<compile_context>
chip_gen: v6e
topology: v6e:2x2x1
jax: 0.10.0
libtpu: 0.0.40
codegen_flags: <defaults>
</compile_context>

<pallas_src>
import jax
import jax.numpy as jnp
from jax.experimental import pallas as pl
from jax.experimental.pallas import tpu as pltpu

N, C, H, W = 2, 8, 16, 16      # inplanes == planes == C (required when downsample=None)
NH = N * H                     # 32 rows  (sublane-major axis)
WC = W * C                     # 128 lanes (fully lane-dense)
EPS = 1e-5                     # nn.BatchNorm2d default eps
_PREC = jax.lax.Precision.HIGHEST   # full-f32 MXU accumulation (reference parity)


def basic_block_kernel(x_ref, t1_ref, g1_ref, b1_ref, t2_ref, g2_ref, b2_ref,
                       pool_ref, out_ref):
    x = x_ref[...]                                   # (NH, WC) packed activation
    pool = pool_ref[...]                             # (WC, WC) channel pool/broadcast

    # Row-within-image index for masking the vertical halo rows (padding=1).
    row = jax.lax.broadcasted_iota(jnp.int32, (NH, WC), 0)
    h_in_img = row % H
    not_top = h_in_img != 0
    not_bot = h_in_img != (H - 1)

    def conv3x3(a, t_ref):
        # Vertical taps via sublane roll + edge masks (no pad scratch);
        # horizontal taps are folded into the banded (WC, WC) weight matrices.
        a_up = jnp.where(not_top, pltpu.roll(a, 1, 0), 0.0)        # x[n, h-1, :]
        a_dn = jnp.where(not_bot, pltpu.roll(a, NH - 1, 0), 0.0)   # x[n, h+1, :]
        out = jnp.dot(a_up, t_ref[0], precision=_PREC,
                      preferred_element_type=jnp.float32)
        out = out + jnp.dot(a, t_ref[1], precision=_PREC,
                            preferred_element_type=jnp.float32)
        out = out + jnp.dot(a_dn, t_ref[2], precision=_PREC,
                            preferred_element_type=jnp.float32)
        return out

    def batchnorm(o, gamma, beta):
        # Single-pass batch stats: var = E[x^2] - mean^2; `pool` sums across the
        # W replicas of each channel and broadcasts the totals back to all lanes.
        s = jnp.sum(o, axis=0, keepdims=True)                      # (1, WC)
        ss = jnp.sum(o * o, axis=0, keepdims=True)                 # (1, WC)
        tot = jnp.dot(s, pool, precision=_PREC,
                      preferred_element_type=jnp.float32)          # per-channel sum
        tot_sq = jnp.dot(ss, pool, precision=_PREC,
                         preferred_element_type=jnp.float32)       # per-channel sumsq
        inv_n = 1.0 / float(N * H * W)
        mean = tot * inv_n
        var = tot_sq * inv_n - mean * mean                         # biased variance
        scale = gamma * jax.lax.rsqrt(var + EPS)                   # folded scale
        bias = beta - mean * scale                                 # folded bias
        return o * scale + bias                                    # one mul + one add

    out = conv3x3(x, t1_ref)                                       # conv1
    out = jnp.maximum(batchnorm(out, g1_ref[...], b1_ref[...]), 0.0)   # bn1 + relu
    out = conv3x3(out, t2_ref)                                     # conv2
    out = batchnorm(out, g2_ref[...], b2_ref[...])                 # bn2
    out_ref[...] = jnp.maximum(out + x, 0.0)                       # residual + relu


# ----------------------------- wrapper (glue) -------------------------------

def _banded_weights(w_hwio):
    """(3, 3, Cin, Cout) HWIO -> (3, W*Cin, W*Cout) block-banded Toeplitz mats."""
    cin, cout = w_hwio.shape[2], w_hwio.shape[3]
    w_in = jnp.arange(W)[:, None]
    w_out = jnp.arange(W)[None, :]
    dx = w_in - w_out + 1                                          # (W, W)
    valid = (dx >= 0) & (dx <= 2)
    taps = w_hwio[:, jnp.clip(dx, 0, 2)]                           # (3, W, W, Cin, Cout)
    taps = jnp.where(valid[None, :, :, None, None], taps, 0.0)
    taps = jnp.transpose(taps, (0, 1, 3, 2, 4))                    # (3, W, Cin, W, Cout)
    return taps.reshape(3, W * cin, W * cout)


def _channel_pool():
    """(WC, WC) matrix: pool[i, j] = 1 if i % C == j % C (sum + broadcast over W)."""
    lane = jnp.arange(WC)
    return (lane[:, None] % C == lane[None, :] % C).astype(jnp.float32)


def _tile_channels(v):
    """(C,) per-channel param -> (1, WC) lane-dense layout (value at lane w*C+c)."""
    return jnp.tile(v.reshape(C), W).reshape(1, WC)


def basic_block(x_nchw, w1, g1, b1, w2, g2, b2):
    # NCHW (PyTorch) -> NHWC -> lane-dense (N*H, W*C) slab.
    x = jnp.transpose(x_nchw, (0, 2, 3, 1)).astype(jnp.float32)
    x2d = x.reshape(NH, WC)

    t1 = _banded_weights(w1)                                       # built once in XLA
    t2 = _banded_weights(w2)
    pool = _channel_pool()

    vmem = pl.BlockSpec(memory_space=pltpu.MemorySpace.VMEM)
    out2d = pl.pallas_call(
        basic_block_kernel,
        out_shape=jax.ShapeDtypeStruct((NH, WC), jnp.float32),     # lane-dense output
        in_specs=[vmem] * 8,
        out_specs=vmem,
    )(x2d, t1, _tile_channels(g1), _tile_channels(b1),
      t2, _tile_channels(g2), _tile_channels(b2), pool)

    out = out2d.reshape(N, H, W, C)
    return jnp.transpose(out, (0, 3, 1, 2))                        # back to NCHW


# ------------------------------- reference ----------------------------------

def _reference(x_nchw, w1, g1, b1, w2, g2, b2):
    """Pure-JAX NHWC reference mirroring the PyTorch forward (training-mode BN)."""
    x = jnp.transpose(x_nchw, (0, 2, 3, 1)).astype(jnp.float32)

    def conv(a, w):
        return jax.lax.conv_general_dilated(
            a, w, window_strides=(1, 1), padding=((1, 1), (1, 1)),
            dimension_numbers=('NHWC', 'HWIO', 'NHWC'), precision=_PREC)

    def bn(o, g, b):
        m = jnp.mean(o, axis=(0, 1, 2), keepdims=True)
        v = jnp.mean((o - m) ** 2, axis=(0, 1, 2), keepdims=True)
        return ((o - m) / jnp.sqrt(v + EPS)) * g.reshape(1, 1, 1, C) + b.reshape(1, 1, 1, C)

    out = jnp.maximum(bn(conv(x, w1), g1, b1), 0.0)
    out = bn(conv(out, w2), g2, b2)
    out = jnp.maximum(out + x, 0.0)
    return jnp.transpose(out, (0, 3, 1, 2))


if __name__ == "__main__":
    key = jax.random.PRNGKey(0)
    kx, kw1, kw2, kg1, kb1, kg2, kb2 = jax.random.split(key, 7)

    x = jax.random.normal(kx, (N, C, H, W), jnp.float32)           # PyTorch-style NCHW

    # conv weights: PyTorch layout (Cout, Cin, 3, 3) -> HWIO (3, 3, Cin, Cout)
    w1 = jnp.transpose(jax.random.normal(kw1, (C, C, 3, 3), jnp.float32) * 0.1,
                       (2, 3, 1, 0))
    w2 = jnp.transpose(jax.random.normal(kw2, (C, C, 3, 3), jnp.float32) * 0.1,
                       (2, 3, 1, 0))
    # BatchNorm affine params (per channel)
    g1 = 1.0 + 0.1 * jax.random.normal(kg1, (C,), jnp.float32)
    b1 = 0.1 * jax.random.normal(kb1, (C,), jnp.float32)
    g2 = 1.0 + 0.1 * jax.random.normal(kg2, (C,), jnp.float32)
    b2 = 0.1 * jax.random.normal(kb2, (C,), jnp.float32)

    out = jax.block_until_ready(basic_block(x, w1, g1, b1, w2, g2, b2))

    ref = _reference(x, w1, g1, b1, w2, g2, b2)
    assert out.shape == (N, C, H, W)
    assert jnp.allclose(out, ref, atol=1e-3, rtol=1e-3), "mismatch vs reference"

    print("KERNEL_OK")
</pallas_src>

<mosaic_0001>
module attributes {stable_mosaic.version = 11 : i64} {
  func.func @basic_block_kernel(%arg0: memref<32x128xf32, #tpu.memory_space<vmem>>, %arg1: memref<3x128x128xf32, #tpu.memory_space<vmem>>, %arg2: memref<1x128xf32, #tpu.memory_space<vmem>>, %arg3: memref<1x128xf32, #tpu.memory_space<vmem>>, %arg4: memref<3x128x128xf32, #tpu.memory_space<vmem>>, %arg5: memref<1x128xf32, #tpu.memory_space<vmem>>, %arg6: memref<1x128xf32, #tpu.memory_space<vmem>>, %arg7: memref<128x128xf32, #tpu.memory_space<vmem>>, %arg8: memref<32x128xf32, #tpu.memory_space<vmem>>) attributes {dimension_semantics = [], scalar_prefetch = 0 : i64, scratch_operands = 0 : i64, tpu.core_type = #tpu.core_type<tc>} {
    %c0 = arith.constant 0 : index
    %c0_0 = arith.constant 0 : index
    %0 = vector.load %arg0[%c0, %c0_0] : memref<32x128xf32, #tpu.memory_space<vmem>>, vector<32x128xf32>
    %c0_1 = arith.constant 0 : index
    %c0_2 = arith.constant 0 : index
    %1 = vector.load %arg7[%c0_1, %c0_2] : memref<128x128xf32, #tpu.memory_space<vmem>>, vector<128x128xf32>
    %2 = tpu.iota {dimensions = array<i32: 0>} : vector<32x128xi32>
    %c16_i32 = arith.constant 16 : i32
    %c0_i32 = arith.constant 0 : i32
    %3 = arith.cmpi eq, %c16_i32, %c0_i32 : i32
    %c1_i32 = arith.constant 1 : i32
    %4 = arith.select %3, %c1_i32, %c16_i32 : i32
    %5 = vector.broadcast %4 : i32 to vector<32x128xi32>
    %6 = arith.remsi %2, %5 : vector<32x128xi32>
    %c0_i32_3 = arith.constant 0 : i32
    %7 = vector.broadcast %c0_i32_3 : i32 to vector<32x128xi32>
    %8 = arith.cmpi ne, %6, %7 : vector<32x128xi32>
    %c0_i32_4 = arith.constant 0 : i32
    %9 = vector.broadcast %c0_i32_4 : i32 to vector<32x128xi32>
    %10 = arith.cmpi slt, %6, %9 : vector<32x128xi32>
    %c0_i32_5 = arith.constant 0 : i32
    %11 = arith.cmpi slt, %4, %c0_i32_5 : i32
    %12 = vector.broadcast %11 : i1 to vector<32x128xi1>
    %13 = vector.broadcast %12 : vector<32x128xi1> to vector<32x128xi1>
    %14 = arith.xori %10, %13 : vector<32x128xi1>
    %15 = arith.andi %14, %8 : vector<32x128xi1>
    %16 = vector.broadcast %4 : i32 to vector<32x128xi32>
    %17 = arith.addi %6, %16 : vector<32x128xi32>
    %18 = arith.select %15, %17, %6 : vector<32x128xi1>, vector<32x128xi32>
    %c0_i32_6 = arith.constant 0 : i32
    %19 = vector.broadcast %c0_i32_6 : i32 to vector<32x128xi32>
    %20 = arith.cmpi ne, %18, %19 : vector<32x128xi32>
    %c15_i32 = arith.constant 15 : i32
    %21 = vector.broadcast %c15_i32 : i32 to vector<32x128xi32>
    %22 = arith.cmpi ne, %18, %21 : vector<32x128xi32>
    %c1_i32_7 = arith.constant 1 : i32
    %23 = tpu.dynamic_rotate %0 by %c1_i32_7 dim 0 : vector<32x128xf32>, i32 -> vector<32x128xf32>
    %cst = arith.constant 0.000000e+00 : f32
    %24 = vector.broadcast %cst : f32 to vector<32x128xf32>
    %25 = arith.select %20, %23, %24 : vector<32x128xi1>, vector<32x128xf32>
    %c31_i32 = arith.constant 31 : i32
    %26 = tpu.dynamic_rotate %0 by %c31_i32 dim 0 : vector<32x128xf32>, i32 -> vector<32x128xf32>
    %cst_8 = arith.constant 0.000000e+00 : f32
    %27 = vector.broadcast %cst_8 : f32 to vector<32x128xf32>
    %28 = arith.select %22, %26, %27 : vector<32x128xi1>, vector<32x128xf32>
    %c0_9 = arith.constant 0 : index
    %c0_10 = arith.constant 0 : index
    %c0_11 = arith.constant 0 : index
    %29 = vector.load %arg1[%c0_9, %c0_10, %c0_11] : memref<3x128x128xf32, #tpu.memory_space<vmem>>, vector<1x128x128xf32>
    %30 = vector.shape_cast %29 : vector<1x128x128xf32> to vector<128x128xf32>
    %cst_12 = arith.constant dense<0.000000e+00> : vector<32x128xf32>
    %31 = tpu.matmul %25, %30, %cst_12 {dimension_numbers = #tpu.dot_dimension_numbers<[1], [0], [0], [1], [0, 0, 1, 1], [], []>, precision = #tpu.contract_precision<fp32>} : vector<32x128xf32>, vector<128x128xf32>, vector<32x128xf32> -> vector<32x128xf32>
    %c1 = arith.constant 1 : index
    %c0_13 = arith.constant 0 : index
    %c0_14 = arith.constant 0 : index
    %32 = vector.load %arg1[%c1, %c0_13, %c0_14] : memref<3x128x128xf32, #tpu.memory_space<vmem>>, vector<1x128x128xf32>
    %33 = vector.shape_cast %32 : vector<1x128x128xf32> to vector<128x128xf32>
    %cst_15 = arith.constant dense<0.000000e+00> : vector<32x128xf32>
    %34 = tpu.matmul %0, %33, %cst_15 {dimension_numbers = #tpu.dot_dimension_numbers<[1], [0], [0], [1], [0, 0, 1, 1], [], []>, precision = #tpu.contract_precision<fp32>} : vector<32x128xf32>, vector<128x128xf32>, vector<32x128xf32> -> vector<32x128xf32>
    %35 = arith.addf %31, %34 : vector<32x128xf32>
    %c2 = arith.constant 2 : index
    %c0_16 = arith.constant 0 : index
    %c0_17 = arith.constant 0 : index
    %36 = vector.load %arg1[%c2, %c0_16, %c0_17] : memref<3x128x128xf32, #tpu.memory_space<vmem>>, vector<1x128x128xf32>
    %37 = vector.shape_cast %36 : vector<1x128x128xf32> to vector<128x128xf32>
    %cst_18 = arith.constant dense<0.000000e+00> : vector<32x128xf32>
    %38 = tpu.matmul %28, %37, %cst_18 {dimension_numbers = #tpu.dot_dimension_numbers<[1], [0], [0], [1], [0, 0, 1, 1], [], []>, precision = #tpu.contract_precision<fp32>} : vector<32x128xf32>, vector<128x128xf32>, vector<32x128xf32> -> vector<32x128xf32>
    %39 = arith.addf %35, %38 : vector<32x128xf32>
    %c0_19 = arith.constant 0 : index
    %c0_20 = arith.constant 0 : index
    %40 = vector.load %arg2[%c0_19, %c0_20] : memref<1x128xf32, #tpu.memory_space<vmem>>, vector<1x128xf32>
    %c0_21 = arith.constant 0 : index
    %c0_22 = arith.constant 0 : index
    %41 = vector.load %arg3[%c0_21, %c0_22] : memref<1x128xf32, #tpu.memory_space<vmem>>, vector<1x128xf32>
    %cst_23 = arith.constant dense<0.000000e+00> : vector<128xf32>
    %42 = vector.multi_reduction <add>, %39, %cst_23 [0] : vector<32x128xf32> to vector<128xf32>
    %43 = vector.shape_cast %42 : vector<128xf32> to vector<1x128xf32>
    %44 = arith.mulf %39, %39 : vector<32x128xf32>
    %cst_24 = arith.constant dense<0.000000e+00> : vector<128xf32>
    %45 = vector.multi_reduction <add>, %44, %cst_24 [0] : vector<32x128xf32> to vector<128xf32>
    %46 = vector.shape_cast %45 : vector<128xf32> to vector<1x128xf32>
    %cst_25 = arith.constant dense<0.000000e+00> : vector<1x128xf32>
    %47 = tpu.matmul %43, %1, %cst_25 {dimension_numbers = #tpu.dot_dimension_numbers<[1], [0], [0], [1], [0, 0, 1, 1], [], []>, precision = #tpu.contract_precision<fp32>} : vector<1x128xf32>, vector<128x128xf32>, vector<1x128xf32> -> vector<1x128xf32>
    %cst_26 = arith.constant dense<0.000000e+00> : vector<1x128xf32>
    %48 = tpu.matmul %46, %1, %cst_26 {dimension_numbers = #tpu.dot_dimension_numbers<[1], [0], [0], [1], [0, 0, 1, 1], [], []>, precision = #tpu.contract_precision<fp32>} : vector<1x128xf32>, vector<128x128xf32>, vector<1x128xf32> -> vector<1x128xf32>
    %cst_27 = arith.constant 0.001953125 : f32
    %49 = vector.broadcast %cst_27 : f32 to vector<1x128xf32>
    %50 = arith.mulf %47, %49 : vector<1x128xf32>
    %cst_28 = arith.constant 0.001953125 : f32
    %51 = vector.broadcast %cst_28 : f32 to vector<1x128xf32>
    %52 = arith.mulf %48, %51 : vector<1x128xf32>
    %53 = arith.mulf %50, %50 : vector<1x128xf32>
    %54 = arith.subf %52, %53 : vector<1x128xf32>
    %cst_29 = arith.constant 9.99999974E-6 : f32
    %55 = vector.broadcast %cst_29 : f32 to vector<1x128xf32>
    %56 = arith.addf %54, %55 : vector<1x128xf32>
    %57 = math.rsqrt %56 : vector<1x128xf32>
    %58 = arith.mulf %40, %57 : vector<1x128xf32>
    %59 = arith.mulf %50, %58 : vector<1x128xf32>
    %60 = arith.subf %41, %59 : vector<1x128xf32>
    %61 = vector.broadcast %58 : vector<1x128xf32> to vector<32x128xf32>
    %62 = arith.mulf %39, %61 : vector<32x128xf32>
    %63 = vector.broadcast %60 : vector<1x128xf32> to vector<32x128xf32>
    %64 = arith.addf %62, %63 : vector<32x128xf32>
    %cst_30 = arith.constant 0.000000e+00 : f32
    %65 = vector.broadcast %cst_30 : f32 to vector<32x128xf32>
    %66 = arith.maximumf %64, %65 : vector<32x128xf32>
    %c1_i32_31 = arith.constant 1 : i32
    %67 = tpu.dynamic_rotate %66 by %c1_i32_31 dim 0 : vector<32x128xf32>, i32 -> vector<32x128xf32>
    %cst_32 = arith.constant 0.000000e+00 : f32
    %68 = vector.broadcast %cst_32 : f32 to vector<32x128xf32>
    %69 = arith.select %20, %67, %68 : vector<32x128xi1>, vector<32x128xf32>
    %c31_i32_33 = arith.constant 31 : i32
    %70 = tpu.dynamic_rotate %66 by %c31_i32_33 dim 0 : vector<32x128xf32>, i32 -> vector<32x128xf32>
    %cst_34 = arith.constant 0.000000e+00 : f32
    %71 = vector.broadcast %cst_34 : f32 to vector<32x128xf32>
    %72 = arith.select %22, %70, %71 : vector<32x128xi1>, vector<32x128xf32>
    %c0_35 = arith.constant 0 : index
    %c0_36 = arith.constant 0 : index
    %c0_37 = arith.constant 0 : index
    %73 = vector.load %arg4[%c0_35, %c0_36, %c0_37] : memref<3x128x128xf32, #tpu.memory_space<vmem>>, vector<1x128x128xf32>
    %74 = vector.shape_cast %73 : vector<1x128x128xf32> to vector<128x128xf32>
    %cst_38 = arith.constant dense<0.000000e+00> : vector<32x128xf32>
    %75 = tpu.matmul %69, %74, %cst_38 {dimension_numbers = #tpu.dot_dimension_numbers<[1], [0], [0], [1], [0, 0, 1, 1], [], []>, precision = #tpu.contract_precision<fp32>} : vector<32x128xf32>, vector<128x128xf32>, vector<32x128xf32> -> vector<32x128xf32>
    %c1_39 = arith.constant 1 : index
    %c0_40 = arith.constant 0 : index
    %c0_41 = arith.constant 0 : index
    %76 = vector.load %arg4[%c1_39, %c0_40, %c0_41] : memref<3x128x128xf32, #tpu.memory_space<vmem>>, vector<1x128x128xf32>
    %77 = vector.shape_cast %76 : vector<1x128x128xf32> to vector<128x128xf32>
    %cst_42 = arith.constant dense<0.000000e+00> : vector<32x128xf32>
    %78 = tpu.matmul %66, %77, %cst_42 {dimension_numbers = #tpu.dot_dimension_numbers<[1], [0], [0], [1], [0, 0, 1, 1], [], []>, precision = #tpu.contract_precision<fp32>} : vector<32x128xf32>, vector<128x128xf32>, vector<32x128xf32> -> vector<32x128xf32>
    %79 = arith.addf %75, %78 : vector<32x128xf32>
    %c2_43 = arith.constant 2 : index
    %c0_44 = arith.constant 0 : index
    %c0_45 = arith.constant 0 : index
    %80 = vector.load %arg4[%c2_43, %c0_44, %c0_45] : memref<3x128x128xf32, #tpu.memory_space<vmem>>, vector<1x128x128xf32>
    %81 = vector.shape_cast %80 : vector<1x128x128xf32> to vector<128x128xf32>
    %cst_46 = arith.constant dense<0.000000e+00> : vector<32x128xf32>
    %82 = tpu.matmul %72, %81, %cst_46 {dimension_numbers = #tpu.dot_dimension_numbers<[1], [0], [0], [1], [0, 0, 1, 1], [], []>, precision = #tpu.contract_precision<fp32>} : vector<32x128xf32>, vector<128x128xf32>, vector<32x128xf32> -> vector<32x128xf32>
    %83 = arith.addf %79, %82 : vector<32x128xf32>
    %c0_47 = arith.constant 0 : index
    %c0_48 = arith.constant 0 : index
    %84 = vector.load %arg5[%c0_47, %c0_48] : memref<1x128xf32, #tpu.memory_space<vmem>>, vector<1x128xf32>
    %c0_49 = arith.constant 0 : index
    %c0_50 = arith.constant 0 : index
    %85 = vector.load %arg6[%c0_49, %c0_50] : memref<1x128xf32, #tpu.memory_space<vmem>>, vector<1x128xf32>
    %cst_51 = arith.constant dense<0.000000e+00> : vector<128xf32>
    %86 = vector.multi_reduction <add>, %83, %cst_51 [0] : vector<32x128xf32> to vector<128xf32>
    %87 = vector.shape_cast %86 : vector<128xf32> to vector<1x128xf32>
    %88 = arith.mulf %83, %83 : vector<32x128xf32>
    %cst_52 = arith.constant dense<0.000000e+00> : vector<128xf32>
    %89 = vector.multi_reduction <add>, %88, %cst_52 [0] : vector<32x128xf32> to vector<128xf32>
    %90 = vector.shape_cast %89 : vector<128xf32> to vector<1x128xf32>
    %cst_53 = arith.constant dense<0.000000e+00> : vector<1x128xf32>
    %91 = tpu.matmul %87, %1, %cst_53 {dimension_numbers = #tpu.dot_dimension_numbers<[1], [0], [0], [1], [0, 0, 1, 1], [], []>, precision = #tpu.contract_precision<fp32>} : vector<1x128xf32>, vector<128x128xf32>, vector<1x128xf32> -> vector<1x128xf32>
    %cst_54 = arith.constant dense<0.000000e+00> : vector<1x128xf32>
    %92 = tpu.matmul %90, %1, %cst_54 {dimension_numbers = #tpu.dot_dimension_numbers<[1], [0], [0], [1], [0, 0, 1, 1], [], []>, precision = #tpu.contract_precision<fp32>} : vector<1x128xf32>, vector<128x128xf32>, vector<1x128xf32> -> vector<1x128xf32>
    %cst_55 = arith.constant 0.001953125 : f32
    %93 = vector.broadcast %cst_55 : f32 to vector<1x128xf32>
    %94 = arith.mulf %91, %93 : vector<1x128xf32>
    %cst_56 = arith.constant 0.001953125 : f32
    %95 = vector.broadcast %cst_56 : f32 to vector<1x128xf32>
    %96 = arith.mulf %92, %95 : vector<1x128xf32>
    %97 = arith.mulf %94, %94 : vector<1x128xf32>
    %98 = arith.subf %96, %97 : vector<1x128xf32>
    %cst_57 = arith.constant 9.99999974E-6 : f32
    %99 = vector.broadcast %cst_57 : f32 to vector<1x128xf32>
    %100 = arith.addf %98, %99 : vector<1x128xf32>
    %101 = math.rsqrt %100 : vector<1x128xf32>
    %102 = arith.mulf %84, %101 : vector<1x128xf32>
    %103 = arith.mulf %94, %102 : vector<1x128xf32>
    %104 = arith.subf %85, %103 : vector<1x128xf32>
    %105 = vector.broadcast %102 : vector<1x128xf32> to vector<32x128xf32>
    %106 = arith.mulf %83, %105 : vector<32x128xf32>
    %107 = vector.broadcast %104 : vector<1x128xf32> to vector<32x128xf32>
    %108 = arith.addf %106, %107 : vector<32x128xf32>
    %109 = arith.addf %108, %0 : vector<32x128xf32>
    %cst_58 = arith.constant 0.000000e+00 : f32
    %110 = vector.broadcast %cst_58 : f32 to vector<32x128xf32>
    %111 = arith.maximumf %109, %110 : vector<32x128xf32>
    %c0_59 = arith.constant 0 : index
    %c0_60 = arith.constant 0 : index
    %112 = vector.load %arg8[%c0_59, %c0_60] : memref<32x128xf32, #tpu.memory_space<vmem>>, vector<32x128xf32>
    tpu.vector_store %arg8[%c0_59, %c0_60], %111 {strides = array<i32>} : memref<32x128xf32, #tpu.memory_space<vmem>>, vector<32x128xf32>,
    return
  }
}

</mosaic_0001>

<llo_original>
// kernel: tpu_custom_call.1
$region0: #{tpu_custom_call.1}
  #allocation0 [shape = 'u32[]', space=smem, size = 0x4, offset = 0x4, fixed_abs, tag = 'smem constant byte address 0x4 - core index']
  #allocation1 [shape = 'u32[144,128]{1,0:T(1,128)}', space=vmem, size = 0x12000, scoped, tag = 'internal scratch']
  %s0 = inlined_call_operand.hbm [shape: f32[32,128], index: 0, kind: input, shape index: {}]
  %s1 = inlined_call_operand.hbm [shape: f32[3,128,128], index: 1, kind: input, shape index: {}]
  %s2 = inlined_call_operand.vmem [shape: f32[1,128], index: 2, kind: input, shape index: {}]
  %s3 = inlined_call_operand.vmem [shape: f32[1,128], index: 3, kind: input, shape index: {}]
  %s4 = inlined_call_operand.hbm [shape: f32[3,128,128], index: 4, kind: input, shape index: {}]
  %s5 = inlined_call_operand.vmem [shape: f32[1,128], index: 5, kind: input, shape index: {}]
  %s6 = inlined_call_operand.vmem [shape: f32[1,128], index: 6, kind: input, shape index: {}]
  %s7 = inlined_call_operand.hbm [shape: f32[128,128], index: 7, kind: input, shape index: {}]
  %s8 = inlined_call_operand.hbm [shape: f32[32,128], index: 8, kind: output, shape index: {}]
  %s9 = sld [smem:[#allocation0]]
  $region58: #{tpu_custom_call.1} parent=0
    _
  %s11 = ssub.s32 1, %s9
  %s12 = scalar_select 0, %s11, %s9
  $region1: #{tpu_custom_call.1} parent=0
    #allocation2 [shape = 'u8[16384]{0}', space=vmem, size = 0x4000, scoped, tag = 'input window, operand 0, single buffered']
    #allocation3 [shape = 's32[1]{0}', space=sflag, size = 0x4, scoped, tag = 'scoped memory for tpu_custom_call.1']
    #allocation4 [shape = 's32[1]{0}', space=sflag, size = 0x4, scoped, tag = 'scoped memory for tpu_custom_call.1']
    #allocation5 [shape = 'u8[196608]{0}', space=vmem, size = 0x30000, scoped, tag = 'input window, operand 1, single buffered']
    #allocation6 [shape = 's32[1]{0}', space=sflag, size = 0x4, scoped, tag = 'scoped memory for tpu_custom_call.1']
    #allocation7 [shape = 'u8[196608]{0}', space=vmem, size = 0x30000, scoped, tag = 'input window, operand 4, single buffered']
    #allocation8 [shape = 'u8[65536]{0}', space=vmem, size = 0x10000, scoped, tag = 'input window, operand 7, single buffered']
    #allocation9 [shape = 's32[1]{0}', space=sflag, size = 0x4, scoped, tag = 'scoped memory for tpu_custom_call.1']
    #allocation10 [shape = 'u8[16384]{0}', space=vmem, size = 0x4000, scoped, tag = 'output window, operand 0, single buffered']
    %13 = vsyncpa [#allocation3], 0
    %14 = vsyncpa [#allocation6], 0
    %15 = vsyncpa [#allocation9], 0
    %16 = vsyncpa [#allocation4], 0
    // Predicated region
    $region2: #{tpu_custom_call.1} parent=1 // pred_check
      _
    $region3: #{tpu_custom_call.1} parent=1 // pred_check_branch
      %18 = sbr.rel (0) target = $region5
    $region4: #{tpu_custom_call.1} parent=1 // pred_region
      %s20 = ssub.s32 512, 512
      %21 = vsyncadd [#allocation3], %s20
      %s22 = sshll.u32 [#allocation2], 4
      %s23 = int_to_ptr.vmem [resolvable:$true] %s22
      %28 = dma.hbm_to_vmem [thread:$0]  %s0, 512, %s23, [#allocation3], 128, 128, 8
    $region5: #{tpu_custom_call.1} parent=1 // pred_fallthru
      _
    // Predicated region
    $region6: #{tpu_custom_call.1} parent=1 // pred_check
      _
    $region7: #{tpu_custom_call.1} parent=1 // pred_check_branch
      %30 = sbr.rel (0) target = $region9
    $region8: #{tpu_custom_call.1} parent=1 // pred_region
      %s32 = ssub.s32 6144, 6144
      %33 = vsyncadd [#allocation6], %s32
      %s34 = sshll.u32 [#allocation5], 4
      %s35 = int_to_ptr.vmem [resolvable:$true] %s34
      %40 = dma.hbm_to_vmem [thread:$0]  %s1, 6144, %s35, [#allocation6], 128, 128, 8
    $region9: #{tpu_custom_call.1} parent=1 // pred_fallthru
      _
    // Predicated region
    $region10: #{tpu_custom_call.1} parent=1 // pred_check
      _
    $region11: #{tpu_custom_call.1} parent=1 // pred_check_branch
      %42 = sbr.rel (0) target = $region13
    $region12: #{tpu_custom_call.1} parent=1 // pred_region
      _
    $region13: #{tpu_custom_call.1} parent=1 // pred_fallthru
      _
    // Predicated region
    $region14: #{tpu_custom_call.1} parent=1 // pred_check
      _
    $region15: #{tpu_custom_call.1} parent=1 // pred_check_branch
      %44 = sbr.rel (0) target = $region17
    $region16: #{tpu_custom_call.1} parent=1 // pred_region
      _
    $region17: #{tpu_custom_call.1} parent=1 // pred_fallthru
      _
    // Predicated region
    $region18: #{tpu_custom_call.1} parent=1 // pred_check
      _
    $region19: #{tpu_custom_call.1} parent=1 // pred_check_branch
      %46 = sbr.rel (0) target = $region21
    $region20: #{tpu_custom_call.1} parent=1 // pred_region
      %s48 = ssub.s32 6144, 6144
      %49 = vsyncadd [#allocation6], %s48
      %s50 = sshll.u32 [#allocation7], 4
      %s51 = int_to_ptr.vmem [resolvable:$true] %s50
      %56 = dma.hbm_to_vmem [thread:$0]  %s4, 6144, %s51, [#allocation6], 128, 128, 8
    $region21: #{tpu_custom_call.1} parent=1 // pred_fallthru
      _
    // Predicated region
    $region22: #{tpu_custom_call.1} parent=1 // pred_check
      _
    $region23: #{tpu_custom_call.1} parent=1 // pred_check_branch
      %58 = sbr.rel (0) target = $region25
    $region24: #{tpu_custom_call.1} parent=1 // pred_region
      _
    $region25: #{tpu_custom_call.1} parent=1 // pred_fallthru
      _
    // Predicated region
    $region26: #{tpu_custom_call.1} parent=1 // pred_check
      _
    $region27: #{tpu_custom_call.1} parent=1 // pred_check_branch
      %60 = sbr.rel (0) target = $region29
    $region28: #{tpu_custom_call.1} parent=1 // pred_region
      _
    $region29: #{tpu_custom_call.1} parent=1 // pred_fallthru
      _
    // Predicated region
    $region30: #{tpu_custom_call.1} parent=1 // pred_check
      _
    $region31: #{tpu_custom_call.1} parent=1 // pred_check_branch
      %62 = sbr.rel (0) target = $region33
    $region32: #{tpu_custom_call.1} parent=1 // pred_region
      %s64 = ssub.s32 2048, 2048
      %65 = vsyncadd [#allocation9], %s64
      %s66 = sshll.u32 [#allocation8], 4
      %s67 = int_to_ptr.vmem [resolvable:$true] %s66
      %72 = dma.hbm_to_vmem [thread:$0]  %s7, 2048, %s67, [#allocation9], 128, 128, 8
    $region33: #{tpu_custom_call.1} parent=1 // pred_fallthru
      _
    // Predicated region
    $region34: #{tpu_custom_call.1} parent=1 // pred_check
      _
    $region35: #{tpu_custom_call.1} parent=1 // pred_check_branch
      %74 = sbr.rel (0) target = $region37
    $region36: #{tpu_custom_call.1} parent=1 // pred_region
      %75 = dma.done [#allocation3], 512
    $region37: #{tpu_custom_call.1} parent=1 // pred_fallthru
      _
    // Predicated region
    $region38: #{tpu_custom_call.1} parent=1 // pred_check
      _
    $region39: #{tpu_custom_call.1} parent=1 // pred_check_branch
      %77 = sbr.rel (0) target = $region41
    $region40: #{tpu_custom_call.1} parent=1 // pred_region
      %78 = dma.done [#allocation6], 6144
    $region41: #{tpu_custom_call.1} parent=1 // pred_fallthru
      _
    // Predicated region
    $region42: #{tpu_custom_call.1} parent=1 // pred_check
      _
    $region43: #{tpu_custom_call.1} parent=1 // pred_check_branch
      %80 = sbr.rel (0) target = $region45
    $region44: #{tpu_custom_call.1} parent=1 // pred_region
      %81 = dma.done [#allocation6], 6144
    $region45: #{tpu_custom_call.1} parent=1 // pred_fallthru
      _
    // Predicated region
    $region46: #{tpu_custom_call.1} parent=1 // pred_check
      _
    $region47: #{tpu_custom_call.1} parent=1 // pred_check_branch
      %83 = sbr.rel (0) target = $region49
    $region48: #{tpu_custom_call.1} parent=1 // pred_region
      %84 = dma.done [#allocation9], 2048
    $region49: #{tpu_custom_call.1} parent=1 // pred_fallthru
      _
    %v85 = vld [vmem:[#allocation2] sm:$0xff]
    %v86 = vld [vmem:[#allocation2 + $0x8] sm:$0xff]
    %v87 = vld [vmem:[#allocation2 + $0x10] sm:$0xff]
    %v88 = vld [vmem:[#allocation2 + $0x18] sm:$0xff]
    %v89 = vld [vmem:[#allocation8] sm:$0xff]
    %v90 = vld [vmem:[#allocation8 + $0x8] sm:$0xff]
    %v91 = vld [vmem:[#allocation8 + $0x10] sm:$0xff]
    %v92 = vld [vmem:[#allocation8 + $0x18] sm:$0xff]
    %v93 = vld [vmem:[#allocation8 + $0x20] sm:$0xff]
    %v94 = vld [vmem:[#allocation8 + $0x28] sm:$0xff]
    %v95 = vld [vmem:[#allocation8 + $0x30] sm:$0xff]
    %v96 = vld [vmem:[#allocation8 + $0x38] sm:$0xff]
    %v97 = vld [vmem:[#allocation8 + $0x40] sm:$0xff]
    %v98 = vld [vmem:[#allocation8 + $0x48] sm:$0xff]
    %v99 = vld [vmem:[#allocation8 + $0x50] sm:$0xff]
    %v100 = vld [vmem:[#allocation8 + $0x58] sm:$0xff]
    %v101 = vld [vmem:[#allocation8 + $0x60] sm:$0xff]
    %v102 = vld [vmem:[#allocation8 + $0x68] sm:$0xff]
    %v103 = vld [vmem:[#allocation8 + $0x70] sm:$0xff]
    %v104 = vld [vmem:[#allocation8 + $0x78] sm:$0xff]
    %v105 = vlaneseq
    %v106 = vshrl.u32 %v105, 7
    %v107 = vadd.s32 %v106, 8
    %v108 = vadd.s32 %v106, 16
    %v109 = vadd.s32 %v106, 24
    %vm110 = vcmp.lt.s32.totalorder %v106, 0
    %v111 = vsub.s32 0, %v106
    %v112 = vsel %vm110, %v111, %v106
    %v113 = vshrl.u32 %v112, 4
    %v114 = vand.u32 %v112, 15
    %v115 = vsub.s32 0, %v114
    %v116 = vsel %vm110, %v115, %v114
    %vm117 = vcmp.lt.s32.totalorder %v107, 0
    %v118 = vsub.s32 0, %v107
    %v119 = vsel %vm117, %v118, %v107
    %v120 = vshrl.u32 %v119, 4
    %v121 = vand.u32 %v119, 15
    %v122 = vsub.s32 0, %v121
    %v123 = vsel %vm117, %v122, %v121
    %vm124 = vcmp.lt.s32.totalorder %v108, 0
    %v125 = vsub.s32 0, %v108
    %v126 = vsel %vm124, %v125, %v108
    %v127 = vshrl.u32 %v126, 4
    %v128 = vand.u32 %v126, 15
    %v129 = vsub.s32 0, %v128
    %v130 = vsel %vm124, %v129, %v128
    %vm131 = vcmp.lt.s32.totalorder %v109, 0
    %v132 = vsub.s32 0, %v109
    %v133 = vsel %vm131, %v132, %v109
    %v134 = vshrl.u32 %v133, 4
    %v135 = vand.u32 %v133, 15
    %v136 = vsub.s32 0, %v135
    %v137 = vsel %vm131, %v136, %v135
    %vm138 = vcmp.ne.s32.totalorder %v116, 0
    %vm139 = vcmp.ne.s32.totalorder %v123, 0
    %vm140 = vcmp.ne.s32.totalorder %v130, 0
    %vm141 = vcmp.ne.s32.totalorder %v137, 0
    %vm142 = vcmp.lt.s32.totalorder %v116, 0
    %vm143 = vcmp.lt.s32.totalorder %v123, 0
    %vm144 = vcmp.lt.s32.totalorder %v130, 0
    %vm145 = vcmp.lt.s32.totalorder %v137, 0
    %vm146 = vmand %vm142, %vm138
    %vm147 = vmand %vm143, %vm139
    %vm148 = vmand %vm144, %vm140
    %vm149 = vmand %vm145, %vm141
    %v150 = vadd.s32 %v116, 16
    %v151 = vadd.s32 %v123, 16
    %v152 = vadd.s32 %v130, 16
    %v153 = vadd.s32 %v137, 16
    %v154 = vsel %vm146, %v150, %v116
    %v155 = vsel %vm147, %v151, %v123
    %v156 = vsel %vm148, %v152, %v130
    %v157 = vsel %vm149, %v153, %v137
    %vm158 = vcmp.ne.s32.totalorder %v154, 0
    %vm159 = vcmp.ne.s32.totalorder %v155, 0
    %vm160 = vcmp.ne.s32.totalorder %v156, 0
    %vm161 = vcmp.ne.s32.totalorder %v157, 0
    %vm162 = vcmp.ne.s32.totalorder %v154, 15
    %vm163 = vcmp.ne.s32.totalorder %v155, 15
    %vm164 = vcmp.ne.s32.totalorder %v156, 15
    %vm165 = vcmp.ne.s32.totalorder %v157, 15
    %v166 = vrot.slane %v85, 7
    %v167 = vrot.slane %v86, 7
    %v168 = vrot.slane %v87, 7
    %v169 = vrot.slane %v88, 7
    %vm170 = vcmp.lt.s32.totalorder %v106, 1
    %v171 = vsel %vm170, %v168, %v169
    %v172 = vsel %vm170, %v167, %v168
    %v173 = vsel %vm170, %v166, %v167
    %v174 = vsel %vm170, %v169, %v166
    %v175 = vsel %vm158, %v174, 0.0
    %v176 = vsel %vm159, %v173, 0.0
    %v177 = vsel %vm160, %v172, 0.0
    %v178 = vsel %vm161, %v171, 0.0
    %v179 = vrot.slane %v85, 1
    %v180 = vrot.slane %v86, 1
    %v181 = vrot.slane %v87, 1
    %v182 = vrot.slane %v88, 1
    %vm183 = vcmp.lt.s32.totalorder %v106, 7
    %v184 = vsel %vm183, %v181, %v182
    %v185 = vsel %vm183, %v180, %v181
    %v186 = vsel %vm183, %v179, %v180
    %v187 = vsel %vm183, %v182, %v179
    %v188 = vsel %vm162, %v186, 0.0
    %v189 = vsel %vm163, %v185, 0.0
    %v190 = vsel %vm164, %v184, 0.0
    %v191 = vsel %vm165, %v187, 0.0
    %v192 = vld [vmem:[#allocation5] sm:$0xff]
    %v193 = vld [vmem:[#allocation5 + $0x8] sm:$0xff]
    %v194 = vld [vmem:[#allocation5 + $0x10] sm:$0xff]
    %v195 = vld [vmem:[#allocation5 + $0x18] sm:$0xff]
    %v196 = vld [vmem:[#allocation5 + $0x20] sm:$0xff]
    %v197 = vld [vmem:[#allocation5 + $0x28] sm:$0xff]
    %v198 = vld [vmem:[#allocation5 + $0x30] sm:$0xff]
    %v199 = vld [vmem:[#allocation5 + $0x38] sm:$0xff]
    %v200 = vld [vmem:[#allocation5 + $0x40] sm:$0xff]
    %v201 = vld [vmem:[#allocation5 + $0x48] sm:$0xff]
    %v202 = vld [vmem:[#allocation5 + $0x50] sm:$0xff]
    %v203 = vld [vmem:[#allocation5 + $0x58] sm:$0xff]
    %v204 = vld [vmem:[#allocation5 + $0x60] sm:$0xff]
    %v205 = vld [vmem:[#allocation5 + $0x68] sm:$0xff]
    %v206 = vld [vmem:[#allocation5 + $0x70] sm:$0xff]
    %v207 = vld [vmem:[#allocation5 + $0x78] sm:$0xff]
    %s208 = scalar_lea.vmem [#allocation5], 128
    %v209 = vld [vmem:[%s208] sm:$0xff]
    %v210 = vld [vmem:[%s208 + $0x8] sm:$0xff]
    %v211 = vld [vmem:[%s208 + $0x10] sm:$0xff]
    %v212 = vld [vmem:[%s208 + $0x18] sm:$0xff]
    %v213 = vld [vmem:[%s208 + $0x20] sm:$0xff]
    %v214 = vld [vmem:[%s208 + $0x28] sm:$0xff]
    %v215 = vld [vmem:[%s208 + $0x30] sm:$0xff]
    %v216 = vld [vmem:[%s208 + $0x38] sm:$0xff]
    %v217 = vld [vmem:[%s208 + $0x40] sm:$0xff]
    %v218 = vld [vmem:[%s208 + $0x48] sm:$0xff]
    %v219 = vld [vmem:[%s208 + $0x50] sm:$0xff]
    %v220 = vld [vmem:[%s208 + $0x58] sm:$0xff]
    %v221 = vld [vmem:[%s208 + $0x60] sm:$0xff]
    %v222 = vld [vmem:[%s208 + $0x68] sm:$0xff]
    %v223 = vld [vmem:[%s208 + $0x70] sm:$0xff]
    %v224 = vld [vmem:[%s208 + $0x78] sm:$0xff]
    %225 = vmatprep.subr.mxu0 0.0
    %v226 = vand.u32 %v224, 4294901760
    %227 = vmatpush1.msra.mxu0 %v226
    %228 = vmatprep.subr.mxu0 0.0
    %v229 = vand.u32 %v223, 4294901760
    %230 = vmatpush1.msra.mxu0 %v229
    %231 = vmatprep.subr.mxu0 0.0
    %v232 = vand.u32 %v222, 4294901760
    %233 = vmatpush1.msra.mxu0 %v232
    %234 = vmatprep.subr.mxu0 0.0
    %v235 = vand.u32 %v221, 4294901760
    %236 = vmatpush1.msra.mxu0 %v235
    %237 = vmatprep.subr.mxu0 0.0
    %v238 = vand.u32 %v220, 4294901760
    %239 = vmatpush1.msra.mxu0 %v238
    %240 = vmatprep.subr.mxu0 0.0
    %v241 = vand.u32 %v219, 4294901760
    %242 = vmatpush1.msra.mxu0 %v241
    %243 = vmatprep.subr.mxu0 0.0
    %v244 = vand.u32 %v218, 4294901760
    %245 = vmatpush1.msra.mxu0 %v244
    %246 = vmatprep.subr.mxu0 0.0
    %v247 = vand.u32 %v217, 4294901760
    %248 = vmatpush1.msra.mxu0 %v247
    %249 = vmatprep.subr.mxu0 0.0
    %v250 = vand.u32 %v216, 4294901760
    %251 = vmatpush1.msra.mxu0 %v250
    %252 = vmatprep.subr.mxu0 0.0
    %v253 = vand.u32 %v215, 4294901760
    %254 = vmatpush1.msra.mxu0 %v253
    %255 = vmatprep.subr.mxu0 0.0
    %v256 = vand.u32 %v214, 4294901760
    %257 = vmatpush1.msra.mxu0 %v256
    %258 = vmatprep.subr.mxu0 0.0
    %v259 = vand.u32 %v213, 4294901760
    %260 = vmatpush1.msra.mxu0 %v259
    %261 = vmatprep.subr.mxu0 0.0
    %v262 = vand.u32 %v212, 4294901760
    %263 = vmatpush1.msra.mxu0 %v262
    %264 = vmatprep.subr.mxu0 0.0
    %v265 = vand.u32 %v211, 4294901760
    %266 = vmatpush1.msra.mxu0 %v265
    %267 = vmatprep.subr.mxu0 0.0
    %v268 = vand.u32 %v210, 4294901760
    %269 = vmatpush1.msra.mxu0 %v268
    %270 = vmatprep.subr.mxu0 0.0
    %v271 = vand.u32 %v209, 4294901760
    %272 = vmatpush1.msra.mxu0 %v271
    %273 = vmatprep.subr.mxu0 0.0
    %274 = vmatpush2.msra.mxu0 0.0
    %275 = vmatprep.subr.mxu0 0.0
    %276 = vmatpush2.msra.mxu0 0.0
    %277 = vmatprep.subr.mxu0 0.0
    %278 = vmatpush2.msra.mxu0 0.0
    %279 = vmatprep.subr.mxu0 0.0
    %280 = vmatpush2.msra.mxu0 0.0
    %281 = vmatprep.subr.mxu0 0.0
    %282 = vmatpush2.msra.mxu0 0.0
    %283 = vmatprep.subr.mxu0 0.0
    %284 = vmatpush2.msra.mxu0 0.0
    %285 = vmatprep.subr.mxu0 0.0
    %286 = vmatpush2.msra.mxu0 0.0
    %287 = vmatprep.subr.mxu0 0.0
    %288 = vmatpush2.msra.mxu0 0.0
    %289 = vmatprep.subr.mxu0 0.0
    %290 = vmatpush2.msra.mxu0 0.0
    %291 = vmatprep.subr.mxu0 0.0
    %292 = vmatpush2.msra.mxu0 0.0
    %293 = vmatprep.subr.mxu0 0.0
    %294 = vmatpush2.msra.mxu0 0.0
    %295 = vmatprep.subr.mxu0 0.0
    %296 = vmatpush2.msra.mxu0 0.0
    %297 = vmatprep.subr.mxu0 0.0
    %298 = vmatpush2.msra.mxu0 0.0
    %299 = vmatprep.subr.mxu0 0.0
    %300 = vmatpush2.msra.mxu0 0.0
    %301 = vmatprep.subr.mxu0 0.0
    %302 = vmatpush2.msra.mxu0 0.0
    %303 = vmatprep.subr.mxu0 0.0
    %304 = vmatpush2.msra.mxu0 0.0
    %305 = vmatprep.mubr.f32.mxu0 0.0
    %v306 = vand.u32 %v85, 4294901760
    %v307 = vsub.f32 %v85, %v306
    %v308 = vand.u32 %v307, 4294901760
    %v309 = vsub.f32 %v307, %v308
    %v310 = vand.u32 %v309, 4294901760
    %311 = vmatmul.mubr.f32.gmra.mxu0 %v310
    %v312 = vpop.f32.mrf.mxu0
    %v313 = vadd.f32 0.0, %v312
    %v314 = vpop.f32.mrf.mxu0
    %315 = vmatprep.mubr.f32.mxu0 0.0
    %v316 = vand.u32 %v86, 4294901760
    %v317 = vsub.f32 %v86, %v316
    %v318 = vand.u32 %v317, 4294901760
    %v319 = vsub.f32 %v317, %v318
    %v320 = vand.u32 %v319, 4294901760
    %321 = vmatmul.mubr.f32.gmra.mxu0 %v320
    %v322 = vpop.f32.mrf.mxu0
    %v323 = vadd.f32 0.0, %v322
    %v324 = vpop.f32.mrf.mxu0
    %325 = vmatprep.mubr.f32.mxu0 0.0
    %v326 = vand.u32 %v87, 4294901760
    %v327 = vsub.f32 %v87, %v326
    %v328 = vand.u32 %v327, 4294901760
    %v329 = vsub.f32 %v327, %v328
    %v330 = vand.u32 %v329, 4294901760
    %331 = vmatmul.mubr.f32.gmra.mxu0 %v330
    %v332 = vpop.f32.mrf.mxu0
    %v333 = vadd.f32 0.0, %v332
    %v334 = vpop.f32.mrf.mxu0
    %335 = vmatprep.mubr.f32.mxu0 0.0
    %v336 = vand.u32 %v88, 4294901760
    %v337 = vsub.f32 %v88, %v336
    %v338 = vand.u32 %v337, 4294901760
    %v339 = vsub.f32 %v337, %v338
    %v340 = vand.u32 %v339, 4294901760
    %341 = vmatmul.mubr.f32.gmra.mxu0 %v340
    %v342 = vpop.f32.mrf.mxu0
    %v343 = vadd.f32 0.0, %v342
    %v344 = vpop.f32.mrf.mxu0
    %345 = vdwg.mxu0
    %346 = vmatprep.subr.mxu0 0.0
    %v347 = vand.u32 %v224, 4294901760
    %v348 = vsub.f32 %v224, %v347
    %v349 = vand.u32 %v348, 4294901760
    %v350 = vsub.f32 %v348, %v349
    %v351 = vand.u32 %v350, 4294901760
    %352 = vmatpush1.msra.mxu0 %v351
    %353 = vmatprep.subr.mxu0 0.0
    %v354 = vand.u32 %v223, 4294901760
    %v355 = vsub.f32 %v223, %v354
    %v356 = vand.u32 %v355, 4294901760
    %v357 = vsub.f32 %v355, %v356
    %v358 = vand.u32 %v357, 4294901760
    %359 = vmatpush1.msra.mxu0 %v358
    %360 = vmatprep.subr.mxu0 0.0
    %v361 = vand.u32 %v222, 4294901760
    %v362 = vsub.f32 %v222, %v361
    %v363 = vand.u32 %v362, 4294901760
    %v364 = vsub.f32 %v362, %v363
    %v365 = vand.u32 %v364, 4294901760
    %366 = vmatpush1.msra.mxu0 %v365
    %367 = vmatprep.subr.mxu0 0.0
    %v368 = vand.u32 %v221, 4294901760
    %v369 = vsub.f32 %v221, %v368
    %v370 = vand.u32 %v369, 4294901760
    %v371 = vsub.f32 %v369, %v370
    %v372 = vand.u32 %v371, 4294901760
    %373 = vmatpush1.msra.mxu0 %v372
    %374 = vmatprep.subr.mxu0 0.0
    %v375 = vand.u32 %v220, 4294901760
    %v376 = vsub.f32 %v220, %v375
    %v377 = vand.u32 %v376, 4294901760
    %v378 = vsub.f32 %v376, %v377
    %v379 = vand.u32 %v378, 4294901760
    %380 = vmatpush1.msra.mxu0 %v379
    %381 = vmatprep.subr.mxu0 0.0
    %v382 = vand.u32 %v219, 4294901760
    %v383 = vsub.f32 %v219, %v382
    %v384 = vand.u32 %v383, 4294901760
    %v385 = vsub.f32 %v383, %v384
    %v386 = vand.u32 %v385, 4294901760
    %387 = vmatpush1.msra.mxu0 %v386
    %388 = vmatprep.subr.mxu0 0.0
    %v389 = vand.u32 %v218, 4294901760
    %v390 = vsub.f32 %v218, %v389
    %v391 = vand.u32 %v390, 4294901760
    %v392 = vsub.f32 %v390, %v391
    %v393 = vand.u32 %v392, 4294901760
    %394 = vmatpush1.msra.mxu0 %v393
    %395 = vmatprep.subr.mxu0 0.0
    %v396 = vand.u32 %v217, 4294901760
    %v397 = vsub.f32 %v217, %v396
    %v398 = vand.u32 %v397, 4294901760
    %v399 = vsub.f32 %v397, %v398
    %v400 = vand.u32 %v399, 4294901760
    %401 = vmatpush1.msra.mxu0 %v400
    %402 = vmatprep.subr.mxu0 0.0
    %v403 = vand.u32 %v216, 4294901760
    %v404 = vsub.f32 %v216, %v403
    %v405 = vand.u32 %v404, 4294901760
    %v406 = vsub.f32 %v404, %v405
    %v407 = vand.u32 %v406, 4294901760
    %408 = vmatpush1.msra.mxu0 %v407
    %409 = vmatprep.subr.mxu0 0.0
    %v410 = vand.u32 %v215, 4294901760
    %v411 = vsub.f32 %v215, %v410
    %v412 = vand.u32 %v411, 4294901760
    %v413 = vsub.f32 %v411, %v412
    %v414 = vand.u32 %v413, 4294901760
    %415 = vmatpush1.msra.mxu0 %v414
    %416 = vmatprep.subr.mxu0 0.0
    %v417 = vand.u32 %v214, 4294901760
    %v418 = vsub.f32 %v214, %v417
    %v419 = vand.u32 %v418, 4294901760
    %v420 = vsub.f32 %v418, %v419
    %v421 = vand.u32 %v420, 4294901760
    %422 = vmatpush1.msra.mxu0 %v421
    %423 = vmatprep.subr.mxu0 0.0
    %v424 = vand.u32 %v213, 4294901760
    %v425 = vsub.f32 %v213, %v424
    %v426 = vand.u32 %v425, 4294901760
    %v427 = vsub.f32 %v425, %v426
    %v428 = vand.u32 %v427, 4294901760
    %429 = vmatpush1.msra.mxu0 %v428
    %430 = vmatprep.subr.mxu0 0.0
    %v431 = vand.u32 %v212, 4294901760
    %v432 = vsub.f32 %v212, %v431
    %v433 = vand.u32 %v432, 4294901760
    %v434 = vsub.f32 %v432, %v433
    %v435 = vand.u32 %v434, 4294901760
    %436 = vmatpush1.msra.mxu0 %v435
    %437 = vmatprep.subr.mxu0 0.0
    %v438 = vand.u32 %v211, 4294901760
    %v439 = vsub.f32 %v211, %v438
    %v440 = vand.u32 %v439, 4294901760
    %v441 = vsub.f32 %v439, %v440
    %v442 = vand.u32 %v441, 4294901760
    %443 = vmatpush1.msra.mxu0 %v442
    %444 = vmatprep.subr.mxu0 0.0
    %v445 = vand.u32 %v210, 4294901760
    %v446 = vsub.f32 %v210, %v445
    %v447 = vand.u32 %v446, 4294901760
    %v448 = vsub.f32 %v446, %v447
    %v449 = vand.u32 %v448, 4294901760
    %450 = vmatpush1.msra.mxu0 %v449
    %451 = vmatprep.subr.mxu0 0.0
    %v452 = vand.u32 %v209, 4294901760
    %v453 = vsub.f32 %v209, %v452
    %v454 = vand.u32 %v453, 4294901760
    %v455 = vsub.f32 %v453, %v454
    %v456 = vand.u32 %v455, 4294901760
    %457 = vmatpush1.msra.mxu0 %v456
    %458 = vmatprep.subr.mxu0 0.0
    %459 = vmatpush2.msra.mxu0 0.0
    %460 = vmatprep.subr.mxu0 0.0
    %461 = vmatpush2.msra.mxu0 0.0
    %462 = vmatprep.subr.mxu0 0.0
    %463 = vmatpush2.msra.mxu0 0.0
    %464 = vmatprep.subr.mxu0 0.0
    %465 = vmatpush2.msra.mxu0 0.0
    %466 = vmatprep.subr.mxu0 0.0
    %467 = vmatpush2.msra.mxu0 0.0
    %468 = vmatprep.subr.mxu0 0.0
    %469 = vmatpush2.msra.mxu0 0.0
    %470 = vmatprep.subr.mxu0 0.0
    %471 = vmatpush2.msra.mxu0 0.0
    %472 = vmatprep.subr.mxu0 0.0
    %473 = vmatpush2.msra.mxu0 0.0
    %474 = vmatprep.subr.mxu0 0.0
    %475 = vmatpush2.msra.mxu0 0.0
    %476 = vmatprep.subr.mxu0 0.0
    %477 = vmatpush2.msra.mxu0 0.0
    %478 = vmatprep.subr.mxu0 0.0
    %479 = vmatpush2.msra.mxu0 0.0
    %480 = vmatprep.subr.mxu0 0.0
    %481 = vmatpush2.msra.mxu0 0.0
    %482 = vmatprep.subr.mxu0 0.0
    %483 = vmatpush2.msra.mxu0 0.0
    %484 = vmatprep.subr.mxu0 0.0
    %485 = vmatpush2.msra.mxu0 0.0
    %486 = vmatprep.subr.mxu0 0.0
    %487 = vmatpush2.msra.mxu0 0.0
    %488 = vmatprep.subr.mxu0 0.0
    %489 = vmatpush2.msra.mxu0 0.0
    %490 = vmatprep.mubr.f32.mxu0 0.0
    %v491 = vand.u32 %v85, 4294901760
    %492 = vmatmul.mubr.f32.gmra.mxu0 %v491
    %v493 = vpop.f32.mrf.mxu0
    %v494 = vadd.f32 %v313, %v493
    %v495 = vpop.f32.mrf.mxu0
    %496 = vmatprep.mubr.f32.mxu0 0.0
    %v497 = vand.u32 %v86, 4294901760
    %498 = vmatmul.mubr.f32.gmra.mxu0 %v497
    %v499 = vpop.f32.mrf.mxu0
    %v500 = vadd.f32 %v323, %v499
    %v501 = vpop.f32.mrf.mxu0
    %502 = vmatprep.mubr.f32.mxu0 0.0
    %v503 = vand.u32 %v87, 4294901760
    %504 = vmatmul.mubr.f32.gmra.mxu0 %v503
    %v505 = vpop.f32.mrf.mxu0
    %v506 = vadd.f32 %v333, %v505
    %v507 = vpop.f32.mrf.mxu0
    %508 = vmatprep.mubr.f32.mxu0 0.0
    %v509 = vand.u32 %v88, 4294901760
    %510 = vmatmul.mubr.f32.gmra.mxu0 %v509
    %v511 = vpop.f32.mrf.mxu0
    %v512 = vadd.f32 %v343, %v511
    %v513 = vpop.f32.mrf.mxu0
    %514 = vdwg.mxu0
    %515 = vmatprep.subr.mxu0 0.0
    %v516 = vand.u32 %v224, 4294901760
    %v517 = vsub.f32 %v224, %v516
    %518 = vmatpush1.msra.mxu0 %v517
    %519 = vmatprep.subr.mxu0 0.0
    %v520 = vand.u32 %v223, 4294901760
    %v521 = vsub.f32 %v223, %v520
    %522 = vmatpush1.msra.mxu0 %v521
    %523 = vmatprep.subr.mxu0 0.0
    %v524 = vand.u32 %v222, 4294901760
    %v525 = vsub.f32 %v222, %v524
    %526 = vmatpush1.msra.mxu0 %v525
    %527 = vmatprep.subr.mxu0 0.0
    %v528 = vand.u32 %v221, 4294901760
    %v529 = vsub.f32 %v221, %v528
    %530 = vmatpush1.msra.mxu0 %v529
    %531 = vmatprep.subr.mxu0 0.0
    %v532 = vand.u32 %v220, 4294901760
    %v533 = vsub.f32 %v220, %v532
    %534 = vmatpush1.msra.mxu0 %v533
    %535 = vmatprep.subr.mxu0 0.0
    %v536 = vand.u32 %v219, 4294901760
    %v537 = vsub.f32 %v219, %v536
    %538 = vmatpush1.msra.mxu0 %v537
    %539 = vmatprep.subr.mxu0 0.0
    %v540 = vand.u32 %v218, 4294901760
    %v541 = vsub.f32 %v218, %v540
    %542 = vmatpush1.msra.mxu0 %v541
    %543 = vmatprep.subr.mxu0 0.0
    %v544 = vand.u32 %v217, 4294901760
    %v545 = vsub.f32 %v217, %v544
    %546 = vmatpush1.msra.mxu0 %v545
    %547 = vmatprep.subr.mxu0 0.0
    %v548 = vand.u32 %v216, 4294901760
    %v549 = vsub.f32 %v216, %v548
    %550 = vmatpush1.msra.mxu0 %v549
    %551 = vmatprep.subr.mxu0 0.0
    %v552 = vand.u32 %v215, 4294901760
    %v553 = vsub.f32 %v215, %v552
    %554 = vmatpush1.msra.mxu0 %v553
    %555 = vmatprep.subr.mxu0 0.0
    %v556 = vand.u32 %v214, 4294901760
    %v557 = vsub.f32 %v214, %v556
    %558 = vmatpush1.msra.mxu0 %v557
    %559 = vmatprep.subr.mxu0 0.0
    %v560 = vand.u32 %v213, 4294901760
    %v561 = vsub.f32 %v213, %v560
    %562 = vmatpush1.msra.mxu0 %v561
    %563 = vmatprep.subr.mxu0 0.0
    %v564 = vand.u32 %v212, 4294901760
    %v565 = vsub.f32 %v212, %v564
    %566 = vmatpush1.msra.mxu0 %v565
    %567 = vmatprep.subr.mxu0 0.0
    %v568 = vand.u32 %v211, 4294901760
    %v569 = vsub.f32 %v211, %v568
    %570 = vmatpush1.msra.mxu0 %v569
    %571 = vmatprep.subr.mxu0 0.0
    %v572 = vand.u32 %v210, 4294901760
    %v573 = vsub.f32 %v210, %v572
    %574 = vmatpush1.msra.mxu0 %v573
    %575 = vmatprep.subr.mxu0 0.0
    %v576 = vand.u32 %v209, 4294901760
    %v577 = vsub.f32 %v209, %v576
    %578 = vmatpush1.msra.mxu0 %v577
    %579 = vmatprep.subr.mxu0 0.0
    %580 = vmatpush2.msra.mxu0 0.0
    %581 = vmatprep.subr.mxu0 0.0
    %582 = vmatpush2.msra.mxu0 0.0
    %583 = vmatprep.subr.mxu0 0.0
    %584 = vmatpush2.msra.mxu0 0.0
    %585 = vmatprep.subr.mxu0 0.0
    %586 = vmatpush2.msra.mxu0 0.0
    %587 = vmatprep.subr.mxu0 0.0
    %588 = vmatpush2.msra.mxu0 0.0
    %589 = vmatprep.subr.mxu0 0.0
    %590 = vmatpush2.msra.mxu0 0.0
    %591 = vmatprep.subr.mxu0 0.0
    %592 = vmatpush2.msra.mxu0 0.0
    %593 = vmatprep.subr.mxu0 0.0
    %594 = vmatpush2.msra.mxu0 0.0
    %595 = vmatprep.subr.mxu0 0.0
    %596 = vmatpush2.msra.mxu0 0.0
    %597 = vmatprep.subr.mxu0 0.0
    %598 = vmatpush2.msra.mxu0 0.0
    %599 = vmatprep.subr.mxu0 0.0
    %600 = vmatpush2.msra.mxu0 0.0
    %601 = vmatprep.subr.mxu0 0.0
    %602 = vmatpush2.msra.mxu0 0.0
    %603 = vmatprep.subr.mxu0 0.0
    %604 = vmatpush2.msra.mxu0 0.0
    %605 = vmatprep.subr.mxu0 0.0
    %606 = vmatpush2.msra.mxu0 0.0
    %607 = vmatprep.subr.mxu0 0.0
    %608 = vmatpush2.msra.mxu0 0.0
    %609 = vmatprep.subr.mxu0 0.0
    %610 = vmatpush2.msra.mxu0 0.0
    %611 = vmatprep.mubr.f32.mxu0 0.0
    %v612 = vand.u32 %v85, 4294901760
    %v613 = vsub.f32 %v85, %v612
    %614 = vmatmul.mubr.f32.gmra.mxu0 %v613
    %v615 = vpop.f32.mrf.mxu0
    %v616 = vadd.f32 %v494, %v615
    %v617 = vpop.f32.mrf.mxu0
    %618 = vmatprep.mubr.f32.mxu0 0.0
    %v619 = vand.u32 %v86, 4294901760
    %v620 = vsub.f32 %v86, %v619
    %621 = vmatmul.mubr.f32.gmra.mxu0 %v620
    %v622 = vpop.f32.mrf.mxu0
    %v623 = vadd.f32 %v500, %v622
    %v624 = vpop.f32.mrf.mxu0
    %625 = vmatprep.mubr.f32.mxu0 0.0
    %v626 = vand.u32 %v87, 4294901760
    %v627 = vsub.f32 %v87, %v626
    %628 = vmatmul.mubr.f32.gmra.mxu0 %v627
    %v629 = vpop.f32.mrf.mxu0
    %v630 = vadd.f32 %v506, %v629
    %v631 = vpop.f32.mrf.mxu0
    %632 = vmatprep.mubr.f32.mxu0 0.0
    %v633 = vand.u32 %v88, 4294901760
    %v634 = vsub.f32 %v88, %v633
    %635 = vmatmul.mubr.f32.gmra.mxu0 %v634
    %v636 = vpop.f32.mrf.mxu0
    %v637 = vadd.f32 %v512, %v636
    %v638 = vpop.f32.mrf.mxu0
    %639 = vdwg.mxu0
    %640 = vmatprep.subr.mxu0 0.0
    %v641 = vand.u32 %v224, 4294901760
    %642 = vmatpush1.msra.mxu0 %v641
    %643 = vmatprep.subr.mxu0 0.0
    %v644 = vand.u32 %v223, 4294901760
    %645 = vmatpush1.msra.mxu0 %v644
    %646 = vmatprep.subr.mxu0 0.0
    %v647 = vand.u32 %v222, 4294901760
    %648 = vmatpush1.msra.mxu0 %v647
    %649 = vmatprep.subr.mxu0 0.0
    %v650 = vand.u32 %v221, 4294901760
    %651 = vmatpush1.msra.mxu0 %v650
    %652 = vmatprep.subr.mxu0 0.0
    %v653 = vand.u32 %v220, 4294901760
    %654 = vmatpush1.msra.mxu0 %v653
    %655 = vmatprep.subr.mxu0 0.0
    %v656 = vand.u32 %v219, 4294901760
    %657 = vmatpush1.msra.mxu0 %v656
    %658 = vmatprep.subr.mxu0 0.0
    %v659 = vand.u32 %v218, 4294901760
    %660 = vmatpush1.msra.mxu0 %v659
    %661 = vmatprep.subr.mxu0 0.0
    %v662 = vand.u32 %v217, 4294901760
    %663 = vmatpush1.msra.mxu0 %v662
    %664 = vmatprep.subr.mxu0 0.0
    %v665 = vand.u32 %v216, 4294901760
    %666 = vmatpush1.msra.mxu0 %v665
    %667 = vmatprep.subr.mxu0 0.0
    %v668 = vand.u32 %v215, 4294901760
    %669 = vmatpush1.msra.mxu0 %v668
    %670 = vmatprep.subr.mxu0 0.0
    %v671 = vand.u32 %v214, 4294901760
    %672 = vmatpush1.msra.mxu0 %v671
    %673 = vmatprep.subr.mxu0 0.0
    %v674 = vand.u32 %v213, 4294901760
    %675 = vmatpush1.msra.mxu0 %v674
    %676 = vmatprep.subr.mxu0 0.0
    %v677 = vand.u32 %v212, 4294901760
    %678 = vmatpush1.msra.mxu0 %v677
    %679 = vmatprep.subr.mxu0 0.0
    %v680 = vand.u32 %v211, 4294901760
    %681 = vmatpush1.msra.mxu0 %v680
    %682 = vmatprep.subr.mxu0 0.0
    %v683 = vand.u32 %v210, 4294901760
    %684 = vmatpush1.msra.mxu0 %v683
    %685 = vmatprep.subr.mxu0 0.0
    %v686 = vand.u32 %v209, 4294901760
    %687 = vmatpush1.msra.mxu0 %v686
    %688 = vmatprep.subr.mxu0 0.0
    %689 = vmatpush2.msra.mxu0 0.0
    %690 = vmatprep.subr.mxu0 0.0
    %691 = vmatpush2.msra.mxu0 0.0
    %692 = vmatprep.subr.mxu0 0.0
    %693 = vmatpush2.msra.mxu0 0.0
    %694 = vmatprep.subr.mxu0 0.0
    %695 = vmatpush2.msra.mxu0 0.0
    %696 = vmatprep.subr.mxu0 0.0
    %697 = vmatpush2.msra.mxu0 0.0
    %698 = vmatprep.subr.mxu0 0.0
    %699 = vmatpush2.msra.mxu0 0.0
    %700 = vmatprep.subr.mxu0 0.0
    %701 = vmatpush2.msra.mxu0 0.0
    %702 = vmatprep.subr.mxu0 0.0
    %703 = vmatpush2.msra.mxu0 0.0
    %704 = vmatprep.subr.mxu0 0.0
    %705 = vmatpush2.msra.mxu0 0.0
    %706 = vmatprep.subr.mxu0 0.0
    %707 = vmatpush2.msra.mxu0 0.0
    %708 = vmatprep.subr.mxu0 0.0
    %709 = vmatpush2.msra.mxu0 0.0
    %710 = vmatprep.subr.mxu0 0.0
    %711 = vmatpush2.msra.mxu0 0.0
    %712 = vmatprep.subr.mxu0 0.0
    %713 = vmatpush2.msra.mxu0 0.0
    %714 = vmatprep.subr.mxu0 0.0
    %715 = vmatpush2.msra.mxu0 0.0
    %716 = vmatprep.subr.mxu0 0.0
    %717 = vmatpush2.msra.mxu0 0.0
    %718 = vmatprep.subr.mxu0 0.0
    %719 = vmatpush2.msra.mxu0 0.0
    %720 = vmatprep.mubr.f32.mxu0 0.0
    %v721 = vand.u32 %v85, 4294901760
    %v722 = vsub.f32 %v85, %v721
    %v723 = vand.u32 %v722, 4294901760
    %724 = vmatmul.mubr.f32.gmra.mxu0 %v723
    %v725 = vpop.f32.mrf.mxu0
    %v726 = vadd.f32 %v616, %v725
    %v727 = vpop.f32.mrf.mxu0
    %728 = vmatprep.mubr.f32.mxu0 0.0
    %v729 = vand.u32 %v86, 4294901760
    %v730 = vsub.f32 %v86, %v729
    %v731 = vand.u32 %v730, 4294901760
    %732 = vmatmul.mubr.f32.gmra.mxu0 %v731
    %v733 = vpop.f32.mrf.mxu0
    %v734 = vadd.f32 %v623, %v733
    %v735 = vpop.f32.mrf.mxu0
    %736 = vmatprep.mubr.f32.mxu0 0.0
    %v737 = vand.u32 %v87, 4294901760
    %v738 = vsub.f32 %v87, %v737
    %v739 = vand.u32 %v738, 4294901760
    %740 = vmatmul.mubr.f32.gmra.mxu0 %v739
    %v741 = vpop.f32.mrf.mxu0
    %v742 = vadd.f32 %v630, %v741
    %v743 = vpop.f32.mrf.mxu0
    %744 = vmatprep.mubr.f32.mxu0 0.0
    %v745 = vand.u32 %v88, 4294901760
    %v746 = vsub.f32 %v88, %v745
    %v747 = vand.u32 %v746, 4294901760
    %748 = vmatmul.mubr.f32.gmra.mxu0 %v747
    %v749 = vpop.f32.mrf.mxu0
    %v750 = vadd.f32 %v637, %v749
    %v751 = vpop.f32.mrf.mxu0
    %752 = vdwg.mxu0
    %753 = vmatprep.subr.mxu0 0.0
    %v754 = vand.u32 %v224, 4294901760
    %v755 = vsub.f32 %v224, %v754
    %v756 = vand.u32 %v755, 4294901760
    %757 = vmatpush1.msra.mxu0 %v756
    %758 = vmatprep.subr.mxu0 0.0
    %v759 = vand.u32 %v223, 4294901760
    %v760 = vsub.f32 %v223, %v759
    %v761 = vand.u32 %v760, 4294901760
    %762 = vmatpush1.msra.mxu0 %v761
    %763 = vmatprep.subr.mxu0 0.0
    %v764 = vand.u32 %v222, 4294901760
    %v765 = vsub.f32 %v222, %v764
    %v766 = vand.u32 %v765, 4294901760
    %767 = vmatpush1.msra.mxu0 %v766
    %768 = vmatprep.subr.mxu0 0.0
    %v769 = vand.u32 %v221, 4294901760
    %v770 = vsub.f32 %v221, %v769
    %v771 = vand.u32 %v770, 4294901760
    %772 = vmatpush1.msra.mxu0 %v771
    %773 = vmatprep.subr.mxu0 0.0
    %v774 = vand.u32 %v220, 4294901760
    %v775 = vsub.f32 %v220, %v774
    %v776 = vand.u32 %v775, 4294901760
    %777 = vmatpush1.msra.mxu0 %v776
    %778 = vmatprep.subr.mxu0 0.0
    %v779 = vand.u32 %v219, 4294901760
    %v780 = vsub.f32 %v219, %v779
    %v781 = vand.u32 %v780, 4294901760
    %782 = vmatpush1.msra.mxu0 %v781
    %783 = vmatprep.subr.mxu0 0.0
    %v784 = vand.u32 %v218, 4294901760
    %v785 = vsub.f32 %v218, %v784
    %v786 = vand.u32 %v785, 4294901760
    %787 = vmatpush1.msra.mxu0 %v786
    %788 = vmatprep.subr.mxu0 0.0
    %v789 = vand.u32 %v217, 4294901760
    %v790 = vsub.f32 %v217, %v789
    %v791 = vand.u32 %v790, 4294901760
    %792 = vmatpush1.msra.mxu0 %v791
    %793 = vmatprep.subr.mxu0 0.0
    %v794 = vand.u32 %v216, 4294901760
    %v795 = vsub.f32 %v216, %v794
    %v796 = vand.u32 %v795, 4294901760
    %797 = vmatpush1.msra.mxu0 %v796
    %798 = vmatprep.subr.mxu0 0.0
    %v799 = vand.u32 %v215, 4294901760
    %v800 = vsub.f32 %v215, %v799
    %v801 = vand.u32 %v800, 4294901760
    %802 = vmatpush1.msra.mxu0 %v801
    %803 = vmatprep.subr.mxu0 0.0
    %v804 = vand.u32 %v214, 4294901760
    %v805 = vsub.f32 %v214, %v804
    %v806 = vand.u32 %v805, 4294901760
    %807 = vmatpush1.msra.mxu0 %v806
    %808 = vmatprep.subr.mxu0 0.0
    %v809 = vand.u32 %v213, 4294901760
    %v810 = vsub.f32 %v213, %v809
    %v811 = vand.u32 %v810, 4294901760
    %812 = vmatpush1.msra.mxu0 %v811
    %813 = vmatprep.subr.mxu0 0.0
    %v814 = vand.u32 %v212, 4294901760
    %v815 = vsub.f32 %v212, %v814
    %v816 = vand.u32 %v815, 4294901760
    %817 = vmatpush1.msra.mxu0 %v816
    %818 = vmatprep.subr.mxu0 0.0
    %v819 = vand.u32 %v211, 4294901760
    %v820 = vsub.f32 %v211, %v819
    %v821 = vand.u32 %v820, 4294901760
    %822 = vmatpush1.msra.mxu0 %v821
    %823 = vmatprep.subr.mxu0 0.0
    %v824 = vand.u32 %v210, 4294901760
    %v825 = vsub.f32 %v210, %v824
    %v826 = vand.u32 %v825, 4294901760
    %827 = vmatpush1.msra.mxu0 %v826
    %828 = vmatprep.subr.mxu0 0.0
    %v829 = vand.u32 %v209, 4294901760
    %v830 = vsub.f32 %v209, %v829
    %v831 = vand.u32 %v830, 4294901760
    %832 = vmatpush1.msra.mxu0 %v831
    %833 = vmatprep.subr.mxu0 0.0
    %834 = vmatpush2.msra.mxu0 0.0
    %835 = vmatprep.subr.mxu0 0.0
    %836 = vmatpush2.msra.mxu0 0.0
    %837 = vmatprep.subr.mxu0 0.0
    %838 = vmatpush2.msra.mxu0 0.0
    %839 = vmatprep.subr.mxu0 0.0
    %840 = vmatpush2.msra.mxu0 0.0
    %841 = vmatprep.subr.mxu0 0.0
    %842 = vmatpush2.msra.mxu0 0.0
    %843 = vmatprep.subr.mxu0 0.0
    %844 = vmatpush2.msra.mxu0 0.0
    %845 = vmatprep.subr.mxu0 0.0
    %846 = vmatpush2.msra.mxu0 0.0
    %847 = vmatprep.subr.mxu0 0.0
    %848 = vmatpush2.msra.mxu0 0.0
    %849 = vmatprep.subr.mxu0 0.0
    %850 = vmatpush2.msra.mxu0 0.0
    %851 = vmatprep.subr.mxu0 0.0
    %852 = vmatpush2.msra.mxu0 0.0
    %853 = vmatprep.subr.mxu0 0.0
    %854 = vmatpush2.msra.mxu0 0.0
    %855 = vmatprep.subr.mxu0 0.0
    %856 = vmatpush2.msra.mxu0 0.0
    %857 = vmatprep.subr.mxu0 0.0
    %858 = vmatpush2.msra.mxu0 0.0
    %859 = vmatprep.subr.mxu0 0.0
    %860 = vmatpush2.msra.mxu0 0.0
    %861 = vmatprep.subr.mxu0 0.0
    %862 = vmatpush2.msra.mxu0 0.0
    %863 = vmatprep.subr.mxu0 0.0
    %864 = vmatpush2.msra.mxu0 0.0
    %865 = vmatprep.mubr.f32.mxu0 0.0
    %v866 = vand.u32 %v85, 4294901760
    %867 = vmatmul.mubr.f32.gmra.mxu0 %v866
    %v868 = vpop.f32.mrf.mxu0
    %v869 = vadd.f32 %v726, %v868
    %v870 = vpop.f32.mrf.mxu0
    %871 = vmatprep.mubr.f32.mxu0 0.0
    %v872 = vand.u32 %v86, 4294901760
    %873 = vmatmul.mubr.f32.gmra.mxu0 %v872
    %v874 = vpop.f32.mrf.mxu0
    %v875 = vadd.f32 %v734, %v874
    %v876 = vpop.f32.mrf.mxu0
    %877 = vmatprep.mubr.f32.mxu0 0.0
    %v878 = vand.u32 %v87, 4294901760
    %879 = vmatmul.mubr.f32.gmra.mxu0 %v878
    %v880 = vpop.f32.mrf.mxu0
    %v881 = vadd.f32 %v742, %v880
    %v882 = vpop.f32.mrf.mxu0
    %883 = vmatprep.mubr.f32.mxu0 0.0
    %v884 = vand.u32 %v88, 4294901760
    %885 = vmatmul.mubr.f32.gmra.mxu0 %v884
    %v886 = vpop.f32.mrf.mxu0
    %v887 = vadd.f32 %v750, %v886
    %v888 = vpop.f32.mrf.mxu0
    %889 = vdwg.mxu0
    %890 = vmatprep.subr.mxu0 0.0
    %v891 = vand.u32 %v224, 4294901760
    %892 = vmatpush1.msra.mxu0 %v891
    %893 = vmatprep.subr.mxu0 0.0
    %v894 = vand.u32 %v223, 4294901760
    %895 = vmatpush1.msra.mxu0 %v894
    %896 = vmatprep.subr.mxu0 0.0
    %v897 = vand.u32 %v222, 4294901760
    %898 = vmatpush1.msra.mxu0 %v897
    %899 = vmatprep.subr.mxu0 0.0
    %v900 = vand.u32 %v221, 4294901760
    %901 = vmatpush1.msra.mxu0 %v900
    %902 = vmatprep.subr.mxu0 0.0
    %v903 = vand.u32 %v220, 4294901760
    %904 = vmatpush1.msra.mxu0 %v903
    %905 = vmatprep.subr.mxu0 0.0
    %v906 = vand.u32 %v219, 4294901760
    %907 = vmatpush1.msra.mxu0 %v906
    %908 = vmatprep.subr.mxu0 0.0
    %v909 = vand.u32 %v218, 4294901760
    %910 = vmatpush1.msra.mxu0 %v909
    %911 = vmatprep.subr.mxu0 0.0
    %v912 = vand.u32 %v217, 4294901760
    %913 = vmatpush1.msra.mxu0 %v912
    %914 = vmatprep.subr.mxu0 0.0
    %v915 = vand.u32 %v216, 4294901760
    %916 = vmatpush1.msra.mxu0 %v915
    %917 = vmatprep.subr.mxu0 0.0
    %v918 = vand.u32 %v215, 4294901760
    %919 = vmatpush1.msra.mxu0 %v918
    %920 = vmatprep.subr.mxu0 0.0
    %v921 = vand.u32 %v214, 4294901760
    %922 = vmatpush1.msra.mxu0 %v921
    %923 = vmatprep.subr.mxu0 0.0
    %v924 = vand.u32 %v213, 4294901760
    %925 = vmatpush1.msra.mxu0 %v924
    %926 = vmatprep.subr.mxu0 0.0
    %v927 = vand.u32 %v212, 4294901760
    %928 = vmatpush1.msra.mxu0 %v927
    %929 = vmatprep.subr.mxu0 0.0
    %v930 = vand.u32 %v211, 4294901760
    %931 = vmatpush1.msra.mxu0 %v930
    %932 = vmatprep.subr.mxu0 0.0
    %v933 = vand.u32 %v210, 4294901760
    %934 = vmatpush1.msra.mxu0 %v933
    %935 = vmatprep.subr.mxu0 0.0
    %v936 = vand.u32 %v209, 4294901760
    %937 = vmatpush1.msra.mxu0 %v936
    %938 = vmatprep.subr.mxu0 0.0
    %939 = vmatpush2.msra.mxu0 0.0
    %940 = vmatprep.subr.mxu0 0.0
    %941 = vmatpush2.msra.mxu0 0.0
    %942 = vmatprep.subr.mxu0 0.0
    %943 = vmatpush2.msra.mxu0 0.0
    %944 = vmatprep.subr.mxu0 0.0
    %945 = vmatpush2.msra.mxu0 0.0
    %946 = vmatprep.subr.mxu0 0.0
    %947 = vmatpush2.msra.mxu0 0.0
    %948 = vmatprep.subr.mxu0 0.0
    %949 = vmatpush2.msra.mxu0 0.0
    %950 = vmatprep.subr.mxu0 0.0
    %951 = vmatpush2.msra.mxu0 0.0
    %952 = vmatprep.subr.mxu0 0.0
    %953 = vmatpush2.msra.mxu0 0.0
    %954 = vmatprep.subr.mxu0 0.0
    %955 = vmatpush2.msra.mxu0 0.0
    %956 = vmatprep.subr.mxu0 0.0
    %957 = vmatpush2.msra.mxu0 0.0
    %958 = vmatprep.subr.mxu0 0.0
    %959 = vmatpush2.msra.mxu0 0.0
    %960 = vmatprep.subr.mxu0 0.0
    %961 = vmatpush2.msra.mxu0 0.0
    %962 = vmatprep.subr.mxu0 0.0
    %963 = vmatpush2.msra.mxu0 0.0
    %964 = vmatprep.subr.mxu0 0.0
    %965 = vmatpush2.msra.mxu0 0.0
    %966 = vmatprep.subr.mxu0 0.0
    %967 = vmatpush2.msra.mxu0 0.0
    %968 = vmatprep.subr.mxu0 0.0
    %969 = vmatpush2.msra.mxu0 0.0
    %970 = vmatprep.mubr.f32.mxu0 0.0
    %v971 = vand.u32 %v85, 4294901760
    %972 = vmatmul.mubr.f32.gmra.mxu0 %v971
    %v973 = vpop.f32.mrf.mxu0
    %v974 = vadd.f32 %v869, %v973
    %v975 = vpop.f32.mrf.mxu0
    %976 = vmatprep.mubr.f32.mxu0 0.0
    %v977 = vand.u32 %v86, 4294901760
    %978 = vmatmul.mubr.f32.gmra.mxu0 %v977
    %v979 = vpop.f32.mrf.mxu0
    %v980 = vadd.f32 %v875, %v979
    %v981 = vpop.f32.mrf.mxu0
    %982 = vmatprep.mubr.f32.mxu0 0.0
    %v983 = vand.u32 %v87, 4294901760
    %984 = vmatmul.mubr.f32.gmra.mxu0 %v983
    %v985 = vpop.f32.mrf.mxu0
    %v986 = vadd.f32 %v881, %v985
    %v987 = vpop.f32.mrf.mxu0
    %988 = vmatprep.mubr.f32.mxu0 0.0
    %v989 = vand.u32 %v88, 4294901760
    %990 = vmatmul.mubr.f32.gmra.mxu0 %v989
    %v991 = vpop.f32.mrf.mxu0
    %v992 = vadd.f32 %v887, %v991
    %v993 = vpop.f32.mrf.mxu0
    %994 = vdwg.mxu0
    %995 = vmatprep.subr.mxu0 0.0
    %v996 = vand.u32 %v207, 4294901760
    %997 = vmatpush1.msra.mxu0 %v996
    %998 = vmatprep.subr.mxu0 0.0
    %v999 = vand.u32 %v206, 4294901760
    %1000 = vmatpush1.msra.mxu0 %v999
    %1001 = vmatprep.subr.mxu0 0.0
    %v1002 = vand.u32 %v205, 4294901760
    %1003 = vmatpush1.msra.mxu0 %v1002
    %1004 = vmatprep.subr.mxu0 0.0
    %v1005 = vand.u32 %v204, 4294901760
    %1006 = vmatpush1.msra.mxu0 %v1005
    %1007 = vmatprep.subr.mxu0 0.0
    %v1008 = vand.u32 %v203, 4294901760
    %1009 = vmatpush1.msra.mxu0 %v1008
    %1010 = vmatprep.subr.mxu0 0.0
    %v1011 = vand.u32 %v202, 4294901760
    %1012 = vmatpush1.msra.mxu0 %v1011
    %1013 = vmatprep.subr.mxu0 0.0
    %v1014 = vand.u32 %v201, 4294901760
    %1015 = vmatpush1.msra.mxu0 %v1014
    %1016 = vmatprep.subr.mxu0 0.0
    %v1017 = vand.u32 %v200, 4294901760
    %1018 = vmatpush1.msra.mxu0 %v1017
    %1019 = vmatprep.subr.mxu0 0.0
    %v1020 = vand.u32 %v199, 4294901760
    %1021 = vmatpush1.msra.mxu0 %v1020
    %1022 = vmatprep.subr.mxu0 0.0
    %v1023 = vand.u32 %v198, 4294901760
    %1024 = vmatpush1.msra.mxu0 %v1023
    %1025 = vmatprep.subr.mxu0 0.0
    %v1026 = vand.u32 %v197, 4294901760
    %1027 = vmatpush1.msra.mxu0 %v1026
    %1028 = vmatprep.subr.mxu0 0.0
    %v1029 = vand.u32 %v196, 4294901760
    %1030 = vmatpush1.msra.mxu0 %v1029
    %1031 = vmatprep.subr.mxu0 0.0
    %v1032 = vand.u32 %v195, 4294901760
    %1033 = vmatpush1.msra.mxu0 %v1032
    %1034 = vmatprep.subr.mxu0 0.0
    %v1035 = vand.u32 %v194, 4294901760
    %1036 = vmatpush1.msra.mxu0 %v1035
    %1037 = vmatprep.subr.mxu0 0.0
    %v1038 = vand.u32 %v193, 4294901760
    %1039 = vmatpush1.msra.mxu0 %v1038
    %1040 = vmatprep.subr.mxu0 0.0
    %v1041 = vand.u32 %v192, 4294901760
    %1042 = vmatpush1.msra.mxu0 %v1041
    %1043 = vmatprep.subr.mxu0 0.0
    %1044 = vmatpush2.msra.mxu0 0.0
    %1045 = vmatprep.subr.mxu0 0.0
    %1046 = vmatpush2.msra.mxu0 0.0
    %1047 = vmatprep.subr.mxu0 0.0
    %1048 = vmatpush2.msra.mxu0 0.0
    %1049 = vmatprep.subr.mxu0 0.0
    %1050 = vmatpush2.msra.mxu0 0.0
    %1051 = vmatprep.subr.mxu0 0.0
    %1052 = vmatpush2.msra.mxu0 0.0
    %1053 = vmatprep.subr.mxu0 0.0
    %1054 = vmatpush2.msra.mxu0 0.0
    %1055 = vmatprep.subr.mxu0 0.0
    %1056 = vmatpush2.msra.mxu0 0.0
    %1057 = vmatprep.subr.mxu0 0.0
    %1058 = vmatpush2.msra.mxu0 0.0
    %1059 = vmatprep.subr.mxu0 0.0
    %1060 = vmatpush2.msra.mxu0 0.0
    %1061 = vmatprep.subr.mxu0 0.0
    %1062 = vmatpush2.msra.mxu0 0.0
    %1063 = vmatprep.subr.mxu0 0.0
    %1064 = vmatpush2.msra.mxu0 0.0
    %1065 = vmatprep.subr.mxu0 0.0
    %1066 = vmatpush2.msra.mxu0 0.0
    %1067 = vmatprep.subr.mxu0 0.0
    %1068 = vmatpush2.msra.mxu0 0.0
    %1069 = vmatprep.subr.mxu0 0.0
    %1070 = vmatpush2.msra.mxu0 0.0
    %1071 = vmatprep.subr.mxu0 0.0
    %1072 = vmatpush2.msra.mxu0 0.0
    %1073 = vmatprep.subr.mxu0 0.0
    %1074 = vmatpush2.msra.mxu0 0.0
    %1075 = vmatprep.mubr.f32.mxu0 0.0
    %v1076 = vand.u32 %v175, 4294901760
    %v1077 = vsub.f32 %v175, %v1076
    %v1078 = vand.u32 %v1077, 4294901760
    %v1079 = vsub.f32 %v1077, %v1078
    %v1080 = vand.u32 %v1079, 4294901760
    %1081 = vmatmul.mubr.f32.gmra.mxu0 %v1080
    %v1082 = vpop.f32.mrf.mxu0
    %v1083 = vadd.f32 %v974, %v1082
    %v1084 = vpop.f32.mrf.mxu0
    %1085 = vmatprep.mubr.f32.mxu0 0.0
    %v1086 = vand.u32 %v176, 4294901760
    %v1087 = vsub.f32 %v176, %v1086
    %v1088 = vand.u32 %v1087, 4294901760
    %v1089 = vsub.f32 %v1087, %v1088
    %v1090 = vand.u32 %v1089, 4294901760
    %1091 = vmatmul.mubr.f32.gmra.mxu0 %v1090
    %v1092 = vpop.f32.mrf.mxu0
    %v1093 = vadd.f32 %v980, %v1092
    %v1094 = vpop.f32.mrf.mxu0
    %1095 = vmatprep.mubr.f32.mxu0 0.0
    %v1096 = vand.u32 %v177, 4294901760
    %v1097 = vsub.f32 %v177, %v1096
    %v1098 = vand.u32 %v1097, 4294901760
    %v1099 = vsub.f32 %v1097, %v1098
    %v1100 = vand.u32 %v1099, 4294901760
    %1101 = vmatmul.mubr.f32.gmra.mxu0 %v1100
    %v1102 = vpop.f32.mrf.mxu0
    %v1103 = vadd.f32 %v986, %v1102
    %v1104 = vpop.f32.mrf.mxu0
    %1105 = vmatprep.mubr.f32.mxu0 0.0
    %v1106 = vand.u32 %v178, 4294901760
    %v1107 = vsub.f32 %v178, %v1106
    %v1108 = vand.u32 %v1107, 4294901760
    %v1109 = vsub.f32 %v1107, %v1108
    %v1110 = vand.u32 %v1109, 4294901760
    %1111 = vmatmul.mubr.f32.gmra.mxu0 %v1110
    %v1112 = vpop.f32.mrf.mxu0
    %v1113 = vadd.f32 %v992, %v1112
    %v1114 = vpop.f32.mrf.mxu0
    %1115 = vdwg.mxu0
    %1116 = vmatprep.subr.mxu0 0.0
    %v1117 = vand.u32 %v207, 4294901760
    %v1118 = vsub.f32 %v207, %v1117
    %v1119 = vand.u32 %v1118, 4294901760
    %v1120 = vsub.f32 %v1118, %v1119
    %v1121 = vand.u32 %v1120, 4294901760
    %1122 = vmatpush1.msra.mxu0 %v1121
    %1123 = vmatprep.subr.mxu0 0.0
    %v1124 = vand.u32 %v206, 4294901760
    %v1125 = vsub.f32 %v206, %v1124
    %v1126 = vand.u32 %v1125, 4294901760
    %v1127 = vsub.f32 %v1125, %v1126
    %v1128 = vand.u32 %v1127, 4294901760
    %1129 = vmatpush1.msra.mxu0 %v1128
    %1130 = vmatprep.subr.mxu0 0.0
    %v1131 = vand.u32 %v205, 4294901760
    %v1132 = vsub.f32 %v205, %v1131
    %v1133 = vand.u32 %v1132, 4294901760
    %v1134 = vsub.f32 %v1132, %v1133
    %v1135 = vand.u32 %v1134, 4294901760
    %1136 = vmatpush1.msra.mxu0 %v1135
    %1137 = vmatprep.subr.mxu0 0.0
    %v1138 = vand.u32 %v204, 4294901760
    %v1139 = vsub.f32 %v204, %v1138
    %v1140 = vand.u32 %v1139, 4294901760
    %v1141 = vsub.f32 %v1139, %v1140
    %v1142 = vand.u32 %v1141, 4294901760
    %1143 = vmatpush1.msra.mxu0 %v1142
    %1144 = vmatprep.subr.mxu0 0.0
    %v1145 = vand.u32 %v203, 4294901760
    %v1146 = vsub.f32 %v203, %v1145
    %v1147 = vand.u32 %v1146, 4294901760
    %v1148 = vsub.f32 %v1146, %v1147
    %v1149 = vand.u32 %v1148, 4294901760
    %1150 = vmatpush1.msra.mxu0 %v1149
    %1151 = vmatprep.subr.mxu0 0.0
    %v1152 = vand.u32 %v202, 4294901760
    %v1153 = vsub.f32 %v202, %v1152
    %v1154 = vand.u32 %v1153, 4294901760
    %v1155 = vsub.f32 %v1153, %v1154
    %v1156 = vand.u32 %v1155, 4294901760
    %1157 = vmatpush1.msra.mxu0 %v1156
    %1158 = vmatprep.subr.mxu0 0.0
    %v1159 = vand.u32 %v201, 4294901760
    %v1160 = vsub.f32 %v201, %v1159
    %v1161 = vand.u32 %v1160, 4294901760
    %v1162 = vsub.f32 %v1160, %v1161
    %v1163 = vand.u32 %v1162, 4294901760
    %1164 = vmatpush1.msra.mxu0 %v1163
    %1165 = vmatprep.subr.mxu0 0.0
    %v1166 = vand.u32 %v200, 4294901760
    %v1167 = vsub.f32 %v200, %v1166
    %v1168 = vand.u32 %v1167, 4294901760
    %v1169 = vsub.f32 %v1167, %v1168
    %v1170 = vand.u32 %v1169, 4294901760
    %1171 = vmatpush1.msra.mxu0 %v1170
    %1172 = vmatprep.subr.mxu0 0.0
    %v1173 = vand.u32 %v199, 4294901760
    %v1174 = vsub.f32 %v199, %v1173
    %v1175 = vand.u32 %v1174, 4294901760
    %v1176 = vsub.f32 %v1174, %v1175
    %v1177 = vand.u32 %v1176, 4294901760
    %1178 = vmatpush1.msra.mxu0 %v1177
    %1179 = vmatprep.subr.mxu0 0.0
    %v1180 = vand.u32 %v198, 4294901760
    %v1181 = vsub.f32 %v198, %v1180
    %v1182 = vand.u32 %v1181, 4294901760
    %v1183 = vsub.f32 %v1181, %v1182
    %v1184 = vand.u32 %v1183, 4294901760
    %1185 = vmatpush1.msra.mxu0 %v1184
    %1186 = vmatprep.subr.mxu0 0.0
    %v1187 = vand.u32 %v197, 4294901760
    %v1188 = vsub.f32 %v197, %v1187
    %v1189 = vand.u32 %v1188, 4294901760
    %v1190 = vsub.f32 %v1188, %v1189
    %v1191 = vand.u32 %v1190, 4294901760
    %1192 = vmatpush1.msra.mxu0 %v1191
    %1193 = vmatprep.subr.mxu0 0.0
    %v1194 = vand.u32 %v196, 4294901760
    %v1195 = vsub.f32 %v196, %v1194
    %v1196 = vand.u32 %v1195, 4294901760
    %v1197 = vsub.f32 %v1195, %v1196
    %v1198 = vand.u32 %v1197, 4294901760
    %1199 = vmatpush1.msra.mxu0 %v1198
    %1200 = vmatprep.subr.mxu0 0.0
    %v1201 = vand.u32 %v195, 4294901760
    %v1202 = vsub.f32 %v195, %v1201
    %v1203 = vand.u32 %v1202, 4294901760
    %v1204 = vsub.f32 %v1202, %v1203
    %v1205 = vand.u32 %v1204, 4294901760
    %1206 = vmatpush1.msra.mxu0 %v1205
    %1207 = vmatprep.subr.mxu0 0.0
    %v1208 = vand.u32 %v194, 4294901760
    %v1209 = vsub.f32 %v194, %v1208
    %v1210 = vand.u32 %v1209, 4294901760
    %v1211 = vsub.f32 %v1209, %v1210
    %v1212 = vand.u32 %v1211, 4294901760
    %1213 = vmatpush1.msra.mxu0 %v1212
    %1214 = vmatprep.subr.mxu0 0.0
    %v1215 = vand.u32 %v193, 4294901760
    %v1216 = vsub.f32 %v193, %v1215
    %v1217 = vand.u32 %v1216, 4294901760
    %v1218 = vsub.f32 %v1216, %v1217
    %v1219 = vand.u32 %v1218, 4294901760
    %1220 = vmatpush1.msra.mxu0 %v1219
    %1221 = vmatprep.subr.mxu0 0.0
    %v1222 = vand.u32 %v192, 4294901760
    %v1223 = vsub.f32 %v192, %v1222
    %v1224 = vand.u32 %v1223, 4294901760
    %v1225 = vsub.f32 %v1223, %v1224
    %v1226 = vand.u32 %v1225, 4294901760
    %1227 = vmatpush1.msra.mxu0 %v1226
    %1228 = vmatprep.subr.mxu0 0.0
    %1229 = vmatpush2.msra.mxu0 0.0
    %1230 = vmatprep.subr.mxu0 0.0
    %1231 = vmatpush2.msra.mxu0 0.0
    %1232 = vmatprep.subr.mxu0 0.0
    %1233 = vmatpush2.msra.mxu0 0.0
    %1234 = vmatprep.subr.mxu0 0.0
    %1235 = vmatpush2.msra.mxu0 0.0
    %1236 = vmatprep.subr.mxu0 0.0
    %1237 = vmatpush2.msra.mxu0 0.0
    %1238 = vmatprep.subr.mxu0 0.0
    %1239 = vmatpush2.msra.mxu0 0.0
    %1240 = vmatprep.subr.mxu0 0.0
    %1241 = vmatpush2.msra.mxu0 0.0
    %1242 = vmatprep.subr.mxu0 0.0
    %1243 = vmatpush2.msra.mxu0 0.0
    %1244 = vmatprep.subr.mxu0 0.0
    %1245 = vmatpush2.msra.mxu0 0.0
    %1246 = vmatprep.subr.mxu0 0.0
    %1247 = vmatpush2.msra.mxu0 0.0
    %1248 = vmatprep.subr.mxu0 0.0
    %1249 = vmatpush2.msra.mxu0 0.0
    %1250 = vmatprep.subr.mxu0 0.0
    %1251 = vmatpush2.msra.mxu0 0.0
    %1252 = vmatprep.subr.mxu0 0.0
    %1253 = vmatpush2.msra.mxu0 0.0
    %1254 = vmatprep.subr.mxu0 0.0
    %1255 = vmatpush2.msra.mxu0 0.0
    %1256 = vmatprep.subr.mxu0 0.0
    %1257 = vmatpush2.msra.mxu0 0.0
    %1258 = vmatprep.subr.mxu0 0.0
    %1259 = vmatpush2.msra.mxu0 0.0
    %1260 = vmatprep.mubr.f32.mxu0 0.0
    %v1261 = vand.u32 %v175, 4294901760
    %1262 = vmatmul.mubr.f32.gmra.mxu0 %v1261
    %v1263 = vpop.f32.mrf.mxu0
    %v1264 = vadd.f32 %v1083, %v1263
    %v1265 = vpop.f32.mrf.mxu0
    %1266 = vmatprep.mubr.f32.mxu0 0.0
    %v1267 = vand.u32 %v176, 4294901760
    %1268 = vmatmul.mubr.f32.gmra.mxu0 %v1267
    %v1269 = vpop.f32.mrf.mxu0
    %v1270 = vadd.f32 %v1093, %v1269
    %v1271 = vpop.f32.mrf.mxu0
    %1272 = vmatprep.mubr.f32.mxu0 0.0
    %v1273 = vand.u32 %v177, 4294901760
    %1274 = vmatmul.mubr.f32.gmra.mxu0 %v1273
    %v1275 = vpop.f32.mrf.mxu0
    %v1276 = vadd.f32 %v1103, %v1275
    %v1277 = vpop.f32.mrf.mxu0
    %1278 = vmatprep.mubr.f32.mxu0 0.0
    %v1279 = vand.u32 %v178, 4294901760
    %1280 = vmatmul.mubr.f32.gmra.mxu0 %v1279
    %v1281 = vpop.f32.mrf.mxu0
    %v1282 = vadd.f32 %v1113, %v1281
    %v1283 = vpop.f32.mrf.mxu0
    %1284 = vdwg.mxu0
    %1285 = vmatprep.subr.mxu0 0.0
    %v1286 = vand.u32 %v207, 4294901760
    %v1287 = vsub.f32 %v207, %v1286
    %1288 = vmatpush1.msra.mxu0 %v1287
    %1289 = vmatprep.subr.mxu0 0.0
    %v1290 = vand.u32 %v206, 4294901760
    %v1291 = vsub.f32 %v206, %v1290
    %1292 = vmatpush1.msra.mxu0 %v1291
    %1293 = vmatprep.subr.mxu0 0.0
    %v1294 = vand.u32 %v205, 4294901760
    %v1295 = vsub.f32 %v205, %v1294
    %1296 = vmatpush1.msra.mxu0 %v1295
    %1297 = vmatprep.subr.mxu0 0.0
    %v1298 = vand.u32 %v204, 4294901760
    %v1299 = vsub.f32 %v204, %v1298
    %1300 = vmatpush1.msra.mxu0 %v1299
    %1301 = vmatprep.subr.mxu0 0.0
    %v1302 = vand.u32 %v203, 4294901760
    %v1303 = vsub.f32 %v203, %v1302
    %1304 = vmatpush1.msra.mxu0 %v1303
    %1305 = vmatprep.subr.mxu0 0.0
    %v1306 = vand.u32 %v202, 4294901760
    %v1307 = vsub.f32 %v202, %v1306
    %1308 = vmatpush1.msra.mxu0 %v1307
    %1309 = vmatprep.subr.mxu0 0.0
    %v1310 = vand.u32 %v201, 4294901760
    %v1311 = vsub.f32 %v201, %v1310
    %1312 = vmatpush1.msra.mxu0 %v1311
    %1313 = vmatprep.subr.mxu0 0.0
    %v1314 = vand.u32 %v200, 4294901760
    %v1315 = vsub.f32 %v200, %v1314
    %1316 = vmatpush1.msra.mxu0 %v1315
    %1317 = vmatprep.subr.mxu0 0.0
    %v1318 = vand.u32 %v199, 4294901760
    %v1319 = vsub.f32 %v199, %v1318
    %1320 = vmatpush1.msra.mxu0 %v1319
    %1321 = vmatprep.subr.mxu0 0.0
    %v1322 = vand.u32 %v198, 4294901760
    %v1323 = vsub.f32 %v198, %v1322
    %1324 = vmatpush1.msra.mxu0 %v1323
    %1325 = vmatprep.subr.mxu0 0.0
    %v1326 = vand.u32 %v197, 4294901760
    %v1327 = vsub.f32 %v197, %v1326
    %1328 = vmatpush1.msra.mxu0 %v1327
    %1329 = vmatprep.subr.mxu0 0.0
    %v1330 = vand.u32 %v196, 4294901760
    %v1331 = vsub.f32 %v196, %v1330
    %1332 = vmatpush1.msra.mxu0 %v1331
    %1333 = vmatprep.subr.mxu0 0.0
    %v1334 = vand.u32 %v195, 4294901760
    %v1335 = vsub.f32 %v195, %v1334
    %1336 = vmatpush1.msra.mxu0 %v1335
    %1337 = vmatprep.subr.mxu0 0.0
    %v1338 = vand.u32 %v194, 4294901760
    %v1339 = vsub.f32 %v194, %v1338
    %1340 = vmatpush1.msra.mxu0 %v1339
    %1341 = vmatprep.subr.mxu0 0.0
    %v1342 = vand.u32 %v193, 4294901760
    %v1343 = vsub.f32 %v193, %v1342
    %1344 = vmatpush1.msra.mxu0 %v1343
    %1345 = vmatprep.subr.mxu0 0.0
    %v1346 = vand.u32 %v192, 4294901760
    %v1347 = vsub.f32 %v192, %v1346
    %1348 = vmatpush1.msra.mxu0 %v1347
    %1349 = vmatprep.subr.mxu0 0.0
    %1350 = vmatpush2.msra.mxu0 0.0
    %1351 = vmatprep.subr.mxu0 0.0
    %1352 = vmatpush2.msra.mxu0 0.0
    %1353 = vmatprep.subr.mxu0 0.0
    %1354 = vmatpush2.msra.mxu0 0.0
    %1355 = vmatprep.subr.mxu0 0.0
    %1356 = vmatpush2.msra.mxu0 0.0
    %1357 = vmatprep.subr.mxu0 0.0
    %1358 = vmatpush2.msra.mxu0 0.0
    %1359 = vmatprep.subr.mxu0 0.0
    %1360 = vmatpush2.msra.mxu0 0.0
    %1361 = vmatprep.subr.mxu0 0.0
    %1362 = vmatpush2.msra.mxu0 0.0
    %1363 = vmatprep.subr.mxu0 0.0
    %1364 = vmatpush2.msra.mxu0 0.0
    %1365 = vmatprep.subr.mxu0 0.0
    %1366 = vmatpush2.msra.mxu0 0.0
    %1367 = vmatprep.subr.mxu0 0.0
    %1368 = vmatpush2.msra.mxu0 0.0
    %1369 = vmatprep.subr.mxu0 0.0
    %1370 = vmatpush2.msra.mxu0 0.0
    %1371 = vmatprep.subr.mxu0 0.0
    %1372 = vmatpush2.msra.mxu0 0.0
    %1373 = vmatprep.subr.mxu0 0.0
    %1374 = vmatpush2.msra.mxu0 0.0
    %1375 = vmatprep.subr.mxu0 0.0
    %1376 = vmatpush2.msra.mxu0 0.0
    %1377 = vmatprep.subr.mxu0 0.0
    %1378 = vmatpush2.msra.mxu0 0.0
    %1379 = vmatprep.subr.mxu0 0.0
    %1380 = vmatpush2.msra.mxu0 0.0
    %1381 = vmatprep.mubr.f32.mxu0 0.0
    %v1382 = vand.u32 %v175, 4294901760
    %v1383 = vsub.f32 %v175, %v1382
    %1384 = vmatmul.mubr.f32.gmra.mxu0 %v1383
    %v1385 = vpop.f32.mrf.mxu0
    %v1386 = vadd.f32 %v1264, %v1385
    %v1387 = vpop.f32.mrf.mxu0
    %1388 = vmatprep.mubr.f32.mxu0 0.0
    %v1389 = vand.u32 %v176, 4294901760
    %v1390 = vsub.f32 %v176, %v1389
    %1391 = vmatmul.mubr.f32.gmra.mxu0 %v1390
    %v1392 = vpop.f32.mrf.mxu0
    %v1393 = vadd.f32 %v1270, %v1392
    %v1394 = vpop.f32.mrf.mxu0
    %1395 = vmatprep.mubr.f32.mxu0 0.0
    %v1396 = vand.u32 %v177, 4294901760
    %v1397 = vsub.f32 %v177, %v1396
    %1398 = vmatmul.mubr.f32.gmra.mxu0 %v1397
    %v1399 = vpop.f32.mrf.mxu0
    %v1400 = vadd.f32 %v1276, %v1399
    %v1401 = vpop.f32.mrf.mxu0
    %1402 = vmatprep.mubr.f32.mxu0 0.0
    %v1403 = vand.u32 %v178, 4294901760
    %v1404 = vsub.f32 %v178, %v1403
    %1405 = vmatmul.mubr.f32.gmra.mxu0 %v1404
    %v1406 = vpop.f32.mrf.mxu0
    %v1407 = vadd.f32 %v1282, %v1406
    %v1408 = vpop.f32.mrf.mxu0
    %1409 = vdwg.mxu0
    %1410 = vmatprep.subr.mxu0 0.0
    %v1411 = vand.u32 %v207, 4294901760
    %1412 = vmatpush1.msra.mxu0 %v1411
    %1413 = vmatprep.subr.mxu0 0.0
    %v1414 = vand.u32 %v206, 4294901760
    %1415 = vmatpush1.msra.mxu0 %v1414
    %1416 = vmatprep.subr.mxu0 0.0
    %v1417 = vand.u32 %v205, 4294901760
    %1418 = vmatpush1.msra.mxu0 %v1417
    %1419 = vmatprep.subr.mxu0 0.0
    %v1420 = vand.u32 %v204, 4294901760
    %1421 = vmatpush1.msra.mxu0 %v1420
    %1422 = vmatprep.subr.mxu0 0.0
    %v1423 = vand.u32 %v203, 4294901760
    %1424 = vmatpush1.msra.mxu0 %v1423
    %1425 = vmatprep.subr.mxu0 0.0
    %v1426 = vand.u32 %v202, 4294901760
    %1427 = vmatpush1.msra.mxu0 %v1426
    %1428 = vmatprep.subr.mxu0 0.0
    %v1429 = vand.u32 %v201, 4294901760
    %1430 = vmatpush1.msra.mxu0 %v1429
    %1431 = vmatprep.subr.mxu0 0.0
    %v1432 = vand.u32 %v200, 4294901760
    %1433 = vmatpush1.msra.mxu0 %v1432
    %1434 = vmatprep.subr.mxu0 0.0
    %v1435 = vand.u32 %v199, 4294901760
    %1436 = vmatpush1.msra.mxu0 %v1435
    %1437 = vmatprep.subr.mxu0 0.0
    %v1438 = vand.u32 %v198, 4294901760
    %1439 = vmatpush1.msra.mxu0 %v1438
    %1440 = vmatprep.subr.mxu0 0.0
    %v1441 = vand.u32 %v197, 4294901760
    %1442 = vmatpush1.msra.mxu0 %v1441
    %1443 = vmatprep.subr.mxu0 0.0
    %v1444 = vand.u32 %v196, 4294901760
    %1445 = vmatpush1.msra.mxu0 %v1444
    %1446 = vmatprep.subr.mxu0 0.0
    %v1447 = vand.u32 %v195, 4294901760
    %1448 = vmatpush1.msra.mxu0 %v1447
    %1449 = vmatprep.subr.mxu0 0.0
    %v1450 = vand.u32 %v194, 4294901760
    %1451 = vmatpush1.msra.mxu0 %v1450
    %1452 = vmatprep.subr.mxu0 0.0
    %v1453 = vand.u32 %v193, 4294901760
    %1454 = vmatpush1.msra.mxu0 %v1453
    %1455 = vmatprep.subr.mxu0 0.0
    %v1456 = vand.u32 %v192, 4294901760
    %1457 = vmatpush1.msra.mxu0 %v1456
    %1458 = vmatprep.subr.mxu0 0.0
    %1459 = vmatpush2.msra.mxu0 0.0
    %1460 = vmatprep.subr.mxu0 0.0
    %1461 = vmatpush2.msra.mxu0 0.0
    %1462 = vmatprep.subr.mxu0 0.0
    %1463 = vmatpush2.msra.mxu0 0.0
    %1464 = vmatprep.subr.mxu0 0.0
    %1465 = vmatpush2.msra.mxu0 0.0
    %1466 = vmatprep.subr.mxu0 0.0
    %1467 = vmatpush2.msra.mxu0 0.0
    %1468 = vmatprep.subr.mxu0 0.0
    %1469 = vmatpush2.msra.mxu0 0.0
    %1470 = vmatprep.subr.mxu0 0.0
    %1471 = vmatpush2.msra.mxu0 0.0
    %1472 = vmatprep.subr.mxu0 0.0
    %1473 = vmatpush2.msra.mxu0 0.0
    %1474 = vmatprep.subr.mxu0 0.0
    %1475 = vmatpush2.msra.mxu0 0.0
    %1476 = vmatprep.subr.mxu0 0.0
    %1477 = vmatpush2.msra.mxu0 0.0
    %1478 = vmatprep.subr.mxu0 0.0
    %1479 = vmatpush2.msra.mxu0 0.0
    %1480 = vmatprep.subr.mxu0 0.0
    %1481 = vmatpush2.msra.mxu0 0.0
    %1482 = vmatprep.subr.mxu0 0.0
    %1483 = vmatpush2.msra.mxu0 0.0
    %1484 = vmatprep.subr.mxu0 0.0
    %1485 = vmatpush2.msra.mxu0 0.0
    %1486 = vmatprep.subr.mxu0 0.0
    %1487 = vmatpush2.msra.mxu0 0.0
    %1488 = vmatprep.subr.mxu0 0.0
    %1489 = vmatpush2.msra.mxu0 0.0
    %1490 = vmatprep.mubr.f32.mxu0 0.0
    %v1491 = vand.u32 %v175, 4294901760
    %v1492 = vsub.f32 %v175, %v1491
    %v1493 = vand.u32 %v1492, 4294901760
    %1494 = vmatmul.mubr.f32.gmra.mxu0 %v1493
    %v1495 = vpop.f32.mrf.mxu0
    %v1496 = vadd.f32 %v1386, %v1495
    %v1497 = vpop.f32.mrf.mxu0
    %1498 = vmatprep.mubr.f32.mxu0 0.0
    %v1499 = vand.u32 %v176, 4294901760
    %v1500 = vsub.f32 %v176, %v1499
    %v1501 = vand.u32 %v1500, 4294901760
    %1502 = vmatmul.mubr.f32.gmra.mxu0 %v1501
    %v1503 = vpop.f32.mrf.mxu0
    %v1504 = vadd.f32 %v1393, %v1503
    %v1505 = vpop.f32.mrf.mxu0
    %1506 = vmatprep.mubr.f32.mxu0 0.0
    %v1507 = vand.u32 %v177, 4294901760
    %v1508 = vsub.f32 %v177, %v1507
    %v1509 = vand.u32 %v1508, 4294901760
    %1510 = vmatmul.mubr.f32.gmra.mxu0 %v1509
    %v1511 = vpop.f32.mrf.mxu0
    %v1512 = vadd.f32 %v1400, %v1511
    %v1513 = vpop.f32.mrf.mxu0
    %1514 = vmatprep.mubr.f32.mxu0 0.0
    %v1515 = vand.u32 %v178, 4294901760
    %v1516 = vsub.f32 %v178, %v1515
    %v1517 = vand.u32 %v1516, 4294901760
    %1518 = vmatmul.mubr.f32.gmra.mxu0 %v1517
    %v1519 = vpop.f32.mrf.mxu0
    %v1520 = vadd.f32 %v1407, %v1519
    %v1521 = vpop.f32.mrf.mxu0
    %1522 = vdwg.mxu0
    %1523 = vmatprep.subr.mxu0 0.0
    %v1524 = vand.u32 %v207, 4294901760
    %v1525 = vsub.f32 %v207, %v1524
    %v1526 = vand.u32 %v1525, 4294901760
    %1527 = vmatpush1.msra.mxu0 %v1526
    %1528 = vmatprep.subr.mxu0 0.0
    %v1529 = vand.u32 %v206, 4294901760
    %v1530 = vsub.f32 %v206, %v1529
    %v1531 = vand.u32 %v1530, 4294901760
    %1532 = vmatpush1.msra.mxu0 %v1531
    %1533 = vmatprep.subr.mxu0 0.0
    %v1534 = vand.u32 %v205, 4294901760
    %v1535 = vsub.f32 %v205, %v1534
    %v1536 = vand.u32 %v1535, 4294901760
    %1537 = vmatpush1.msra.mxu0 %v1536
    %1538 = vmatprep.subr.mxu0 0.0
    %v1539 = vand.u32 %v204, 4294901760
    %v1540 = vsub.f32 %v204, %v1539
    %v1541 = vand.u32 %v1540, 4294901760
    %1542 = vmatpush1.msra.mxu0 %v1541
    %1543 = vmatprep.subr.mxu0 0.0
    %v1544 = vand.u32 %v203, 4294901760
    %v1545 = vsub.f32 %v203, %v1544
    %v1546 = vand.u32 %v1545, 4294901760
    %1547 = vmatpush1.msra.mxu0 %v1546
    %1548 = vmatprep.subr.mxu0 0.0
    %v1549 = vand.u32 %v202, 4294901760
    %v1550 = vsub.f32 %v202, %v1549
    %v1551 = vand.u32 %v1550, 4294901760
    %1552 = vmatpush1.msra.mxu0 %v1551
    %1553 = vmatprep.subr.mxu0 0.0
    %v1554 = vand.u32 %v201, 4294901760
    %v1555 = vsub.f32 %v201, %v1554
    %v1556 = vand.u32 %v1555, 4294901760
    %1557 = vmatpush1.msra.mxu0 %v1556
    %1558 = vmatprep.subr.mxu0 0.0
    %v1559 = vand.u32 %v200, 4294901760
    %v1560 = vsub.f32 %v200, %v1559
    %v1561 = vand.u32 %v1560, 4294901760
    %1562 = vmatpush1.msra.mxu0 %v1561
    %1563 = vmatprep.subr.mxu0 0.0
    %v1564 = vand.u32 %v199, 4294901760
    %v1565 = vsub.f32 %v199, %v1564
    %v1566 = vand.u32 %v1565, 4294901760
    %1567 = vmatpush1.msra.mxu0 %v1566
    %1568 = vmatprep.subr.mxu0 0.0
    %v1569 = vand.u32 %v198, 4294901760
    %v1570 = vsub.f32 %v198, %v1569
    %v1571 = vand.u32 %v1570, 4294901760
    %1572 = vmatpush1.msra.mxu0 %v1571
    %1573 = vmatprep.subr.mxu0 0.0
    %v1574 = vand.u32 %v197, 4294901760
    %v1575 = vsub.f32 %v197, %v1574
    %v1576 = vand.u32 %v1575, 4294901760
    %1577 = vmatpush1.msra.mxu0 %v1576
    %1578 = vmatprep.subr.mxu0 0.0
    %v1579 = vand.u32 %v196, 4294901760
    %v1580 = vsub.f32 %v196, %v1579
    %v1581 = vand.u32 %v1580, 4294901760
    %1582 = vmatpush1.msra.mxu0 %v1581
    %1583 = vmatprep.subr.mxu0 0.0
    %v1584 = vand.u32 %v195, 4294901760
    %v1585 = vsub.f32 %v195, %v1584
    %v1586 = vand.u32 %v1585, 4294901760
    %1587 = vmatpush1.msra.mxu0 %v1586
    %1588 = vmatprep.subr.mxu0 0.0
    %v1589 = vand.u32 %v194, 4294901760
    %v1590 = vsub.f32 %v194, %v1589
    %v1591 = vand.u32 %v1590, 4294901760
    %1592 = vmatpush1.msra.mxu0 %v1591
    %1593 = vmatprep.subr.mxu0 0.0
    %v1594 = vand.u32 %v193, 4294901760
    %v1595 = vsub.f32 %v193, %v1594
    %v1596 = vand.u32 %v1595, 4294901760
    %1597 = vmatpush1.msra.mxu0 %v1596
    %1598 = vmatprep.subr.mxu0 0.0
    %v1599 = vand.u32 %v192, 4294901760
    %v1600 = vsub.f32 %v192, %v1599
    %v1601 = vand.u32 %v1600, 4294901760
    %1602 = vmatpush1.msra.mxu0 %v1601
    %1603 = vmatprep.subr.mxu0 0.0
    %1604 = vmatpush2.msra.mxu0 0.0
    %1605 = vmatprep.subr.mxu0 0.0
    %1606 = vmatpush2.msra.mxu0 0.0
    %1607 = vmatprep.subr.mxu0 0.0
    %1608 = vmatpush2.msra.mxu0 0.0
    %1609 = vmatprep.subr.mxu0 0.0
    %1610 = vmatpush2.msra.mxu0 0.0
    %1611 = vmatprep.subr.mxu0 0.0
    %1612 = vmatpush2.msra.mxu0 0.0
    %1613 = vmatprep.subr.mxu0 0.0
    %1614 = vmatpush2.msra.mxu0 0.0
    %1615 = vmatprep.subr.mxu0 0.0
    %1616 = vmatpush2.msra.mxu0 0.0
    %1617 = vmatprep.subr.mxu0 0.0
    %1618 = vmatpush2.msra.mxu0 0.0
    %1619 = vmatprep.subr.mxu0 0.0
    %1620 = vmatpush2.msra.mxu0 0.0
    %1621 = vmatprep.subr.mxu0 0.0
    %1622 = vmatpush2.msra.mxu0 0.0
    %1623 = vmatprep.subr.mxu0 0.0
    %1624 = vmatpush2.msra.mxu0 0.0
    %1625 = vmatprep.subr.mxu0 0.0
    %1626 = vmatpush2.msra.mxu0 0.0
    %1627 = vmatprep.subr.mxu0 0.0
    %1628 = vmatpush2.msra.mxu0 0.0
    %1629 = vmatprep.subr.mxu0 0.0
    %1630 = vmatpush2.msra.mxu0 0.0
    %1631 = vmatprep.subr.mxu0 0.0
    %1632 = vmatpush2.msra.mxu0 0.0
    %1633 = vmatprep.subr.mxu0 0.0
    %1634 = vmatpush2.msra.mxu0 0.0
    %1635 = vmatprep.mubr.f32.mxu0 0.0
    %v1636 = vand.u32 %v175, 4294901760
    %1637 = vmatmul.mubr.f32.gmra.mxu0 %v1636
    %v1638 = vpop.f32.mrf.mxu0
    %v1639 = vadd.f32 %v1496, %v1638
    %v1640 = vpop.f32.mrf.mxu0
    %1641 = vmatprep.mubr.f32.mxu0 0.0
    %v1642 = vand.u32 %v176, 4294901760
    %1643 = vmatmul.mubr.f32.gmra.mxu0 %v1642
    %v1644 = vpop.f32.mrf.mxu0
    %v1645 = vadd.f32 %v1504, %v1644
    %v1646 = vpop.f32.mrf.mxu0
    %1647 = vmatprep.mubr.f32.mxu0 0.0
    %v1648 = vand.u32 %v177, 4294901760
    %1649 = vmatmul.mubr.f32.gmra.mxu0 %v1648
    %v1650 = vpop.f32.mrf.mxu0
    %v1651 = vadd.f32 %v1512, %v1650
    %v1652 = vpop.f32.mrf.mxu0
    %1653 = vmatprep.mubr.f32.mxu0 0.0
    %v1654 = vand.u32 %v178, 4294901760
    %1655 = vmatmul.mubr.f32.gmra.mxu0 %v1654
    %v1656 = vpop.f32.mrf.mxu0
    %v1657 = vadd.f32 %v1520, %v1656
    %v1658 = vpop.f32.mrf.mxu0
    %1659 = vdwg.mxu0
    %1660 = vmatprep.subr.mxu0 0.0
    %v1661 = vand.u32 %v207, 4294901760
    %1662 = vmatpush1.msra.mxu0 %v1661
    %1663 = vmatprep.subr.mxu0 0.0
    %v1664 = vand.u32 %v206, 4294901760
    %1665 = vmatpush1.msra.mxu0 %v1664
    %1666 = vmatprep.subr.mxu0 0.0
    %v1667 = vand.u32 %v205, 4294901760
    %1668 = vmatpush1.msra.mxu0 %v1667
    %1669 = vmatprep.subr.mxu0 0.0
    %v1670 = vand.u32 %v204, 4294901760
    %1671 = vmatpush1.msra.mxu0 %v1670
    %1672 = vmatprep.subr.mxu0 0.0
    %v1673 = vand.u32 %v203, 4294901760
    %1674 = vmatpush1.msra.mxu0 %v1673
    %1675 = vmatprep.subr.mxu0 0.0
    %v1676 = vand.u32 %v202, 4294901760
    %1677 = vmatpush1.msra.mxu0 %v1676
    %1678 = vmatprep.subr.mxu0 0.0
    %v1679 = vand.u32 %v201, 4294901760
    %1680 = vmatpush1.msra.mxu0 %v1679
    %1681 = vmatprep.subr.mxu0 0.0
    %v1682 = vand.u32 %v200, 4294901760
    %1683 = vmatpush1.msra.mxu0 %v1682
    %1684 = vmatprep.subr.mxu0 0.0
    %v1685 = vand.u32 %v199, 4294901760
    %1686 = vmatpush1.msra.mxu0 %v1685
    %1687 = vmatprep.subr.mxu0 0.0
    %v1688 = vand.u32 %v198, 4294901760
    %1689 = vmatpush1.msra.mxu0 %v1688
    %1690 = vmatprep.subr.mxu0 0.0
    %v1691 = vand.u32 %v197, 4294901760
    %1692 = vmatpush1.msra.mxu0 %v1691
    %1693 = vmatprep.subr.mxu0 0.0
    %v1694 = vand.u32 %v196, 4294901760
    %1695 = vmatpush1.msra.mxu0 %v1694
    %1696 = vmatprep.subr.mxu0 0.0
    %v1697 = vand.u32 %v195, 4294901760
    %1698 = vmatpush1.msra.mxu0 %v1697
    %1699 = vmatprep.subr.mxu0 0.0
    %v1700 = vand.u32 %v194, 4294901760
    %1701 = vmatpush1.msra.mxu0 %v1700
    %1702 = vmatprep.subr.mxu0 0.0
    %v1703 = vand.u32 %v193, 4294901760
    %1704 = vmatpush1.msra.mxu0 %v1703
    %1705 = vmatprep.subr.mxu0 0.0
    %v1706 = vand.u32 %v192, 4294901760
    %1707 = vmatpush1.msra.mxu0 %v1706
    %1708 = vmatprep.subr.mxu0 0.0
    %1709 = vmatpush2.msra.mxu0 0.0
    %1710 = vmatprep.subr.mxu0 0.0
    %1711 = vmatpush2.msra.mxu0 0.0
    %1712 = vmatprep.subr.mxu0 0.0
    %1713 = vmatpush2.msra.mxu0 0.0
    %1714 = vmatprep.subr.mxu0 0.0
    %1715 = vmatpush2.msra.mxu0 0.0
    %1716 = vmatprep.subr.mxu0 0.0
    %1717 = vmatpush2.msra.mxu0 0.0
    %1718 = vmatprep.subr.mxu0 0.0
    %1719 = vmatpush2.msra.mxu0 0.0
    %1720 = vmatprep.subr.mxu0 0.0
    %1721 = vmatpush2.msra.mxu0 0.0
    %1722 = vmatprep.subr.mxu0 0.0
    %1723 = vmatpush2.msra.mxu0 0.0
    %1724 = vmatprep.subr.mxu0 0.0
    %1725 = vmatpush2.msra.mxu0 0.0
    %1726 = vmatprep.subr.mxu0 0.0
    %1727 = vmatpush2.msra.mxu0 0.0
    %1728 = vmatprep.subr.mxu0 0.0
    %1729 = vmatpush2.msra.mxu0 0.0
    %1730 = vmatprep.subr.mxu0 0.0
    %1731 = vmatpush2.msra.mxu0 0.0
    %1732 = vmatprep.subr.mxu0 0.0
    %1733 = vmatpush2.msra.mxu0 0.0
    %1734 = vmatprep.subr.mxu0 0.0
    %1735 = vmatpush2.msra.mxu0 0.0
    %1736 = vmatprep.subr.mxu0 0.0
    %1737 = vmatpush2.msra.mxu0 0.0
    %1738 = vmatprep.subr.mxu0 0.0
    %1739 = vmatpush2.msra.mxu0 0.0
    %1740 = vmatprep.mubr.f32.mxu0 0.0
    %v1741 = vand.u32 %v175, 4294901760
    %1742 = vmatmul.mubr.f32.gmra.mxu0 %v1741
    %v1743 = vpop.f32.mrf.mxu0
    %v1744 = vadd.f32 %v1639, %v1743
    %v1745 = vpop.f32.mrf.mxu0
    %1746 = vmatprep.mubr.f32.mxu0 0.0
    %v1747 = vand.u32 %v176, 4294901760
    %1748 = vmatmul.mubr.f32.gmra.mxu0 %v1747
    %v1749 = vpop.f32.mrf.mxu0
    %v1750 = vadd.f32 %v1645, %v1749
    %v1751 = vpop.f32.mrf.mxu0
    %1752 = vmatprep.mubr.f32.mxu0 0.0
    %v1753 = vand.u32 %v177, 4294901760
    %1754 = vmatmul.mubr.f32.gmra.mxu0 %v1753
    %v1755 = vpop.f32.mrf.mxu0
    %v1756 = vadd.f32 %v1651, %v1755
    %v1757 = vpop.f32.mrf.mxu0
    %1758 = vmatprep.mubr.f32.mxu0 0.0
    %v1759 = vand.u32 %v178, 4294901760
    %1760 = vmatmul.mubr.f32.gmra.mxu0 %v1759
    %v1761 = vpop.f32.mrf.mxu0
    %v1762 = vadd.f32 %v1657, %v1761
    %v1763 = vpop.f32.mrf.mxu0
    %1764 = vdwg.mxu0
    %s1765 = scalar_lea.vmem [#allocation5], 256
    %v1766 = vld [vmem:[%s1765] sm:$0xff]
    %v1767 = vld [vmem:[%s1765 + $0x8] sm:$0xff]
    %v1768 = vld [vmem:[%s1765 + $0x10] sm:$0xff]
    %v1769 = vld [vmem:[%s1765 + $0x18] sm:$0xff]
    %v1770 = vld [vmem:[%s1765 + $0x20] sm:$0xff]
    %v1771 = vld [vmem:[%s1765 + $0x28] sm:$0xff]
    %v1772 = vld [vmem:[%s1765 + $0x30] sm:$0xff]
    %v1773 = vld [vmem:[%s1765 + $0x38] sm:$0xff]
    %v1774 = vld [vmem:[%s1765 + $0x40] sm:$0xff]
    %v1775 = vld [vmem:[%s1765 + $0x48] sm:$0xff]
    %v1776 = vld [vmem:[%s1765 + $0x50] sm:$0xff]
    %v1777 = vld [vmem:[%s1765 + $0x58] sm:$0xff]
    %v1778 = vld [vmem:[%s1765 + $0x60] sm:$0xff]
    %v1779 = vld [vmem:[%s1765 + $0x68] sm:$0xff]
    %v1780 = vld [vmem:[%s1765 + $0x70] sm:$0xff]
    %v1781 = vld [vmem:[%s1765 + $0x78] sm:$0xff]
    %1782 = vmatprep.subr.mxu0 0.0
    %v1783 = vand.u32 %v1781, 4294901760
    %1784 = vmatpush1.msra.mxu0 %v1783
    %1785 = vmatprep.subr.mxu0 0.0
    %v1786 = vand.u32 %v1780, 4294901760
    %1787 = vmatpush1.msra.mxu0 %v1786
    %1788 = vmatprep.subr.mxu0 0.0
    %v1789 = vand.u32 %v1779, 4294901760
    %1790 = vmatpush1.msra.mxu0 %v1789
    %1791 = vmatprep.subr.mxu0 0.0
    %v1792 = vand.u32 %v1778, 4294901760
    %1793 = vmatpush1.msra.mxu0 %v1792
    %1794 = vmatprep.subr.mxu0 0.0
    %v1795 = vand.u32 %v1777, 4294901760
    %1796 = vmatpush1.msra.mxu0 %v1795
    %1797 = vmatprep.subr.mxu0 0.0
    %v1798 = vand.u32 %v1776, 4294901760
    %1799 = vmatpush1.msra.mxu0 %v1798
    %1800 = vmatprep.subr.mxu0 0.0
    %v1801 = vand.u32 %v1775, 4294901760
    %1802 = vmatpush1.msra.mxu0 %v1801
    %1803 = vmatprep.subr.mxu0 0.0
    %v1804 = vand.u32 %v1774, 4294901760
    %1805 = vmatpush1.msra.mxu0 %v1804
    %1806 = vmatprep.subr.mxu0 0.0
    %v1807 = vand.u32 %v1773, 4294901760
    %1808 = vmatpush1.msra.mxu0 %v1807
    %1809 = vmatprep.subr.mxu0 0.0
    %v1810 = vand.u32 %v1772, 4294901760
    %1811 = vmatpush1.msra.mxu0 %v1810
    %1812 = vmatprep.subr.mxu0 0.0
    %v1813 = vand.u32 %v1771, 4294901760
    %1814 = vmatpush1.msra.mxu0 %v1813
    %1815 = vmatprep.subr.mxu0 0.0
    %v1816 = vand.u32 %v1770, 4294901760
    %1817 = vmatpush1.msra.mxu0 %v1816
    %1818 = vmatprep.subr.mxu0 0.0
    %v1819 = vand.u32 %v1769, 4294901760
    %1820 = vmatpush1.msra.mxu0 %v1819
    %1821 = vmatprep.subr.mxu0 0.0
    %v1822 = vand.u32 %v1768, 4294901760
    %1823 = vmatpush1.msra.mxu0 %v1822
    %1824 = vmatprep.subr.mxu0 0.0
    %v1825 = vand.u32 %v1767, 4294901760
    %1826 = vmatpush1.msra.mxu0 %v1825
    %1827 = vmatprep.subr.mxu0 0.0
    %v1828 = vand.u32 %v1766, 4294901760
    %1829 = vmatpush1.msra.mxu0 %v1828
    %1830 = vmatprep.subr.mxu0 0.0
    %1831 = vmatpush2.msra.mxu0 0.0
    %1832 = vmatprep.subr.mxu0 0.0
    %1833 = vmatpush2.msra.mxu0 0.0
    %1834 = vmatprep.subr.mxu0 0.0
    %1835 = vmatpush2.msra.mxu0 0.0
    %1836 = vmatprep.subr.mxu0 0.0
    %1837 = vmatpush2.msra.mxu0 0.0
    %1838 = vmatprep.subr.mxu0 0.0
    %1839 = vmatpush2.msra.mxu0 0.0
    %1840 = vmatprep.subr.mxu0 0.0
    %1841 = vmatpush2.msra.mxu0 0.0
    %1842 = vmatprep.subr.mxu0 0.0
    %1843 = vmatpush2.msra.mxu0 0.0
    %1844 = vmatprep.subr.mxu0 0.0
    %1845 = vmatpush2.msra.mxu0 0.0
    %1846 = vmatprep.subr.mxu0 0.0
    %1847 = vmatpush2.msra.mxu0 0.0
    %1848 = vmatprep.subr.mxu0 0.0
    %1849 = vmatpush2.msra.mxu0 0.0
    %1850 = vmatprep.subr.mxu0 0.0
    %1851 = vmatpush2.msra.mxu0 0.0
    %1852 = vmatprep.subr.mxu0 0.0
    %1853 = vmatpush2.msra.mxu0 0.0
    %1854 = vmatprep.subr.mxu0 0.0
    %1855 = vmatpush2.msra.mxu0 0.0
    %1856 = vmatprep.subr.mxu0 0.0
    %1857 = vmatpush2.msra.mxu0 0.0
    %1858 = vmatprep.subr.mxu0 0.0
    %1859 = vmatpush2.msra.mxu0 0.0
    %1860 = vmatprep.subr.mxu0 0.0
    %1861 = vmatpush2.msra.mxu0 0.0
    %1862 = vmatprep.mubr.f32.mxu0 0.0
    %v1863 = vand.u32 %v188, 4294901760
    %v1864 = vsub.f32 %v188, %v1863
    %v1865 = vand.u32 %v1864, 4294901760
    %v1866 = vsub.f32 %v1864, %v1865
    %v1867 = vand.u32 %v1866, 4294901760
    %1868 = vmatmul.mubr.f32.gmra.mxu0 %v1867
    %v1869 = vpop.f32.mrf.mxu0
    %v1870 = vadd.f32 0.0, %v1869
    %v1871 = vpop.f32.mrf.mxu0
    %1872 = vmatprep.mubr.f32.mxu0 0.0
    %v1873 = vand.u32 %v189, 4294901760
    %v1874 = vsub.f32 %v189, %v1873
    %v1875 = vand.u32 %v1874, 4294901760
    %v1876 = vsub.f32 %v1874, %v1875
    %v1877 = vand.u32 %v1876, 4294901760
    %1878 = vmatmul.mubr.f32.gmra.mxu0 %v1877
    %v1879 = vpop.f32.mrf.mxu0
    %v1880 = vadd.f32 0.0, %v1879
    %v1881 = vpop.f32.mrf.mxu0
    %1882 = vmatprep.mubr.f32.mxu0 0.0
    %v1883 = vand.u32 %v190, 4294901760
    %v1884 = vsub.f32 %v190, %v1883
    %v1885 = vand.u32 %v1884, 4294901760
    %v1886 = vsub.f32 %v1884, %v1885
    %v1887 = vand.u32 %v1886, 4294901760
    %1888 = vmatmul.mubr.f32.gmra.mxu0 %v1887
    %v1889 = vpop.f32.mrf.mxu0
    %v1890 = vadd.f32 0.0, %v1889
    %v1891 = vpop.f32.mrf.mxu0
    %1892 = vmatprep.mubr.f32.mxu0 0.0
    %v1893 = vand.u32 %v191, 4294901760
    %v1894 = vsub.f32 %v191, %v1893
    %v1895 = vand.u32 %v1894, 4294901760
    %v1896 = vsub.f32 %v1894, %v1895
    %v1897 = vand.u32 %v1896, 4294901760
    %1898 = vmatmul.mubr.f32.gmra.mxu0 %v1897
    %v1899 = vpop.f32.mrf.mxu0
    %v1900 = vadd.f32 0.0, %v1899
    %v1901 = vpop.f32.mrf.mxu0
    %1902 = vdwg.mxu0
    %1903 = vmatprep.subr.mxu0 0.0
    %v1904 = vand.u32 %v1781, 4294901760
    %v1905 = vsub.f32 %v1781, %v1904
    %v1906 = vand.u32 %v1905, 4294901760
    %v1907 = vsub.f32 %v1905, %v1906
    %v1908 = vand.u32 %v1907, 4294901760
    %1909 = vmatpush1.msra.mxu0 %v1908
    %1910 = vmatprep.subr.mxu0 0.0
    %v1911 = vand.u32 %v1780, 4294901760
    %v1912 = vsub.f32 %v1780, %v1911
    %v1913 = vand.u32 %v1912, 4294901760
    %v1914 = vsub.f32 %v1912, %v1913
    %v1915 = vand.u32 %v1914, 4294901760
    %1916 = vmatpush1.msra.mxu0 %v1915
    %1917 = vmatprep.subr.mxu0 0.0
    %v1918 = vand.u32 %v1779, 4294901760
    %v1919 = vsub.f32 %v1779, %v1918
    %v1920 = vand.u32 %v1919, 4294901760
    %v1921 = vsub.f32 %v1919, %v1920
    %v1922 = vand.u32 %v1921, 4294901760
    %1923 = vmatpush1.msra.mxu0 %v1922
    %1924 = vmatprep.subr.mxu0 0.0
    %v1925 = vand.u32 %v1778, 4294901760
    %v1926 = vsub.f32 %v1778, %v1925
    %v1927 = vand.u32 %v1926, 4294901760
    %v1928 = vsub.f32 %v1926, %v1927
    %v1929 = vand.u32 %v1928, 4294901760
    %1930 = vmatpush1.msra.mxu0 %v1929
    %1931 = vmatprep.subr.mxu0 0.0
    %v1932 = vand.u32 %v1777, 4294901760
    %v1933 = vsub.f32 %v1777, %v1932
    %v1934 = vand.u32 %v1933, 4294901760
    %v1935 = vsub.f32 %v1933, %v1934
    %v1936 = vand.u32 %v1935, 4294901760
    %1937 = vmatpush1.msra.mxu0 %v1936
    %1938 = vmatprep.subr.mxu0 0.0
    %v1939 = vand.u32 %v1776, 4294901760
    %v1940 = vsub.f32 %v1776, %v1939
    %v1941 = vand.u32 %v1940, 4294901760
    %v1942 = vsub.f32 %v1940, %v1941
    %v1943 = vand.u32 %v1942, 4294901760
    %1944 = vmatpush1.msra.mxu0 %v1943
    %1945 = vmatprep.subr.mxu0 0.0
    %v1946 = vand.u32 %v1775, 4294901760
    %v1947 = vsub.f32 %v1775, %v1946
    %v1948 = vand.u32 %v1947, 4294901760
    %v1949 = vsub.f32 %v1947, %v1948
    %v1950 = vand.u32 %v1949, 4294901760
    %1951 = vmatpush1.msra.mxu0 %v1950
    %1952 = vmatprep.subr.mxu0 0.0
    %v1953 = vand.u32 %v1774, 4294901760
    %v1954 = vsub.f32 %v1774, %v1953
    %v1955 = vand.u32 %v1954, 4294901760
    %v1956 = vsub.f32 %v1954, %v1955
    %v1957 = vand.u32 %v1956, 4294901760
    %1958 = vmatpush1.msra.mxu0 %v1957
    %1959 = vmatprep.subr.mxu0 0.0
    %v1960 = vand.u32 %v1773, 4294901760
    %v1961 = vsub.f32 %v1773, %v1960
    %v1962 = vand.u32 %v1961, 4294901760
    %v1963 = vsub.f32 %v1961, %v1962
    %v1964 = vand.u32 %v1963, 4294901760
    %1965 = vmatpush1.msra.mxu0 %v1964
    %1966 = vmatprep.subr.mxu0 0.0
    %v1967 = vand.u32 %v1772, 4294901760
    %v1968 = vsub.f32 %v1772, %v1967
    %v1969 = vand.u32 %v1968, 4294901760
    %v1970 = vsub.f32 %v1968, %v1969
    %v1971 = vand.u32 %v1970, 4294901760
    %1972 = vmatpush1.msra.mxu0 %v1971
    %1973 = vmatprep.subr.mxu0 0.0
    %v1974 = vand.u32 %v1771, 4294901760
    %v1975 = vsub.f32 %v1771, %v1974
    %v1976 = vand.u32 %v1975, 4294901760
    %v1977 = vsub.f32 %v1975, %v1976
    %v1978 = vand.u32 %v1977, 4294901760
    %1979 = vmatpush1.msra.mxu0 %v1978
    %1980 = vmatprep.subr.mxu0 0.0
    %v1981 = vand.u32 %v1770, 4294901760
    %v1982 = vsub.f32 %v1770, %v1981
    %v1983 = vand.u32 %v1982, 4294901760
    %v1984 = vsub.f32 %v1982, %v1983
    %v1985 = vand.u32 %v1984, 4294901760
    %1986 = vmatpush1.msra.mxu0 %v1985
    %1987 = vmatprep.subr.mxu0 0.0
    %v1988 = vand.u32 %v1769, 4294901760
    %v1989 = vsub.f32 %v1769, %v1988
    %v1990 = vand.u32 %v1989, 4294901760
    %v1991 = vsub.f32 %v1989, %v1990
    %v1992 = vand.u32 %v1991, 4294901760
    %1993 = vmatpush1.msra.mxu0 %v1992
    %1994 = vmatprep.subr.mxu0 0.0
    %v1995 = vand.u32 %v1768, 4294901760
    %v1996 = vsub.f32 %v1768, %v1995
    %v1997 = vand.u32 %v1996, 4294901760
    %v1998 = vsub.f32 %v1996, %v1997
    %v1999 = vand.u32 %v1998, 4294901760
    %2000 = vmatpush1.msra.mxu0 %v1999
    %2001 = vmatprep.subr.mxu0 0.0
    %v2002 = vand.u32 %v1767, 4294901760
    %v2003 = vsub.f32 %v1767, %v2002
    %v2004 = vand.u32 %v2003, 4294901760
    %v2005 = vsub.f32 %v2003, %v2004
    %v2006 = vand.u32 %v2005, 4294901760
    %2007 = vmatpush1.msra.mxu0 %v2006
    %2008 = vmatprep.subr.mxu0 0.0
    %v2009 = vand.u32 %v1766, 4294901760
    %v2010 = vsub.f32 %v1766, %v2009
    %v2011 = vand.u32 %v2010, 4294901760
    %v2012 = vsub.f32 %v2010, %v2011
    %v2013 = vand.u32 %v2012, 4294901760
    %2014 = vmatpush1.msra.mxu0 %v2013
    %2015 = vmatprep.subr.mxu0 0.0
    %2016 = vmatpush2.msra.mxu0 0.0
    %2017 = vmatprep.subr.mxu0 0.0
    %2018 = vmatpush2.msra.mxu0 0.0
    %2019 = vmatprep.subr.mxu0 0.0
    %2020 = vmatpush2.msra.mxu0 0.0
    %2021 = vmatprep.subr.mxu0 0.0
    %2022 = vmatpush2.msra.mxu0 0.0
    %2023 = vmatprep.subr.mxu0 0.0
    %2024 = vmatpush2.msra.mxu0 0.0
    %2025 = vmatprep.subr.mxu0 0.0
    %2026 = vmatpush2.msra.mxu0 0.0
    %2027 = vmatprep.subr.mxu0 0.0
    %2028 = vmatpush2.msra.mxu0 0.0
    %2029 = vmatprep.subr.mxu0 0.0
    %2030 = vmatpush2.msra.mxu0 0.0
    %2031 = vmatprep.subr.mxu0 0.0
    %2032 = vmatpush2.msra.mxu0 0.0
    %2033 = vmatprep.subr.mxu0 0.0
    %2034 = vmatpush2.msra.mxu0 0.0
    %2035 = vmatprep.subr.mxu0 0.0
    %2036 = vmatpush2.msra.mxu0 0.0
    %2037 = vmatprep.subr.mxu0 0.0
    %2038 = vmatpush2.msra.mxu0 0.0
    %2039 = vmatprep.subr.mxu0 0.0
    %2040 = vmatpush2.msra.mxu0 0.0
    %2041 = vmatprep.subr.mxu0 0.0
    %2042 = vmatpush2.msra.mxu0 0.0
    %2043 = vmatprep.subr.mxu0 0.0
    %2044 = vmatpush2.msra.mxu0 0.0
    %2045 = vmatprep.subr.mxu0 0.0
    %2046 = vmatpush2.msra.mxu0 0.0
    %2047 = vmatprep.mubr.f32.mxu0 0.0
    %v2048 = vand.u32 %v188, 4294901760
    %2049 = vmatmul.mubr.f32.gmra.mxu0 %v2048
    %v2050 = vpop.f32.mrf.mxu0
    %v2051 = vadd.f32 %v1870, %v2050
    %v2052 = vpop.f32.mrf.mxu0
    %2053 = vmatprep.mubr.f32.mxu0 0.0
    %v2054 = vand.u32 %v189, 4294901760
    %2055 = vmatmul.mubr.f32.gmra.mxu0 %v2054
    %v2056 = vpop.f32.mrf.mxu0
    %v2057 = vadd.f32 %v1880, %v2056
    %v2058 = vpop.f32.mrf.mxu0
    %2059 = vmatprep.mubr.f32.mxu0 0.0
    %v2060 = vand.u32 %v190, 4294901760
    %2061 = vmatmul.mubr.f32.gmra.mxu0 %v2060
    %v2062 = vpop.f32.mrf.mxu0
    %v2063 = vadd.f32 %v1890, %v2062
    %v2064 = vpop.f32.mrf.mxu0
    %2065 = vmatprep.mubr.f32.mxu0 0.0
    %v2066 = vand.u32 %v191, 4294901760
    %2067 = vmatmul.mubr.f32.gmra.mxu0 %v2066
    %v2068 = vpop.f32.mrf.mxu0
    %v2069 = vadd.f32 %v1900, %v2068
    %v2070 = vpop.f32.mrf.mxu0
    %2071 = vdwg.mxu0
    %2072 = vmatprep.subr.mxu0 0.0
    %v2073 = vand.u32 %v1781, 4294901760
    %v2074 = vsub.f32 %v1781, %v2073
    %2075 = vmatpush1.msra.mxu0 %v2074
    %2076 = vmatprep.subr.mxu0 0.0
    %v2077 = vand.u32 %v1780, 4294901760
    %v2078 = vsub.f32 %v1780, %v2077
    %2079 = vmatpush1.msra.mxu0 %v2078
    %2080 = vmatprep.subr.mxu0 0.0
    %v2081 = vand.u32 %v1779, 4294901760
    %v2082 = vsub.f32 %v1779, %v2081
    %2083 = vmatpush1.msra.mxu0 %v2082
    %2084 = vmatprep.subr.mxu0 0.0
    %v2085 = vand.u32 %v1778, 4294901760
    %v2086 = vsub.f32 %v1778, %v2085
    %2087 = vmatpush1.msra.mxu0 %v2086
    %2088 = vmatprep.subr.mxu0 0.0
    %v2089 = vand.u32 %v1777, 4294901760
    %v2090 = vsub.f32 %v1777, %v2089
    %2091 = vmatpush1.msra.mxu0 %v2090
    %2092 = vmatprep.subr.mxu0 0.0
    %v2093 = vand.u32 %v1776, 4294901760
    %v2094 = vsub.f32 %v1776, %v2093
    %2095 = vmatpush1.msra.mxu0 %v2094
    %2096 = vmatprep.subr.mxu0 0.0
    %v2097 = vand.u32 %v1775, 4294901760
    %v2098 = vsub.f32 %v1775, %v2097
    %2099 = vmatpush1.msra.mxu0 %v2098
    %2100 = vmatprep.subr.mxu0 0.0
    %v2101 = vand.u32 %v1774, 4294901760
    %v2102 = vsub.f32 %v1774, %v2101
    %2103 = vmatpush1.msra.mxu0 %v2102
    %2104 = vmatprep.subr.mxu0 0.0
    %v2105 = vand.u32 %v1773, 4294901760
    %v2106 = vsub.f32 %v1773, %v2105
    %2107 = vmatpush1.msra.mxu0 %v2106
    %2108 = vmatprep.subr.mxu0 0.0
    %v2109 = vand.u32 %v1772, 4294901760
    %v2110 = vsub.f32 %v1772, %v2109
    %2111 = vmatpush1.msra.mxu0 %v2110
    %2112 = vmatprep.subr.mxu0 0.0
    %v2113 = vand.u32 %v1771, 4294901760
    %v2114 = vsub.f32 %v1771, %v2113
    %2115 = vmatpush1.msra.mxu0 %v2114
    %2116 = vmatprep.subr.mxu0 0.0
    %v2117 = vand.u32 %v1770, 4294901760
    %v2118 = vsub.f32 %v1770, %v2117
    %2119 = vmatpush1.msra.mxu0 %v2118
    %2120 = vmatprep.subr.mxu0 0.0
    %v2121 = vand.u32 %v1769, 4294901760
    %v2122 = vsub.f32 %v1769, %v2121
    %2123 = vmatpush1.msra.mxu0 %v2122
    %2124 = vmatprep.subr.mxu0 0.0
    %v2125 = vand.u32 %v1768, 4294901760
    %v2126 = vsub.f32 %v1768, %v2125
    %2127 = vmatpush1.msra.mxu0 %v2126
    %2128 = vmatprep.subr.mxu0 0.0
    %v2129 = vand.u32 %v1767, 4294901760
    %v2130 = vsub.f32 %v1767, %v2129
    %2131 = vmatpush1.msra.mxu0 %v2130
    %2132 = vmatprep.subr.mxu0 0.0
    %v2133 = vand.u32 %v1766, 4294901760
    %v2134 = vsub.f32 %v1766, %v2133
    %2135 = vmatpush1.msra.mxu0 %v2134
    %2136 = vmatprep.subr.mxu0 0.0
    %2137 = vmatpush2.msra.mxu0 0.0
    %2138 = vmatprep.subr.mxu0 0.0
    %2139 = vmatpush2.msra.mxu0 0.0
    %2140 = vmatprep.subr.mxu0 0.0
    %2141 = vmatpush2.msra.mxu0 0.0
    %2142 = vmatprep.subr.mxu0 0.0
    %2143 = vmatpush2.msra.mxu0 0.0
    %2144 = vmatprep.subr.mxu0 0.0
    %2145 = vmatpush2.msra.mxu0 0.0
    %2146 = vmatprep.subr.mxu0 0.0
    %2147 = vmatpush2.msra.mxu0 0.0
    %2148 = vmatprep.subr.mxu0 0.0
    %2149 = vmatpush2.msra.mxu0 0.0
    %2150 = vmatprep.subr.mxu0 0.0
    %2151 = vmatpush2.msra.mxu0 0.0
    %2152 = vmatprep.subr.mxu0 0.0
    %2153 = vmatpush2.msra.mxu0 0.0
    %2154 = vmatprep.subr.mxu0 0.0
    %2155 = vmatpush2.msra.mxu0 0.0
    %2156 = vmatprep.subr.mxu0 0.0
    %2157 = vmatpush2.msra.mxu0 0.0
    %2158 = vmatprep.subr.mxu0 0.0
    %2159 = vmatpush2.msra.mxu0 0.0
    %2160 = vmatprep.subr.mxu0 0.0
    %2161 = vmatpush2.msra.mxu0 0.0
    %2162 = vmatprep.subr.mxu0 0.0
    %2163 = vmatpush2.msra.mxu0 0.0
    %2164 = vmatprep.subr.mxu0 0.0
    %2165 = vmatpush2.msra.mxu0 0.0
    %2166 = vmatprep.subr.mxu0 0.0
    %2167 = vmatpush2.msra.mxu0 0.0
    %2168 = vmatprep.mubr.f32.mxu0 0.0
    %v2169 = vand.u32 %v188, 4294901760
    %v2170 = vsub.f32 %v188, %v2169
    %2171 = vmatmul.mubr.f32.gmra.mxu0 %v2170
    %v2172 = vpop.f32.mrf.mxu0
    %v2173 = vadd.f32 %v2051, %v2172
    %v2174 = vpop.f32.mrf.mxu0
    %2175 = vmatprep.mubr.f32.mxu0 0.0
    %v2176 = vand.u32 %v189, 4294901760
    %v2177 = vsub.f32 %v189, %v2176
    %2178 = vmatmul.mubr.f32.gmra.mxu0 %v2177
    %v2179 = vpop.f32.mrf.mxu0
    %v2180 = vadd.f32 %v2057, %v2179
    %v2181 = vpop.f32.mrf.mxu0
    %2182 = vmatprep.mubr.f32.mxu0 0.0
    %v2183 = vand.u32 %v190, 4294901760
    %v2184 = vsub.f32 %v190, %v2183
    %2185 = vmatmul.mubr.f32.gmra.mxu0 %v2184
    %v2186 = vpop.f32.mrf.mxu0
    %v2187 = vadd.f32 %v2063, %v2186
    %v2188 = vpop.f32.mrf.mxu0
    %2189 = vmatprep.mubr.f32.mxu0 0.0
    %v2190 = vand.u32 %v191, 4294901760
    %v2191 = vsub.f32 %v191, %v2190
    %2192 = vmatmul.mubr.f32.gmra.mxu0 %v2191
    %v2193 = vpop.f32.mrf.mxu0
    %v2194 = vadd.f32 %v2069, %v2193
    %v2195 = vpop.f32.mrf.mxu0
    %2196 = vdwg.mxu0
    %2197 = vmatprep.subr.mxu0 0.0
    %v2198 = vand.u32 %v1781, 4294901760
    %2199 = vmatpush1.msra.mxu0 %v2198
    %2200 = vmatprep.subr.mxu0 0.0
    %v2201 = vand.u32 %v1780, 4294901760
    %2202 = vmatpush1.msra.mxu0 %v2201
    %2203 = vmatprep.subr.mxu0 0.0
    %v2204 = vand.u32 %v1779, 4294901760
    %2205 = vmatpush1.msra.mxu0 %v2204
    %2206 = vmatprep.subr.mxu0 0.0
    %v2207 = vand.u32 %v1778, 4294901760
    %2208 = vmatpush1.msra.mxu0 %v2207
    %2209 = vmatprep.subr.mxu0 0.0
    %v2210 = vand.u32 %v1777, 4294901760
    %2211 = vmatpush1.msra.mxu0 %v2210
    %2212 = vmatprep.subr.mxu0 0.0
    %v2213 = vand.u32 %v1776, 4294901760
    %2214 = vmatpush1.msra.mxu0 %v2213
    %2215 = vmatprep.subr.mxu0 0.0
    %v2216 = vand.u32 %v1775, 4294901760
    %2217 = vmatpush1.msra.mxu0 %v2216
    %2218 = vmatprep.subr.mxu0 0.0
    %v2219 = vand.u32 %v1774, 4294901760
    %2220 = vmatpush1.msra.mxu0 %v2219
    %2221 = vmatprep.subr.mxu0 0.0
    %v2222 = vand.u32 %v1773, 4294901760
    %2223 = vmatpush1.msra.mxu0 %v2222
    %2224 = vmatprep.subr.mxu0 0.0
    %v2225 = vand.u32 %v1772, 4294901760
    %2226 = vmatpush1.msra.mxu0 %v2225
    %2227 = vmatprep.subr.mxu0 0.0
    %v2228 = vand.u32 %v1771, 4294901760
    %2229 = vmatpush1.msra.mxu0 %v2228
    %2230 = vmatprep.subr.mxu0 0.0
    %v2231 = vand.u32 %v1770, 4294901760
    %2232 = vmatpush1.msra.mxu0 %v2231
    %2233 = vmatprep.subr.mxu0 0.0
    %v2234 = vand.u32 %v1769, 4294901760
    %2235 = vmatpush1.msra.mxu0 %v2234
    %2236 = vmatprep.subr.mxu0 0.0
    %v2237 = vand.u32 %v1768, 4294901760
    %2238 = vmatpush1.msra.mxu0 %v2237
    %2239 = vmatprep.subr.mxu0 0.0
    %v2240 = vand.u32 %v1767, 4294901760
    %2241 = vmatpush1.msra.mxu0 %v2240
    %2242 = vmatprep.subr.mxu0 0.0
    %v2243 = vand.u32 %v1766, 4294901760
    %2244 = vmatpush1.msra.mxu0 %v2243
    %2245 = vmatprep.subr.mxu0 0.0
    %2246 = vmatpush2.msra.mxu0 0.0
    %2247 = vmatprep.subr.mxu0 0.0
    %2248 = vmatpush2.msra.mxu0 0.0
    %2249 = vmatprep.subr.mxu0 0.0
    %2250 = vmatpush2.msra.mxu0 0.0
    %2251 = vmatprep.subr.mxu0 0.0
    %2252 = vmatpush2.msra.mxu0 0.0
    %2253 = vmatprep.subr.mxu0 0.0
    %2254 = vmatpush2.msra.mxu0 0.0
    %2255 = vmatprep.subr.mxu0 0.0
    %2256 = vmatpush2.msra.mxu0 0.0
    %2257 = vmatprep.subr.mxu0 0.0
    %2258 = vmatpush2.msra.mxu0 0.0
    %2259 = vmatprep.subr.mxu0 0.0
    %2260 = vmatpush2.msra.mxu0 0.0
    %2261 = vmatprep.subr.mxu0 0.0
    %2262 = vmatpush2.msra.mxu0 0.0
    %2263 = vmatprep.subr.mxu0 0.0
    %2264 = vmatpush2.msra.mxu0 0.0
    %2265 = vmatprep.subr.mxu0 0.0
    %2266 = vmatpush2.msra.mxu0 0.0
    %2267 = vmatprep.subr.mxu0 0.0
    %2268 = vmatpush2.msra.mxu0 0.0
    %2269 = vmatprep.subr.mxu0 0.0
    %2270 = vmatpush2.msra.mxu0 0.0
    %2271 = vmatprep.subr.mxu0 0.0
    %2272 = vmatpush2.msra.mxu0 0.0
    %2273 = vmatprep.subr.mxu0 0.0
    %2274 = vmatpush2.msra.mxu0 0.0
    %2275 = vmatprep.subr.mxu0 0.0
    %2276 = vmatpush2.msra.mxu0 0.0
    %2277 = vmatprep.mubr.f32.mxu0 0.0
    %v2278 = vand.u32 %v188, 4294901760
    %v2279 = vsub.f32 %v188, %v2278
    %v2280 = vand.u32 %v2279, 4294901760
    %2281 = vmatmul.mubr.f32.gmra.mxu0 %v2280
    %v2282 = vpop.f32.mrf.mxu0
    %v2283 = vadd.f32 %v2173, %v2282
    %v2284 = vpop.f32.mrf.mxu0
    %2285 = vmatprep.mubr.f32.mxu0 0.0
    %v2286 = vand.u32 %v189, 4294901760
    %v2287 = vsub.f32 %v189, %v2286
    %v2288 = vand.u32 %v2287, 4294901760
    %2289 = vmatmul.mubr.f32.gmra.mxu0 %v2288
    %v2290 = vpop.f32.mrf.mxu0
    %v2291 = vadd.f32 %v2180, %v2290
    %v2292 = vpop.f32.mrf.mxu0
    %2293 = vmatprep.mubr.f32.mxu0 0.0
    %v2294 = vand.u32 %v190, 4294901760
    %v2295 = vsub.f32 %v190, %v2294
    %v2296 = vand.u32 %v2295, 4294901760
    %2297 = vmatmul.mubr.f32.gmra.mxu0 %v2296
    %v2298 = vpop.f32.mrf.mxu0
    %v2299 = vadd.f32 %v2187, %v2298
    %v2300 = vpop.f32.mrf.mxu0
    %2301 = vmatprep.mubr.f32.mxu0 0.0
    %v2302 = vand.u32 %v191, 4294901760
    %v2303 = vsub.f32 %v191, %v2302
    %v2304 = vand.u32 %v2303, 4294901760
    %2305 = vmatmul.mubr.f32.gmra.mxu0 %v2304
    %v2306 = vpop.f32.mrf.mxu0
    %v2307 = vadd.f32 %v2194, %v2306
    %v2308 = vpop.f32.mrf.mxu0
    %2309 = vdwg.mxu0
    %2310 = vmatprep.subr.mxu0 0.0
    %v2311 = vand.u32 %v1781, 4294901760
    %v2312 = vsub.f32 %v1781, %v2311
    %v2313 = vand.u32 %v2312, 4294901760
    %2314 = vmatpush1.msra.mxu0 %v2313
    %2315 = vmatprep.subr.mxu0 0.0
    %v2316 = vand.u32 %v1780, 4294901760
    %v2317 = vsub.f32 %v1780, %v2316
    %v2318 = vand.u32 %v2317, 4294901760
    %2319 = vmatpush1.msra.mxu0 %v2318
    %2320 = vmatprep.subr.mxu0 0.0
    %v2321 = vand.u32 %v1779, 4294901760
    %v2322 = vsub.f32 %v1779, %v2321
    %v2323 = vand.u32 %v2322, 4294901760
    %2324 = vmatpush1.msra.mxu0 %v2323
    %2325 = vmatprep.subr.mxu0 0.0
    %v2326 = vand.u32 %v1778, 4294901760
    %v2327 = vsub.f32 %v1778, %v2326
    %v2328 = vand.u32 %v2327, 4294901760
    %2329 = vmatpush1.msra.mxu0 %v2328
    %2330 = vmatprep.subr.mxu0 0.0
    %v2331 = vand.u32 %v1777, 4294901760
    %v2332 = vsub.f32 %v1777, %v2331
    %v2333 = vand.u32 %v2332, 4294901760
    %2334 = vmatpush1.msra.mxu0 %v2333
    %2335 = vmatprep.subr.mxu0 0.0
    %v2336 = vand.u32 %v1776, 4294901760
    %v2337 = vsub.f32 %v1776, %v2336
    %v2338 = vand.u32 %v2337, 4294901760
    %2339 = vmatpush1.msra.mxu0 %v2338
    %2340 = vmatprep.subr.mxu0 0.0
    %v2341 = vand.u32 %v1775, 4294901760
    %v2342 = vsub.f32 %v1775, %v2341
    %v2343 = vand.u32 %v2342, 4294901760
    %2344 = vmatpush1.msra.mxu0 %v2343
    %2345 = vmatprep.subr.mxu0 0.0
    %v2346 = vand.u32 %v1774, 4294901760
    %v2347 = vsub.f32 %v1774, %v2346
    %v2348 = vand.u32 %v2347, 4294901760
    %2349 = vmatpush1.msra.mxu0 %v2348
    %2350 = vmatprep.subr.mxu0 0.0
    %v2351 = vand.u32 %v1773, 4294901760
    %v2352 = vsub.f32 %v1773, %v2351
    %v2353 = vand.u32 %v2352, 4294901760
    %2354 = vmatpush1.msra.mxu0 %v2353
    %2355 = vmatprep.subr.mxu0 0.0
    %v2356 = vand.u32 %v1772, 4294901760
    %v2357 = vsub.f32 %v1772, %v2356
    %v2358 = vand.u32 %v2357, 4294901760
    %2359 = vmatpush1.msra.mxu0 %v2358
    %2360 = vmatprep.subr.mxu0 0.0
    %v2361 = vand.u32 %v1771, 4294901760
    %v2362 = vsub.f32 %v1771, %v2361
    %v2363 = vand.u32 %v2362, 4294901760
    %2364 = vmatpush1.msra.mxu0 %v2363
    %2365 = vmatprep.subr.mxu0 0.0
    %v2366 = vand.u32 %v1770, 4294901760
    %v2367 = vsub.f32 %v1770, %v2366
    %v2368 = vand.u32 %v2367, 4294901760
    %2369 = vmatpush1.msra.mxu0 %v2368
    %2370 = vmatprep.subr.mxu0 0.0
    %v2371 = vand.u32 %v1769, 4294901760
    %v2372 = vsub.f32 %v1769, %v2371
    %v2373 = vand.u32 %v2372, 4294901760
    %2374 = vmatpush1.msra.mxu0 %v2373
    %2375 = vmatprep.subr.mxu0 0.0
    %v2376 = vand.u32 %v1768, 4294901760
    %v2377 = vsub.f32 %v1768, %v2376
    %v2378 = vand.u32 %v2377, 4294901760
    %2379 = vmatpush1.msra.mxu0 %v2378
    %2380 = vmatprep.subr.mxu0 0.0
    %v2381 = vand.u32 %v1767, 4294901760
    %v2382 = vsub.f32 %v1767, %v2381
    %v2383 = vand.u32 %v2382, 4294901760
    %2384 = vmatpush1.msra.mxu0 %v2383
    %2385 = vmatprep.subr.mxu0 0.0
    %v2386 = vand.u32 %v1766, 4294901760
    %v2387 = vsub.f32 %v1766, %v2386
    %v2388 = vand.u32 %v2387, 4294901760
    %2389 = vmatpush1.msra.mxu0 %v2388
    %2390 = vmatprep.subr.mxu0 0.0
    %2391 = vmatpush2.msra.mxu0 0.0
    %2392 = vmatprep.subr.mxu0 0.0
    %2393 = vmatpush2.msra.mxu0 0.0
    %2394 = vmatprep.subr.mxu0 0.0
    %2395 = vmatpush2.msra.mxu0 0.0
    %2396 = vmatprep.subr.mxu0 0.0
    %2397 = vmatpush2.msra.mxu0 0.0
    %2398 = vmatprep.subr.mxu0 0.0
    %2399 = vmatpush2.msra.mxu0 0.0
    %2400 = vmatprep.subr.mxu0 0.0
    %2401 = vmatpush2.msra.mxu0 0.0
    %2402 = vmatprep.subr.mxu0 0.0
    %2403 = vmatpush2.msra.mxu0 0.0
    %2404 = vmatprep.subr.mxu0 0.0
    %2405 = vmatpush2.msra.mxu0 0.0
    %2406 = vmatprep.subr.mxu0 0.0
    %2407 = vmatpush2.msra.mxu0 0.0
    %2408 = vmatprep.subr.mxu0 0.0
    %2409 = vmatpush2.msra.mxu0 0.0
    %2410 = vmatprep.subr.mxu0 0.0
    %2411 = vmatpush2.msra.mxu0 0.0
    %2412 = vmatprep.subr.mxu0 0.0
    %2413 = vmatpush2.msra.mxu0 0.0
    %2414 = vmatprep.subr.mxu0 0.0
    %2415 = vmatpush2.msra.mxu0 0.0
    %2416 = vmatprep.subr.mxu0 0.0
    %2417 = vmatpush2.msra.mxu0 0.0
    %2418 = vmatprep.subr.mxu0 0.0
    %2419 = vmatpush2.msra.mxu0 0.0
    %2420 = vmatprep.subr.mxu0 0.0
    %2421 = vmatpush2.msra.mxu0 0.0
    %2422 = vmatprep.mubr.f32.mxu0 0.0
    %v2423 = vand.u32 %v188, 4294901760
    %2424 = vmatmul.mubr.f32.gmra.mxu0 %v2423
    %v2425 = vpop.f32.mrf.mxu0
    %v2426 = vadd.f32 %v2283, %v2425
    %v2427 = vpop.f32.mrf.mxu0
    %2428 = vmatprep.mubr.f32.mxu0 0.0
    %v2429 = vand.u32 %v189, 4294901760
    %2430 = vmatmul.mubr.f32.gmra.mxu0 %v2429
    %v2431 = vpop.f32.mrf.mxu0
    %v2432 = vadd.f32 %v2291, %v2431
    %v2433 = vpop.f32.mrf.mxu0
    %2434 = vmatprep.mubr.f32.mxu0 0.0
    %v2435 = vand.u32 %v190, 4294901760
    %2436 = vmatmul.mubr.f32.gmra.mxu0 %v2435
    %v2437 = vpop.f32.mrf.mxu0
    %v2438 = vadd.f32 %v2299, %v2437
    %v2439 = vpop.f32.mrf.mxu0
    %2440 = vmatprep.mubr.f32.mxu0 0.0
    %v2441 = vand.u32 %v191, 4294901760
    %2442 = vmatmul.mubr.f32.gmra.mxu0 %v2441
    %v2443 = vpop.f32.mrf.mxu0
    %v2444 = vadd.f32 %v2307, %v2443
    %v2445 = vpop.f32.mrf.mxu0
    %2446 = vdwg.mxu0
    %2447 = vmatprep.subr.mxu0 0.0
    %v2448 = vand.u32 %v1781, 4294901760
    %2449 = vmatpush1.msra.mxu0 %v2448
    %2450 = vmatprep.subr.mxu0 0.0
    %v2451 = vand.u32 %v1780, 4294901760
    %2452 = vmatpush1.msra.mxu0 %v2451
    %2453 = vmatprep.subr.mxu0 0.0
    %v2454 = vand.u32 %v1779, 4294901760
    %2455 = vmatpush1.msra.mxu0 %v2454
    %2456 = vmatprep.subr.mxu0 0.0
    %v2457 = vand.u32 %v1778, 4294901760
    %2458 = vmatpush1.msra.mxu0 %v2457
    %2459 = vmatprep.subr.mxu0 0.0
    %v2460 = vand.u32 %v1777, 4294901760
    %2461 = vmatpush1.msra.mxu0 %v2460
    %2462 = vmatprep.subr.mxu0 0.0
    %v2463 = vand.u32 %v1776, 4294901760
    %2464 = vmatpush1.msra.mxu0 %v2463
    %2465 = vmatprep.subr.mxu0 0.0
    %v2466 = vand.u32 %v1775, 4294901760
    %2467 = vmatpush1.msra.mxu0 %v2466
    %2468 = vmatprep.subr.mxu0 0.0
    %v2469 = vand.u32 %v1774, 4294901760
    %2470 = vmatpush1.msra.mxu0 %v2469
    %2471 = vmatprep.subr.mxu0 0.0
    %v2472 = vand.u32 %v1773, 4294901760
    %2473 = vmatpush1.msra.mxu0 %v2472
    %2474 = vmatprep.subr.mxu0 0.0
    %v2475 = vand.u32 %v1772, 4294901760
    %2476 = vmatpush1.msra.mxu0 %v2475
    %2477 = vmatprep.subr.mxu0 0.0
    %v2478 = vand.u32 %v1771, 4294901760
    %2479 = vmatpush1.msra.mxu0 %v2478
    %2480 = vmatprep.subr.mxu0 0.0
    %v2481 = vand.u32 %v1770, 4294901760
    %2482 = vmatpush1.msra.mxu0 %v2481
    %2483 = vmatprep.subr.mxu0 0.0
    %v2484 = vand.u32 %v1769, 4294901760
    %2485 = vmatpush1.msra.mxu0 %v2484
    %2486 = vmatprep.subr.mxu0 0.0
    %v2487 = vand.u32 %v1768, 4294901760
    %2488 = vmatpush1.msra.mxu0 %v2487
    %2489 = vmatprep.subr.mxu0 0.0
    %v2490 = vand.u32 %v1767, 4294901760
    %2491 = vmatpush1.msra.mxu0 %v2490
    %2492 = vmatprep.subr.mxu0 0.0
    %v2493 = vand.u32 %v1766, 4294901760
    %2494 = vmatpush1.msra.mxu0 %v2493
    %2495 = vmatprep.subr.mxu0 0.0
    %2496 = vmatpush2.msra.mxu0 0.0
    %2497 = vmatprep.subr.mxu0 0.0
    %2498 = vmatpush2.msra.mxu0 0.0
    %2499 = vmatprep.subr.mxu0 0.0
    %2500 = vmatpush2.msra.mxu0 0.0
    %2501 = vmatprep.subr.mxu0 0.0
    %2502 = vmatpush2.msra.mxu0 0.0
    %2503 = vmatprep.subr.mxu0 0.0
    %2504 = vmatpush2.msra.mxu0 0.0
    %2505 = vmatprep.subr.mxu0 0.0
    %2506 = vmatpush2.msra.mxu0 0.0
    %2507 = vmatprep.subr.mxu0 0.0
    %2508 = vmatpush2.msra.mxu0 0.0
    %2509 = vmatprep.subr.mxu0 0.0
    %2510 = vmatpush2.msra.mxu0 0.0
    %2511 = vmatprep.subr.mxu0 0.0
    %2512 = vmatpush2.msra.mxu0 0.0
    %2513 = vmatprep.subr.mxu0 0.0
    %2514 = vmatpush2.msra.mxu0 0.0
    %2515 = vmatprep.subr.mxu0 0.0
    %2516 = vmatpush2.msra.mxu0 0.0
    %2517 = vmatprep.subr.mxu0 0.0
    %2518 = vmatpush2.msra.mxu0 0.0
    %2519 = vmatprep.subr.mxu0 0.0
    %2520 = vmatpush2.msra.mxu0 0.0
    %2521 = vmatprep.subr.mxu0 0.0
    %2522 = vmatpush2.msra.mxu0 0.0
    %2523 = vmatprep.subr.mxu0 0.0
    %2524 = vmatpush2.msra.mxu0 0.0
    %2525 = vmatprep.subr.mxu0 0.0
    %2526 = vmatpush2.msra.mxu0 0.0
    %2527 = vmatprep.mubr.f32.mxu0 0.0
    %v2528 = vand.u32 %v188, 4294901760
    %2529 = vmatmul.mubr.f32.gmra.mxu0 %v2528
    %v2530 = vpop.f32.mrf.mxu0
    %v2531 = vadd.f32 %v2426, %v2530
    %v2532 = vpop.f32.mrf.mxu0
    %2533 = vmatprep.mubr.f32.mxu0 0.0
    %v2534 = vand.u32 %v189, 4294901760
    %2535 = vmatmul.mubr.f32.gmra.mxu0 %v2534
    %v2536 = vpop.f32.mrf.mxu0
    %v2537 = vadd.f32 %v2432, %v2536
    %v2538 = vpop.f32.mrf.mxu0
    %2539 = vmatprep.mubr.f32.mxu0 0.0
    %v2540 = vand.u32 %v190, 4294901760
    %2541 = vmatmul.mubr.f32.gmra.mxu0 %v2540
    %v2542 = vpop.f32.mrf.mxu0
    %v2543 = vadd.f32 %v2438, %v2542
    %v2544 = vpop.f32.mrf.mxu0
    %2545 = vmatprep.mubr.f32.mxu0 0.0
    %v2546 = vand.u32 %v191, 4294901760
    %2547 = vmatmul.mubr.f32.gmra.mxu0 %v2546
    %v2548 = vpop.f32.mrf.mxu0
    %v2549 = vadd.f32 %v2444, %v2548
    %v2550 = vpop.f32.mrf.mxu0
    %2551 = vdwg.mxu0
    %v2552 = vadd.f32 %v1744, %v2531
    %v2553 = vadd.f32 %v1750, %v2537
    %v2554 = vadd.f32 %v1756, %v2543
    %v2555 = vadd.f32 %v1762, %v2549
    %v2556 = vld [vmem:[%s2] sm:$0x1]
    %v2557 = vld [vmem:[%s3] sm:$0x1]
    %v2558 = vadd.f32 %v2552, %v2553
    %v2559 = vadd.f32 %v2558, %v2554
    %v2560 = vadd.f32 %v2559, %v2555
    %v2561 = vrot.slane %v2560, 4
    %v2562 = vadd.f32 %v2560, %v2561
    %v2563 = vrot.slane %v2562, 2
    %v2564 = vadd.f32 %v2562, %v2563
    %v2565 = vrot.slane %v2564, 1
    %v2566 = vadd.f32 %v2564, %v2565
    %v2567 = vmul.f32 %v2552, %v2552
    %v2568 = vmul.f32 %v2553, %v2553
    %v2569 = vmul.f32 %v2554, %v2554
    %v2570 = vmul.f32 %v2555, %v2555
    %v2571 = vadd.f32 %v2567, %v2568
    %v2572 = vadd.f32 %v2571, %v2569
    %v2573 = vadd.f32 %v2572, %v2570
    %v2574 = vrot.slane %v2573, 4
    %v2575 = vadd.f32 %v2573, %v2574
    %v2576 = vrot.slane %v2575, 2
    %v2577 = vadd.f32 %v2575, %v2576
    %v2578 = vrot.slane %v2577, 1
    %v2579 = vadd.f32 %v2577, %v2578
    %2580 = vmatprep.subr.mxu0 0.0
    %v2581 = vand.u32 %v104, 4294901760
    %2582 = vmatpush1.msra.mxu0 %v2581
    %2583 = vmatprep.subr.mxu0 0.0
    %v2584 = vand.u32 %v103, 4294901760
    %2585 = vmatpush1.msra.mxu0 %v2584
    %2586 = vmatprep.subr.mxu0 0.0
    %v2587 = vand.u32 %v102, 4294901760
    %2588 = vmatpush1.msra.mxu0 %v2587
    %2589 = vmatprep.subr.mxu0 0.0
    %v2590 = vand.u32 %v101, 4294901760
    %2591 = vmatpush1.msra.mxu0 %v2590
    %2592 = vmatprep.subr.mxu0 0.0
    %v2593 = vand.u32 %v100, 4294901760
    %2594 = vmatpush1.msra.mxu0 %v2593
    %2595 = vmatprep.subr.mxu0 0.0
    %v2596 = vand.u32 %v99, 4294901760
    %2597 = vmatpush1.msra.mxu0 %v2596
    %2598 = vmatprep.subr.mxu0 0.0
    %v2599 = vand.u32 %v98, 4294901760
    %2600 = vmatpush1.msra.mxu0 %v2599
    %2601 = vmatprep.subr.mxu0 0.0
    %v2602 = vand.u32 %v97, 4294901760
    %2603 = vmatpush1.msra.mxu0 %v2602
    %2604 = vmatprep.subr.mxu0 0.0
    %v2605 = vand.u32 %v96, 4294901760
    %2606 = vmatpush1.msra.mxu0 %v2605
    %2607 = vmatprep.subr.mxu0 0.0
    %v2608 = vand.u32 %v95, 4294901760
    %2609 = vmatpush1.msra.mxu0 %v2608
    %2610 = vmatprep.subr.mxu0 0.0
    %v2611 = vand.u32 %v94, 4294901760
    %2612 = vmatpush1.msra.mxu0 %v2611
    %2613 = vmatprep.subr.mxu0 0.0
    %v2614 = vand.u32 %v93, 4294901760
    %2615 = vmatpush1.msra.mxu0 %v2614
    %2616 = vmatprep.subr.mxu0 0.0
    %v2617 = vand.u32 %v92, 4294901760
    %2618 = vmatpush1.msra.mxu0 %v2617
    %2619 = vmatprep.subr.mxu0 0.0
    %v2620 = vand.u32 %v91, 4294901760
    %2621 = vmatpush1.msra.mxu0 %v2620
    %2622 = vmatprep.subr.mxu0 0.0
    %v2623 = vand.u32 %v90, 4294901760
    %2624 = vmatpush1.msra.mxu0 %v2623
    %2625 = vmatprep.subr.mxu0 0.0
    %v2626 = vand.u32 %v89, 4294901760
    %2627 = vmatpush1.msra.mxu0 %v2626
    %2628 = vmatprep.subr.mxu0 0.0
    %2629 = vmatpush2.msra.mxu0 0.0
    %2630 = vmatprep.subr.mxu0 0.0
    %2631 = vmatpush2.msra.mxu0 0.0
    %2632 = vmatprep.subr.mxu0 0.0
    %2633 = vmatpush2.msra.mxu0 0.0
    %2634 = vmatprep.subr.mxu0 0.0
    %2635 = vmatpush2.msra.mxu0 0.0
    %2636 = vmatprep.subr.mxu0 0.0
    %2637 = vmatpush2.msra.mxu0 0.0
    %2638 = vmatprep.subr.mxu0 0.0
    %2639 = vmatpush2.msra.mxu0 0.0
    %2640 = vmatprep.subr.mxu0 0.0
    %2641 = vmatpush2.msra.mxu0 0.0
    %2642 = vmatprep.subr.mxu0 0.0
    %2643 = vmatpush2.msra.mxu0 0.0
    %2644 = vmatprep.subr.mxu0 0.0
    %2645 = vmatpush2.msra.mxu0 0.0
    %2646 = vmatprep.subr.mxu0 0.0
    %2647 = vmatpush2.msra.mxu0 0.0
    %2648 = vmatprep.subr.mxu0 0.0
    %2649 = vmatpush2.msra.mxu0 0.0
    %2650 = vmatprep.subr.mxu0 0.0
    %2651 = vmatpush2.msra.mxu0 0.0
    %2652 = vmatprep.subr.mxu0 0.0
    %2653 = vmatpush2.msra.mxu0 0.0
    %2654 = vmatprep.subr.mxu0 0.0
    %2655 = vmatpush2.msra.mxu0 0.0
    %2656 = vmatprep.subr.mxu0 0.0
    %2657 = vmatpush2.msra.mxu0 0.0
    %2658 = vmatprep.subr.mxu0 0.0
    %2659 = vmatpush2.msra.mxu0 0.0
    %2660 = vmatprep.mubr.f32.mxu0 0.0
    %v2661 = vand.u32 %v2566, 4294901760
    %v2662 = vsub.f32 %v2566, %v2661
    %v2663 = vand.u32 %v2662, 4294901760
    %v2664 = vsub.f32 %v2662, %v2663
    %v2665 = vand.u32 %v2664, 4294901760
    %2666 = vmatmul.mubr.f32.gmra.mxu0 %v2665
    %v2667 = vpop.f32.mrf.mxu0
    %v2668 = vadd.f32 0.0, %v2667
    %v2669 = vpop.f32.mrf.mxu0
    %2670 = vdwg.mxu0
    %2671 = vmatprep.subr.mxu0 0.0
    %v2672 = vand.u32 %v104, 4294901760
    %v2673 = vsub.f32 %v104, %v2672
    %v2674 = vand.u32 %v2673, 4294901760
    %v2675 = vsub.f32 %v2673, %v2674
    %v2676 = vand.u32 %v2675, 4294901760
    %2677 = vmatpush1.msra.mxu0 %v2676
    %2678 = vmatprep.subr.mxu0 0.0
    %v2679 = vand.u32 %v103, 4294901760
    %v2680 = vsub.f32 %v103, %v2679
    %v2681 = vand.u32 %v2680, 4294901760
    %v2682 = vsub.f32 %v2680, %v2681
    %v2683 = vand.u32 %v2682, 4294901760
    %2684 = vmatpush1.msra.mxu0 %v2683
    %2685 = vmatprep.subr.mxu0 0.0
    %v2686 = vand.u32 %v102, 4294901760
    %v2687 = vsub.f32 %v102, %v2686
    %v2688 = vand.u32 %v2687, 4294901760
    %v2689 = vsub.f32 %v2687, %v2688
    %v2690 = vand.u32 %v2689, 4294901760
    %2691 = vmatpush1.msra.mxu0 %v2690
    %2692 = vmatprep.subr.mxu0 0.0
    %v2693 = vand.u32 %v101, 4294901760
    %v2694 = vsub.f32 %v101, %v2693
    %v2695 = vand.u32 %v2694, 4294901760
    %v2696 = vsub.f32 %v2694, %v2695
    %v2697 = vand.u32 %v2696, 4294901760
    %2698 = vmatpush1.msra.mxu0 %v2697
    %2699 = vmatprep.subr.mxu0 0.0
    %v2700 = vand.u32 %v100, 4294901760
    %v2701 = vsub.f32 %v100, %v2700
    %v2702 = vand.u32 %v2701, 4294901760
    %v2703 = vsub.f32 %v2701, %v2702
    %v2704 = vand.u32 %v2703, 4294901760
    %2705 = vmatpush1.msra.mxu0 %v2704
    %2706 = vmatprep.subr.mxu0 0.0
    %v2707 = vand.u32 %v99, 4294901760
    %v2708 = vsub.f32 %v99, %v2707
    %v2709 = vand.u32 %v2708, 4294901760
    %v2710 = vsub.f32 %v2708, %v2709
    %v2711 = vand.u32 %v2710, 4294901760
    %2712 = vmatpush1.msra.mxu0 %v2711
    %2713 = vmatprep.subr.mxu0 0.0
    %v2714 = vand.u32 %v98, 4294901760
    %v2715 = vsub.f32 %v98, %v2714
    %v2716 = vand.u32 %v2715, 4294901760
    %v2717 = vsub.f32 %v2715, %v2716
    %v2718 = vand.u32 %v2717, 4294901760
    %2719 = vmatpush1.msra.mxu0 %v2718
    %2720 = vmatprep.subr.mxu0 0.0
    %v2721 = vand.u32 %v97, 4294901760
    %v2722 = vsub.f32 %v97, %v2721
    %v2723 = vand.u32 %v2722, 4294901760
    %v2724 = vsub.f32 %v2722, %v2723
    %v2725 = vand.u32 %v2724, 4294901760
    %2726 = vmatpush1.msra.mxu0 %v2725
    %2727 = vmatprep.subr.mxu0 0.0
    %v2728 = vand.u32 %v96, 4294901760
    %v2729 = vsub.f32 %v96, %v2728
    %v2730 = vand.u32 %v2729, 4294901760
    %v2731 = vsub.f32 %v2729, %v2730
    %v2732 = vand.u32 %v2731, 4294901760
    %2733 = vmatpush1.msra.mxu0 %v2732
    %2734 = vmatprep.subr.mxu0 0.0
    %v2735 = vand.u32 %v95, 4294901760
    %v2736 = vsub.f32 %v95, %v2735
    %v2737 = vand.u32 %v2736, 4294901760
    %v2738 = vsub.f32 %v2736, %v2737
    %v2739 = vand.u32 %v2738, 4294901760
    %2740 = vmatpush1.msra.mxu0 %v2739
    %2741 = vmatprep.subr.mxu0 0.0
    %v2742 = vand.u32 %v94, 4294901760
    %v2743 = vsub.f32 %v94, %v2742
    %v2744 = vand.u32 %v2743, 4294901760
    %v2745 = vsub.f32 %v2743, %v2744
    %v2746 = vand.u32 %v2745, 4294901760
    %2747 = vmatpush1.msra.mxu0 %v2746
    %2748 = vmatprep.subr.mxu0 0.0
    %v2749 = vand.u32 %v93, 4294901760
    %v2750 = vsub.f32 %v93, %v2749
    %v2751 = vand.u32 %v2750, 4294901760
    %v2752 = vsub.f32 %v2750, %v2751
    %v2753 = vand.u32 %v2752, 4294901760
    %2754 = vmatpush1.msra.mxu0 %v2753
    %2755 = vmatprep.subr.mxu0 0.0
    %v2756 = vand.u32 %v92, 4294901760
    %v2757 = vsub.f32 %v92, %v2756
    %v2758 = vand.u32 %v2757, 4294901760
    %v2759 = vsub.f32 %v2757, %v2758
    %v2760 = vand.u32 %v2759, 4294901760
    %2761 = vmatpush1.msra.mxu0 %v2760
    %2762 = vmatprep.subr.mxu0 0.0
    %v2763 = vand.u32 %v91, 4294901760
    %v2764 = vsub.f32 %v91, %v2763
    %v2765 = vand.u32 %v2764, 4294901760
    %v2766 = vsub.f32 %v2764, %v2765
    %v2767 = vand.u32 %v2766, 4294901760
    %2768 = vmatpush1.msra.mxu0 %v2767
    %2769 = vmatprep.subr.mxu0 0.0
    %v2770 = vand.u32 %v90, 4294901760
    %v2771 = vsub.f32 %v90, %v2770
    %v2772 = vand.u32 %v2771, 4294901760
    %v2773 = vsub.f32 %v2771, %v2772
    %v2774 = vand.u32 %v2773, 4294901760
    %2775 = vmatpush1.msra.mxu0 %v2774
    %2776 = vmatprep.subr.mxu0 0.0
    %v2777 = vand.u32 %v89, 4294901760
    %v2778 = vsub.f32 %v89, %v2777
    %v2779 = vand.u32 %v2778, 4294901760
    %v2780 = vsub.f32 %v2778, %v2779
    %v2781 = vand.u32 %v2780, 4294901760
    %2782 = vmatpush1.msra.mxu0 %v2781
    %2783 = vmatprep.subr.mxu0 0.0
    %2784 = vmatpush2.msra.mxu0 0.0
    %2785 = vmatprep.subr.mxu0 0.0
    %2786 = vmatpush2.msra.mxu0 0.0
    %2787 = vmatprep.subr.mxu0 0.0
    %2788 = vmatpush2.msra.mxu0 0.0
    %2789 = vmatprep.subr.mxu0 0.0
    %2790 = vmatpush2.msra.mxu0 0.0
    %2791 = vmatprep.subr.mxu0 0.0
    %2792 = vmatpush2.msra.mxu0 0.0
    %2793 = vmatprep.subr.mxu0 0.0
    %2794 = vmatpush2.msra.mxu0 0.0
    %2795 = vmatprep.subr.mxu0 0.0
    %2796 = vmatpush2.msra.mxu0 0.0
    %2797 = vmatprep.subr.mxu0 0.0
    %2798 = vmatpush2.msra.mxu0 0.0
    %2799 = vmatprep.subr.mxu0 0.0
    %2800 = vmatpush2.msra.mxu0 0.0
    %2801 = vmatprep.subr.mxu0 0.0
    %2802 = vmatpush2.msra.mxu0 0.0
    %2803 = vmatprep.subr.mxu0 0.0
    %2804 = vmatpush2.msra.mxu0 0.0
    %2805 = vmatprep.subr.mxu0 0.0
    %2806 = vmatpush2.msra.mxu0 0.0
    %2807 = vmatprep.subr.mxu0 0.0
    %2808 = vmatpush2.msra.mxu0 0.0
    %2809 = vmatprep.subr.mxu0 0.0
    %2810 = vmatpush2.msra.mxu0 0.0
    %2811 = vmatprep.subr.mxu0 0.0
    %2812 = vmatpush2.msra.mxu0 0.0
    %2813 = vmatprep.subr.mxu0 0.0
    %2814 = vmatpush2.msra.mxu0 0.0
    %2815 = vmatprep.mubr.f32.mxu0 0.0
    %v2816 = vand.u32 %v2566, 4294901760
    %2817 = vmatmul.mubr.f32.gmra.mxu0 %v2816
    %v2818 = vpop.f32.mrf.mxu0
    %v2819 = vadd.f32 %v2668, %v2818
    %v2820 = vpop.f32.mrf.mxu0
    %2821 = vdwg.mxu0
    %2822 = vmatprep.subr.mxu0 0.0
    %v2823 = vand.u32 %v104, 4294901760
    %v2824 = vsub.f32 %v104, %v2823
    %2825 = vmatpush1.msra.mxu0 %v2824
    %2826 = vmatprep.subr.mxu0 0.0
    %v2827 = vand.u32 %v103, 4294901760
    %v2828 = vsub.f32 %v103, %v2827
    %2829 = vmatpush1.msra.mxu0 %v2828
    %2830 = vmatprep.subr.mxu0 0.0
    %v2831 = vand.u32 %v102, 4294901760
    %v2832 = vsub.f32 %v102, %v2831
    %2833 = vmatpush1.msra.mxu0 %v2832
    %2834 = vmatprep.subr.mxu0 0.0
    %v2835 = vand.u32 %v101, 4294901760
    %v2836 = vsub.f32 %v101, %v2835
    %2837 = vmatpush1.msra.mxu0 %v2836
    %2838 = vmatprep.subr.mxu0 0.0
    %v2839 = vand.u32 %v100, 4294901760
    %v2840 = vsub.f32 %v100, %v2839
    %2841 = vmatpush1.msra.mxu0 %v2840
    %2842 = vmatprep.subr.mxu0 0.0
    %v2843 = vand.u32 %v99, 4294901760
    %v2844 = vsub.f32 %v99, %v2843
    %2845 = vmatpush1.msra.mxu0 %v2844
    %2846 = vmatprep.subr.mxu0 0.0
    %v2847 = vand.u32 %v98, 4294901760
    %v2848 = vsub.f32 %v98, %v2847
    %2849 = vmatpush1.msra.mxu0 %v2848
    %2850 = vmatprep.subr.mxu0 0.0
    %v2851 = vand.u32 %v97, 4294901760
    %v2852 = vsub.f32 %v97, %v2851
    %2853 = vmatpush1.msra.mxu0 %v2852
    %2854 = vmatprep.subr.mxu0 0.0
    %v2855 = vand.u32 %v96, 4294901760
    %v2856 = vsub.f32 %v96, %v2855
    %2857 = vmatpush1.msra.mxu0 %v2856
    %2858 = vmatprep.subr.mxu0 0.0
    %v2859 = vand.u32 %v95, 4294901760
    %v2860 = vsub.f32 %v95, %v2859
    %2861 = vmatpush1.msra.mxu0 %v2860
    %2862 = vmatprep.subr.mxu0 0.0
    %v2863 = vand.u32 %v94, 4294901760
    %v2864 = vsub.f32 %v94, %v2863
    %2865 = vmatpush1.msra.mxu0 %v2864
    %2866 = vmatprep.subr.mxu0 0.0
    %v2867 = vand.u32 %v93, 4294901760
    %v2868 = vsub.f32 %v93, %v2867
    %2869 = vmatpush1.msra.mxu0 %v2868
    %2870 = vmatprep.subr.mxu0 0.0
    %v2871 = vand.u32 %v92, 4294901760
    %v2872 = vsub.f32 %v92, %v2871
    %2873 = vmatpush1.msra.mxu0 %v2872
    %2874 = vmatprep.subr.mxu0 0.0
    %v2875 = vand.u32 %v91, 4294901760
    %v2876 = vsub.f32 %v91, %v2875
    %2877 = vmatpush1.msra.mxu0 %v2876
    %2878 = vmatprep.subr.mxu0 0.0
    %v2879 = vand.u32 %v90, 4294901760
    %v2880 = vsub.f32 %v90, %v2879
    %2881 = vmatpush1.msra.mxu0 %v2880
    %2882 = vmatprep.subr.mxu0 0.0
    %v2883 = vand.u32 %v89, 4294901760
    %v2884 = vsub.f32 %v89, %v2883
    %2885 = vmatpush1.msra.mxu0 %v2884
    %2886 = vmatprep.subr.mxu0 0.0
    %2887 = vmatpush2.msra.mxu0 0.0
    %2888 = vmatprep.subr.mxu0 0.0
    %2889 = vmatpush2.msra.mxu0 0.0
    %2890 = vmatprep.subr.mxu0 0.0
    %2891 = vmatpush2.msra.mxu0 0.0
    %2892 = vmatprep.subr.mxu0 0.0
    %2893 = vmatpush2.msra.mxu0 0.0
    %2894 = vmatprep.subr.mxu0 0.0
    %2895 = vmatpush2.msra.mxu0 0.0
    %2896 = vmatprep.subr.mxu0 0.0
    %2897 = vmatpush2.msra.mxu0 0.0
    %2898 = vmatprep.subr.mxu0 0.0
    %2899 = vmatpush2.msra.mxu0 0.0
    %2900 = vmatprep.subr.mxu0 0.0
    %2901 = vmatpush2.msra.mxu0 0.0
    %2902 = vmatprep.subr.mxu0 0.0
    %2903 = vmatpush2.msra.mxu0 0.0
    %2904 = vmatprep.subr.mxu0 0.0
    %2905 = vmatpush2.msra.mxu0 0.0
    %2906 = vmatprep.subr.mxu0 0.0
    %2907 = vmatpush2.msra.mxu0 0.0
    %2908 = vmatprep.subr.mxu0 0.0
    %2909 = vmatpush2.msra.mxu0 0.0
    %2910 = vmatprep.subr.mxu0 0.0
    %2911 = vmatpush2.msra.mxu0 0.0
    %2912 = vmatprep.subr.mxu0 0.0
    %2913 = vmatpush2.msra.mxu0 0.0
    %2914 = vmatprep.subr.mxu0 0.0
    %2915 = vmatpush2.msra.mxu0 0.0
    %2916 = vmatprep.subr.mxu0 0.0
    %2917 = vmatpush2.msra.mxu0 0.0
    %2918 = vmatprep.mubr.f32.mxu0 0.0
    %v2919 = vand.u32 %v2566, 4294901760
    %v2920 = vsub.f32 %v2566, %v2919
    %2921 = vmatmul.mubr.f32.gmra.mxu0 %v2920
    %v2922 = vpop.f32.mrf.mxu0
    %v2923 = vadd.f32 %v2819, %v2922
    %v2924 = vpop.f32.mrf.mxu0
    %2925 = vdwg.mxu0
    %2926 = vmatprep.subr.mxu0 0.0
    %v2927 = vand.u32 %v104, 4294901760
    %2928 = vmatpush1.msra.mxu0 %v2927
    %2929 = vmatprep.subr.mxu0 0.0
    %v2930 = vand.u32 %v103, 4294901760
    %2931 = vmatpush1.msra.mxu0 %v2930
    %2932 = vmatprep.subr.mxu0 0.0
    %v2933 = vand.u32 %v102, 4294901760
    %2934 = vmatpush1.msra.mxu0 %v2933
    %2935 = vmatprep.subr.mxu0 0.0
    %v2936 = vand.u32 %v101, 4294901760
    %2937 = vmatpush1.msra.mxu0 %v2936
    %2938 = vmatprep.subr.mxu0 0.0
    %v2939 = vand.u32 %v100, 4294901760
    %2940 = vmatpush1.msra.mxu0 %v2939
    %2941 = vmatprep.subr.mxu0 0.0
    %v2942 = vand.u32 %v99, 4294901760
    %2943 = vmatpush1.msra.mxu0 %v2942
    %2944 = vmatprep.subr.mxu0 0.0
    %v2945 = vand.u32 %v98, 4294901760
    %2946 = vmatpush1.msra.mxu0 %v2945
    %2947 = vmatprep.subr.mxu0 0.0
    %v2948 = vand.u32 %v97, 4294901760
    %2949 = vmatpush1.msra.mxu0 %v2948
    %2950 = vmatprep.subr.mxu0 0.0
    %v2951 = vand.u32 %v96, 4294901760
    %2952 = vmatpush1.msra.mxu0 %v2951
    %2953 = vmatprep.subr.mxu0 0.0
    %v2954 = vand.u32 %v95, 4294901760
    %2955 = vmatpush1.msra.mxu0 %v2954
    %2956 = vmatprep.subr.mxu0 0.0
    %v2957 = vand.u32 %v94, 4294901760
    %2958 = vmatpush1.msra.mxu0 %v2957
    %2959 = vmatprep.subr.mxu0 0.0
    %v2960 = vand.u32 %v93, 4294901760
    %2961 = vmatpush1.msra.mxu0 %v2960
    %2962 = vmatprep.subr.mxu0 0.0
    %v2963 = vand.u32 %v92, 4294901760
    %2964 = vmatpush1.msra.mxu0 %v2963
    %2965 = vmatprep.subr.mxu0 0.0
    %v2966 = vand.u32 %v91, 4294901760
    %2967 = vmatpush1.msra.mxu0 %v2966
    %2968 = vmatprep.subr.mxu0 0.0
    %v2969 = vand.u32 %v90, 4294901760
    %2970 = vmatpush1.msra.mxu0 %v2969
    %2971 = vmatprep.subr.mxu0 0.0
    %v2972 = vand.u32 %v89, 4294901760
    %2973 = vmatpush1.msra.mxu0 %v2972
    %2974 = vmatprep.subr.mxu0 0.0
    %2975 = vmatpush2.msra.mxu0 0.0
    %2976 = vmatprep.subr.mxu0 0.0
    %2977 = vmatpush2.msra.mxu0 0.0
    %2978 = vmatprep.subr.mxu0 0.0
    %2979 = vmatpush2.msra.mxu0 0.0
    %2980 = vmatprep.subr.mxu0 0.0
    %2981 = vmatpush2.msra.mxu0 0.0
    %2982 = vmatprep.subr.mxu0 0.0
    %2983 = vmatpush2.msra.mxu0 0.0
    %2984 = vmatprep.subr.mxu0 0.0
    %2985 = vmatpush2.msra.mxu0 0.0
    %2986 = vmatprep.subr.mxu0 0.0
    %2987 = vmatpush2.msra.mxu0 0.0
    %2988 = vmatprep.subr.mxu0 0.0
    %2989 = vmatpush2.msra.mxu0 0.0
    %2990 = vmatprep.subr.mxu0 0.0
    %2991 = vmatpush2.msra.mxu0 0.0
    %2992 = vmatprep.subr.mxu0 0.0
    %2993 = vmatpush2.msra.mxu0 0.0
    %2994 = vmatprep.subr.mxu0 0.0
    %2995 = vmatpush2.msra.mxu0 0.0
    %2996 = vmatprep.subr.mxu0 0.0
    %2997 = vmatpush2.msra.mxu0 0.0
    %2998 = vmatprep.subr.mxu0 0.0
    %2999 = vmatpush2.msra.mxu0 0.0
    %3000 = vmatprep.subr.mxu0 0.0
    %3001 = vmatpush2.msra.mxu0 0.0
    %3002 = vmatprep.subr.mxu0 0.0
    %3003 = vmatpush2.msra.mxu0 0.0
    %3004 = vmatprep.subr.mxu0 0.0
    %3005 = vmatpush2.msra.mxu0 0.0
    %3006 = vmatprep.mubr.f32.mxu0 0.0
    %v3007 = vand.u32 %v2566, 4294901760
    %v3008 = vsub.f32 %v2566, %v3007
    %v3009 = vand.u32 %v3008, 4294901760
    %3010 = vmatmul.mubr.f32.gmra.mxu0 %v3009
    %v3011 = vpop.f32.mrf.mxu0
    %v3012 = vadd.f32 %v2923, %v3011
    %v3013 = vpop.f32.mrf.mxu0
    %3014 = vdwg.mxu0
    %3015 = vmatprep.subr.mxu0 0.0
    %v3016 = vand.u32 %v104, 4294901760
    %v3017 = vsub.f32 %v104, %v3016
    %v3018 = vand.u32 %v3017, 4294901760
    %3019 = vmatpush1.msra.mxu0 %v3018
    %3020 = vmatprep.subr.mxu0 0.0
    %v3021 = vand.u32 %v103, 4294901760
    %v3022 = vsub.f32 %v103, %v3021
    %v3023 = vand.u32 %v3022, 4294901760
    %3024 = vmatpush1.msra.mxu0 %v3023
    %3025 = vmatprep.subr.mxu0 0.0
    %v3026 = vand.u32 %v102, 4294901760
    %v3027 = vsub.f32 %v102, %v3026
    %v3028 = vand.u32 %v3027, 4294901760
    %3029 = vmatpush1.msra.mxu0 %v3028
    %3030 = vmatprep.subr.mxu0 0.0
    %v3031 = vand.u32 %v101, 4294901760
    %v3032 = vsub.f32 %v101, %v3031
    %v3033 = vand.u32 %v3032, 4294901760
    %3034 = vmatpush1.msra.mxu0 %v3033
    %3035 = vmatprep.subr.mxu0 0.0
    %v3036 = vand.u32 %v100, 4294901760
    %v3037 = vsub.f32 %v100, %v3036
    %v3038 = vand.u32 %v3037, 4294901760
    %3039 = vmatpush1.msra.mxu0 %v3038
    %3040 = vmatprep.subr.mxu0 0.0
    %v3041 = vand.u32 %v99, 4294901760
    %v3042 = vsub.f32 %v99, %v3041
    %v3043 = vand.u32 %v3042, 4294901760
    %3044 = vmatpush1.msra.mxu0 %v3043
    %3045 = vmatprep.subr.mxu0 0.0
    %v3046 = vand.u32 %v98, 4294901760
    %v3047 = vsub.f32 %v98, %v3046
    %v3048 = vand.u32 %v3047, 4294901760
    %3049 = vmatpush1.msra.mxu0 %v3048
    %3050 = vmatprep.subr.mxu0 0.0
    %v3051 = vand.u32 %v97, 4294901760
    %v3052 = vsub.f32 %v97, %v3051
    %v3053 = vand.u32 %v3052, 4294901760
    %3054 = vmatpush1.msra.mxu0 %v3053
    %3055 = vmatprep.subr.mxu0 0.0
    %v3056 = vand.u32 %v96, 4294901760
    %v3057 = vsub.f32 %v96, %v3056
    %v3058 = vand.u32 %v3057, 4294901760
    %3059 = vmatpush1.msra.mxu0 %v3058
    %3060 = vmatprep.subr.mxu0 0.0
    %v3061 = vand.u32 %v95, 4294901760
    %v3062 = vsub.f32 %v95, %v3061
    %v3063 = vand.u32 %v3062, 4294901760
    %3064 = vmatpush1.msra.mxu0 %v3063
    %3065 = vmatprep.subr.mxu0 0.0
    %v3066 = vand.u32 %v94, 4294901760
    %v3067 = vsub.f32 %v94, %v3066
    %v3068 = vand.u32 %v3067, 4294901760
    %3069 = vmatpush1.msra.mxu0 %v3068
    %3070 = vmatprep.subr.mxu0 0.0
    %v3071 = vand.u32 %v93, 4294901760
    %v3072 = vsub.f32 %v93, %v3071
    %v3073 = vand.u32 %v3072, 4294901760
    %3074 = vmatpush1.msra.mxu0 %v3073
    %3075 = vmatprep.subr.mxu0 0.0
    %v3076 = vand.u32 %v92, 4294901760
    %v3077 = vsub.f32 %v92, %v3076
    %v3078 = vand.u32 %v3077, 4294901760
    %3079 = vmatpush1.msra.mxu0 %v3078
    %3080 = vmatprep.subr.mxu0 0.0
    %v3081 = vand.u32 %v91, 4294901760
    %v3082 = vsub.f32 %v91, %v3081
    %v3083 = vand.u32 %v3082, 4294901760
    %3084 = vmatpush1.msra.mxu0 %v3083
    %3085 = vmatprep.subr.mxu0 0.0
    %v3086 = vand.u32 %v90, 4294901760
    %v3087 = vsub.f32 %v90, %v3086
    %v3088 = vand.u32 %v3087, 4294901760
    %3089 = vmatpush1.msra.mxu0 %v3088
    %3090 = vmatprep.subr.mxu0 0.0
    %v3091 = vand.u32 %v89, 4294901760
    %v3092 = vsub.f32 %v89, %v3091
    %v3093 = vand.u32 %v3092, 4294901760
    %3094 = vmatpush1.msra.mxu0 %v3093
    %3095 = vmatprep.subr.mxu0 0.0
    %3096 = vmatpush2.msra.mxu0 0.0
    %3097 = vmatprep.subr.mxu0 0.0
    %3098 = vmatpush2.msra.mxu0 0.0
    %3099 = vmatprep.subr.mxu0 0.0
    %3100 = vmatpush2.msra.mxu0 0.0
    %3101 = vmatprep.subr.mxu0 0.0
    %3102 = vmatpush2.msra.mxu0 0.0
    %3103 = vmatprep.subr.mxu0 0.0
    %3104 = vmatpush2.msra.mxu0 0.0
    %3105 = vmatprep.subr.mxu0 0.0
    %3106 = vmatpush2.msra.mxu0 0.0
    %3107 = vmatprep.subr.mxu0 0.0
    %3108 = vmatpush2.msra.mxu0 0.0
    %3109 = vmatprep.subr.mxu0 0.0
    %3110 = vmatpush2.msra.mxu0 0.0
    %3111 = vmatprep.subr.mxu0 0.0
    %3112 = vmatpush2.msra.mxu0 0.0
    %3113 = vmatprep.subr.mxu0 0.0
    %3114 = vmatpush2.msra.mxu0 0.0
    %3115 = vmatprep.subr.mxu0 0.0
    %3116 = vmatpush2.msra.mxu0 0.0
    %3117 = vmatprep.subr.mxu0 0.0
    %3118 = vmatpush2.msra.mxu0 0.0
    %3119 = vmatprep.subr.mxu0 0.0
    %3120 = vmatpush2.msra.mxu0 0.0
    %3121 = vmatprep.subr.mxu0 0.0
    %3122 = vmatpush2.msra.mxu0 0.0
    %3123 = vmatprep.subr.mxu0 0.0
    %3124 = vmatpush2.msra.mxu0 0.0
    %3125 = vmatprep.subr.mxu0 0.0
    %3126 = vmatpush2.msra.mxu0 0.0
    %3127 = vmatprep.mubr.f32.mxu0 0.0
    %v3128 = vand.u32 %v2566, 4294901760
    %3129 = vmatmul.mubr.f32.gmra.mxu0 %v3128
    %v3130 = vpop.f32.mrf.mxu0
    %v3131 = vadd.f32 %v3012, %v3130
    %v3132 = vpop.f32.mrf.mxu0
    %3133 = vdwg.mxu0
    %3134 = vmatprep.subr.mxu0 0.0
    %v3135 = vand.u32 %v104, 4294901760
    %3136 = vmatpush1.msra.mxu0 %v3135
    %3137 = vmatprep.subr.mxu0 0.0
    %v3138 = vand.u32 %v103, 4294901760
    %3139 = vmatpush1.msra.mxu0 %v3138
    %3140 = vmatprep.subr.mxu0 0.0
    %v3141 = vand.u32 %v102, 4294901760
    %3142 = vmatpush1.msra.mxu0 %v3141
    %3143 = vmatprep.subr.mxu0 0.0
    %v3144 = vand.u32 %v101, 4294901760
    %3145 = vmatpush1.msra.mxu0 %v3144
    %3146 = vmatprep.subr.mxu0 0.0
    %v3147 = vand.u32 %v100, 4294901760
    %3148 = vmatpush1.msra.mxu0 %v3147
    %3149 = vmatprep.subr.mxu0 0.0
    %v3150 = vand.u32 %v99, 4294901760
    %3151 = vmatpush1.msra.mxu0 %v3150
    %3152 = vmatprep.subr.mxu0 0.0
    %v3153 = vand.u32 %v98, 4294901760
    %3154 = vmatpush1.msra.mxu0 %v3153
    %3155 = vmatprep.subr.mxu0 0.0
    %v3156 = vand.u32 %v97, 4294901760
    %3157 = vmatpush1.msra.mxu0 %v3156
    %3158 = vmatprep.subr.mxu0 0.0
    %v3159 = vand.u32 %v96, 4294901760
    %3160 = vmatpush1.msra.mxu0 %v3159
    %3161 = vmatprep.subr.mxu0 0.0
    %v3162 = vand.u32 %v95, 4294901760
    %3163 = vmatpush1.msra.mxu0 %v3162
    %3164 = vmatprep.subr.mxu0 0.0
    %v3165 = vand.u32 %v94, 4294901760
    %3166 = vmatpush1.msra.mxu0 %v3165
    %3167 = vmatprep.subr.mxu0 0.0
    %v3168 = vand.u32 %v93, 4294901760
    %3169 = vmatpush1.msra.mxu0 %v3168
    %3170 = vmatprep.subr.mxu0 0.0
    %v3171 = vand.u32 %v92, 4294901760
    %3172 = vmatpush1.msra.mxu0 %v3171
    %3173 = vmatprep.subr.mxu0 0.0
    %v3174 = vand.u32 %v91, 4294901760
    %3175 = vmatpush1.msra.mxu0 %v3174
    %3176 = vmatprep.subr.mxu0 0.0
    %v3177 = vand.u32 %v90, 4294901760
    %3178 = vmatpush1.msra.mxu0 %v3177
    %3179 = vmatprep.subr.mxu0 0.0
    %v3180 = vand.u32 %v89, 4294901760
    %3181 = vmatpush1.msra.mxu0 %v3180
    %3182 = vmatprep.subr.mxu0 0.0
    %3183 = vmatpush2.msra.mxu0 0.0
    %3184 = vmatprep.subr.mxu0 0.0
    %3185 = vmatpush2.msra.mxu0 0.0
    %3186 = vmatprep.subr.mxu0 0.0
    %3187 = vmatpush2.msra.mxu0 0.0
    %3188 = vmatprep.subr.mxu0 0.0
    %3189 = vmatpush2.msra.mxu0 0.0
    %3190 = vmatprep.subr.mxu0 0.0
    %3191 = vmatpush2.msra.mxu0 0.0
    %3192 = vmatprep.subr.mxu0 0.0
    %3193 = vmatpush2.msra.mxu0 0.0
    %3194 = vmatprep.subr.mxu0 0.0
    %3195 = vmatpush2.msra.mxu0 0.0
    %3196 = vmatprep.subr.mxu0 0.0
    %3197 = vmatpush2.msra.mxu0 0.0
    %3198 = vmatprep.subr.mxu0 0.0
    %3199 = vmatpush2.msra.mxu0 0.0
    %3200 = vmatprep.subr.mxu0 0.0
    %3201 = vmatpush2.msra.mxu0 0.0
    %3202 = vmatprep.subr.mxu0 0.0
    %3203 = vmatpush2.msra.mxu0 0.0
    %3204 = vmatprep.subr.mxu0 0.0
    %3205 = vmatpush2.msra.mxu0 0.0
    %3206 = vmatprep.subr.mxu0 0.0
    %3207 = vmatpush2.msra.mxu0 0.0
    %3208 = vmatprep.subr.mxu0 0.0
    %3209 = vmatpush2.msra.mxu0 0.0
    %3210 = vmatprep.subr.mxu0 0.0
    %3211 = vmatpush2.msra.mxu0 0.0
    %3212 = vmatprep.subr.mxu0 0.0
    %3213 = vmatpush2.msra.mxu0 0.0
    %3214 = vmatprep.mubr.f32.mxu0 0.0
    %v3215 = vand.u32 %v2566, 4294901760
    %3216 = vmatmul.mubr.f32.gmra.mxu0 %v3215
    %v3217 = vpop.f32.mrf.mxu0
    %v3218 = vadd.f32 %v3131, %v3217
    %v3219 = vpop.f32.mrf.mxu0
    %3220 = vdwg.mxu0
    %3221 = vmatprep.subr.mxu0 0.0
    %v3222 = vand.u32 %v104, 4294901760
    %3223 = vmatpush1.msra.mxu0 %v3222
    %3224 = vmatprep.subr.mxu0 0.0
    %v3225 = vand.u32 %v103, 4294901760
    %3226 = vmatpush1.msra.mxu0 %v3225
    %3227 = vmatprep.subr.mxu0 0.0
    %v3228 = vand.u32 %v102, 4294901760
    %3229 = vmatpush1.msra.mxu0 %v3228
    %3230 = vmatprep.subr.mxu0 0.0
    %v3231 = vand.u32 %v101, 4294901760
    %3232 = vmatpush1.msra.mxu0 %v3231
    %3233 = vmatprep.subr.mxu0 0.0
    %v3234 = vand.u32 %v100, 4294901760
    %3235 = vmatpush1.msra.mxu0 %v3234
    %3236 = vmatprep.subr.mxu0 0.0
    %v3237 = vand.u32 %v99, 4294901760
    %3238 = vmatpush1.msra.mxu0 %v3237
    %3239 = vmatprep.subr.mxu0 0.0
    %v3240 = vand.u32 %v98, 4294901760
    %3241 = vmatpush1.msra.mxu0 %v3240
    %3242 = vmatprep.subr.mxu0 0.0
    %v3243 = vand.u32 %v97, 4294901760
    %3244 = vmatpush1.msra.mxu0 %v3243
    %3245 = vmatprep.subr.mxu0 0.0
    %v3246 = vand.u32 %v96, 4294901760
    %3247 = vmatpush1.msra.mxu0 %v3246
    %3248 = vmatprep.subr.mxu0 0.0
    %v3249 = vand.u32 %v95, 4294901760
    %3250 = vmatpush1.msra.mxu0 %v3249
    %3251 = vmatprep.subr.mxu0 0.0
    %v3252 = vand.u32 %v94, 4294901760
    %3253 = vmatpush1.msra.mxu0 %v3252
    %3254 = vmatprep.subr.mxu0 0.0
    %v3255 = vand.u32 %v93, 4294901760
    %3256 = vmatpush1.msra.mxu0 %v3255
    %3257 = vmatprep.subr.mxu0 0.0
    %v3258 = vand.u32 %v92, 4294901760
    %3259 = vmatpush1.msra.mxu0 %v3258
    %3260 = vmatprep.subr.mxu0 0.0
    %v3261 = vand.u32 %v91, 4294901760
    %3262 = vmatpush1.msra.mxu0 %v3261
    %3263 = vmatprep.subr.mxu0 0.0
    %v3264 = vand.u32 %v90, 4294901760
    %3265 = vmatpush1.msra.mxu0 %v3264
    %3266 = vmatprep.subr.mxu0 0.0
    %v3267 = vand.u32 %v89, 4294901760
    %3268 = vmatpush1.msra.mxu0 %v3267
    %3269 = vmatprep.subr.mxu0 0.0
    %3270 = vmatpush2.msra.mxu0 0.0
    %3271 = vmatprep.subr.mxu0 0.0
    %3272 = vmatpush2.msra.mxu0 0.0
    %3273 = vmatprep.subr.mxu0 0.0
    %3274 = vmatpush2.msra.mxu0 0.0
    %3275 = vmatprep.subr.mxu0 0.0
    %3276 = vmatpush2.msra.mxu0 0.0
    %3277 = vmatprep.subr.mxu0 0.0
    %3278 = vmatpush2.msra.mxu0 0.0
    %3279 = vmatprep.subr.mxu0 0.0
    %3280 = vmatpush2.msra.mxu0 0.0
    %3281 = vmatprep.subr.mxu0 0.0
    %3282 = vmatpush2.msra.mxu0 0.0
    %3283 = vmatprep.subr.mxu0 0.0
    %3284 = vmatpush2.msra.mxu0 0.0
    %3285 = vmatprep.subr.mxu0 0.0
    %3286 = vmatpush2.msra.mxu0 0.0
    %3287 = vmatprep.subr.mxu0 0.0
    %3288 = vmatpush2.msra.mxu0 0.0
    %3289 = vmatprep.subr.mxu0 0.0
    %3290 = vmatpush2.msra.mxu0 0.0
    %3291 = vmatprep.subr.mxu0 0.0
    %3292 = vmatpush2.msra.mxu0 0.0
    %3293 = vmatprep.subr.mxu0 0.0
    %3294 = vmatpush2.msra.mxu0 0.0
    %3295 = vmatprep.subr.mxu0 0.0
    %3296 = vmatpush2.msra.mxu0 0.0
    %3297 = vmatprep.subr.mxu0 0.0
    %3298 = vmatpush2.msra.mxu0 0.0
    %3299 = vmatprep.subr.mxu0 0.0
    %3300 = vmatpush2.msra.mxu0 0.0
    %3301 = vmatprep.mubr.f32.mxu0 0.0
    %v3302 = vand.u32 %v2579, 4294901760
    %v3303 = vsub.f32 %v2579, %v3302
    %v3304 = vand.u32 %v3303, 4294901760
    %v3305 = vsub.f32 %v3303, %v3304
    %v3306 = vand.u32 %v3305, 4294901760
    %3307 = vmatmul.mubr.f32.gmra.mxu0 %v3306
    %v3308 = vpop.f32.mrf.mxu0
    %v3309 = vadd.f32 0.0, %v3308
    %v3310 = vpop.f32.mrf.mxu0
    %3311 = vdwg.mxu0
    %3312 = vmatprep.subr.mxu0 0.0
    %v3313 = vand.u32 %v104, 4294901760
    %v3314 = vsub.f32 %v104, %v3313
    %v3315 = vand.u32 %v3314, 4294901760
    %v3316 = vsub.f32 %v3314, %v3315
    %v3317 = vand.u32 %v3316, 4294901760
    %3318 = vmatpush1.msra.mxu0 %v3317
    %3319 = vmatprep.subr.mxu0 0.0
    %v3320 = vand.u32 %v103, 4294901760
    %v3321 = vsub.f32 %v103, %v3320
    %v3322 = vand.u32 %v3321, 4294901760
    %v3323 = vsub.f32 %v3321, %v3322
    %v3324 = vand.u32 %v3323, 4294901760
    %3325 = vmatpush1.msra.mxu0 %v3324
    %3326 = vmatprep.subr.mxu0 0.0
    %v3327 = vand.u32 %v102, 4294901760
    %v3328 = vsub.f32 %v102, %v3327
    %v3329 = vand.u32 %v3328, 4294901760
    %v3330 = vsub.f32 %v3328, %v3329
    %v3331 = vand.u32 %v3330, 4294901760
    %3332 = vmatpush1.msra.mxu0 %v3331
    %3333 = vmatprep.subr.mxu0 0.0
    %v3334 = vand.u32 %v101, 4294901760
    %v3335 = vsub.f32 %v101, %v3334
    %v3336 = vand.u32 %v3335, 4294901760
    %v3337 = vsub.f32 %v3335, %v3336
    %v3338 = vand.u32 %v3337, 4294901760
    %3339 = vmatpush1.msra.mxu0 %v3338
    %3340 = vmatprep.subr.mxu0 0.0
    %v3341 = vand.u32 %v100, 4294901760
    %v3342 = vsub.f32 %v100, %v3341
    %v3343 = vand.u32 %v3342, 4294901760
    %v3344 = vsub.f32 %v3342, %v3343
    %v3345 = vand.u32 %v3344, 4294901760
    %3346 = vmatpush1.msra.mxu0 %v3345
    %3347 = vmatprep.subr.mxu0 0.0
    %v3348 = vand.u32 %v99, 4294901760
    %v3349 = vsub.f32 %v99, %v3348
    %v3350 = vand.u32 %v3349, 4294901760
    %v3351 = vsub.f32 %v3349, %v3350
    %v3352 = vand.u32 %v3351, 4294901760
    %3353 = vmatpush1.msra.mxu0 %v3352
    %3354 = vmatprep.subr.mxu0 0.0
    %v3355 = vand.u32 %v98, 4294901760
    %v3356 = vsub.f32 %v98, %v3355
    %v3357 = vand.u32 %v3356, 4294901760
    %v3358 = vsub.f32 %v3356, %v3357
    %v3359 = vand.u32 %v3358, 4294901760
    %3360 = vmatpush1.msra.mxu0 %v3359
    %3361 = vmatprep.subr.mxu0 0.0
    %v3362 = vand.u32 %v97, 4294901760
    %v3363 = vsub.f32 %v97, %v3362
    %v3364 = vand.u32 %v3363, 4294901760
    %v3365 = vsub.f32 %v3363, %v3364
    %v3366 = vand.u32 %v3365, 4294901760
    %3367 = vmatpush1.msra.mxu0 %v3366
    %3368 = vmatprep.subr.mxu0 0.0
    %v3369 = vand.u32 %v96, 4294901760
    %v3370 = vsub.f32 %v96, %v3369
    %v3371 = vand.u32 %v3370, 4294901760
    %v3372 = vsub.f32 %v3370, %v3371
    %v3373 = vand.u32 %v3372, 4294901760
    %3374 = vmatpush1.msra.mxu0 %v3373
    %3375 = vmatprep.subr.mxu0 0.0
    %v3376 = vand.u32 %v95, 4294901760
    %v3377 = vsub.f32 %v95, %v3376
    %v3378 = vand.u32 %v3377, 4294901760
    %v3379 = vsub.f32 %v3377, %v3378
    %v3380 = vand.u32 %v3379, 4294901760
    %3381 = vmatpush1.msra.mxu0 %v3380
    %3382 = vmatprep.subr.mxu0 0.0
    %v3383 = vand.u32 %v94, 4294901760
    %v3384 = vsub.f32 %v94, %v3383
    %v3385 = vand.u32 %v3384, 4294901760
    %v3386 = vsub.f32 %v3384, %v3385
    %v3387 = vand.u32 %v3386, 4294901760
    %3388 = vmatpush1.msra.mxu0 %v3387
    %3389 = vmatprep.subr.mxu0 0.0
    %v3390 = vand.u32 %v93, 4294901760
    %v3391 = vsub.f32 %v93, %v3390
    %v3392 = vand.u32 %v3391, 4294901760
    %v3393 = vsub.f32 %v3391, %v3392
    %v3394 = vand.u32 %v3393, 4294901760
    %3395 = vmatpush1.msra.mxu0 %v3394
    %3396 = vmatprep.subr.mxu0 0.0
    %v3397 = vand.u32 %v92, 4294901760
    %v3398 = vsub.f32 %v92, %v3397
    %v3399 = vand.u32 %v3398, 4294901760
    %v3400 = vsub.f32 %v3398, %v3399
    %v3401 = vand.u32 %v3400, 4294901760
    %3402 = vmatpush1.msra.mxu0 %v3401
    %3403 = vmatprep.subr.mxu0 0.0
    %v3404 = vand.u32 %v91, 4294901760
    %v3405 = vsub.f32 %v91, %v3404
    %v3406 = vand.u32 %v3405, 4294901760
    %v3407 = vsub.f32 %v3405, %v3406
    %v3408 = vand.u32 %v3407, 4294901760
    %3409 = vmatpush1.msra.mxu0 %v3408
    %3410 = vmatprep.subr.mxu0 0.0
    %v3411 = vand.u32 %v90, 4294901760
    %v3412 = vsub.f32 %v90, %v3411
    %v3413 = vand.u32 %v3412, 4294901760
    %v3414 = vsub.f32 %v3412, %v3413
    %v3415 = vand.u32 %v3414, 4294901760
    %3416 = vmatpush1.msra.mxu0 %v3415
    %3417 = vmatprep.subr.mxu0 0.0
    %v3418 = vand.u32 %v89, 4294901760
    %v3419 = vsub.f32 %v89, %v3418
    %v3420 = vand.u32 %v3419, 4294901760
    %v3421 = vsub.f32 %v3419, %v3420
    %v3422 = vand.u32 %v3421, 4294901760
    %3423 = vmatpush1.msra.mxu0 %v3422
    %3424 = vmatprep.subr.mxu0 0.0
    %3425 = vmatpush2.msra.mxu0 0.0
    %3426 = vmatprep.subr.mxu0 0.0
    %3427 = vmatpush2.msra.mxu0 0.0
    %3428 = vmatprep.subr.mxu0 0.0
    %3429 = vmatpush2.msra.mxu0 0.0
    %3430 = vmatprep.subr.mxu0 0.0
    %3431 = vmatpush2.msra.mxu0 0.0
    %3432 = vmatprep.subr.mxu0 0.0
    %3433 = vmatpush2.msra.mxu0 0.0
    %3434 = vmatprep.subr.mxu0 0.0
    %3435 = vmatpush2.msra.mxu0 0.0
    %3436 = vmatprep.subr.mxu0 0.0
    %3437 = vmatpush2.msra.mxu0 0.0
    %3438 = vmatprep.subr.mxu0 0.0
    %3439 = vmatpush2.msra.mxu0 0.0
    %3440 = vmatprep.subr.mxu0 0.0
    %3441 = vmatpush2.msra.mxu0 0.0
    %3442 = vmatprep.subr.mxu0 0.0
    %3443 = vmatpush2.msra.mxu0 0.0
    %3444 = vmatprep.subr.mxu0 0.0
    %3445 = vmatpush2.msra.mxu0 0.0
    %3446 = vmatprep.subr.mxu0 0.0
    %3447 = vmatpush2.msra.mxu0 0.0
    %3448 = vmatprep.subr.mxu0 0.0
    %3449 = vmatpush2.msra.mxu0 0.0
    %3450 = vmatprep.subr.mxu0 0.0
    %3451 = vmatpush2.msra.mxu0 0.0
    %3452 = vmatprep.subr.mxu0 0.0
    %3453 = vmatpush2.msra.mxu0 0.0
    %3454 = vmatprep.subr.mxu0 0.0
    %3455 = vmatpush2.msra.mxu0 0.0
    %3456 = vmatprep.mubr.f32.mxu0 0.0
    %v3457 = vand.u32 %v2579, 4294901760
    %3458 = vmatmul.mubr.f32.gmra.mxu0 %v3457
    %v3459 = vpop.f32.mrf.mxu0
    %v3460 = vadd.f32 %v3309, %v3459
    %v3461 = vpop.f32.mrf.mxu0
    %3462 = vdwg.mxu0
    %3463 = vmatprep.subr.mxu0 0.0
    %v3464 = vand.u32 %v104, 4294901760
    %v3465 = vsub.f32 %v104, %v3464
    %3466 = vmatpush1.msra.mxu0 %v3465
    %3467 = vmatprep.subr.mxu0 0.0
    %v3468 = vand.u32 %v103, 4294901760
    %v3469 = vsub.f32 %v103, %v3468
    %3470 = vmatpush1.msra.mxu0 %v3469
    %3471 = vmatprep.subr.mxu0 0.0
    %v3472 = vand.u32 %v102, 4294901760
    %v3473 = vsub.f32 %v102, %v3472
    %3474 = vmatpush1.msra.mxu0 %v3473
    %3475 = vmatprep.subr.mxu0 0.0
    %v3476 = vand.u32 %v101, 4294901760
    %v3477 = vsub.f32 %v101, %v3476
    %3478 = vmatpush1.msra.mxu0 %v3477
    %3479 = vmatprep.subr.mxu0 0.0
    %v3480 = vand.u32 %v100, 4294901760
    %v3481 = vsub.f32 %v100, %v3480
    %3482 = vmatpush1.msra.mxu0 %v3481
    %3483 = vmatprep.subr.mxu0 0.0
    %v3484 = vand.u32 %v99, 4294901760
    %v3485 = vsub.f32 %v99, %v3484
    %3486 = vmatpush1.msra.mxu0 %v3485
    %3487 = vmatprep.subr.mxu0 0.0
    %v3488 = vand.u32 %v98, 4294901760
    %v3489 = vsub.f32 %v98, %v3488
    %3490 = vmatpush1.msra.mxu0 %v3489
    %3491 = vmatprep.subr.mxu0 0.0
    %v3492 = vand.u32 %v97, 4294901760
    %v3493 = vsub.f32 %v97, %v3492
    %3494 = vmatpush1.msra.mxu0 %v3493
    %3495 = vmatprep.subr.mxu0 0.0
    %v3496 = vand.u32 %v96, 4294901760
    %v3497 = vsub.f32 %v96, %v3496
    %3498 = vmatpush1.msra.mxu0 %v3497
    %3499 = vmatprep.subr.mxu0 0.0
    %v3500 = vand.u32 %v95, 4294901760
    %v3501 = vsub.f32 %v95, %v3500
    %3502 = vmatpush1.msra.mxu0 %v3501
    %3503 = vmatprep.subr.mxu0 0.0
    %v3504 = vand.u32 %v94, 4294901760
    %v3505 = vsub.f32 %v94, %v3504
    %3506 = vmatpush1.msra.mxu0 %v3505
    %3507 = vmatprep.subr.mxu0 0.0
    %v3508 = vand.u32 %v93, 4294901760
    %v3509 = vsub.f32 %v93, %v3508
    %3510 = vmatpush1.msra.mxu0 %v3509
    %3511 = vmatprep.subr.mxu0 0.0
    %v3512 = vand.u32 %v92, 4294901760
    %v3513 = vsub.f32 %v92, %v3512
    %3514 = vmatpush1.msra.mxu0 %v3513
    %3515 = vmatprep.subr.mxu0 0.0
    %v3516 = vand.u32 %v91, 4294901760
    %v3517 = vsub.f32 %v91, %v3516
    %3518 = vmatpush1.msra.mxu0 %v3517
    %3519 = vmatprep.subr.mxu0 0.0
    %v3520 = vand.u32 %v90, 4294901760
    %v3521 = vsub.f32 %v90, %v3520
    %3522 = vmatpush1.msra.mxu0 %v3521
    %3523 = vmatprep.subr.mxu0 0.0
    %v3524 = vand.u32 %v89, 4294901760
    %v3525 = vsub.f32 %v89, %v3524
    %3526 = vmatpush1.msra.mxu0 %v3525
    %3527 = vmatprep.subr.mxu0 0.0
    %3528 = vmatpush2.msra.mxu0 0.0
    %3529 = vmatprep.subr.mxu0 0.0
    %3530 = vmatpush2.msra.mxu0 0.0
    %3531 = vmatprep.subr.mxu0 0.0
    %3532 = vmatpush2.msra.mxu0 0.0
    %3533 = vmatprep.subr.mxu0 0.0
    %3534 = vmatpush2.msra.mxu0 0.0
    %3535 = vmatprep.subr.mxu0 0.0
    %3536 = vmatpush2.msra.mxu0 0.0
    %3537 = vmatprep.subr.mxu0 0.0
    %3538 = vmatpush2.msra.mxu0 0.0
    %3539 = vmatprep.subr.mxu0 0.0
    %3540 = vmatpush2.msra.mxu0 0.0
    %3541 = vmatprep.subr.mxu0 0.0
    %3542 = vmatpush2.msra.mxu0 0.0
    %3543 = vmatprep.subr.mxu0 0.0
    %3544 = vmatpush2.msra.mxu0 0.0
    %3545 = vmatprep.subr.mxu0 0.0
    %3546 = vmatpush2.msra.mxu0 0.0
    %3547 = vmatprep.subr.mxu0 0.0
    %3548 = vmatpush2.msra.mxu0 0.0
    %3549 = vmatprep.subr.mxu0 0.0
    %3550 = vmatpush2.msra.mxu0 0.0
    %3551 = vmatprep.subr.mxu0 0.0
    %3552 = vmatpush2.msra.mxu0 0.0
    %3553 = vmatprep.subr.mxu0 0.0
    %3554 = vmatpush2.msra.mxu0 0.0
    %3555 = vmatprep.subr.mxu0 0.0
    %3556 = vmatpush2.msra.mxu0 0.0
    %3557 = vmatprep.subr.mxu0 0.0
    %3558 = vmatpush2.msra.mxu0 0.0
    %3559 = vmatprep.mubr.f32.mxu0 0.0
    %v3560 = vand.u32 %v2579, 4294901760
    %v3561 = vsub.f32 %v2579, %v3560
    %3562 = vmatmul.mubr.f32.gmra.mxu0 %v3561
    %v3563 = vpop.f32.mrf.mxu0
    %v3564 = vadd.f32 %v3460, %v3563
    %v3565 = vpop.f32.mrf.mxu0
    %3566 = vdwg.mxu0
    %3567 = vmatprep.subr.mxu0 0.0
    %v3568 = vand.u32 %v104, 4294901760
    %3569 = vmatpush1.msra.mxu0 %v3568
    %3570 = vmatprep.subr.mxu0 0.0
    %v3571 = vand.u32 %v103, 4294901760
    %3572 = vmatpush1.msra.mxu0 %v3571
    %3573 = vmatprep.subr.mxu0 0.0
    %v3574 = vand.u32 %v102, 4294901760
    %3575 = vmatpush1.msra.mxu0 %v3574
    %3576 = vmatprep.subr.mxu0 0.0
    %v3577 = vand.u32 %v101, 4294901760
    %3578 = vmatpush1.msra.mxu0 %v3577
    %3579 = vmatprep.subr.mxu0 0.0
    %v3580 = vand.u32 %v100, 4294901760
    %3581 = vmatpush1.msra.mxu0 %v3580
    %3582 = vmatprep.subr.mxu0 0.0
    %v3583 = vand.u32 %v99, 4294901760
    %3584 = vmatpush1.msra.mxu0 %v3583
    %3585 = vmatprep.subr.mxu0 0.0
    %v3586 = vand.u32 %v98, 4294901760
    %3587 = vmatpush1.msra.mxu0 %v3586
    %3588 = vmatprep.subr.mxu0 0.0
    %v3589 = vand.u32 %v97, 4294901760
    %3590 = vmatpush1.msra.mxu0 %v3589
    %3591 = vmatprep.subr.mxu0 0.0
    %v3592 = vand.u32 %v96, 4294901760
    %3593 = vmatpush1.msra.mxu0 %v3592
    %3594 = vmatprep.subr.mxu0 0.0
    %v3595 = vand.u32 %v95, 4294901760
    %3596 = vmatpush1.msra.mxu0 %v3595
    %3597 = vmatprep.subr.mxu0 0.0
    %v3598 = vand.u32 %v94, 4294901760
    %3599 = vmatpush1.msra.mxu0 %v3598
    %3600 = vmatprep.subr.mxu0 0.0
    %v3601 = vand.u32 %v93, 4294901760
    %3602 = vmatpush1.msra.mxu0 %v3601
    %3603 = vmatprep.subr.mxu0 0.0
    %v3604 = vand.u32 %v92, 4294901760
    %3605 = vmatpush1.msra.mxu0 %v3604
    %3606 = vmatprep.subr.mxu0 0.0
    %v3607 = vand.u32 %v91, 4294901760
    %3608 = vmatpush1.msra.mxu0 %v3607
    %3609 = vmatprep.subr.mxu0 0.0
    %v3610 = vand.u32 %v90, 4294901760
    %3611 = vmatpush1.msra.mxu0 %v3610
    %3612 = vmatprep.subr.mxu0 0.0
    %v3613 = vand.u32 %v89, 4294901760
    %3614 = vmatpush1.msra.mxu0 %v3613
    %3615 = vmatprep.subr.mxu0 0.0
    %3616 = vmatpush2.msra.mxu0 0.0
    %3617 = vmatprep.subr.mxu0 0.0
    %3618 = vmatpush2.msra.mxu0 0.0
    %3619 = vmatprep.subr.mxu0 0.0
    %3620 = vmatpush2.msra.mxu0 0.0
    %3621 = vmatprep.subr.mxu0 0.0
    %3622 = vmatpush2.msra.mxu0 0.0
    %3623 = vmatprep.subr.mxu0 0.0
    %3624 = vmatpush2.msra.mxu0 0.0
    %3625 = vmatprep.subr.mxu0 0.0
    %3626 = vmatpush2.msra.mxu0 0.0
    %3627 = vmatprep.subr.mxu0 0.0
    %3628 = vmatpush2.msra.mxu0 0.0
    %3629 = vmatprep.subr.mxu0 0.0
    %3630 = vmatpush2.msra.mxu0 0.0
    %3631 = vmatprep.subr.mxu0 0.0
    %3632 = vmatpush2.msra.mxu0 0.0
    %3633 = vmatprep.subr.mxu0 0.0
    %3634 = vmatpush2.msra.mxu0 0.0
    %3635 = vmatprep.subr.mxu0 0.0
    %3636 = vmatpush2.msra.mxu0 0.0
    %3637 = vmatprep.subr.mxu0 0.0
    %3638 = vmatpush2.msra.mxu0 0.0
    %3639 = vmatprep.subr.mxu0 0.0
    %3640 = vmatpush2.msra.mxu0 0.0
    %3641 = vmatprep.subr.mxu0 0.0
    %3642 = vmatpush2.msra.mxu0 0.0
    %3643 = vmatprep.subr.mxu0 0.0
    %3644 = vmatpush2.msra.mxu0 0.0
    %3645 = vmatprep.subr.mxu0 0.0
    %3646 = vmatpush2.msra.mxu0 0.0
    %3647 = vmatprep.mubr.f32.mxu0 0.0
    %v3648 = vand.u32 %v2579, 4294901760
    %v3649 = vsub.f32 %v2579, %v3648
    %v3650 = vand.u32 %v3649, 4294901760
    %3651 = vmatmul.mubr.f32.gmra.mxu0 %v3650
    %v3652 = vpop.f32.mrf.mxu0
    %v3653 = vadd.f32 %v3564, %v3652
    %v3654 = vpop.f32.mrf.mxu0
    %3655 = vdwg.mxu0
    %3656 = vmatprep.subr.mxu0 0.0
    %v3657 = vand.u32 %v104, 4294901760
    %v3658 = vsub.f32 %v104, %v3657
    %v3659 = vand.u32 %v3658, 4294901760
    %3660 = vmatpush1.msra.mxu0 %v3659
    %3661 = vmatprep.subr.mxu0 0.0
    %v3662 = vand.u32 %v103, 4294901760
    %v3663 = vsub.f32 %v103, %v3662
    %v3664 = vand.u32 %v3663, 4294901760
    %3665 = vmatpush1.msra.mxu0 %v3664
    %3666 = vmatprep.subr.mxu0 0.0
    %v3667 = vand.u32 %v102, 4294901760
    %v3668 = vsub.f32 %v102, %v3667
    %v3669 = vand.u32 %v3668, 4294901760
    %3670 = vmatpush1.msra.mxu0 %v3669
    %3671 = vmatprep.subr.mxu0 0.0
    %v3672 = vand.u32 %v101, 4294901760
    %v3673 = vsub.f32 %v101, %v3672
    %v3674 = vand.u32 %v3673, 4294901760
    %3675 = vmatpush1.msra.mxu0 %v3674
    %3676 = vmatprep.subr.mxu0 0.0
    %v3677 = vand.u32 %v100, 4294901760
    %v3678 = vsub.f32 %v100, %v3677
    %v3679 = vand.u32 %v3678, 4294901760
    %3680 = vmatpush1.msra.mxu0 %v3679
    %3681 = vmatprep.subr.mxu0 0.0
    %v3682 = vand.u32 %v99, 4294901760
    %v3683 = vsub.f32 %v99, %v3682
    %v3684 = vand.u32 %v3683, 4294901760
    %3685 = vmatpush1.msra.mxu0 %v3684
    %3686 = vmatprep.subr.mxu0 0.0
    %v3687 = vand.u32 %v98, 4294901760
    %v3688 = vsub.f32 %v98, %v3687
    %v3689 = vand.u32 %v3688, 4294901760
    %3690 = vmatpush1.msra.mxu0 %v3689
    %3691 = vmatprep.subr.mxu0 0.0
    %v3692 = vand.u32 %v97, 4294901760
    %v3693 = vsub.f32 %v97, %v3692
    %v3694 = vand.u32 %v3693, 4294901760
    %3695 = vmatpush1.msra.mxu0 %v3694
    %3696 = vmatprep.subr.mxu0 0.0
    %v3697 = vand.u32 %v96, 4294901760
    %v3698 = vsub.f32 %v96, %v3697
    %v3699 = vand.u32 %v3698, 4294901760
    %3700 = vmatpush1.msra.mxu0 %v3699
    %3701 = vmatprep.subr.mxu0 0.0
    %v3702 = vand.u32 %v95, 4294901760
    %v3703 = vsub.f32 %v95, %v3702
    %v3704 = vand.u32 %v3703, 4294901760
    %3705 = vmatpush1.msra.mxu0 %v3704
    %3706 = vmatprep.subr.mxu0 0.0
    %v3707 = vand.u32 %v94, 4294901760
    %v3708 = vsub.f32 %v94, %v3707
    %v3709 = vand.u32 %v3708, 4294901760
    %3710 = vmatpush1.msra.mxu0 %v3709
    %3711 = vmatprep.subr.mxu0 0.0
    %v3712 = vand.u32 %v93, 4294901760
    %v3713 = vsub.f32 %v93, %v3712
    %v3714 = vand.u32 %v3713, 4294901760
    %3715 = vmatpush1.msra.mxu0 %v3714
    %3716 = vmatprep.subr.mxu0 0.0
    %v3717 = vand.u32 %v92, 4294901760
    %v3718 = vsub.f32 %v92, %v3717
    %v3719 = vand.u32 %v3718, 4294901760
    %3720 = vmatpush1.msra.mxu0 %v3719
    %3721 = vmatprep.subr.mxu0 0.0
    %v3722 = vand.u32 %v91, 4294901760
    %v3723 = vsub.f32 %v91, %v3722
    %v3724 = vand.u32 %v3723, 4294901760
    %3725 = vmatpush1.msra.mxu0 %v3724
    %3726 = vmatprep.subr.mxu0 0.0
    %v3727 = vand.u32 %v90, 4294901760
    %v3728 = vsub.f32 %v90, %v3727
    %v3729 = vand.u32 %v3728, 4294901760
    %3730 = vmatpush1.msra.mxu0 %v3729
    %3731 = vmatprep.subr.mxu0 0.0
    %v3732 = vand.u32 %v89, 4294901760
    %v3733 = vsub.f32 %v89, %v3732
    %v3734 = vand.u32 %v3733, 4294901760
    %3735 = vmatpush1.msra.mxu0 %v3734
    %3736 = vmatprep.subr.mxu0 0.0
    %3737 = vmatpush2.msra.mxu0 0.0
    %3738 = vmatprep.subr.mxu0 0.0
    %3739 = vmatpush2.msra.mxu0 0.0
    %3740 = vmatprep.subr.mxu0 0.0
    %3741 = vmatpush2.msra.mxu0 0.0
    %3742 = vmatprep.subr.mxu0 0.0
    %3743 = vmatpush2.msra.mxu0 0.0
    %3744 = vmatprep.subr.mxu0 0.0
    %3745 = vmatpush2.msra.mxu0 0.0
    %3746 = vmatprep.subr.mxu0 0.0
    %3747 = vmatpush2.msra.mxu0 0.0
    %3748 = vmatprep.subr.mxu0 0.0
    %3749 = vmatpush2.msra.mxu0 0.0
    %3750 = vmatprep.subr.mxu0 0.0
    %3751 = vmatpush2.msra.mxu0 0.0
    %3752 = vmatprep.subr.mxu0 0.0
    %3753 = vmatpush2.msra.mxu0 0.0
    %3754 = vmatprep.subr.mxu0 0.0
    %3755 = vmatpush2.msra.mxu0 0.0
    %3756 = vmatprep.subr.mxu0 0.0
    %3757 = vmatpush2.msra.mxu0 0.0
    %3758 = vmatprep.subr.mxu0 0.0
    %3759 = vmatpush2.msra.mxu0 0.0
    %3760 = vmatprep.subr.mxu0 0.0
    %3761 = vmatpush2.msra.mxu0 0.0
    %3762 = vmatprep.subr.mxu0 0.0
    %3763 = vmatpush2.msra.mxu0 0.0
    %3764 = vmatprep.subr.mxu0 0.0
    %3765 = vmatpush2.msra.mxu0 0.0
    %3766 = vmatprep.subr.mxu0 0.0
    %3767 = vmatpush2.msra.mxu0 0.0
    %3768 = vmatprep.mubr.f32.mxu0 0.0
    %v3769 = vand.u32 %v2579, 4294901760
    %3770 = vmatmul.mubr.f32.gmra.mxu0 %v3769
    %v3771 = vpop.f32.mrf.mxu0
    %v3772 = vadd.f32 %v3653, %v3771
    %v3773 = vpop.f32.mrf.mxu0
    %3774 = vdwg.mxu0
    %3775 = vmatprep.subr.mxu0 0.0
    %v3776 = vand.u32 %v104, 4294901760
    %3777 = vmatpush1.msra.mxu0 %v3776
    %3778 = vmatprep.subr.mxu0 0.0
    %v3779 = vand.u32 %v103, 4294901760
    %3780 = vmatpush1.msra.mxu0 %v3779
    %3781 = vmatprep.subr.mxu0 0.0
    %v3782 = vand.u32 %v102, 4294901760
    %3783 = vmatpush1.msra.mxu0 %v3782
    %3784 = vmatprep.subr.mxu0 0.0
    %v3785 = vand.u32 %v101, 4294901760
    %3786 = vmatpush1.msra.mxu0 %v3785
    %3787 = vmatprep.subr.mxu0 0.0
    %v3788 = vand.u32 %v100, 4294901760
    %3789 = vmatpush1.msra.mxu0 %v3788
    %3790 = vmatprep.subr.mxu0 0.0
    %v3791 = vand.u32 %v99, 4294901760
    %3792 = vmatpush1.msra.mxu0 %v3791
    %3793 = vmatprep.subr.mxu0 0.0
    %v3794 = vand.u32 %v98, 4294901760
    %3795 = vmatpush1.msra.mxu0 %v3794
    %3796 = vmatprep.subr.mxu0 0.0
    %v3797 = vand.u32 %v97, 4294901760
    %3798 = vmatpush1.msra.mxu0 %v3797
    %3799 = vmatprep.subr.mxu0 0.0
    %v3800 = vand.u32 %v96, 4294901760
    %3801 = vmatpush1.msra.mxu0 %v3800
    %3802 = vmatprep.subr.mxu0 0.0
    %v3803 = vand.u32 %v95, 4294901760
    %3804 = vmatpush1.msra.mxu0 %v3803
    %3805 = vmatprep.subr.mxu0 0.0
    %v3806 = vand.u32 %v94, 4294901760
    %3807 = vmatpush1.msra.mxu0 %v3806
    %3808 = vmatprep.subr.mxu0 0.0
    %v3809 = vand.u32 %v93, 4294901760
    %3810 = vmatpush1.msra.mxu0 %v3809
    %3811 = vmatprep.subr.mxu0 0.0
    %v3812 = vand.u32 %v92, 4294901760
    %3813 = vmatpush1.msra.mxu0 %v3812
    %3814 = vmatprep.subr.mxu0 0.0
    %v3815 = vand.u32 %v91, 4294901760
    %3816 = vmatpush1.msra.mxu0 %v3815
    %3817 = vmatprep.subr.mxu0 0.0
    %v3818 = vand.u32 %v90, 4294901760
    %3819 = vmatpush1.msra.mxu0 %v3818
    %3820 = vmatprep.subr.mxu0 0.0
    %v3821 = vand.u32 %v89, 4294901760
    %3822 = vmatpush1.msra.mxu0 %v3821
    %3823 = vmatprep.subr.mxu0 0.0
    %3824 = vmatpush2.msra.mxu0 0.0
    %3825 = vmatprep.subr.mxu0 0.0
    %3826 = vmatpush2.msra.mxu0 0.0
    %3827 = vmatprep.subr.mxu0 0.0
    %3828 = vmatpush2.msra.mxu0 0.0
    %3829 = vmatprep.subr.mxu0 0.0
    %3830 = vmatpush2.msra.mxu0 0.0
    %3831 = vmatprep.subr.mxu0 0.0
    %3832 = vmatpush2.msra.mxu0 0.0
    %3833 = vmatprep.subr.mxu0 0.0
    %3834 = vmatpush2.msra.mxu0 0.0
    %3835 = vmatprep.subr.mxu0 0.0
    %3836 = vmatpush2.msra.mxu0 0.0
    %3837 = vmatprep.subr.mxu0 0.0
    %3838 = vmatpush2.msra.mxu0 0.0
    %3839 = vmatprep.subr.mxu0 0.0
    %3840 = vmatpush2.msra.mxu0 0.0
    %3841 = vmatprep.subr.mxu0 0.0
    %3842 = vmatpush2.msra.mxu0 0.0
    %3843 = vmatprep.subr.mxu0 0.0
    %3844 = vmatpush2.msra.mxu0 0.0
    %3845 = vmatprep.subr.mxu0 0.0
    %3846 = vmatpush2.msra.mxu0 0.0
    %3847 = vmatprep.subr.mxu0 0.0
    %3848 = vmatpush2.msra.mxu0 0.0
    %3849 = vmatprep.subr.mxu0 0.0
    %3850 = vmatpush2.msra.mxu0 0.0
    %3851 = vmatprep.subr.mxu0 0.0
    %3852 = vmatpush2.msra.mxu0 0.0
    %3853 = vmatprep.subr.mxu0 0.0
    %3854 = vmatpush2.msra.mxu0 0.0
    %3855 = vmatprep.mubr.f32.mxu0 0.0
    %v3856 = vand.u32 %v2579, 4294901760
    %3857 = vmatmul.mubr.f32.gmra.mxu0 %v3856
    %v3858 = vpop.f32.mrf.mxu0
    %v3859 = vadd.f32 %v3772, %v3858
    %v3860 = vpop.f32.mrf.mxu0
    %3861 = vdwg.mxu0
    %v3862 = vmul.f32 %v3218, 0.001953125
    %v3863 = vmul.f32 %v3859, 0.001953125
    %v3864 = vmul.f32 %v3862, %v3862
    %v3865 = vsub.f32 %v3863, %v3864
    %v3866 = vadd.f32 %v3865, 1e-05
    %v3867 = vrsqrt.pop %v3866
    %v3868 = vmul.f32 %v2556, %v3867
    %v3869 = vmul.f32 %v3862, %v3868
    %v3870 = vsub.f32 %v2557, %v3869
    %v3872 = vlaneseq
    %v3873 = vshrl.u32 %v3872, 7
    %v3874 = vsub.s32 0, %v3873
    %v3875 = vrot.slane %v3868, %v3874
    %v3877 = vmul.f32 %v2552, %v3875
    %v3878 = vmul.f32 %v2553, %v3875
    %v3879 = vmul.f32 %v2554, %v3875
    %v3880 = vmul.f32 %v2555, %v3875
    %v3882 = vlaneseq
    %v3883 = vshrl.u32 %v3882, 7
    %v3884 = vsub.s32 0, %v3883
    %v3885 = vrot.slane %v3870, %v3884
    %v3887 = vadd.f32 %v3877, %v3885
    %v3888 = vadd.f32 %v3878, %v3885
    %v3889 = vadd.f32 %v3879, %v3885
    %v3890 = vadd.f32 %v3880, %v3885
    %v3891 = vmax.f32 %v3887, 0.0
    %v3892 = vmax.f32 %v3888, 0.0
    %v3893 = vmax.f32 %v3889, 0.0
    %v3894 = vmax.f32 %v3890, 0.0
    %v3895 = vrot.slane %v3891, 7
    %v3896 = vrot.slane %v3892, 7
    %v3897 = vrot.slane %v3893, 7
    %v3898 = vrot.slane %v3894, 7
    %v3899 = vsel %vm170, %v3897, %v3898
    %v3900 = vsel %vm170, %v3896, %v3897
    %v3901 = vsel %vm170, %v3895, %v3896
    %v3902 = vsel %vm170, %v3898, %v3895
    %v3903 = vsel %vm158, %v3902, 0.0
    %v3904 = vsel %vm159, %v3901, 0.0
    %v3905 = vsel %vm160, %v3900, 0.0
    %v3906 = vsel %vm161, %v3899, 0.0
    %v3907 = vrot.slane %v3891, 1
    %v3908 = vrot.slane %v3892, 1
    %v3909 = vrot.slane %v3893, 1
    %v3910 = vrot.slane %v3894, 1
    %v3911 = vsel %vm183, %v3909, %v3910
    %v3912 = vsel %vm183, %v3908, %v3909
    %v3913 = vsel %vm183, %v3907, %v3908
    %v3914 = vsel %vm183, %v3910, %v3907
    %v3915 = vsel %vm162, %v3913, 0.0
    %v3916 = vsel %vm163, %v3912, 0.0
    %v3917 = vsel %vm164, %v3911, 0.0
    %v3918 = vsel %vm165, %v3914, 0.0
    %v3919 = vld [vmem:[#allocation7] sm:$0xff]
    %v3920 = vld [vmem:[#allocation7 + $0x8] sm:$0xff]
    %v3921 = vld [vmem:[#allocation7 + $0x10] sm:$0xff]
    %v3922 = vld [vmem:[#allocation7 + $0x18] sm:$0xff]
    %v3923 = vld [vmem:[#allocation7 + $0x20] sm:$0xff]
    %v3924 = vld [vmem:[#allocation7 + $0x28] sm:$0xff]
    %v3925 = vld [vmem:[#allocation7 + $0x30] sm:$0xff]
    %v3926 = vld [vmem:[#allocation7 + $0x38] sm:$0xff]
    %v3927 = vld [vmem:[#allocation7 + $0x40] sm:$0xff]
    %v3928 = vld [vmem:[#allocation7 + $0x48] sm:$0xff]
    %v3929 = vld [vmem:[#allocation7 + $0x50] sm:$0xff]
    %v3930 = vld [vmem:[#allocation7 + $0x58] sm:$0xff]
    %v3931 = vld [vmem:[#allocation7 + $0x60] sm:$0xff]
    %v3932 = vld [vmem:[#allocation7 + $0x68] sm:$0xff]
    %v3933 = vld [vmem:[#allocation7 + $0x70] sm:$0xff]
    %v3934 = vld [vmem:[#allocation7 + $0x78] sm:$0xff]
    %s3935 = scalar_lea.vmem [#allocation7], 128
    %v3936 = vld [vmem:[%s3935] sm:$0xff]
    %v3937 = vld [vmem:[%s3935 + $0x8] sm:$0xff]
    %v3938 = vld [vmem:[%s3935 + $0x10] sm:$0xff]
    %v3939 = vld [vmem:[%s3935 + $0x18] sm:$0xff]
    %v3940 = vld [vmem:[%s3935 + $0x20] sm:$0xff]
    %v3941 = vld [vmem:[%s3935 + $0x28] sm:$0xff]
    %v3942 = vld [vmem:[%s3935 + $0x30] sm:$0xff]
    %v3943 = vld [vmem:[%s3935 + $0x38] sm:$0xff]
    %v3944 = vld [vmem:[%s3935 + $0x40] sm:$0xff]
    %v3945 = vld [vmem:[%s3935 + $0x48] sm:$0xff]
    %v3946 = vld [vmem:[%s3935 + $0x50] sm:$0xff]
    %v3947 = vld [vmem:[%s3935 + $0x58] sm:$0xff]
    %v3948 = vld [vmem:[%s3935 + $0x60] sm:$0xff]
    %v3949 = vld [vmem:[%s3935 + $0x68] sm:$0xff]
    %v3950 = vld [vmem:[%s3935 + $0x70] sm:$0xff]
    %v3951 = vld [vmem:[%s3935 + $0x78] sm:$0xff]
    %3952 = vmatprep.subr.mxu0 0.0
    %v3953 = vand.u32 %v3951, 4294901760
    %3954 = vmatpush1.msra.mxu0 %v3953
    %3955 = vmatprep.subr.mxu0 0.0
    %v3956 = vand.u32 %v3950, 4294901760
    %3957 = vmatpush1.msra.mxu0 %v3956
    %3958 = vmatprep.subr.mxu0 0.0
    %v3959 = vand.u32 %v3949, 4294901760
    %3960 = vmatpush1.msra.mxu0 %v3959
    %3961 = vmatprep.subr.mxu0 0.0
    %v3962 = vand.u32 %v3948, 4294901760
    %3963 = vmatpush1.msra.mxu0 %v3962
    %3964 = vmatprep.subr.mxu0 0.0
    %v3965 = vand.u32 %v3947, 4294901760
    %3966 = vmatpush1.msra.mxu0 %v3965
    %3967 = vmatprep.subr.mxu0 0.0
    %v3968 = vand.u32 %v3946, 4294901760
    %3969 = vmatpush1.msra.mxu0 %v3968
    %3970 = vmatprep.subr.mxu0 0.0
    %v3971 = vand.u32 %v3945, 4294901760
    %3972 = vmatpush1.msra.mxu0 %v3971
    %3973 = vmatprep.subr.mxu0 0.0
    %v3974 = vand.u32 %v3944, 4294901760
    %3975 = vmatpush1.msra.mxu0 %v3974
    %3976 = vmatprep.subr.mxu0 0.0
    %v3977 = vand.u32 %v3943, 4294901760
    %3978 = vmatpush1.msra.mxu0 %v3977
    %3979 = vmatprep.subr.mxu0 0.0
    %v3980 = vand.u32 %v3942, 4294901760
    %3981 = vmatpush1.msra.mxu0 %v3980
    %3982 = vmatprep.subr.mxu0 0.0
    %v3983 = vand.u32 %v3941, 4294901760
    %3984 = vmatpush1.msra.mxu0 %v3983
    %3985 = vmatprep.subr.mxu0 0.0
    %v3986 = vand.u32 %v3940, 4294901760
    %3987 = vmatpush1.msra.mxu0 %v3986
    %3988 = vmatprep.subr.mxu0 0.0
    %v3989 = vand.u32 %v3939, 4294901760
    %3990 = vmatpush1.msra.mxu0 %v3989
    %3991 = vmatprep.subr.mxu0 0.0
    %v3992 = vand.u32 %v3938, 4294901760
    %3993 = vmatpush1.msra.mxu0 %v3992
    %3994 = vmatprep.subr.mxu0 0.0
    %v3995 = vand.u32 %v3937, 4294901760
    %3996 = vmatpush1.msra.mxu0 %v3995
    %3997 = vmatprep.subr.mxu0 0.0
    %v3998 = vand.u32 %v3936, 4294901760
    %3999 = vmatpush1.msra.mxu0 %v3998
    %4000 = vmatprep.subr.mxu0 0.0
    %4001 = vmatpush2.msra.mxu0 0.0
    %4002 = vmatprep.subr.mxu0 0.0
    %4003 = vmatpush2.msra.mxu0 0.0
    %4004 = vmatprep.subr.mxu0 0.0
    %4005 = vmatpush2.msra.mxu0 0.0
    %4006 = vmatprep.subr.mxu0 0.0
    %4007 = vmatpush2.msra.mxu0 0.0
    %4008 = vmatprep.subr.mxu0 0.0
    %4009 = vmatpush2.msra.mxu0 0.0
    %4010 = vmatprep.subr.mxu0 0.0
    %4011 = vmatpush2.msra.mxu0 0.0
    %4012 = vmatprep.subr.mxu0 0.0
    %4013 = vmatpush2.msra.mxu0 0.0
    %4014 = vmatprep.subr.mxu0 0.0
    %4015 = vmatpush2.msra.mxu0 0.0
    %4016 = vmatprep.subr.mxu0 0.0
    %4017 = vmatpush2.msra.mxu0 0.0
    %4018 = vmatprep.subr.mxu0 0.0
    %4019 = vmatpush2.msra.mxu0 0.0
    %4020 = vmatprep.subr.mxu0 0.0
    %4021 = vmatpush2.msra.mxu0 0.0
    %4022 = vmatprep.subr.mxu0 0.0
    %4023 = vmatpush2.msra.mxu0 0.0
    %4024 = vmatprep.subr.mxu0 0.0
    %4025 = vmatpush2.msra.mxu0 0.0
    %4026 = vmatprep.subr.mxu0 0.0
    %4027 = vmatpush2.msra.mxu0 0.0
    %4028 = vmatprep.subr.mxu0 0.0
    %4029 = vmatpush2.msra.mxu0 0.0
    %4030 = vmatprep.subr.mxu0 0.0
    %4031 = vmatpush2.msra.mxu0 0.0
    %4032 = vmatprep.mubr.f32.mxu0 0.0
    %v4033 = vand.u32 %v3891, 4294901760
    %v4034 = vsub.f32 %v3891, %v4033
    %v4035 = vand.u32 %v4034, 4294901760
    %v4036 = vsub.f32 %v4034, %v4035
    %v4037 = vand.u32 %v4036, 4294901760
    %4038 = vmatmul.mubr.f32.gmra.mxu0 %v4037
    %v4039 = vpop.f32.mrf.mxu0
    %v4040 = vadd.f32 0.0, %v4039
    %v4041 = vpop.f32.mrf.mxu0
    %4042 = vmatprep.mubr.f32.mxu0 0.0
    %v4043 = vand.u32 %v3892, 4294901760
    %v4044 = vsub.f32 %v3892, %v4043
    %v4045 = vand.u32 %v4044, 4294901760
    %v4046 = vsub.f32 %v4044, %v4045
    %v4047 = vand.u32 %v4046, 4294901760
    %4048 = vmatmul.mubr.f32.gmra.mxu0 %v4047
    %v4049 = vpop.f32.mrf.mxu0
    %v4050 = vadd.f32 0.0, %v4049
    %v4051 = vpop.f32.mrf.mxu0
    %4052 = vmatprep.mubr.f32.mxu0 0.0
    %v4053 = vand.u32 %v3893, 4294901760
    %v4054 = vsub.f32 %v3893, %v4053
    %v4055 = vand.u32 %v4054, 4294901760
    %v4056 = vsub.f32 %v4054, %v4055
    %v4057 = vand.u32 %v4056, 4294901760
    %4058 = vmatmul.mubr.f32.gmra.mxu0 %v4057
    %v4059 = vpop.f32.mrf.mxu0
    %v4060 = vadd.f32 0.0, %v4059
    %v4061 = vpop.f32.mrf.mxu0
    %4062 = vmatprep.mubr.f32.mxu0 0.0
    %v4063 = vand.u32 %v3894, 4294901760
    %v4064 = vsub.f32 %v3894, %v4063
    %v4065 = vand.u32 %v4064, 4294901760
    %v4066 = vsub.f32 %v4064, %v4065
    %v4067 = vand.u32 %v4066, 4294901760
    %4068 = vmatmul.mubr.f32.gmra.mxu0 %v4067
    %v4069 = vpop.f32.mrf.mxu0
    %v4070 = vadd.f32 0.0, %v4069
    %v4071 = vpop.f32.mrf.mxu0
    %4072 = vdwg.mxu0
    %4073 = vmatprep.subr.mxu0 0.0
    %v4074 = vand.u32 %v3951, 4294901760
    %v4075 = vsub.f32 %v3951, %v4074
    %v4076 = vand.u32 %v4075, 4294901760
    %v4077 = vsub.f32 %v4075, %v4076
    %v4078 = vand.u32 %v4077, 4294901760
    %4079 = vmatpush1.msra.mxu0 %v4078
    %4080 = vmatprep.subr.mxu0 0.0
    %v4081 = vand.u32 %v3950, 4294901760
    %v4082 = vsub.f32 %v3950, %v4081
    %v4083 = vand.u32 %v4082, 4294901760
    %v4084 = vsub.f32 %v4082, %v4083
    %v4085 = vand.u32 %v4084, 4294901760
    %4086 = vmatpush1.msra.mxu0 %v4085
    %4087 = vmatprep.subr.mxu0 0.0
    %v4088 = vand.u32 %v3949, 4294901760
    %v4089 = vsub.f32 %v3949, %v4088
    %v4090 = vand.u32 %v4089, 4294901760
    %v4091 = vsub.f32 %v4089, %v4090
    %v4092 = vand.u32 %v4091, 4294901760
    %4093 = vmatpush1.msra.mxu0 %v4092
    %4094 = vmatprep.subr.mxu0 0.0
    %v4095 = vand.u32 %v3948, 4294901760
    %v4096 = vsub.f32 %v3948, %v4095
    %v4097 = vand.u32 %v4096, 4294901760
    %v4098 = vsub.f32 %v4096, %v4097
    %v4099 = vand.u32 %v4098, 4294901760
    %4100 = vmatpush1.msra.mxu0 %v4099
    %4101 = vmatprep.subr.mxu0 0.0
    %v4102 = vand.u32 %v3947, 4294901760
    %v4103 = vsub.f32 %v3947, %v4102
    %v4104 = vand.u32 %v4103, 4294901760
    %v4105 = vsub.f32 %v4103, %v4104
    %v4106 = vand.u32 %v4105, 4294901760
    %4107 = vmatpush1.msra.mxu0 %v4106
    %4108 = vmatprep.subr.mxu0 0.0
    %v4109 = vand.u32 %v3946, 4294901760
    %v4110 = vsub.f32 %v3946, %v4109
    %v4111 = vand.u32 %v4110, 4294901760
    %v4112 = vsub.f32 %v4110, %v4111
    %v4113 = vand.u32 %v4112, 4294901760
    %4114 = vmatpush1.msra.mxu0 %v4113
    %4115 = vmatprep.subr.mxu0 0.0
    %v4116 = vand.u32 %v3945, 4294901760
    %v4117 = vsub.f32 %v3945, %v4116
    %v4118 = vand.u32 %v4117, 4294901760
    %v4119 = vsub.f32 %v4117, %v4118
    %v4120 = vand.u32 %v4119, 4294901760
    %4121 = vmatpush1.msra.mxu0 %v4120
    %4122 = vmatprep.subr.mxu0 0.0
    %v4123 = vand.u32 %v3944, 4294901760
    %v4124 = vsub.f32 %v3944, %v4123
    %v4125 = vand.u32 %v4124, 4294901760
    %v4126 = vsub.f32 %v4124, %v4125
    %v4127 = vand.u32 %v4126, 4294901760
    %4128 = vmatpush1.msra.mxu0 %v4127
    %4129 = vmatprep.subr.mxu0 0.0
    %v4130 = vand.u32 %v3943, 4294901760
    %v4131 = vsub.f32 %v3943, %v4130
    %v4132 = vand.u32 %v4131, 4294901760
    %v4133 = vsub.f32 %v4131, %v4132
    %v4134 = vand.u32 %v4133, 4294901760
    %4135 = vmatpush1.msra.mxu0 %v4134
    %4136 = vmatprep.subr.mxu0 0.0
    %v4137 = vand.u32 %v3942, 4294901760
    %v4138 = vsub.f32 %v3942, %v4137
    %v4139 = vand.u32 %v4138, 4294901760
    %v4140 = vsub.f32 %v4138, %v4139
    %v4141 = vand.u32 %v4140, 4294901760
    %4142 = vmatpush1.msra.mxu0 %v4141
    %4143 = vmatprep.subr.mxu0 0.0
    %v4144 = vand.u32 %v3941, 4294901760
    %v4145 = vsub.f32 %v3941, %v4144
    %v4146 = vand.u32 %v4145, 4294901760
    %v4147 = vsub.f32 %v4145, %v4146
    %v4148 = vand.u32 %v4147, 4294901760
    %4149 = vmatpush1.msra.mxu0 %v4148
    %4150 = vmatprep.subr.mxu0 0.0
    %v4151 = vand.u32 %v3940, 4294901760
    %v4152 = vsub.f32 %v3940, %v4151
    %v4153 = vand.u32 %v4152, 4294901760
    %v4154 = vsub.f32 %v4152, %v4153
    %v4155 = vand.u32 %v4154, 4294901760
    %4156 = vmatpush1.msra.mxu0 %v4155
    %4157 = vmatprep.subr.mxu0 0.0
    %v4158 = vand.u32 %v3939, 4294901760
    %v4159 = vsub.f32 %v3939, %v4158
    %v4160 = vand.u32 %v4159, 4294901760
    %v4161 = vsub.f32 %v4159, %v4160
    %v4162 = vand.u32 %v4161, 4294901760
    %4163 = vmatpush1.msra.mxu0 %v4162
    %4164 = vmatprep.subr.mxu0 0.0
    %v4165 = vand.u32 %v3938, 4294901760
    %v4166 = vsub.f32 %v3938, %v4165
    %v4167 = vand.u32 %v4166, 4294901760
    %v4168 = vsub.f32 %v4166, %v4167
    %v4169 = vand.u32 %v4168, 4294901760
    %4170 = vmatpush1.msra.mxu0 %v4169
    %4171 = vmatprep.subr.mxu0 0.0
    %v4172 = vand.u32 %v3937, 4294901760
    %v4173 = vsub.f32 %v3937, %v4172
    %v4174 = vand.u32 %v4173, 4294901760
    %v4175 = vsub.f32 %v4173, %v4174
    %v4176 = vand.u32 %v4175, 4294901760
    %4177 = vmatpush1.msra.mxu0 %v4176
    %4178 = vmatprep.subr.mxu0 0.0
    %v4179 = vand.u32 %v3936, 4294901760
    %v4180 = vsub.f32 %v3936, %v4179
    %v4181 = vand.u32 %v4180, 4294901760
    %v4182 = vsub.f32 %v4180, %v4181
    %v4183 = vand.u32 %v4182, 4294901760
    %4184 = vmatpush1.msra.mxu0 %v4183
    %4185 = vmatprep.subr.mxu0 0.0
    %4186 = vmatpush2.msra.mxu0 0.0
    %4187 = vmatprep.subr.mxu0 0.0
    %4188 = vmatpush2.msra.mxu0 0.0
    %4189 = vmatprep.subr.mxu0 0.0
    %4190 = vmatpush2.msra.mxu0 0.0
    %4191 = vmatprep.subr.mxu0 0.0
    %4192 = vmatpush2.msra.mxu0 0.0
    %4193 = vmatprep.subr.mxu0 0.0
    %4194 = vmatpush2.msra.mxu0 0.0
    %4195 = vmatprep.subr.mxu0 0.0
    %4196 = vmatpush2.msra.mxu0 0.0
    %4197 = vmatprep.subr.mxu0 0.0
    %4198 = vmatpush2.msra.mxu0 0.0
    %4199 = vmatprep.subr.mxu0 0.0
    %4200 = vmatpush2.msra.mxu0 0.0
    %4201 = vmatprep.subr.mxu0 0.0
    %4202 = vmatpush2.msra.mxu0 0.0
    %4203 = vmatprep.subr.mxu0 0.0
    %4204 = vmatpush2.msra.mxu0 0.0
    %4205 = vmatprep.subr.mxu0 0.0
    %4206 = vmatpush2.msra.mxu0 0.0
    %4207 = vmatprep.subr.mxu0 0.0
    %4208 = vmatpush2.msra.mxu0 0.0
    %4209 = vmatprep.subr.mxu0 0.0
    %4210 = vmatpush2.msra.mxu0 0.0
    %4211 = vmatprep.subr.mxu0 0.0
    %4212 = vmatpush2.msra.mxu0 0.0
    %4213 = vmatprep.subr.mxu0 0.0
    %4214 = vmatpush2.msra.mxu0 0.0
    %4215 = vmatprep.subr.mxu0 0.0
    %4216 = vmatpush2.msra.mxu0 0.0
    %4217 = vmatprep.mubr.f32.mxu0 0.0
    %v4218 = vand.u32 %v3891, 4294901760
    %4219 = vmatmul.mubr.f32.gmra.mxu0 %v4218
    %v4220 = vpop.f32.mrf.mxu0
    %v4221 = vadd.f32 %v4040, %v4220
    %v4222 = vpop.f32.mrf.mxu0
    %4223 = vmatprep.mubr.f32.mxu0 0.0
    %v4224 = vand.u32 %v3892, 4294901760
    %4225 = vmatmul.mubr.f32.gmra.mxu0 %v4224
    %v4226 = vpop.f32.mrf.mxu0
    %v4227 = vadd.f32 %v4050, %v4226
    %v4228 = vpop.f32.mrf.mxu0
    %4229 = vmatprep.mubr.f32.mxu0 0.0
    %v4230 = vand.u32 %v3893, 4294901760
    %4231 = vmatmul.mubr.f32.gmra.mxu0 %v4230
    %v4232 = vpop.f32.mrf.mxu0
    %v4233 = vadd.f32 %v4060, %v4232
    %v4234 = vpop.f32.mrf.mxu0
    %4235 = vmatprep.mubr.f32.mxu0 0.0
    %v4236 = vand.u32 %v3894, 4294901760
    %4237 = vmatmul.mubr.f32.gmra.mxu0 %v4236
    %v4238 = vpop.f32.mrf.mxu0
    %v4239 = vadd.f32 %v4070, %v4238
    %v4240 = vpop.f32.mrf.mxu0
    %4241 = vdwg.mxu0
    %4242 = vmatprep.subr.mxu0 0.0
    %v4243 = vand.u32 %v3951, 4294901760
    %v4244 = vsub.f32 %v3951, %v4243
    %4245 = vmatpush1.msra.mxu0 %v4244
    %4246 = vmatprep.subr.mxu0 0.0
    %v4247 = vand.u32 %v3950, 4294901760
    %v4248 = vsub.f32 %v3950, %v4247
    %4249 = vmatpush1.msra.mxu0 %v4248
    %4250 = vmatprep.subr.mxu0 0.0
    %v4251 = vand.u32 %v3949, 4294901760
    %v4252 = vsub.f32 %v3949, %v4251
    %4253 = vmatpush1.msra.mxu0 %v4252
    %4254 = vmatprep.subr.mxu0 0.0
    %v4255 = vand.u32 %v3948, 4294901760
    %v4256 = vsub.f32 %v3948, %v4255
    %4257 = vmatpush1.msra.mxu0 %v4256
    %4258 = vmatprep.subr.mxu0 0.0
    %v4259 = vand.u32 %v3947, 4294901760
    %v4260 = vsub.f32 %v3947, %v4259
    %4261 = vmatpush1.msra.mxu0 %v4260
    %4262 = vmatprep.subr.mxu0 0.0
    %v4263 = vand.u32 %v3946, 4294901760
    %v4264 = vsub.f32 %v3946, %v4263
    %4265 = vmatpush1.msra.mxu0 %v4264
    %4266 = vmatprep.subr.mxu0 0.0
    %v4267 = vand.u32 %v3945, 4294901760
    %v4268 = vsub.f32 %v3945, %v4267
    %4269 = vmatpush1.msra.mxu0 %v4268
    %4270 = vmatprep.subr.mxu0 0.0
    %v4271 = vand.u32 %v3944, 4294901760
    %v4272 = vsub.f32 %v3944, %v4271
    %4273 = vmatpush1.msra.mxu0 %v4272
    %4274 = vmatprep.subr.mxu0 0.0
    %v4275 = vand.u32 %v3943, 4294901760
    %v4276 = vsub.f32 %v3943, %v4275
    %4277 = vmatpush1.msra.mxu0 %v4276
    %4278 = vmatprep.subr.mxu0 0.0
    %v4279 = vand.u32 %v3942, 4294901760
    %v4280 = vsub.f32 %v3942, %v4279
    %4281 = vmatpush1.msra.mxu0 %v4280
    %4282 = vmatprep.subr.mxu0 0.0
    %v4283 = vand.u32 %v3941, 4294901760
    %v4284 = vsub.f32 %v3941, %v4283
    %4285 = vmatpush1.msra.mxu0 %v4284
    %4286 = vmatprep.subr.mxu0 0.0
    %v4287 = vand.u32 %v3940, 4294901760
    %v4288 = vsub.f32 %v3940, %v4287
    %4289 = vmatpush1.msra.mxu0 %v4288
    %4290 = vmatprep.subr.mxu0 0.0
    %v4291 = vand.u32 %v3939, 4294901760
    %v4292 = vsub.f32 %v3939, %v4291
    %4293 = vmatpush1.msra.mxu0 %v4292
    %4294 = vmatprep.subr.mxu0 0.0
    %v4295 = vand.u32 %v3938, 4294901760
    %v4296 = vsub.f32 %v3938, %v4295
    %4297 = vmatpush1.msra.mxu0 %v4296
    %4298 = vmatprep.subr.mxu0 0.0
    %v4299 = vand.u32 %v3937, 4294901760
    %v4300 = vsub.f32 %v3937, %v4299
    %4301 = vmatpush1.msra.mxu0 %v4300
    %4302 = vmatprep.subr.mxu0 0.0
    %v4303 = vand.u32 %v3936, 4294901760
    %v4304 = vsub.f32 %v3936, %v4303
    %4305 = vmatpush1.msra.mxu0 %v4304
    %4306 = vmatprep.subr.mxu0 0.0
    %4307 = vmatpush2.msra.mxu0 0.0
    %4308 = vmatprep.subr.mxu0 0.0
    %4309 = vmatpush2.msra.mxu0 0.0
    %4310 = vmatprep.subr.mxu0 0.0
    %4311 = vmatpush2.msra.mxu0 0.0
    %4312 = vmatprep.subr.mxu0 0.0
    %4313 = vmatpush2.msra.mxu0 0.0
    %4314 = vmatprep.subr.mxu0 0.0
    %4315 = vmatpush2.msra.mxu0 0.0
    %4316 = vmatprep.subr.mxu0 0.0
    %4317 = vmatpush2.msra.mxu0 0.0
    %4318 = vmatprep.subr.mxu0 0.0
    %4319 = vmatpush2.msra.mxu0 0.0
    %4320 = vmatprep.subr.mxu0 0.0
    %4321 = vmatpush2.msra.mxu0 0.0
    %4322 = vmatprep.subr.mxu0 0.0
    %4323 = vmatpush2.msra.mxu0 0.0
    %4324 = vmatprep.subr.mxu0 0.0
    %4325 = vmatpush2.msra.mxu0 0.0
    %4326 = vmatprep.subr.mxu0 0.0
    %4327 = vmatpush2.msra.mxu0 0.0
    %4328 = vmatprep.subr.mxu0 0.0
    %4329 = vmatpush2.msra.mxu0 0.0
    %4330 = vmatprep.subr.mxu0 0.0
    %4331 = vmatpush2.msra.mxu0 0.0
    %4332 = vmatprep.subr.mxu0 0.0
    %4333 = vmatpush2.msra.mxu0 0.0
    %4334 = vmatprep.subr.mxu0 0.0
    %4335 = vmatpush2.msra.mxu0 0.0
    %4336 = vmatprep.subr.mxu0 0.0
    %4337 = vmatpush2.msra.mxu0 0.0
    %4338 = vmatprep.mubr.f32.mxu0 0.0
    %v4339 = vand.u32 %v3891, 4294901760
    %v4340 = vsub.f32 %v3891, %v4339
    %4341 = vmatmul.mubr.f32.gmra.mxu0 %v4340
    %v4342 = vpop.f32.mrf.mxu0
    %v4343 = vadd.f32 %v4221, %v4342
    %v4344 = vpop.f32.mrf.mxu0
    %4345 = vmatprep.mubr.f32.mxu0 0.0
    %v4346 = vand.u32 %v3892, 4294901760
    %v4347 = vsub.f32 %v3892, %v4346
    %4348 = vmatmul.mubr.f32.gmra.mxu0 %v4347
    %v4349 = vpop.f32.mrf.mxu0
    %v4350 = vadd.f32 %v4227, %v4349
    %v4351 = vpop.f32.mrf.mxu0
    %4352 = vmatprep.mubr.f32.mxu0 0.0
    %v4353 = vand.u32 %v3893, 4294901760
    %v4354 = vsub.f32 %v3893, %v4353
    %4355 = vmatmul.mubr.f32.gmra.mxu0 %v4354
    %v4356 = vpop.f32.mrf.mxu0
    %v4357 = vadd.f32 %v4233, %v4356
    %v4358 = vpop.f32.mrf.mxu0
    %4359 = vmatprep.mubr.f32.mxu0 0.0
    %v4360 = vand.u32 %v3894, 4294901760
    %v4361 = vsub.f32 %v3894, %v4360
    %4362 = vmatmul.mubr.f32.gmra.mxu0 %v4361
    %v4363 = vpop.f32.mrf.mxu0
    %v4364 = vadd.f32 %v4239, %v4363
    %v4365 = vpop.f32.mrf.mxu0
    %4366 = vdwg.mxu0
    %4367 = vmatprep.subr.mxu0 0.0
    %v4368 = vand.u32 %v3951, 4294901760
    %4369 = vmatpush1.msra.mxu0 %v4368
    %4370 = vmatprep.subr.mxu0 0.0
    %v4371 = vand.u32 %v3950, 4294901760
    %4372 = vmatpush1.msra.mxu0 %v4371
    %4373 = vmatprep.subr.mxu0 0.0
    %v4374 = vand.u32 %v3949, 4294901760
    %4375 = vmatpush1.msra.mxu0 %v4374
    %4376 = vmatprep.subr.mxu0 0.0
    %v4377 = vand.u32 %v3948, 4294901760
    %4378 = vmatpush1.msra.mxu0 %v4377
    %4379 = vmatprep.subr.mxu0 0.0
    %v4380 = vand.u32 %v3947, 4294901760
    %4381 = vmatpush1.msra.mxu0 %v4380
    %4382 = vmatprep.subr.mxu0 0.0
    %v4383 = vand.u32 %v3946, 4294901760
    %4384 = vmatpush1.msra.mxu0 %v4383
    %4385 = vmatprep.subr.mxu0 0.0
    %v4386 = vand.u32 %v3945, 4294901760
    %4387 = vmatpush1.msra.mxu0 %v4386
    %4388 = vmatprep.subr.mxu0 0.0
    %v4389 = vand.u32 %v3944, 4294901760
    %4390 = vmatpush1.msra.mxu0 %v4389
    %4391 = vmatprep.subr.mxu0 0.0
    %v4392 = vand.u32 %v3943, 4294901760
    %4393 = vmatpush1.msra.mxu0 %v4392
    %4394 = vmatprep.subr.mxu0 0.0
    %v4395 = vand.u32 %v3942, 4294901760
    %4396 = vmatpush1.msra.mxu0 %v4395
    %4397 = vmatprep.subr.mxu0 0.0
    %v4398 = vand.u32 %v3941, 4294901760
    %4399 = vmatpush1.msra.mxu0 %v4398
    %4400 = vmatprep.subr.mxu0 0.0
    %v4401 = vand.u32 %v3940, 4294901760
    %4402 = vmatpush1.msra.mxu0 %v4401
    %4403 = vmatprep.subr.mxu0 0.0
    %v4404 = vand.u32 %v3939, 4294901760
    %4405 = vmatpush1.msra.mxu0 %v4404
    %4406 = vmatprep.subr.mxu0 0.0
    %v4407 = vand.u32 %v3938, 4294901760
    %4408 = vmatpush1.msra.mxu0 %v4407
    %4409 = vmatprep.subr.mxu0 0.0
    %v4410 = vand.u32 %v3937, 4294901760
    %4411 = vmatpush1.msra.mxu0 %v4410
    %4412 = vmatprep.subr.mxu0 0.0
    %v4413 = vand.u32 %v3936, 4294901760
    %4414 = vmatpush1.msra.mxu0 %v4413
    %4415 = vmatprep.subr.mxu0 0.0
    %4416 = vmatpush2.msra.mxu0 0.0
    %4417 = vmatprep.subr.mxu0 0.0
    %4418 = vmatpush2.msra.mxu0 0.0
    %4419 = vmatprep.subr.mxu0 0.0
    %4420 = vmatpush2.msra.mxu0 0.0
    %4421 = vmatprep.subr.mxu0 0.0
    %4422 = vmatpush2.msra.mxu0 0.0
    %4423 = vmatprep.subr.mxu0 0.0
    %4424 = vmatpush2.msra.mxu0 0.0
    %4425 = vmatprep.subr.mxu0 0.0
    %4426 = vmatpush2.msra.mxu0 0.0
    %4427 = vmatprep.subr.mxu0 0.0
    %4428 = vmatpush2.msra.mxu0 0.0
    %4429 = vmatprep.subr.mxu0 0.0
    %4430 = vmatpush2.msra.mxu0 0.0
    %4431 = vmatprep.subr.mxu0 0.0
    %4432 = vmatpush2.msra.mxu0 0.0
    %4433 = vmatprep.subr.mxu0 0.0
    %4434 = vmatpush2.msra.mxu0 0.0
    %4435 = vmatprep.subr.mxu0 0.0
    %4436 = vmatpush2.msra.mxu0 0.0
    %4437 = vmatprep.subr.mxu0 0.0
    %4438 = vmatpush2.msra.mxu0 0.0
    %4439 = vmatprep.subr.mxu0 0.0
    %4440 = vmatpush2.msra.mxu0 0.0
    %4441 = vmatprep.subr.mxu0 0.0
    %4442 = vmatpush2.msra.mxu0 0.0
    %4443 = vmatprep.subr.mxu0 0.0
    %4444 = vmatpush2.msra.mxu0 0.0
    %4445 = vmatprep.subr.mxu0 0.0
    %4446 = vmatpush2.msra.mxu0 0.0
    %4447 = vmatprep.mubr.f32.mxu0 0.0
    %v4448 = vand.u32 %v3891, 4294901760
    %v4449 = vsub.f32 %v3891, %v4448
    %v4450 = vand.u32 %v4449, 4294901760
    %4451 = vmatmul.mubr.f32.gmra.mxu0 %v4450
    %v4452 = vpop.f32.mrf.mxu0
    %v4453 = vadd.f32 %v4343, %v4452
    %v4454 = vpop.f32.mrf.mxu0
    %4455 = vmatprep.mubr.f32.mxu0 0.0
    %v4456 = vand.u32 %v3892, 4294901760
    %v4457 = vsub.f32 %v3892, %v4456
    %v4458 = vand.u32 %v4457, 4294901760
    %4459 = vmatmul.mubr.f32.gmra.mxu0 %v4458
    %v4460 = vpop.f32.mrf.mxu0
    %v4461 = vadd.f32 %v4350, %v4460
    %v4462 = vpop.f32.mrf.mxu0
    %4463 = vmatprep.mubr.f32.mxu0 0.0
    %v4464 = vand.u32 %v3893, 4294901760
    %v4465 = vsub.f32 %v3893, %v4464
    %v4466 = vand.u32 %v4465, 4294901760
    %4467 = vmatmul.mubr.f32.gmra.mxu0 %v4466
    %v4468 = vpop.f32.mrf.mxu0
    %v4469 = vadd.f32 %v4357, %v4468
    %v4470 = vpop.f32.mrf.mxu0
    %4471 = vmatprep.mubr.f32.mxu0 0.0
    %v4472 = vand.u32 %v3894, 4294901760
    %v4473 = vsub.f32 %v3894, %v4472
    %v4474 = vand.u32 %v4473, 4294901760
    %4475 = vmatmul.mubr.f32.gmra.mxu0 %v4474
    %v4476 = vpop.f32.mrf.mxu0
    %v4477 = vadd.f32 %v4364, %v4476
    %v4478 = vpop.f32.mrf.mxu0
    %4479 = vdwg.mxu0
    %4480 = vmatprep.subr.mxu0 0.0
    %v4481 = vand.u32 %v3951, 4294901760
    %v4482 = vsub.f32 %v3951, %v4481
    %v4483 = vand.u32 %v4482, 4294901760
    %4484 = vmatpush1.msra.mxu0 %v4483
    %4485 = vmatprep.subr.mxu0 0.0
    %v4486 = vand.u32 %v3950, 4294901760
    %v4487 = vsub.f32 %v3950, %v4486
    %v4488 = vand.u32 %v4487, 4294901760
    %4489 = vmatpush1.msra.mxu0 %v4488
    %4490 = vmatprep.subr.mxu0 0.0
    %v4491 = vand.u32 %v3949, 4294901760
    %v4492 = vsub.f32 %v3949, %v4491
    %v4493 = vand.u32 %v4492, 4294901760
    %4494 = vmatpush1.msra.mxu0 %v4493
    %4495 = vmatprep.subr.mxu0 0.0
    %v4496 = vand.u32 %v3948, 4294901760
    %v4497 = vsub.f32 %v3948, %v4496
    %v4498 = vand.u32 %v4497, 4294901760
    %4499 = vmatpush1.msra.mxu0 %v4498
    %4500 = vmatprep.subr.mxu0 0.0
    %v4501 = vand.u32 %v3947, 4294901760
    %v4502 = vsub.f32 %v3947, %v4501
    %v4503 = vand.u32 %v4502, 4294901760
    %4504 = vmatpush1.msra.mxu0 %v4503
    %4505 = vmatprep.subr.mxu0 0.0
    %v4506 = vand.u32 %v3946, 4294901760
    %v4507 = vsub.f32 %v3946, %v4506
    %v4508 = vand.u32 %v4507, 4294901760
    %4509 = vmatpush1.msra.mxu0 %v4508
    %4510 = vmatprep.subr.mxu0 0.0
    %v4511 = vand.u32 %v3945, 4294901760
    %v4512 = vsub.f32 %v3945, %v4511
    %v4513 = vand.u32 %v4512, 4294901760
    %4514 = vmatpush1.msra.mxu0 %v4513
    %4515 = vmatprep.subr.mxu0 0.0
    %v4516 = vand.u32 %v3944, 4294901760
    %v4517 = vsub.f32 %v3944, %v4516
    %v4518 = vand.u32 %v4517, 4294901760
    %4519 = vmatpush1.msra.mxu0 %v4518
    %4520 = vmatprep.subr.mxu0 0.0
    %v4521 = vand.u32 %v3943, 4294901760
    %v4522 = vsub.f32 %v3943, %v4521
    %v4523 = vand.u32 %v4522, 4294901760
    %4524 = vmatpush1.msra.mxu0 %v4523
    %4525 = vmatprep.subr.mxu0 0.0
    %v4526 = vand.u32 %v3942, 4294901760
    %v4527 = vsub.f32 %v3942, %v4526
    %v4528 = vand.u32 %v4527, 4294901760
    %4529 = vmatpush1.msra.mxu0 %v4528
    %4530 = vmatprep.subr.mxu0 0.0
    %v4531 = vand.u32 %v3941, 4294901760
    %v4532 = vsub.f32 %v3941, %v4531
    %v4533 = vand.u32 %v4532, 4294901760
    %4534 = vmatpush1.msra.mxu0 %v4533
    %4535 = vmatprep.subr.mxu0 0.0
    %v4536 = vand.u32 %v3940, 4294901760
    %v4537 = vsub.f32 %v3940, %v4536
    %v4538 = vand.u32 %v4537, 4294901760
    %4539 = vmatpush1.msra.mxu0 %v4538
    %4540 = vmatprep.subr.mxu0 0.0
    %v4541 = vand.u32 %v3939, 4294901760
    %v4542 = vsub.f32 %v3939, %v4541
    %v4543 = vand.u32 %v4542, 4294901760
    %4544 = vmatpush1.msra.mxu0 %v4543
    %4545 = vmatprep.subr.mxu0 0.0
    %v4546 = vand.u32 %v3938, 4294901760
    %v4547 = vsub.f32 %v3938, %v4546
    %v4548 = vand.u32 %v4547, 4294901760
    %4549 = vmatpush1.msra.mxu0 %v4548
    %4550 = vmatprep.subr.mxu0 0.0
    %v4551 = vand.u32 %v3937, 4294901760
    %v4552 = vsub.f32 %v3937, %v4551
    %v4553 = vand.u32 %v4552, 4294901760
    %4554 = vmatpush1.msra.mxu0 %v4553
    %4555 = vmatprep.subr.mxu0 0.0
    %v4556 = vand.u32 %v3936, 4294901760
    %v4557 = vsub.f32 %v3936, %v4556
    %v4558 = vand.u32 %v4557, 4294901760
    %4559 = vmatpush1.msra.mxu0 %v4558
    %4560 = vmatprep.subr.mxu0 0.0
    %4561 = vmatpush2.msra.mxu0 0.0
    %4562 = vmatprep.subr.mxu0 0.0
    %4563 = vmatpush2.msra.mxu0 0.0
    %4564 = vmatprep.subr.mxu0 0.0
    %4565 = vmatpush2.msra.mxu0 0.0
    %4566 = vmatprep.subr.mxu0 0.0
    %4567 = vmatpush2.msra.mxu0 0.0
    %4568 = vmatprep.subr.mxu0 0.0
    %4569 = vmatpush2.msra.mxu0 0.0
    %4570 = vmatprep.subr.mxu0 0.0
    %4571 = vmatpush2.msra.mxu0 0.0
    %4572 = vmatprep.subr.mxu0 0.0
    %4573 = vmatpush2.msra.mxu0 0.0
    %4574 = vmatprep.subr.mxu0 0.0
    %4575 = vmatpush2.msra.mxu0 0.0
    %4576 = vmatprep.subr.mxu0 0.0
    %4577 = vmatpush2.msra.mxu0 0.0
    %4578 = vmatprep.subr.mxu0 0.0
    %4579 = vmatpush2.msra.mxu0 0.0
    %4580 = vmatprep.subr.mxu0 0.0
    %4581 = vmatpush2.msra.mxu0 0.0
    %4582 = vmatprep.subr.mxu0 0.0
    %4583 = vmatpush2.msra.mxu0 0.0
    %4584 = vmatprep.subr.mxu0 0.0
    %4585 = vmatpush2.msra.mxu0 0.0
    %4586 = vmatprep.subr.mxu0 0.0
    %4587 = vmatpush2.msra.mxu0 0.0
    %4588 = vmatprep.subr.mxu0 0.0
    %4589 = vmatpush2.msra.mxu0 0.0
    %4590 = vmatprep.subr.mxu0 0.0
    %4591 = vmatpush2.msra.mxu0 0.0
    %4592 = vmatprep.mubr.f32.mxu0 0.0
    %v4593 = vand.u32 %v3891, 4294901760
    %4594 = vmatmul.mubr.f32.gmra.mxu0 %v4593
    %v4595 = vpop.f32.mrf.mxu0
    %v4596 = vadd.f32 %v4453, %v4595
    %v4597 = vpop.f32.mrf.mxu0
    %4598 = vmatprep.mubr.f32.mxu0 0.0
    %v4599 = vand.u32 %v3892, 4294901760
    %4600 = vmatmul.mubr.f32.gmra.mxu0 %v4599
    %v4601 = vpop.f32.mrf.mxu0
    %v4602 = vadd.f32 %v4461, %v4601
    %v4603 = vpop.f32.mrf.mxu0
    %4604 = vmatprep.mubr.f32.mxu0 0.0
    %v4605 = vand.u32 %v3893, 4294901760
    %4606 = vmatmul.mubr.f32.gmra.mxu0 %v4605
    %v4607 = vpop.f32.mrf.mxu0
    %v4608 = vadd.f32 %v4469, %v4607
    %v4609 = vpop.f32.mrf.mxu0
    %4610 = vmatprep.mubr.f32.mxu0 0.0
    %v4611 = vand.u32 %v3894, 4294901760
    %4612 = vmatmul.mubr.f32.gmra.mxu0 %v4611
    %v4613 = vpop.f32.mrf.mxu0
    %v4614 = vadd.f32 %v4477, %v4613
    %v4615 = vpop.f32.mrf.mxu0
    %4616 = vdwg.mxu0
    %4617 = vmatprep.subr.mxu0 0.0
    %v4618 = vand.u32 %v3951, 4294901760
    %4619 = vmatpush1.msra.mxu0 %v4618
    %4620 = vmatprep.subr.mxu0 0.0
    %v4621 = vand.u32 %v3950, 4294901760
    %4622 = vmatpush1.msra.mxu0 %v4621
    %4623 = vmatprep.subr.mxu0 0.0
    %v4624 = vand.u32 %v3949, 4294901760
    %4625 = vmatpush1.msra.mxu0 %v4624
    %4626 = vmatprep.subr.mxu0 0.0
    %v4627 = vand.u32 %v3948, 4294901760
    %4628 = vmatpush1.msra.mxu0 %v4627
    %4629 = vmatprep.subr.mxu0 0.0
    %v4630 = vand.u32 %v3947, 4294901760
    %4631 = vmatpush1.msra.mxu0 %v4630
    %4632 = vmatprep.subr.mxu0 0.0
    %v4633 = vand.u32 %v3946, 4294901760
    %4634 = vmatpush1.msra.mxu0 %v4633
    %4635 = vmatprep.subr.mxu0 0.0
    %v4636 = vand.u32 %v3945, 4294901760
    %4637 = vmatpush1.msra.mxu0 %v4636
    %4638 = vmatprep.subr.mxu0 0.0
    %v4639 = vand.u32 %v3944, 4294901760
    %4640 = vmatpush1.msra.mxu0 %v4639
    %4641 = vmatprep.subr.mxu0 0.0
    %v4642 = vand.u32 %v3943, 4294901760
    %4643 = vmatpush1.msra.mxu0 %v4642
    %4644 = vmatprep.subr.mxu0 0.0
    %v4645 = vand.u32 %v3942, 4294901760
    %4646 = vmatpush1.msra.mxu0 %v4645
    %4647 = vmatprep.subr.mxu0 0.0
    %v4648 = vand.u32 %v3941, 4294901760
    %4649 = vmatpush1.msra.mxu0 %v4648
    %4650 = vmatprep.subr.mxu0 0.0
    %v4651 = vand.u32 %v3940, 4294901760
    %4652 = vmatpush1.msra.mxu0 %v4651
    %4653 = vmatprep.subr.mxu0 0.0
    %v4654 = vand.u32 %v3939, 4294901760
    %4655 = vmatpush1.msra.mxu0 %v4654
    %4656 = vmatprep.subr.mxu0 0.0
    %v4657 = vand.u32 %v3938, 4294901760
    %4658 = vmatpush1.msra.mxu0 %v4657
    %4659 = vmatprep.subr.mxu0 0.0
    %v4660 = vand.u32 %v3937, 4294901760
    %4661 = vmatpush1.msra.mxu0 %v4660
    %4662 = vmatprep.subr.mxu0 0.0
    %v4663 = vand.u32 %v3936, 4294901760
    %4664 = vmatpush1.msra.mxu0 %v4663
    %4665 = vmatprep.subr.mxu0 0.0
    %4666 = vmatpush2.msra.mxu0 0.0
    %4667 = vmatprep.subr.mxu0 0.0
    %4668 = vmatpush2.msra.mxu0 0.0
    %4669 = vmatprep.subr.mxu0 0.0
    %4670 = vmatpush2.msra.mxu0 0.0
    %4671 = vmatprep.subr.mxu0 0.0
    %4672 = vmatpush2.msra.mxu0 0.0
    %4673 = vmatprep.subr.mxu0 0.0
    %4674 = vmatpush2.msra.mxu0 0.0
    %4675 = vmatprep.subr.mxu0 0.0
    %4676 = vmatpush2.msra.mxu0 0.0
    %4677 = vmatprep.subr.mxu0 0.0
    %4678 = vmatpush2.msra.mxu0 0.0
    %4679 = vmatprep.subr.mxu0 0.0
    %4680 = vmatpush2.msra.mxu0 0.0
    %4681 = vmatprep.subr.mxu0 0.0
    %4682 = vmatpush2.msra.mxu0 0.0
    %4683 = vmatprep.subr.mxu0 0.0
    %4684 = vmatpush2.msra.mxu0 0.0
    %4685 = vmatprep.subr.mxu0 0.0
    %4686 = vmatpush2.msra.mxu0 0.0
    %4687 = vmatprep.subr.mxu0 0.0
    %4688 = vmatpush2.msra.mxu0 0.0
    %4689 = vmatprep.subr.mxu0 0.0
    %4690 = vmatpush2.msra.mxu0 0.0
    %4691 = vmatprep.subr.mxu0 0.0
    %4692 = vmatpush2.msra.mxu0 0.0
    %4693 = vmatprep.subr.mxu0 0.0
    %4694 = vmatpush2.msra.mxu0 0.0
    %4695 = vmatprep.subr.mxu0 0.0
    %4696 = vmatpush2.msra.mxu0 0.0
    %4697 = vmatprep.mubr.f32.mxu0 0.0
    %v4698 = vand.u32 %v3891, 4294901760
    %4699 = vmatmul.mubr.f32.gmra.mxu0 %v4698
    %v4700 = vpop.f32.mrf.mxu0
    %v4701 = vadd.f32 %v4596, %v4700
    %v4702 = vpop.f32.mrf.mxu0
    %4703 = vmatprep.mubr.f32.mxu0 0.0
    %v4704 = vand.u32 %v3892, 4294901760
    %4705 = vmatmul.mubr.f32.gmra.mxu0 %v4704
    %v4706 = vpop.f32.mrf.mxu0
    %v4707 = vadd.f32 %v4602, %v4706
    %v4708 = vpop.f32.mrf.mxu0
    %4709 = vmatprep.mubr.f32.mxu0 0.0
    %v4710 = vand.u32 %v3893, 4294901760
    %4711 = vmatmul.mubr.f32.gmra.mxu0 %v4710
    %v4712 = vpop.f32.mrf.mxu0
    %v4713 = vadd.f32 %v4608, %v4712
    %v4714 = vpop.f32.mrf.mxu0
    %4715 = vmatprep.mubr.f32.mxu0 0.0
    %v4716 = vand.u32 %v3894, 4294901760
    %4717 = vmatmul.mubr.f32.gmra.mxu0 %v4716
    %v4718 = vpop.f32.mrf.mxu0
    %v4719 = vadd.f32 %v4614, %v4718
    %v4720 = vpop.f32.mrf.mxu0
    %4721 = vdwg.mxu0
    %4722 = vmatprep.subr.mxu0 0.0
    %v4723 = vand.u32 %v3934, 4294901760
    %4724 = vmatpush1.msra.mxu0 %v4723
    %4725 = vmatprep.subr.mxu0 0.0
    %v4726 = vand.u32 %v3933, 4294901760
    %4727 = vmatpush1.msra.mxu0 %v4726
    %4728 = vmatprep.subr.mxu0 0.0
    %v4729 = vand.u32 %v3932, 4294901760
    %4730 = vmatpush1.msra.mxu0 %v4729
    %4731 = vmatprep.subr.mxu0 0.0
    %v4732 = vand.u32 %v3931, 4294901760
    %4733 = vmatpush1.msra.mxu0 %v4732
    %4734 = vmatprep.subr.mxu0 0.0
    %v4735 = vand.u32 %v3930, 4294901760
    %4736 = vmatpush1.msra.mxu0 %v4735
    %4737 = vmatprep.subr.mxu0 0.0
    %v4738 = vand.u32 %v3929, 4294901760
    %4739 = vmatpush1.msra.mxu0 %v4738
    %4740 = vmatprep.subr.mxu0 0.0
    %v4741 = vand.u32 %v3928, 4294901760
    %4742 = vmatpush1.msra.mxu0 %v4741
    %4743 = vmatprep.subr.mxu0 0.0
    %v4744 = vand.u32 %v3927, 4294901760
    %4745 = vmatpush1.msra.mxu0 %v4744
    %4746 = vmatprep.subr.mxu0 0.0
    %v4747 = vand.u32 %v3926, 4294901760
    %4748 = vmatpush1.msra.mxu0 %v4747
    %4749 = vmatprep.subr.mxu0 0.0
    %v4750 = vand.u32 %v3925, 4294901760
    %4751 = vmatpush1.msra.mxu0 %v4750
    %4752 = vmatprep.subr.mxu0 0.0
    %v4753 = vand.u32 %v3924, 4294901760
    %4754 = vmatpush1.msra.mxu0 %v4753
    %4755 = vmatprep.subr.mxu0 0.0
    %v4756 = vand.u32 %v3923, 4294901760
    %4757 = vmatpush1.msra.mxu0 %v4756
    %4758 = vmatprep.subr.mxu0 0.0
    %v4759 = vand.u32 %v3922, 4294901760
    %4760 = vmatpush1.msra.mxu0 %v4759
    %4761 = vmatprep.subr.mxu0 0.0
    %v4762 = vand.u32 %v3921, 4294901760
    %4763 = vmatpush1.msra.mxu0 %v4762
    %4764 = vmatprep.subr.mxu0 0.0
    %v4765 = vand.u32 %v3920, 4294901760
    %4766 = vmatpush1.msra.mxu0 %v4765
    %4767 = vmatprep.subr.mxu0 0.0
    %v4768 = vand.u32 %v3919, 4294901760
    %4769 = vmatpush1.msra.mxu0 %v4768
    %4770 = vmatprep.subr.mxu0 0.0
    %4771 = vmatpush2.msra.mxu0 0.0
    %4772 = vmatprep.subr.mxu0 0.0
    %4773 = vmatpush2.msra.mxu0 0.0
    %4774 = vmatprep.subr.mxu0 0.0
    %4775 = vmatpush2.msra.mxu0 0.0
    %4776 = vmatprep.subr.mxu0 0.0
    %4777 = vmatpush2.msra.mxu0 0.0
    %4778 = vmatprep.subr.mxu0 0.0
    %4779 = vmatpush2.msra.mxu0 0.0
    %4780 = vmatprep.subr.mxu0 0.0
    %4781 = vmatpush2.msra.mxu0 0.0
    %4782 = vmatprep.subr.mxu0 0.0
    %4783 = vmatpush2.msra.mxu0 0.0
    %4784 = vmatprep.subr.mxu0 0.0
    %4785 = vmatpush2.msra.mxu0 0.0
    %4786 = vmatprep.subr.mxu0 0.0
    %4787 = vmatpush2.msra.mxu0 0.0
    %4788 = vmatprep.subr.mxu0 0.0
    %4789 = vmatpush2.msra.mxu0 0.0
    %4790 = vmatprep.subr.mxu0 0.0
    %4791 = vmatpush2.msra.mxu0 0.0
    %4792 = vmatprep.subr.mxu0 0.0
    %4793 = vmatpush2.msra.mxu0 0.0
    %4794 = vmatprep.subr.mxu0 0.0
    %4795 = vmatpush2.msra.mxu0 0.0
    %4796 = vmatprep.subr.mxu0 0.0
    %4797 = vmatpush2.msra.mxu0 0.0
    %4798 = vmatprep.subr.mxu0 0.0
    %4799 = vmatpush2.msra.mxu0 0.0
    %4800 = vmatprep.subr.mxu0 0.0
    %4801 = vmatpush2.msra.mxu0 0.0
    %4802 = vmatprep.mubr.f32.mxu0 0.0
    %v4803 = vand.u32 %v3903, 4294901760
    %v4804 = vsub.f32 %v3903, %v4803
    %v4805 = vand.u32 %v4804, 4294901760
    %v4806 = vsub.f32 %v4804, %v4805
    %v4807 = vand.u32 %v4806, 4294901760
    %4808 = vmatmul.mubr.f32.gmra.mxu0 %v4807
    %v4809 = vpop.f32.mrf.mxu0
    %v4810 = vadd.f32 %v4701, %v4809
    %v4811 = vpop.f32.mrf.mxu0
    %4812 = vmatprep.mubr.f32.mxu0 0.0
    %v4813 = vand.u32 %v3904, 4294901760
    %v4814 = vsub.f32 %v3904, %v4813
    %v4815 = vand.u32 %v4814, 4294901760
    %v4816 = vsub.f32 %v4814, %v4815
    %v4817 = vand.u32 %v4816, 4294901760
    %4818 = vmatmul.mubr.f32.gmra.mxu0 %v4817
    %v4819 = vpop.f32.mrf.mxu0
    %v4820 = vadd.f32 %v4707, %v4819
    %v4821 = vpop.f32.mrf.mxu0
    %4822 = vmatprep.mubr.f32.mxu0 0.0
    %v4823 = vand.u32 %v3905, 4294901760
    %v4824 = vsub.f32 %v3905, %v4823
    %v4825 = vand.u32 %v4824, 4294901760
    %v4826 = vsub.f32 %v4824, %v4825
    %v4827 = vand.u32 %v4826, 4294901760
    %4828 = vmatmul.mubr.f32.gmra.mxu0 %v4827
    %v4829 = vpop.f32.mrf.mxu0
    %v4830 = vadd.f32 %v4713, %v4829
    %v4831 = vpop.f32.mrf.mxu0
    %4832 = vmatprep.mubr.f32.mxu0 0.0
    %v4833 = vand.u32 %v3906, 4294901760
    %v4834 = vsub.f32 %v3906, %v4833
    %v4835 = vand.u32 %v4834, 4294901760
    %v4836 = vsub.f32 %v4834, %v4835
    %v4837 = vand.u32 %v4836, 4294901760
    %4838 = vmatmul.mubr.f32.gmra.mxu0 %v4837
    %v4839 = vpop.f32.mrf.mxu0
    %v4840 = vadd.f32 %v4719, %v4839
    %v4841 = vpop.f32.mrf.mxu0
    %4842 = vdwg.mxu0
    %4843 = vmatprep.subr.mxu0 0.0
    %v4844 = vand.u32 %v3934, 4294901760
    %v4845 = vsub.f32 %v3934, %v4844
    %v4846 = vand.u32 %v4845, 4294901760
    %v4847 = vsub.f32 %v4845, %v4846
    %v4848 = vand.u32 %v4847, 4294901760
    %4849 = vmatpush1.msra.mxu0 %v4848
    %4850 = vmatprep.subr.mxu0 0.0
    %v4851 = vand.u32 %v3933, 4294901760
    %v4852 = vsub.f32 %v3933, %v4851
    %v4853 = vand.u32 %v4852, 4294901760
    %v4854 = vsub.f32 %v4852, %v4853
    %v4855 = vand.u32 %v4854, 4294901760
    %4856 = vmatpush1.msra.mxu0 %v4855
    %4857 = vmatprep.subr.mxu0 0.0
    %v4858 = vand.u32 %v3932, 4294901760
    %v4859 = vsub.f32 %v3932, %v4858
    %v4860 = vand.u32 %v4859, 4294901760
    %v4861 = vsub.f32 %v4859, %v4860
    %v4862 = vand.u32 %v4861, 4294901760
    %4863 = vmatpush1.msra.mxu0 %v4862
    %4864 = vmatprep.subr.mxu0 0.0
    %v4865 = vand.u32 %v3931, 4294901760
    %v4866 = vsub.f32 %v3931, %v4865
    %v4867 = vand.u32 %v4866, 4294901760
    %v4868 = vsub.f32 %v4866, %v4867
    %v4869 = vand.u32 %v4868, 4294901760
    %4870 = vmatpush1.msra.mxu0 %v4869
    %4871 = vmatprep.subr.mxu0 0.0
    %v4872 = vand.u32 %v3930, 4294901760
    %v4873 = vsub.f32 %v3930, %v4872
    %v4874 = vand.u32 %v4873, 4294901760
    %v4875 = vsub.f32 %v4873, %v4874
    %v4876 = vand.u32 %v4875, 4294901760
    %4877 = vmatpush1.msra.mxu0 %v4876
    %4878 = vmatprep.subr.mxu0 0.0
    %v4879 = vand.u32 %v3929, 4294901760
    %v4880 = vsub.f32 %v3929, %v4879
    %v4881 = vand.u32 %v4880, 4294901760
    %v4882 = vsub.f32 %v4880, %v4881
    %v4883 = vand.u32 %v4882, 4294901760
    %4884 = vmatpush1.msra.mxu0 %v4883
    %4885 = vmatprep.subr.mxu0 0.0
    %v4886 = vand.u32 %v3928, 4294901760
    %v4887 = vsub.f32 %v3928, %v4886
    %v4888 = vand.u32 %v4887, 4294901760
    %v4889 = vsub.f32 %v4887, %v4888
    %v4890 = vand.u32 %v4889, 4294901760
    %4891 = vmatpush1.msra.mxu0 %v4890
    %4892 = vmatprep.subr.mxu0 0.0
    %v4893 = vand.u32 %v3927, 4294901760
    %v4894 = vsub.f32 %v3927, %v4893
    %v4895 = vand.u32 %v4894, 4294901760
    %v4896 = vsub.f32 %v4894, %v4895
    %v4897 = vand.u32 %v4896, 4294901760
    %4898 = vmatpush1.msra.mxu0 %v4897
    %4899 = vmatprep.subr.mxu0 0.0
    %v4900 = vand.u32 %v3926, 4294901760
    %v4901 = vsub.f32 %v3926, %v4900
    %v4902 = vand.u32 %v4901, 4294901760
    %v4903 = vsub.f32 %v4901, %v4902
    %v4904 = vand.u32 %v4903, 4294901760
    %4905 = vmatpush1.msra.mxu0 %v4904
    %4906 = vmatprep.subr.mxu0 0.0
    %v4907 = vand.u32 %v3925, 4294901760
    %v4908 = vsub.f32 %v3925, %v4907
    %v4909 = vand.u32 %v4908, 4294901760
    %v4910 = vsub.f32 %v4908, %v4909
    %v4911 = vand.u32 %v4910, 4294901760
    %4912 = vmatpush1.msra.mxu0 %v4911
    %4913 = vmatprep.subr.mxu0 0.0
    %v4914 = vand.u32 %v3924, 4294901760
    %v4915 = vsub.f32 %v3924, %v4914
    %v4916 = vand.u32 %v4915, 4294901760
    %v4917 = vsub.f32 %v4915, %v4916
    %v4918 = vand.u32 %v4917, 4294901760
    %4919 = vmatpush1.msra.mxu0 %v4918
    %4920 = vmatprep.subr.mxu0 0.0
    %v4921 = vand.u32 %v3923, 4294901760
    %v4922 = vsub.f32 %v3923, %v4921
    %v4923 = vand.u32 %v4922, 4294901760
    %v4924 = vsub.f32 %v4922, %v4923
    %v4925 = vand.u32 %v4924, 4294901760
    %4926 = vmatpush1.msra.mxu0 %v4925
    %4927 = vmatprep.subr.mxu0 0.0
    %v4928 = vand.u32 %v3922, 4294901760
    %v4929 = vsub.f32 %v3922, %v4928
    %v4930 = vand.u32 %v4929, 4294901760
    %v4931 = vsub.f32 %v4929, %v4930
    %v4932 = vand.u32 %v4931, 4294901760
    %4933 = vmatpush1.msra.mxu0 %v4932
    %4934 = vmatprep.subr.mxu0 0.0
    %v4935 = vand.u32 %v3921, 4294901760
    %v4936 = vsub.f32 %v3921, %v4935
    %v4937 = vand.u32 %v4936, 4294901760
    %v4938 = vsub.f32 %v4936, %v4937
    %v4939 = vand.u32 %v4938, 4294901760
    %4940 = vmatpush1.msra.mxu0 %v4939
    %4941 = vmatprep.subr.mxu0 0.0
    %v4942 = vand.u32 %v3920, 4294901760
    %v4943 = vsub.f32 %v3920, %v4942
    %v4944 = vand.u32 %v4943, 4294901760
    %v4945 = vsub.f32 %v4943, %v4944
    %v4946 = vand.u32 %v4945, 4294901760
    %4947 = vmatpush1.msra.mxu0 %v4946
    %4948 = vmatprep.subr.mxu0 0.0
    %v4949 = vand.u32 %v3919, 4294901760
    %v4950 = vsub.f32 %v3919, %v4949
    %v4951 = vand.u32 %v4950, 4294901760
    %v4952 = vsub.f32 %v4950, %v4951
    %v4953 = vand.u32 %v4952, 4294901760
    %4954 = vmatpush1.msra.mxu0 %v4953
    %4955 = vmatprep.subr.mxu0 0.0
    %4956 = vmatpush2.msra.mxu0 0.0
    %4957 = vmatprep.subr.mxu0 0.0
    %4958 = vmatpush2.msra.mxu0 0.0
    %4959 = vmatprep.subr.mxu0 0.0
    %4960 = vmatpush2.msra.mxu0 0.0
    %4961 = vmatprep.subr.mxu0 0.0
    %4962 = vmatpush2.msra.mxu0 0.0
    %4963 = vmatprep.subr.mxu0 0.0
    %4964 = vmatpush2.msra.mxu0 0.0
    %4965 = vmatprep.subr.mxu0 0.0
    %4966 = vmatpush2.msra.mxu0 0.0
    %4967 = vmatprep.subr.mxu0 0.0
    %4968 = vmatpush2.msra.mxu0 0.0
    %4969 = vmatprep.subr.mxu0 0.0
    %4970 = vmatpush2.msra.mxu0 0.0
    %4971 = vmatprep.subr.mxu0 0.0
    %4972 = vmatpush2.msra.mxu0 0.0
    %4973 = vmatprep.subr.mxu0 0.0
    %4974 = vmatpush2.msra.mxu0 0.0
    %4975 = vmatprep.subr.mxu0 0.0
    %4976 = vmatpush2.msra.mxu0 0.0
    %4977 = vmatprep.subr.mxu0 0.0
    %4978 = vmatpush2.msra.mxu0 0.0
    %4979 = vmatprep.subr.mxu0 0.0
    %4980 = vmatpush2.msra.mxu0 0.0
    %4981 = vmatprep.subr.mxu0 0.0
    %4982 = vmatpush2.msra.mxu0 0.0
    %4983 = vmatprep.subr.mxu0 0.0
    %4984 = vmatpush2.msra.mxu0 0.0
    %4985 = vmatprep.subr.mxu0 0.0
    %4986 = vmatpush2.msra.mxu0 0.0
    %4987 = vmatprep.mubr.f32.mxu0 0.0
    %v4988 = vand.u32 %v3903, 4294901760
    %4989 = vmatmul.mubr.f32.gmra.mxu0 %v4988
    %v4990 = vpop.f32.mrf.mxu0
    %v4991 = vadd.f32 %v4810, %v4990
    %v4992 = vpop.f32.mrf.mxu0
    %4993 = vmatprep.mubr.f32.mxu0 0.0
    %v4994 = vand.u32 %v3904, 4294901760
    %4995 = vmatmul.mubr.f32.gmra.mxu0 %v4994
    %v4996 = vpop.f32.mrf.mxu0
    %v4997 = vadd.f32 %v4820, %v4996
    %v4998 = vpop.f32.mrf.mxu0
    %4999 = vmatprep.mubr.f32.mxu0 0.0
    %v5000 = vand.u32 %v3905, 4294901760
    %5001 = vmatmul.mubr.f32.gmra.mxu0 %v5000
    %v5002 = vpop.f32.mrf.mxu0
    %v5003 = vadd.f32 %v4830, %v5002
    %v5004 = vpop.f32.mrf.mxu0
    %5005 = vmatprep.mubr.f32.mxu0 0.0
    %v5006 = vand.u32 %v3906, 4294901760
    %5007 = vmatmul.mubr.f32.gmra.mxu0 %v5006
    %v5008 = vpop.f32.mrf.mxu0
    %v5009 = vadd.f32 %v4840, %v5008
    %v5010 = vpop.f32.mrf.mxu0
    %5011 = vdwg.mxu0
    %5012 = vmatprep.subr.mxu0 0.0
    %v5013 = vand.u32 %v3934, 4294901760
    %v5014 = vsub.f32 %v3934, %v5013
    %5015 = vmatpush1.msra.mxu0 %v5014
    %5016 = vmatprep.subr.mxu0 0.0
    %v5017 = vand.u32 %v3933, 4294901760
    %v5018 = vsub.f32 %v3933, %v5017
    %5019 = vmatpush1.msra.mxu0 %v5018
    %5020 = vmatprep.subr.mxu0 0.0
    %v5021 = vand.u32 %v3932, 4294901760
    %v5022 = vsub.f32 %v3932, %v5021
    %5023 = vmatpush1.msra.mxu0 %v5022
    %5024 = vmatprep.subr.mxu0 0.0
    %v5025 = vand.u32 %v3931, 4294901760
    %v5026 = vsub.f32 %v3931, %v5025
    %5027 = vmatpush1.msra.mxu0 %v5026
    %5028 = vmatprep.subr.mxu0 0.0
    %v5029 = vand.u32 %v3930, 4294901760
    %v5030 = vsub.f32 %v3930, %v5029
    %5031 = vmatpush1.msra.mxu0 %v5030
    %5032 = vmatprep.subr.mxu0 0.0
    %v5033 = vand.u32 %v3929, 4294901760
    %v5034 = vsub.f32 %v3929, %v5033
    %5035 = vmatpush1.msra.mxu0 %v5034
    %5036 = vmatprep.subr.mxu0 0.0
    %v5037 = vand.u32 %v3928, 4294901760
    %v5038 = vsub.f32 %v3928, %v5037
    %5039 = vmatpush1.msra.mxu0 %v5038
    %5040 = vmatprep.subr.mxu0 0.0
    %v5041 = vand.u32 %v3927, 4294901760
    %v5042 = vsub.f32 %v3927, %v5041
    %5043 = vmatpush1.msra.mxu0 %v5042
    %5044 = vmatprep.subr.mxu0 0.0
    %v5045 = vand.u32 %v3926, 4294901760
    %v5046 = vsub.f32 %v3926, %v5045
    %5047 = vmatpush1.msra.mxu0 %v5046
    %5048 = vmatprep.subr.mxu0 0.0
    %v5049 = vand.u32 %v3925, 4294901760
    %v5050 = vsub.f32 %v3925, %v5049
    %5051 = vmatpush1.msra.mxu0 %v5050
    %5052 = vmatprep.subr.mxu0 0.0
    %v5053 = vand.u32 %v3924, 4294901760
    %v5054 = vsub.f32 %v3924, %v5053
    %5055 = vmatpush1.msra.mxu0 %v5054
    %5056 = vmatprep.subr.mxu0 0.0
    %v5057 = vand.u32 %v3923, 4294901760
    %v5058 = vsub.f32 %v3923, %v5057
    %5059 = vmatpush1.msra.mxu0 %v5058
    %5060 = vmatprep.subr.mxu0 0.0
    %v5061 = vand.u32 %v3922, 4294901760
    %v5062 = vsub.f32 %v3922, %v5061
    %5063 = vmatpush1.msra.mxu0 %v5062
    %5064 = vmatprep.subr.mxu0 0.0
    %v5065 = vand.u32 %v3921, 4294901760
    %v5066 = vsub.f32 %v3921, %v5065
    %5067 = vmatpush1.msra.mxu0 %v5066
    %5068 = vmatprep.subr.mxu0 0.0
    %v5069 = vand.u32 %v3920, 4294901760
    %v5070 = vsub.f32 %v3920, %v5069
    %5071 = vmatpush1.msra.mxu0 %v5070
    %5072 = vmatprep.subr.mxu0 0.0
    %v5073 = vand.u32 %v3919, 4294901760
    %v5074 = vsub.f32 %v3919, %v5073
    %5075 = vmatpush1.msra.mxu0 %v5074
    %5076 = vmatprep.subr.mxu0 0.0
    %5077 = vmatpush2.msra.mxu0 0.0
    %5078 = vmatprep.subr.mxu0 0.0
    %5079 = vmatpush2.msra.mxu0 0.0
    %5080 = vmatprep.subr.mxu0 0.0
    %5081 = vmatpush2.msra.mxu0 0.0
    %5082 = vmatprep.subr.mxu0 0.0
    %5083 = vmatpush2.msra.mxu0 0.0
    %5084 = vmatprep.subr.mxu0 0.0
    %5085 = vmatpush2.msra.mxu0 0.0
    %5086 = vmatprep.subr.mxu0 0.0
    %5087 = vmatpush2.msra.mxu0 0.0
    %5088 = vmatprep.subr.mxu0 0.0
    %5089 = vmatpush2.msra.mxu0 0.0
    %5090 = vmatprep.subr.mxu0 0.0
    %5091 = vmatpush2.msra.mxu0 0.0
    %5092 = vmatprep.subr.mxu0 0.0
    %5093 = vmatpush2.msra.mxu0 0.0
    %5094 = vmatprep.subr.mxu0 0.0
    %5095 = vmatpush2.msra.mxu0 0.0
    %5096 = vmatprep.subr.mxu0 0.0
    %5097 = vmatpush2.msra.mxu0 0.0
    %5098 = vmatprep.subr.mxu0 0.0
    %5099 = vmatpush2.msra.mxu0 0.0
    %5100 = vmatprep.subr.mxu0 0.0
    %5101 = vmatpush2.msra.mxu0 0.0
    %5102 = vmatprep.subr.mxu0 0.0
    %5103 = vmatpush2.msra.mxu0 0.0
    %5104 = vmatprep.subr.mxu0 0.0
    %5105 = vmatpush2.msra.mxu0 0.0
    %5106 = vmatprep.subr.mxu0 0.0
    %5107 = vmatpush2.msra.mxu0 0.0
    %5108 = vmatprep.mubr.f32.mxu0 0.0
    %v5109 = vand.u32 %v3903, 4294901760
    %v5110 = vsub.f32 %v3903, %v5109
    %5111 = vmatmul.mubr.f32.gmra.mxu0 %v5110
    %v5112 = vpop.f32.mrf.mxu0
    %v5113 = vadd.f32 %v4991, %v5112
    %v5114 = vpop.f32.mrf.mxu0
    %5115 = vmatprep.mubr.f32.mxu0 0.0
    %v5116 = vand.u32 %v3904, 4294901760
    %v5117 = vsub.f32 %v3904, %v5116
    %5118 = vmatmul.mubr.f32.gmra.mxu0 %v5117
    %v5119 = vpop.f32.mrf.mxu0
    %v5120 = vadd.f32 %v4997, %v5119
    %v5121 = vpop.f32.mrf.mxu0
    %5122 = vmatprep.mubr.f32.mxu0 0.0
    %v5123 = vand.u32 %v3905, 4294901760
    %v5124 = vsub.f32 %v3905, %v5123
    %5125 = vmatmul.mubr.f32.gmra.mxu0 %v5124
    %v5126 = vpop.f32.mrf.mxu0
    %v5127 = vadd.f32 %v5003, %v5126
    %v5128 = vpop.f32.mrf.mxu0
    %5129 = vmatprep.mubr.f32.mxu0 0.0
    %v5130 = vand.u32 %v3906, 4294901760
    %v5131 = vsub.f32 %v3906, %v5130
    %5132 = vmatmul.mubr.f32.gmra.mxu0 %v5131
    %v5133 = vpop.f32.mrf.mxu0
    %v5134 = vadd.f32 %v5009, %v5133
    %v5135 = vpop.f32.mrf.mxu0
    %5136 = vdwg.mxu0
    %5137 = vmatprep.subr.mxu0 0.0
    %v5138 = vand.u32 %v3934, 4294901760
    %5139 = vmatpush1.msra.mxu0 %v5138
    %5140 = vmatprep.subr.mxu0 0.0
    %v5141 = vand.u32 %v3933, 4294901760
    %5142 = vmatpush1.msra.mxu0 %v5141
    %5143 = vmatprep.subr.mxu0 0.0
    %v5144 = vand.u32 %v3932, 4294901760
    %5145 = vmatpush1.msra.mxu0 %v5144
    %5146 = vmatprep.subr.mxu0 0.0
    %v5147 = vand.u32 %v3931, 4294901760
    %5148 = vmatpush1.msra.mxu0 %v5147
    %5149 = vmatprep.subr.mxu0 0.0
    %v5150 = vand.u32 %v3930, 4294901760
    %5151 = vmatpush1.msra.mxu0 %v5150
    %5152 = vmatprep.subr.mxu0 0.0
    %v5153 = vand.u32 %v3929, 4294901760
    %5154 = vmatpush1.msra.mxu0 %v5153
    %5155 = vmatprep.subr.mxu0 0.0
    %v5156 = vand.u32 %v3928, 4294901760
    %5157 = vmatpush1.msra.mxu0 %v5156
    %5158 = vmatprep.subr.mxu0 0.0
    %v5159 = vand.u32 %v3927, 4294901760
    %5160 = vmatpush1.msra.mxu0 %v5159
    %5161 = vmatprep.subr.mxu0 0.0
    %v5162 = vand.u32 %v3926, 4294901760
    %5163 = vmatpush1.msra.mxu0 %v5162
    %5164 = vmatprep.subr.mxu0 0.0
    %v5165 = vand.u32 %v3925, 4294901760
    %5166 = vmatpush1.msra.mxu0 %v5165
    %5167 = vmatprep.subr.mxu0 0.0
    %v5168 = vand.u32 %v3924, 4294901760
    %5169 = vmatpush1.msra.mxu0 %v5168
    %5170 = vmatprep.subr.mxu0 0.0
    %v5171 = vand.u32 %v3923, 4294901760
    %5172 = vmatpush1.msra.mxu0 %v5171
    %5173 = vmatprep.subr.mxu0 0.0
    %v5174 = vand.u32 %v3922, 4294901760
    %5175 = vmatpush1.msra.mxu0 %v5174
    %5176 = vmatprep.subr.mxu0 0.0
    %v5177 = vand.u32 %v3921, 4294901760
    %5178 = vmatpush1.msra.mxu0 %v5177
    %5179 = vmatprep.subr.mxu0 0.0
    %v5180 = vand.u32 %v3920, 4294901760
    %5181 = vmatpush1.msra.mxu0 %v5180
    %5182 = vmatprep.subr.mxu0 0.0
    %v5183 = vand.u32 %v3919, 4294901760
    %5184 = vmatpush1.msra.mxu0 %v5183
    %5185 = vmatprep.subr.mxu0 0.0
    %5186 = vmatpush2.msra.mxu0 0.0
    %5187 = vmatprep.subr.mxu0 0.0
    %5188 = vmatpush2.msra.mxu0 0.0
    %5189 = vmatprep.subr.mxu0 0.0
    %5190 = vmatpush2.msra.mxu0 0.0
    %5191 = vmatprep.subr.mxu0 0.0
    %5192 = vmatpush2.msra.mxu0 0.0
    %5193 = vmatprep.subr.mxu0 0.0
    %5194 = vmatpush2.msra.mxu0 0.0
    %5195 = vmatprep.subr.mxu0 0.0
    %5196 = vmatpush2.msra.mxu0 0.0
    %5197 = vmatprep.subr.mxu0 0.0
    %5198 = vmatpush2.msra.mxu0 0.0
    %5199 = vmatprep.subr.mxu0 0.0
    %5200 = vmatpush2.msra.mxu0 0.0
    %5201 = vmatprep.subr.mxu0 0.0
    %5202 = vmatpush2.msra.mxu0 0.0
    %5203 = vmatprep.subr.mxu0 0.0
    %5204 = vmatpush2.msra.mxu0 0.0
    %5205 = vmatprep.subr.mxu0 0.0
    %5206 = vmatpush2.msra.mxu0 0.0
    %5207 = vmatprep.subr.mxu0 0.0
    %5208 = vmatpush2.msra.mxu0 0.0
    %5209 = vmatprep.subr.mxu0 0.0
    %5210 = vmatpush2.msra.mxu0 0.0
    %5211 = vmatprep.subr.mxu0 0.0
    %5212 = vmatpush2.msra.mxu0 0.0
    %5213 = vmatprep.subr.mxu0 0.0
    %5214 = vmatpush2.msra.mxu0 0.0
    %5215 = vmatprep.subr.mxu0 0.0
    %5216 = vmatpush2.msra.mxu0 0.0
    %5217 = vmatprep.mubr.f32.mxu0 0.0
    %v5218 = vand.u32 %v3903, 4294901760
    %v5219 = vsub.f32 %v3903, %v5218
    %v5220 = vand.u32 %v5219, 4294901760
    %5221 = vmatmul.mubr.f32.gmra.mxu0 %v5220
    %v5222 = vpop.f32.mrf.mxu0
    %v5223 = vadd.f32 %v5113, %v5222
    %v5224 = vpop.f32.mrf.mxu0
    %5225 = vmatprep.mubr.f32.mxu0 0.0
    %v5226 = vand.u32 %v3904, 4294901760
    %v5227 = vsub.f32 %v3904, %v5226
    %v5228 = vand.u32 %v5227, 4294901760
    %5229 = vmatmul.mubr.f32.gmra.mxu0 %v5228
    %v5230 = vpop.f32.mrf.mxu0
    %v5231 = vadd.f32 %v5120, %v5230
    %v5232 = vpop.f32.mrf.mxu0
    %5233 = vmatprep.mubr.f32.mxu0 0.0
    %v5234 = vand.u32 %v3905, 4294901760
    %v5235 = vsub.f32 %v3905, %v5234
    %v5236 = vand.u32 %v5235, 4294901760
    %5237 = vmatmul.mubr.f32.gmra.mxu0 %v5236
    %v5238 = vpop.f32.mrf.mxu0
    %v5239 = vadd.f32 %v5127, %v5238
    %v5240 = vpop.f32.mrf.mxu0
    %5241 = vmatprep.mubr.f32.mxu0 0.0
    %v5242 = vand.u32 %v3906, 4294901760
    %v5243 = vsub.f32 %v3906, %v5242
    %v5244 = vand.u32 %v5243, 4294901760
    %5245 = vmatmul.mubr.f32.gmra.mxu0 %v5244
    %v5246 = vpop.f32.mrf.mxu0
    %v5247 = vadd.f32 %v5134, %v5246
    %v5248 = vpop.f32.mrf.mxu0
    %5249 = vdwg.mxu0
    %5250 = vmatprep.subr.mxu0 0.0
    %v5251 = vand.u32 %v3934, 4294901760
    %v5252 = vsub.f32 %v3934, %v5251
    %v5253 = vand.u32 %v5252, 4294901760
    %5254 = vmatpush1.msra.mxu0 %v5253
    %5255 = vmatprep.subr.mxu0 0.0
    %v5256 = vand.u32 %v3933, 4294901760
    %v5257 = vsub.f32 %v3933, %v5256
    %v5258 = vand.u32 %v5257, 4294901760
    %5259 = vmatpush1.msra.mxu0 %v5258
    %5260 = vmatprep.subr.mxu0 0.0
    %v5261 = vand.u32 %v3932, 4294901760
    %v5262 = vsub.f32 %v3932, %v5261
    %v5263 = vand.u32 %v5262, 4294901760
    %5264 = vmatpush1.msra.mxu0 %v5263
    %5265 = vmatprep.subr.mxu0 0.0
    %v5266 = vand.u32 %v3931, 4294901760
    %v5267 = vsub.f32 %v3931, %v5266
    %v5268 = vand.u32 %v5267, 4294901760
    %5269 = vmatpush1.msra.mxu0 %v5268
    %5270 = vmatprep.subr.mxu0 0.0
    %v5271 = vand.u32 %v3930, 4294901760
    %v5272 = vsub.f32 %v3930, %v5271
    %v5273 = vand.u32 %v5272, 4294901760
    %5274 = vmatpush1.msra.mxu0 %v5273
    %5275 = vmatprep.subr.mxu0 0.0
    %v5276 = vand.u32 %v3929, 4294901760
    %v5277 = vsub.f32 %v3929, %v5276
    %v5278 = vand.u32 %v5277, 4294901760
    %5279 = vmatpush1.msra.mxu0 %v5278
    %5280 = vmatprep.subr.mxu0 0.0
    %v5281 = vand.u32 %v3928, 4294901760
    %v5282 = vsub.f32 %v3928, %v5281
    %v5283 = vand.u32 %v5282, 4294901760
    %5284 = vmatpush1.msra.mxu0 %v5283
    %5285 = vmatprep.subr.mxu0 0.0
    %v5286 = vand.u32 %v3927, 4294901760
    %v5287 = vsub.f32 %v3927, %v5286
    %v5288 = vand.u32 %v5287, 4294901760
    %5289 = vmatpush1.msra.mxu0 %v5288
    %5290 = vmatprep.subr.mxu0 0.0
    %v5291 = vand.u32 %v3926, 4294901760
    %v5292 = vsub.f32 %v3926, %v5291
    %v5293 = vand.u32 %v5292, 4294901760
    %5294 = vmatpush1.msra.mxu0 %v5293
    %5295 = vmatprep.subr.mxu0 0.0
    %v5296 = vand.u32 %v3925, 4294901760
    %v5297 = vsub.f32 %v3925, %v5296
    %v5298 = vand.u32 %v5297, 4294901760
    %5299 = vmatpush1.msra.mxu0 %v5298
    %5300 = vmatprep.subr.mxu0 0.0
    %v5301 = vand.u32 %v3924, 4294901760
    %v5302 = vsub.f32 %v3924, %v5301
    %v5303 = vand.u32 %v5302, 4294901760
    %5304 = vmatpush1.msra.mxu0 %v5303
    %5305 = vmatprep.subr.mxu0 0.0
    %v5306 = vand.u32 %v3923, 4294901760
    %v5307 = vsub.f32 %v3923, %v5306
    %v5308 = vand.u32 %v5307, 4294901760
    %5309 = vmatpush1.msra.mxu0 %v5308
    %5310 = vmatprep.subr.mxu0 0.0
    %v5311 = vand.u32 %v3922, 4294901760
    %v5312 = vsub.f32 %v3922, %v5311
    %v5313 = vand.u32 %v5312, 4294901760
    %5314 = vmatpush1.msra.mxu0 %v5313
    %5315 = vmatprep.subr.mxu0 0.0
    %v5316 = vand.u32 %v3921, 4294901760
    %v5317 = vsub.f32 %v3921, %v5316
    %v5318 = vand.u32 %v5317, 4294901760
    %5319 = vmatpush1.msra.mxu0 %v5318
    %5320 = vmatprep.subr.mxu0 0.0
    %v5321 = vand.u32 %v3920, 4294901760
    %v5322 = vsub.f32 %v3920, %v5321
    %v5323 = vand.u32 %v5322, 4294901760
    %5324 = vmatpush1.msra.mxu0 %v5323
    %5325 = vmatprep.subr.mxu0 0.0
    %v5326 = vand.u32 %v3919, 4294901760
    %v5327 = vsub.f32 %v3919, %v5326
    %v5328 = vand.u32 %v5327, 4294901760
    %5329 = vmatpush1.msra.mxu0 %v5328
    %5330 = vmatprep.subr.mxu0 0.0
    %5331 = vmatpush2.msra.mxu0 0.0
    %5332 = vmatprep.subr.mxu0 0.0
    %5333 = vmatpush2.msra.mxu0 0.0
    %5334 = vmatprep.subr.mxu0 0.0
    %5335 = vmatpush2.msra.mxu0 0.0
    %5336 = vmatprep.subr.mxu0 0.0
    %5337 = vmatpush2.msra.mxu0 0.0
    %5338 = vmatprep.subr.mxu0 0.0
    %5339 = vmatpush2.msra.mxu0 0.0
    %5340 = vmatprep.subr.mxu0 0.0
    %5341 = vmatpush2.msra.mxu0 0.0
    %5342 = vmatprep.subr.mxu0 0.0
    %5343 = vmatpush2.msra.mxu0 0.0
    %5344 = vmatprep.subr.mxu0 0.0
    %5345 = vmatpush2.msra.mxu0 0.0
    %5346 = vmatprep.subr.mxu0 0.0
    %5347 = vmatpush2.msra.mxu0 0.0
    %5348 = vmatprep.subr.mxu0 0.0
    %5349 = vmatpush2.msra.mxu0 0.0
    %5350 = vmatprep.subr.mxu0 0.0
    %5351 = vmatpush2.msra.mxu0 0.0
    %5352 = vmatprep.subr.mxu0 0.0
    %5353 = vmatpush2.msra.mxu0 0.0
    %5354 = vmatprep.subr.mxu0 0.0
    %5355 = vmatpush2.msra.mxu0 0.0
    %5356 = vmatprep.subr.mxu0 0.0
    %5357 = vmatpush2.msra.mxu0 0.0
    %5358 = vmatprep.subr.mxu0 0.0
    %5359 = vmatpush2.msra.mxu0 0.0
    %5360 = vmatprep.subr.mxu0 0.0
    %5361 = vmatpush2.msra.mxu0 0.0
    %5362 = vmatprep.mubr.f32.mxu0 0.0
    %v5363 = vand.u32 %v3903, 4294901760
    %5364 = vmatmul.mubr.f32.gmra.mxu0 %v5363
    %v5365 = vpop.f32.mrf.mxu0
    %v5366 = vadd.f32 %v5223, %v5365
    %v5367 = vpop.f32.mrf.mxu0
    %5368 = vmatprep.mubr.f32.mxu0 0.0
    %v5369 = vand.u32 %v3904, 4294901760
    %5370 = vmatmul.mubr.f32.gmra.mxu0 %v5369
    %v5371 = vpop.f32.mrf.mxu0
    %v5372 = vadd.f32 %v5231, %v5371
    %v5373 = vpop.f32.mrf.mxu0
    %5374 = vmatprep.mubr.f32.mxu0 0.0
    %v5375 = vand.u32 %v3905, 4294901760
    %5376 = vmatmul.mubr.f32.gmra.mxu0 %v5375
    %v5377 = vpop.f32.mrf.mxu0
    %v5378 = vadd.f32 %v5239, %v5377
    %v5379 = vpop.f32.mrf.mxu0
    %5380 = vmatprep.mubr.f32.mxu0 0.0
    %v5381 = vand.u32 %v3906, 4294901760
    %5382 = vmatmul.mubr.f32.gmra.mxu0 %v5381
    %v5383 = vpop.f32.mrf.mxu0
    %v5384 = vadd.f32 %v5247, %v5383
    %v5385 = vpop.f32.mrf.mxu0
    %5386 = vdwg.mxu0
    %5387 = vmatprep.subr.mxu0 0.0
    %v5388 = vand.u32 %v3934, 4294901760
    %5389 = vmatpush1.msra.mxu0 %v5388
    %5390 = vmatprep.subr.mxu0 0.0
    %v5391 = vand.u32 %v3933, 4294901760
    %5392 = vmatpush1.msra.mxu0 %v5391
    %5393 = vmatprep.subr.mxu0 0.0
    %v5394 = vand.u32 %v3932, 4294901760
    %5395 = vmatpush1.msra.mxu0 %v5394
    %5396 = vmatprep.subr.mxu0 0.0
    %v5397 = vand.u32 %v3931, 4294901760
    %5398 = vmatpush1.msra.mxu0 %v5397
    %5399 = vmatprep.subr.mxu0 0.0
    %v5400 = vand.u32 %v3930, 4294901760
    %5401 = vmatpush1.msra.mxu0 %v5400
    %5402 = vmatprep.subr.mxu0 0.0
    %v5403 = vand.u32 %v3929, 4294901760
    %5404 = vmatpush1.msra.mxu0 %v5403
    %5405 = vmatprep.subr.mxu0 0.0
    %v5406 = vand.u32 %v3928, 4294901760
    %5407 = vmatpush1.msra.mxu0 %v5406
    %5408 = vmatprep.subr.mxu0 0.0
    %v5409 = vand.u32 %v3927, 4294901760
    %5410 = vmatpush1.msra.mxu0 %v5409
    %5411 = vmatprep.subr.mxu0 0.0
    %v5412 = vand.u32 %v3926, 4294901760
    %5413 = vmatpush1.msra.mxu0 %v5412
    %5414 = vmatprep.subr.mxu0 0.0
    %v5415 = vand.u32 %v3925, 4294901760
    %5416 = vmatpush1.msra.mxu0 %v5415
    %5417 = vmatprep.subr.mxu0 0.0
    %v5418 = vand.u32 %v3924, 4294901760
    %5419 = vmatpush1.msra.mxu0 %v5418
    %5420 = vmatprep.subr.mxu0 0.0
    %v5421 = vand.u32 %v3923, 4294901760
    %5422 = vmatpush1.msra.mxu0 %v5421
    %5423 = vmatprep.subr.mxu0 0.0
    %v5424 = vand.u32 %v3922, 4294901760
    %5425 = vmatpush1.msra.mxu0 %v5424
    %5426 = vmatprep.subr.mxu0 0.0
    %v5427 = vand.u32 %v3921, 4294901760
    %5428 = vmatpush1.msra.mxu0 %v5427
    %5429 = vmatprep.subr.mxu0 0.0
    %v5430 = vand.u32 %v3920, 4294901760
    %5431 = vmatpush1.msra.mxu0 %v5430
    %5432 = vmatprep.subr.mxu0 0.0
    %v5433 = vand.u32 %v3919, 4294901760
    %5434 = vmatpush1.msra.mxu0 %v5433
    %5435 = vmatprep.subr.mxu0 0.0
    %5436 = vmatpush2.msra.mxu0 0.0
    %5437 = vmatprep.subr.mxu0 0.0
    %5438 = vmatpush2.msra.mxu0 0.0
    %5439 = vmatprep.subr.mxu0 0.0
    %5440 = vmatpush2.msra.mxu0 0.0
    %5441 = vmatprep.subr.mxu0 0.0
    %5442 = vmatpush2.msra.mxu0 0.0
    %5443 = vmatprep.subr.mxu0 0.0
    %5444 = vmatpush2.msra.mxu0 0.0
    %5445 = vmatprep.subr.mxu0 0.0
    %5446 = vmatpush2.msra.mxu0 0.0
    %5447 = vmatprep.subr.mxu0 0.0
    %5448 = vmatpush2.msra.mxu0 0.0
    %5449 = vmatprep.subr.mxu0 0.0
    %5450 = vmatpush2.msra.mxu0 0.0
    %5451 = vmatprep.subr.mxu0 0.0
    %5452 = vmatpush2.msra.mxu0 0.0
    %5453 = vmatprep.subr.mxu0 0.0
    %5454 = vmatpush2.msra.mxu0 0.0
    %5455 = vmatprep.subr.mxu0 0.0
    %5456 = vmatpush2.msra.mxu0 0.0
    %5457 = vmatprep.subr.mxu0 0.0
    %5458 = vmatpush2.msra.mxu0 0.0
    %5459 = vmatprep.subr.mxu0 0.0
    %5460 = vmatpush2.msra.mxu0 0.0
    %5461 = vmatprep.subr.mxu0 0.0
    %5462 = vmatpush2.msra.mxu0 0.0
    %5463 = vmatprep.subr.mxu0 0.0
    %5464 = vmatpush2.msra.mxu0 0.0
    %5465 = vmatprep.subr.mxu0 0.0
    %5466 = vmatpush2.msra.mxu0 0.0
    %5467 = vmatprep.mubr.f32.mxu0 0.0
    %v5468 = vand.u32 %v3903, 4294901760
    %5469 = vmatmul.mubr.f32.gmra.mxu0 %v5468
    %v5470 = vpop.f32.mrf.mxu0
    %v5471 = vadd.f32 %v5366, %v5470
    %v5472 = vpop.f32.mrf.mxu0
    %5473 = vmatprep.mubr.f32.mxu0 0.0
    %v5474 = vand.u32 %v3904, 4294901760
    %5475 = vmatmul.mubr.f32.gmra.mxu0 %v5474
    %v5476 = vpop.f32.mrf.mxu0
    %v5477 = vadd.f32 %v5372, %v5476
    %v5478 = vpop.f32.mrf.mxu0
    %5479 = vmatprep.mubr.f32.mxu0 0.0
    %v5480 = vand.u32 %v3905, 4294901760
    %5481 = vmatmul.mubr.f32.gmra.mxu0 %v5480
    %v5482 = vpop.f32.mrf.mxu0
    %v5483 = vadd.f32 %v5378, %v5482
    %v5484 = vpop.f32.mrf.mxu0
    %5485 = vmatprep.mubr.f32.mxu0 0.0
    %v5486 = vand.u32 %v3906, 4294901760
    %5487 = vmatmul.mubr.f32.gmra.mxu0 %v5486
    %v5488 = vpop.f32.mrf.mxu0
    %v5489 = vadd.f32 %v5384, %v5488
    %v5490 = vpop.f32.mrf.mxu0
    %5491 = vdwg.mxu0
    %s5492 = scalar_lea.vmem [#allocation7], 256
    %v5493 = vld [vmem:[%s5492] sm:$0xff]
    %v5494 = vld [vmem:[%s5492 + $0x8] sm:$0xff]
    %v5495 = vld [vmem:[%s5492 + $0x10] sm:$0xff]
    %v5496 = vld [vmem:[%s5492 + $0x18] sm:$0xff]
    %v5497 = vld [vmem:[%s5492 + $0x20] sm:$0xff]
    %v5498 = vld [vmem:[%s5492 + $0x28] sm:$0xff]
    %v5499 = vld [vmem:[%s5492 + $0x30] sm:$0xff]
    %v5500 = vld [vmem:[%s5492 + $0x38] sm:$0xff]
    %v5501 = vld [vmem:[%s5492 + $0x40] sm:$0xff]
    %v5502 = vld [vmem:[%s5492 + $0x48] sm:$0xff]
    %v5503 = vld [vmem:[%s5492 + $0x50] sm:$0xff]
    %v5504 = vld [vmem:[%s5492 + $0x58] sm:$0xff]
    %v5505 = vld [vmem:[%s5492 + $0x60] sm:$0xff]
    %v5506 = vld [vmem:[%s5492 + $0x68] sm:$0xff]
    %v5507 = vld [vmem:[%s5492 + $0x70] sm:$0xff]
    %v5508 = vld [vmem:[%s5492 + $0x78] sm:$0xff]
    %5509 = vmatprep.subr.mxu0 0.0
    %v5510 = vand.u32 %v5508, 4294901760
    %5511 = vmatpush1.msra.mxu0 %v5510
    %5512 = vmatprep.subr.mxu0 0.0
    %v5513 = vand.u32 %v5507, 4294901760
    %5514 = vmatpush1.msra.mxu0 %v5513
    %5515 = vmatprep.subr.mxu0 0.0
    %v5516 = vand.u32 %v5506, 4294901760
    %5517 = vmatpush1.msra.mxu0 %v5516
    %5518 = vmatprep.subr.mxu0 0.0
    %v5519 = vand.u32 %v5505, 4294901760
    %5520 = vmatpush1.msra.mxu0 %v5519
    %5521 = vmatprep.subr.mxu0 0.0
    %v5522 = vand.u32 %v5504, 4294901760
    %5523 = vmatpush1.msra.mxu0 %v5522
    %5524 = vmatprep.subr.mxu0 0.0
    %v5525 = vand.u32 %v5503, 4294901760
    %5526 = vmatpush1.msra.mxu0 %v5525
    %5527 = vmatprep.subr.mxu0 0.0
    %v5528 = vand.u32 %v5502, 4294901760
    %5529 = vmatpush1.msra.mxu0 %v5528
    %5530 = vmatprep.subr.mxu0 0.0
    %v5531 = vand.u32 %v5501, 4294901760
    %5532 = vmatpush1.msra.mxu0 %v5531
    %5533 = vmatprep.subr.mxu0 0.0
    %v5534 = vand.u32 %v5500, 4294901760
    %5535 = vmatpush1.msra.mxu0 %v5534
    %5536 = vmatprep.subr.mxu0 0.0
    %v5537 = vand.u32 %v5499, 4294901760
    %5538 = vmatpush1.msra.mxu0 %v5537
    %5539 = vmatprep.subr.mxu0 0.0
    %v5540 = vand.u32 %v5498, 4294901760
    %5541 = vmatpush1.msra.mxu0 %v5540
    %5542 = vmatprep.subr.mxu0 0.0
    %v5543 = vand.u32 %v5497, 4294901760
    %5544 = vmatpush1.msra.mxu0 %v5543
    %5545 = vmatprep.subr.mxu0 0.0
    %v5546 = vand.u32 %v5496, 4294901760
    %5547 = vmatpush1.msra.mxu0 %v5546
    %5548 = vmatprep.subr.mxu0 0.0
    %v5549 = vand.u32 %v5495, 4294901760
    %5550 = vmatpush1.msra.mxu0 %v5549
    %5551 = vmatprep.subr.mxu0 0.0
    %v5552 = vand.u32 %v5494, 4294901760
    %5553 = vmatpush1.msra.mxu0 %v5552
    %5554 = vmatprep.subr.mxu0 0.0
    %v5555 = vand.u32 %v5493, 4294901760
    %5556 = vmatpush1.msra.mxu0 %v5555
    %5557 = vmatprep.subr.mxu0 0.0
    %5558 = vmatpush2.msra.mxu0 0.0
    %5559 = vmatprep.subr.mxu0 0.0
    %5560 = vmatpush2.msra.mxu0 0.0
    %5561 = vmatprep.subr.mxu0 0.0
    %5562 = vmatpush2.msra.mxu0 0.0
    %5563 = vmatprep.subr.mxu0 0.0
    %5564 = vmatpush2.msra.mxu0 0.0
    %5565 = vmatprep.subr.mxu0 0.0
    %5566 = vmatpush2.msra.mxu0 0.0
    %5567 = vmatprep.subr.mxu0 0.0
    %5568 = vmatpush2.msra.mxu0 0.0
    %5569 = vmatprep.subr.mxu0 0.0
    %5570 = vmatpush2.msra.mxu0 0.0
    %5571 = vmatprep.subr.mxu0 0.0
    %5572 = vmatpush2.msra.mxu0 0.0
    %5573 = vmatprep.subr.mxu0 0.0
    %5574 = vmatpush2.msra.mxu0 0.0
    %5575 = vmatprep.subr.mxu0 0.0
    %5576 = vmatpush2.msra.mxu0 0.0
    %5577 = vmatprep.subr.mxu0 0.0
    %5578 = vmatpush2.msra.mxu0 0.0
    %5579 = vmatprep.subr.mxu0 0.0
    %5580 = vmatpush2.msra.mxu0 0.0
    %5581 = vmatprep.subr.mxu0 0.0
    %5582 = vmatpush2.msra.mxu0 0.0
    %5583 = vmatprep.subr.mxu0 0.0
    %5584 = vmatpush2.msra.mxu0 0.0
    %5585 = vmatprep.subr.mxu0 0.0
    %5586 = vmatpush2.msra.mxu0 0.0
    %5587 = vmatprep.subr.mxu0 0.0
    %5588 = vmatpush2.msra.mxu0 0.0
    %5589 = vmatprep.mubr.f32.mxu0 0.0
    %v5590 = vand.u32 %v3915, 4294901760
    %v5591 = vsub.f32 %v3915, %v5590
    %v5592 = vand.u32 %v5591, 4294901760
    %v5593 = vsub.f32 %v5591, %v5592
    %v5594 = vand.u32 %v5593, 4294901760
    %5595 = vmatmul.mubr.f32.gmra.mxu0 %v5594
    %v5596 = vpop.f32.mrf.mxu0
    %v5597 = vadd.f32 0.0, %v5596
    %v5598 = vpop.f32.mrf.mxu0
    %5599 = vmatprep.mubr.f32.mxu0 0.0
    %v5600 = vand.u32 %v3916, 4294901760
    %v5601 = vsub.f32 %v3916, %v5600
    %v5602 = vand.u32 %v5601, 4294901760
    %v5603 = vsub.f32 %v5601, %v5602
    %v5604 = vand.u32 %v5603, 4294901760
    %5605 = vmatmul.mubr.f32.gmra.mxu0 %v5604
    %v5606 = vpop.f32.mrf.mxu0
    %v5607 = vadd.f32 0.0, %v5606
    %v5608 = vpop.f32.mrf.mxu0
    %5609 = vmatprep.mubr.f32.mxu0 0.0
    %v5610 = vand.u32 %v3917, 4294901760
    %v5611 = vsub.f32 %v3917, %v5610
    %v5612 = vand.u32 %v5611, 4294901760
    %v5613 = vsub.f32 %v5611, %v5612
    %v5614 = vand.u32 %v5613, 4294901760
    %5615 = vmatmul.mubr.f32.gmra.mxu0 %v5614
    %v5616 = vpop.f32.mrf.mxu0
    %v5617 = vadd.f32 0.0, %v5616
    %v5618 = vpop.f32.mrf.mxu0
    %5619 = vmatprep.mubr.f32.mxu0 0.0
    %v5620 = vand.u32 %v3918, 4294901760
    %v5621 = vsub.f32 %v3918, %v5620
    %v5622 = vand.u32 %v5621, 4294901760
    %v5623 = vsub.f32 %v5621, %v5622
    %v5624 = vand.u32 %v5623, 4294901760
    %5625 = vmatmul.mubr.f32.gmra.mxu0 %v5624
    %v5626 = vpop.f32.mrf.mxu0
    %v5627 = vadd.f32 0.0, %v5626
    %v5628 = vpop.f32.mrf.mxu0
    %5629 = vdwg.mxu0
    %5630 = vmatprep.subr.mxu0 0.0
    %v5631 = vand.u32 %v5508, 4294901760
    %v5632 = vsub.f32 %v5508, %v5631
    %v5633 = vand.u32 %v5632, 4294901760
    %v5634 = vsub.f32 %v5632, %v5633
    %v5635 = vand.u32 %v5634, 4294901760
    %5636 = vmatpush1.msra.mxu0 %v5635
    %5637 = vmatprep.subr.mxu0 0.0
    %v5638 = vand.u32 %v5507, 4294901760
    %v5639 = vsub.f32 %v5507, %v5638
    %v5640 = vand.u32 %v5639, 4294901760
    %v5641 = vsub.f32 %v5639, %v5640
    %v5642 = vand.u32 %v5641, 4294901760
    %5643 = vmatpush1.msra.mxu0 %v5642
    %5644 = vmatprep.subr.mxu0 0.0
    %v5645 = vand.u32 %v5506, 4294901760
    %v5646 = vsub.f32 %v5506, %v5645
    %v5647 = vand.u32 %v5646, 4294901760
    %v5648 = vsub.f32 %v5646, %v5647
    %v5649 = vand.u32 %v5648, 4294901760
    %5650 = vmatpush1.msra.mxu0 %v5649
    %5651 = vmatprep.subr.mxu0 0.0
    %v5652 = vand.u32 %v5505, 4294901760
    %v5653 = vsub.f32 %v5505, %v5652
    %v5654 = vand.u32 %v5653, 4294901760
    %v5655 = vsub.f32 %v5653, %v5654
    %v5656 = vand.u32 %v5655, 4294901760
    %5657 = vmatpush1.msra.mxu0 %v5656
    %5658 = vmatprep.subr.mxu0 0.0
    %v5659 = vand.u32 %v5504, 4294901760
    %v5660 = vsub.f32 %v5504, %v5659
    %v5661 = vand.u32 %v5660, 4294901760
    %v5662 = vsub.f32 %v5660, %v5661
    %v5663 = vand.u32 %v5662, 4294901760
    %5664 = vmatpush1.msra.mxu0 %v5663
    %5665 = vmatprep.subr.mxu0 0.0
    %v5666 = vand.u32 %v5503, 4294901760
    %v5667 = vsub.f32 %v5503, %v5666
    %v5668 = vand.u32 %v5667, 4294901760
    %v5669 = vsub.f32 %v5667, %v5668
    %v5670 = vand.u32 %v5669, 4294901760
    %5671 = vmatpush1.msra.mxu0 %v5670
    %5672 = vmatprep.subr.mxu0 0.0
    %v5673 = vand.u32 %v5502, 4294901760
    %v5674 = vsub.f32 %v5502, %v5673
    %v5675 = vand.u32 %v5674, 4294901760
    %v5676 = vsub.f32 %v5674, %v5675
    %v5677 = vand.u32 %v5676, 4294901760
    %5678 = vmatpush1.msra.mxu0 %v5677
    %5679 = vmatprep.subr.mxu0 0.0
    %v5680 = vand.u32 %v5501, 4294901760
    %v5681 = vsub.f32 %v5501, %v5680
    %v5682 = vand.u32 %v5681, 4294901760
    %v5683 = vsub.f32 %v5681, %v5682
    %v5684 = vand.u32 %v5683, 4294901760
    %5685 = vmatpush1.msra.mxu0 %v5684
    %5686 = vmatprep.subr.mxu0 0.0
    %v5687 = vand.u32 %v5500, 4294901760
    %v5688 = vsub.f32 %v5500, %v5687
    %v5689 = vand.u32 %v5688, 4294901760
    %v5690 = vsub.f32 %v5688, %v5689
    %v5691 = vand.u32 %v5690, 4294901760
    %5692 = vmatpush1.msra.mxu0 %v5691
    %5693 = vmatprep.subr.mxu0 0.0
    %v5694 = vand.u32 %v5499, 4294901760
    %v5695 = vsub.f32 %v5499, %v5694
    %v5696 = vand.u32 %v5695, 4294901760
    %v5697 = vsub.f32 %v5695, %v5696
    %v5698 = vand.u32 %v5697, 4294901760
    %5699 = vmatpush1.msra.mxu0 %v5698
    %5700 = vmatprep.subr.mxu0 0.0
    %v5701 = vand.u32 %v5498, 4294901760
    %v5702 = vsub.f32 %v5498, %v5701
    %v5703 = vand.u32 %v5702, 4294901760
    %v5704 = vsub.f32 %v5702, %v5703
    %v5705 = vand.u32 %v5704, 4294901760
    %5706 = vmatpush1.msra.mxu0 %v5705
    %5707 = vmatprep.subr.mxu0 0.0
    %v5708 = vand.u32 %v5497, 4294901760
    %v5709 = vsub.f32 %v5497, %v5708
    %v5710 = vand.u32 %v5709, 4294901760
    %v5711 = vsub.f32 %v5709, %v5710
    %v5712 = vand.u32 %v5711, 4294901760
    %5713 = vmatpush1.msra.mxu0 %v5712
    %5714 = vmatprep.subr.mxu0 0.0
    %v5715 = vand.u32 %v5496, 4294901760
    %v5716 = vsub.f32 %v5496, %v5715
    %v5717 = vand.u32 %v5716, 4294901760
    %v5718 = vsub.f32 %v5716, %v5717
    %v5719 = vand.u32 %v5718, 4294901760
    %5720 = vmatpush1.msra.mxu0 %v5719
    %5721 = vmatprep.subr.mxu0 0.0
    %v5722 = vand.u32 %v5495, 4294901760
    %v5723 = vsub.f32 %v5495, %v5722
    %v5724 = vand.u32 %v5723, 4294901760
    %v5725 = vsub.f32 %v5723, %v5724
    %v5726 = vand.u32 %v5725, 4294901760
    %5727 = vmatpush1.msra.mxu0 %v5726
    %5728 = vmatprep.subr.mxu0 0.0
    %v5729 = vand.u32 %v5494, 4294901760
    %v5730 = vsub.f32 %v5494, %v5729
    %v5731 = vand.u32 %v5730, 4294901760
    %v5732 = vsub.f32 %v5730, %v5731
    %v5733 = vand.u32 %v5732, 4294901760
    %5734 = vmatpush1.msra.mxu0 %v5733
    %5735 = vmatprep.subr.mxu0 0.0
    %v5736 = vand.u32 %v5493, 4294901760
    %v5737 = vsub.f32 %v5493, %v5736
    %v5738 = vand.u32 %v5737, 4294901760
    %v5739 = vsub.f32 %v5737, %v5738
    %v5740 = vand.u32 %v5739, 4294901760
    %5741 = vmatpush1.msra.mxu0 %v5740
    %5742 = vmatprep.subr.mxu0 0.0
    %5743 = vmatpush2.msra.mxu0 0.0
    %5744 = vmatprep.subr.mxu0 0.0
    %5745 = vmatpush2.msra.mxu0 0.0
    %5746 = vmatprep.subr.mxu0 0.0
    %5747 = vmatpush2.msra.mxu0 0.0
    %5748 = vmatprep.subr.mxu0 0.0
    %5749 = vmatpush2.msra.mxu0 0.0
    %5750 = vmatprep.subr.mxu0 0.0
    %5751 = vmatpush2.msra.mxu0 0.0
    %5752 = vmatprep.subr.mxu0 0.0
    %5753 = vmatpush2.msra.mxu0 0.0
    %5754 = vmatprep.subr.mxu0 0.0
    %5755 = vmatpush2.msra.mxu0 0.0
    %5756 = vmatprep.subr.mxu0 0.0
    %5757 = vmatpush2.msra.mxu0 0.0
    %5758 = vmatprep.subr.mxu0 0.0
    %5759 = vmatpush2.msra.mxu0 0.0
    %5760 = vmatprep.subr.mxu0 0.0
    %5761 = vmatpush2.msra.mxu0 0.0
    %5762 = vmatprep.subr.mxu0 0.0
    %5763 = vmatpush2.msra.mxu0 0.0
    %5764 = vmatprep.subr.mxu0 0.0
    %5765 = vmatpush2.msra.mxu0 0.0
    %5766 = vmatprep.subr.mxu0 0.0
    %5767 = vmatpush2.msra.mxu0 0.0
    %5768 = vmatprep.subr.mxu0 0.0
    %5769 = vmatpush2.msra.mxu0 0.0
    %5770 = vmatprep.subr.mxu0 0.0
    %5771 = vmatpush2.msra.mxu0 0.0
    %5772 = vmatprep.subr.mxu0 0.0
    %5773 = vmatpush2.msra.mxu0 0.0
    %5774 = vmatprep.mubr.f32.mxu0 0.0
    %v5775 = vand.u32 %v3915, 4294901760
    %5776 = vmatmul.mubr.f32.gmra.mxu0 %v5775
    %v5777 = vpop.f32.mrf.mxu0
    %v5778 = vadd.f32 %v5597, %v5777
    %v5779 = vpop.f32.mrf.mxu0
    %5780 = vmatprep.mubr.f32.mxu0 0.0
    %v5781 = vand.u32 %v3916, 4294901760
    %5782 = vmatmul.mubr.f32.gmra.mxu0 %v5781
    %v5783 = vpop.f32.mrf.mxu0
    %v5784 = vadd.f32 %v5607, %v5783
    %v5785 = vpop.f32.mrf.mxu0
    %5786 = vmatprep.mubr.f32.mxu0 0.0
    %v5787 = vand.u32 %v3917, 4294901760
    %5788 = vmatmul.mubr.f32.gmra.mxu0 %v5787
    %v5789 = vpop.f32.mrf.mxu0
    %v5790 = vadd.f32 %v5617, %v5789
    %v5791 = vpop.f32.mrf.mxu0
    %5792 = vmatprep.mubr.f32.mxu0 0.0
    %v5793 = vand.u32 %v3918, 4294901760
    %5794 = vmatmul.mubr.f32.gmra.mxu0 %v5793
    %v5795 = vpop.f32.mrf.mxu0
    %v5796 = vadd.f32 %v5627, %v5795
    %v5797 = vpop.f32.mrf.mxu0
    %5798 = vdwg.mxu0
    %5799 = vmatprep.subr.mxu0 0.0
    %v5800 = vand.u32 %v5508, 4294901760
    %v5801 = vsub.f32 %v5508, %v5800
    %5802 = vmatpush1.msra.mxu0 %v5801
    %5803 = vmatprep.subr.mxu0 0.0
    %v5804 = vand.u32 %v5507, 4294901760
    %v5805 = vsub.f32 %v5507, %v5804
    %5806 = vmatpush1.msra.mxu0 %v5805
    %5807 = vmatprep.subr.mxu0 0.0
    %v5808 = vand.u32 %v5506, 4294901760
    %v5809 = vsub.f32 %v5506, %v5808
    %5810 = vmatpush1.msra.mxu0 %v5809
    %5811 = vmatprep.subr.mxu0 0.0
    %v5812 = vand.u32 %v5505, 4294901760
    %v5813 = vsub.f32 %v5505, %v5812
    %5814 = vmatpush1.msra.mxu0 %v5813
    %5815 = vmatprep.subr.mxu0 0.0
    %v5816 = vand.u32 %v5504, 4294901760
    %v5817 = vsub.f32 %v5504, %v5816
    %5818 = vmatpush1.msra.mxu0 %v5817
    %5819 = vmatprep.subr.mxu0 0.0
    %v5820 = vand.u32 %v5503, 4294901760
    %v5821 = vsub.f32 %v5503, %v5820
    %5822 = vmatpush1.msra.mxu0 %v5821
    %5823 = vmatprep.subr.mxu0 0.0
    %v5824 = vand.u32 %v5502, 4294901760
    %v5825 = vsub.f32 %v5502, %v5824
    %5826 = vmatpush1.msra.mxu0 %v5825
    %5827 = vmatprep.subr.mxu0 0.0
    %v5828 = vand.u32 %v5501, 4294901760
    %v5829 = vsub.f32 %v5501, %v5828
    %5830 = vmatpush1.msra.mxu0 %v5829
    %5831 = vmatprep.subr.mxu0 0.0
    %v5832 = vand.u32 %v5500, 4294901760
    %v5833 = vsub.f32 %v5500, %v5832
    %5834 = vmatpush1.msra.mxu0 %v5833
    %5835 = vmatprep.subr.mxu0 0.0
    %v5836 = vand.u32 %v5499, 4294901760
    %v5837 = vsub.f32 %v5499, %v5836
    %5838 = vmatpush1.msra.mxu0 %v5837
    %5839 = vmatprep.subr.mxu0 0.0
    %v5840 = vand.u32 %v5498, 4294901760
    %v5841 = vsub.f32 %v5498, %v5840
    %5842 = vmatpush1.msra.mxu0 %v5841
    %5843 = vmatprep.subr.mxu0 0.0
    %v5844 = vand.u32 %v5497, 4294901760
    %v5845 = vsub.f32 %v5497, %v5844
    %5846 = vmatpush1.msra.mxu0 %v5845
    %5847 = vmatprep.subr.mxu0 0.0
    %v5848 = vand.u32 %v5496, 4294901760
    %v5849 = vsub.f32 %v5496, %v5848
    %5850 = vmatpush1.msra.mxu0 %v5849
    %5851 = vmatprep.subr.mxu0 0.0
    %v5852 = vand.u32 %v5495, 4294901760
    %v5853 = vsub.f32 %v5495, %v5852
    %5854 = vmatpush1.msra.mxu0 %v5853
    %5855 = vmatprep.subr.mxu0 0.0
    %v5856 = vand.u32 %v5494, 4294901760
    %v5857 = vsub.f32 %v5494, %v5856
    %5858 = vmatpush1.msra.mxu0 %v5857
    %5859 = vmatprep.subr.mxu0 0.0
    %v5860 = vand.u32 %v5493, 4294901760
    %v5861 = vsub.f32 %v5493, %v5860
    %5862 = vmatpush1.msra.mxu0 %v5861
    %5863 = vmatprep.subr.mxu0 0.0
    %5864 = vmatpush2.msra.mxu0 0.0
    %5865 = vmatprep.subr.mxu0 0.0
    %5866 = vmatpush2.msra.mxu0 0.0
    %5867 = vmatprep.subr.mxu0 0.0
    %5868 = vmatpush2.msra.mxu0 0.0
    %5869 = vmatprep.subr.mxu0 0.0
    %5870 = vmatpush2.msra.mxu0 0.0
    %5871 = vmatprep.subr.mxu0 0.0
    %5872 = vmatpush2.msra.mxu0 0.0
    %5873 = vmatprep.subr.mxu0 0.0
    %5874 = vmatpush2.msra.mxu0 0.0
    %5875 = vmatprep.subr.mxu0 0.0
    %5876 = vmatpush2.msra.mxu0 0.0
    %5877 = vmatprep.subr.mxu0 0.0
    %5878 = vmatpush2.msra.mxu0 0.0
    %5879 = vmatprep.subr.mxu0 0.0
    %5880 = vmatpush2.msra.mxu0 0.0
    %5881 = vmatprep.subr.mxu0 0.0
    %5882 = vmatpush2.msra.mxu0 0.0
    %5883 = vmatprep.subr.mxu0 0.0
    %5884 = vmatpush2.msra.mxu0 0.0
    %5885 = vmatprep.subr.mxu0 0.0
    %5886 = vmatpush2.msra.mxu0 0.0
    %5887 = vmatprep.subr.mxu0 0.0
    %5888 = vmatpush2.msra.mxu0 0.0
    %5889 = vmatprep.subr.mxu0 0.0
    %5890 = vmatpush2.msra.mxu0 0.0
    %5891 = vmatprep.subr.mxu0 0.0
    %5892 = vmatpush2.msra.mxu0 0.0
    %5893 = vmatprep.subr.mxu0 0.0
    %5894 = vmatpush2.msra.mxu0 0.0
    %5895 = vmatprep.mubr.f32.mxu0 0.0
    %v5896 = vand.u32 %v3915, 4294901760
    %v5897 = vsub.f32 %v3915, %v5896
    %5898 = vmatmul.mubr.f32.gmra.mxu0 %v5897
    %v5899 = vpop.f32.mrf.mxu0
    %v5900 = vadd.f32 %v5778, %v5899
    %v5901 = vpop.f32.mrf.mxu0
    %5902 = vmatprep.mubr.f32.mxu0 0.0
    %v5903 = vand.u32 %v3916, 4294901760
    %v5904 = vsub.f32 %v3916, %v5903
    %5905 = vmatmul.mubr.f32.gmra.mxu0 %v5904
    %v5906 = vpop.f32.mrf.mxu0
    %v5907 = vadd.f32 %v5784, %v5906
    %v5908 = vpop.f32.mrf.mxu0
    %5909 = vmatprep.mubr.f32.mxu0 0.0
    %v5910 = vand.u32 %v3917, 4294901760
    %v5911 = vsub.f32 %v3917, %v5910
    %5912 = vmatmul.mubr.f32.gmra.mxu0 %v5911
    %v5913 = vpop.f32.mrf.mxu0
    %v5914 = vadd.f32 %v5790, %v5913
    %v5915 = vpop.f32.mrf.mxu0
    %5916 = vmatprep.mubr.f32.mxu0 0.0
    %v5917 = vand.u32 %v3918, 4294901760
    %v5918 = vsub.f32 %v3918, %v5917
    %5919 = vmatmul.mubr.f32.gmra.mxu0 %v5918
    %v5920 = vpop.f32.mrf.mxu0
    %v5921 = vadd.f32 %v5796, %v5920
    %v5922 = vpop.f32.mrf.mxu0
    %5923 = vdwg.mxu0
    %5924 = vmatprep.subr.mxu0 0.0
    %v5925 = vand.u32 %v5508, 4294901760
    %5926 = vmatpush1.msra.mxu0 %v5925
    %5927 = vmatprep.subr.mxu0 0.0
    %v5928 = vand.u32 %v5507, 4294901760
    %5929 = vmatpush1.msra.mxu0 %v5928
    %5930 = vmatprep.subr.mxu0 0.0
    %v5931 = vand.u32 %v5506, 4294901760
    %5932 = vmatpush1.msra.mxu0 %v5931
    %5933 = vmatprep.subr.mxu0 0.0
    %v5934 = vand.u32 %v5505, 4294901760
    %5935 = vmatpush1.msra.mxu0 %v5934
    %5936 = vmatprep.subr.mxu0 0.0
    %v5937 = vand.u32 %v5504, 4294901760
    %5938 = vmatpush1.msra.mxu0 %v5937
    %5939 = vmatprep.subr.mxu0 0.0
    %v5940 = vand.u32 %v5503, 4294901760
    %5941 = vmatpush1.msra.mxu0 %v5940
    %5942 = vmatprep.subr.mxu0 0.0
    %v5943 = vand.u32 %v5502, 4294901760
    %5944 = vmatpush1.msra.mxu0 %v5943
    %5945 = vmatprep.subr.mxu0 0.0
    %v5946 = vand.u32 %v5501, 4294901760
    %5947 = vmatpush1.msra.mxu0 %v5946
    %5948 = vmatprep.subr.mxu0 0.0
    %v5949 = vand.u32 %v5500, 4294901760
    %5950 = vmatpush1.msra.mxu0 %v5949
    %5951 = vmatprep.subr.mxu0 0.0
    %v5952 = vand.u32 %v5499, 4294901760
    %5953 = vmatpush1.msra.mxu0 %v5952
    %5954 = vmatprep.subr.mxu0 0.0
    %v5955 = vand.u32 %v5498, 4294901760
    %5956 = vmatpush1.msra.mxu0 %v5955
    %5957 = vmatprep.subr.mxu0 0.0
    %v5958 = vand.u32 %v5497, 4294901760
    %5959 = vmatpush1.msra.mxu0 %v5958
    %5960 = vmatprep.subr.mxu0 0.0
    %v5961 = vand.u32 %v5496, 4294901760
    %5962 = vmatpush1.msra.mxu0 %v5961
    %5963 = vmatprep.subr.mxu0 0.0
    %v5964 = vand.u32 %v5495, 4294901760
    %5965 = vmatpush1.msra.mxu0 %v5964
    %5966 = vmatprep.subr.mxu0 0.0
    %v5967 = vand.u32 %v5494, 4294901760
    %5968 = vmatpush1.msra.mxu0 %v5967
    %5969 = vmatprep.subr.mxu0 0.0
    %v5970 = vand.u32 %v5493, 4294901760
    %5971 = vmatpush1.msra.mxu0 %v5970
    %5972 = vmatprep.subr.mxu0 0.0
    %5973 = vmatpush2.msra.mxu0 0.0
    %5974 = vmatprep.subr.mxu0 0.0
    %5975 = vmatpush2.msra.mxu0 0.0
    %5976 = vmatprep.subr.mxu0 0.0
    %5977 = vmatpush2.msra.mxu0 0.0
    %5978 = vmatprep.subr.mxu0 0.0
    %5979 = vmatpush2.msra.mxu0 0.0
    %5980 = vmatprep.subr.mxu0 0.0
    %5981 = vmatpush2.msra.mxu0 0.0
    %5982 = vmatprep.subr.mxu0 0.0
    %5983 = vmatpush2.msra.mxu0 0.0
    %5984 = vmatprep.subr.mxu0 0.0
    %5985 = vmatpush2.msra.mxu0 0.0
    %5986 = vmatprep.subr.mxu0 0.0
    %5987 = vmatpush2.msra.mxu0 0.0
    %5988 = vmatprep.subr.mxu0 0.0
    %5989 = vmatpush2.msra.mxu0 0.0
    %5990 = vmatprep.subr.mxu0 0.0
    %5991 = vmatpush2.msra.mxu0 0.0
    %5992 = vmatprep.subr.mxu0 0.0
    %5993 = vmatpush2.msra.mxu0 0.0
    %5994 = vmatprep.subr.mxu0 0.0
    %5995 = vmatpush2.msra.mxu0 0.0
    %5996 = vmatprep.subr.mxu0 0.0
    %5997 = vmatpush2.msra.mxu0 0.0
    %5998 = vmatprep.subr.mxu0 0.0
    %5999 = vmatpush2.msra.mxu0 0.0
    %6000 = vmatprep.subr.mxu0 0.0
    %6001 = vmatpush2.msra.mxu0 0.0
    %6002 = vmatprep.subr.mxu0 0.0
    %6003 = vmatpush2.msra.mxu0 0.0
    %6004 = vmatprep.mubr.f32.mxu0 0.0
    %v6005 = vand.u32 %v3915, 4294901760
    %v6006 = vsub.f32 %v3915, %v6005
    %v6007 = vand.u32 %v6006, 4294901760
    %6008 = vmatmul.mubr.f32.gmra.mxu0 %v6007
    %v6009 = vpop.f32.mrf.mxu0
    %v6010 = vadd.f32 %v5900, %v6009
    %v6011 = vpop.f32.mrf.mxu0
    %6012 = vmatprep.mubr.f32.mxu0 0.0
    %v6013 = vand.u32 %v3916, 4294901760
    %v6014 = vsub.f32 %v3916, %v6013
    %v6015 = vand.u32 %v6014, 4294901760
    %6016 = vmatmul.mubr.f32.gmra.mxu0 %v6015
    %v6017 = vpop.f32.mrf.mxu0
    %v6018 = vadd.f32 %v5907, %v6017
    %v6019 = vpop.f32.mrf.mxu0
    %6020 = vmatprep.mubr.f32.mxu0 0.0
    %v6021 = vand.u32 %v3917, 4294901760
    %v6022 = vsub.f32 %v3917, %v6021
    %v6023 = vand.u32 %v6022, 4294901760
    %6024 = vmatmul.mubr.f32.gmra.mxu0 %v6023
    %v6025 = vpop.f32.mrf.mxu0
    %v6026 = vadd.f32 %v5914, %v6025
    %v6027 = vpop.f32.mrf.mxu0
    %6028 = vmatprep.mubr.f32.mxu0 0.0
    %v6029 = vand.u32 %v3918, 4294901760
    %v6030 = vsub.f32 %v3918, %v6029
    %v6031 = vand.u32 %v6030, 4294901760
    %6032 = vmatmul.mubr.f32.gmra.mxu0 %v6031
    %v6033 = vpop.f32.mrf.mxu0
    %v6034 = vadd.f32 %v5921, %v6033
    %v6035 = vpop.f32.mrf.mxu0
    %6036 = vdwg.mxu0
    %6037 = vmatprep.subr.mxu0 0.0
    %v6038 = vand.u32 %v5508, 4294901760
    %v6039 = vsub.f32 %v5508, %v6038
    %v6040 = vand.u32 %v6039, 4294901760
    %6041 = vmatpush1.msra.mxu0 %v6040
    %6042 = vmatprep.subr.mxu0 0.0
    %v6043 = vand.u32 %v5507, 4294901760
    %v6044 = vsub.f32 %v5507, %v6043
    %v6045 = vand.u32 %v6044, 4294901760
    %6046 = vmatpush1.msra.mxu0 %v6045
    %6047 = vmatprep.subr.mxu0 0.0
    %v6048 = vand.u32 %v5506, 4294901760
    %v6049 = vsub.f32 %v5506, %v6048
    %v6050 = vand.u32 %v6049, 4294901760
    %6051 = vmatpush1.msra.mxu0 %v6050
    %6052 = vmatprep.subr.mxu0 0.0
    %v6053 = vand.u32 %v5505, 4294901760
    %v6054 = vsub.f32 %v5505, %v6053
    %v6055 = vand.u32 %v6054, 4294901760
    %6056 = vmatpush1.msra.mxu0 %v6055
    %6057 = vmatprep.subr.mxu0 0.0
    %v6058 = vand.u32 %v5504, 4294901760
    %v6059 = vsub.f32 %v5504, %v6058
    %v6060 = vand.u32 %v6059, 4294901760
    %6061 = vmatpush1.msra.mxu0 %v6060
    %6062 = vmatprep.subr.mxu0 0.0
    %v6063 = vand.u32 %v5503, 4294901760
    %v6064 = vsub.f32 %v5503, %v6063
    %v6065 = vand.u32 %v6064, 4294901760
    %6066 = vmatpush1.msra.mxu0 %v6065
    %6067 = vmatprep.subr.mxu0 0.0
    %v6068 = vand.u32 %v5502, 4294901760
    %v6069 = vsub.f32 %v5502, %v6068
    %v6070 = vand.u32 %v6069, 4294901760
    %6071 = vmatpush1.msra.mxu0 %v6070
    %6072 = vmatprep.subr.mxu0 0.0
    %v6073 = vand.u32 %v5501, 4294901760
    %v6074 = vsub.f32 %v5501, %v6073
    %v6075 = vand.u32 %v6074, 4294901760
    %6076 = vmatpush1.msra.mxu0 %v6075
    %6077 = vmatprep.subr.mxu0 0.0
    %v6078 = vand.u32 %v5500, 4294901760
    %v6079 = vsub.f32 %v5500, %v6078
    %v6080 = vand.u32 %v6079, 4294901760
    %6081 = vmatpush1.msra.mxu0 %v6080
    %6082 = vmatprep.subr.mxu0 0.0
    %v6083 = vand.u32 %v5499, 4294901760
    %v6084 = vsub.f32 %v5499, %v6083
    %v6085 = vand.u32 %v6084, 4294901760
    %6086 = vmatpush1.msra.mxu0 %v6085
    %6087 = vmatprep.subr.mxu0 0.0
    %v6088 = vand.u32 %v5498, 4294901760
    %v6089 = vsub.f32 %v5498, %v6088
    %v6090 = vand.u32 %v6089, 4294901760
    %6091 = vmatpush1.msra.mxu0 %v6090
    %6092 = vmatprep.subr.mxu0 0.0
    %v6093 = vand.u32 %v5497, 4294901760
    %v6094 = vsub.f32 %v5497, %v6093
    %v6095 = vand.u32 %v6094, 4294901760
    %6096 = vmatpush1.msra.mxu0 %v6095
    %6097 = vmatprep.subr.mxu0 0.0
    %v6098 = vand.u32 %v5496, 4294901760
    %v6099 = vsub.f32 %v5496, %v6098
    %v6100 = vand.u32 %v6099, 4294901760
    %6101 = vmatpush1.msra.mxu0 %v6100
    %6102 = vmatprep.subr.mxu0 0.0
    %v6103 = vand.u32 %v5495, 4294901760
    %v6104 = vsub.f32 %v5495, %v6103
    %v6105 = vand.u32 %v6104, 4294901760
    %6106 = vmatpush1.msra.mxu0 %v6105
    %6107 = vmatprep.subr.mxu0 0.0
    %v6108 = vand.u32 %v5494, 4294901760
    %v6109 = vsub.f32 %v5494, %v6108
    %v6110 = vand.u32 %v6109, 4294901760
    %6111 = vmatpush1.msra.mxu0 %v6110
    %6112 = vmatprep.subr.mxu0 0.0
    %v6113 = vand.u32 %v5493, 4294901760
    %v6114 = vsub.f32 %v5493, %v6113
    %v6115 = vand.u32 %v6114, 4294901760
    %6116 = vmatpush1.msra.mxu0 %v6115
    %6117 = vmatprep.subr.mxu0 0.0
    %6118 = vmatpush2.msra.mxu0 0.0
    %6119 = vmatprep.subr.mxu0 0.0
    %6120 = vmatpush2.msra.mxu0 0.0
    %6121 = vmatprep.subr.mxu0 0.0
    %6122 = vmatpush2.msra.mxu0 0.0
    %6123 = vmatprep.subr.mxu0 0.0
    %6124 = vmatpush2.msra.mxu0 0.0
    %6125 = vmatprep.subr.mxu0 0.0
    %6126 = vmatpush2.msra.mxu0 0.0
    %6127 = vmatprep.subr.mxu0 0.0
    %6128 = vmatpush2.msra.mxu0 0.0
    %6129 = vmatprep.subr.mxu0 0.0
    %6130 = vmatpush2.msra.mxu0 0.0
    %6131 = vmatprep.subr.mxu0 0.0
    %6132 = vmatpush2.msra.mxu0 0.0
    %6133 = vmatprep.subr.mxu0 0.0
    %6134 = vmatpush2.msra.mxu0 0.0
    %6135 = vmatprep.subr.mxu0 0.0
    %6136 = vmatpush2.msra.mxu0 0.0
    %6137 = vmatprep.subr.mxu0 0.0
    %6138 = vmatpush2.msra.mxu0 0.0
    %6139 = vmatprep.subr.mxu0 0.0
    %6140 = vmatpush2.msra.mxu0 0.0
    %6141 = vmatprep.subr.mxu0 0.0
    %6142 = vmatpush2.msra.mxu0 0.0
    %6143 = vmatprep.subr.mxu0 0.0
    %6144 = vmatpush2.msra.mxu0 0.0
    %6145 = vmatprep.subr.mxu0 0.0
    %6146 = vmatpush2.msra.mxu0 0.0
    %6147 = vmatprep.subr.mxu0 0.0
    %6148 = vmatpush2.msra.mxu0 0.0
    %6149 = vmatprep.mubr.f32.mxu0 0.0
    %v6150 = vand.u32 %v3915, 4294901760
    %6151 = vmatmul.mubr.f32.gmra.mxu0 %v6150
    %v6152 = vpop.f32.mrf.mxu0
    %v6153 = vadd.f32 %v6010, %v6152
    %v6154 = vpop.f32.mrf.mxu0
    %6155 = vmatprep.mubr.f32.mxu0 0.0
    %v6156 = vand.u32 %v3916, 4294901760
    %6157 = vmatmul.mubr.f32.gmra.mxu0 %v6156
    %v6158 = vpop.f32.mrf.mxu0
    %v6159 = vadd.f32 %v6018, %v6158
    %v6160 = vpop.f32.mrf.mxu0
    %6161 = vmatprep.mubr.f32.mxu0 0.0
    %v6162 = vand.u32 %v3917, 4294901760
    %6163 = vmatmul.mubr.f32.gmra.mxu0 %v6162
    %v6164 = vpop.f32.mrf.mxu0
    %v6165 = vadd.f32 %v6026, %v6164
    %v6166 = vpop.f32.mrf.mxu0
    %6167 = vmatprep.mubr.f32.mxu0 0.0
    %v6168 = vand.u32 %v3918, 4294901760
    %6169 = vmatmul.mubr.f32.gmra.mxu0 %v6168
    %v6170 = vpop.f32.mrf.mxu0
    %v6171 = vadd.f32 %v6034, %v6170
    %v6172 = vpop.f32.mrf.mxu0
    %6173 = vdwg.mxu0
    %6174 = vmatprep.subr.mxu0 0.0
    %v6175 = vand.u32 %v5508, 4294901760
    %6176 = vmatpush1.msra.mxu0 %v6175
    %6177 = vmatprep.subr.mxu0 0.0
    %v6178 = vand.u32 %v5507, 4294901760
    %6179 = vmatpush1.msra.mxu0 %v6178
    %6180 = vmatprep.subr.mxu0 0.0
    %v6181 = vand.u32 %v5506, 4294901760
    %6182 = vmatpush1.msra.mxu0 %v6181
    %6183 = vmatprep.subr.mxu0 0.0
    %v6184 = vand.u32 %v5505, 4294901760
    %6185 = vmatpush1.msra.mxu0 %v6184
    %6186 = vmatprep.subr.mxu0 0.0
    %v6187 = vand.u32 %v5504, 4294901760
    %6188 = vmatpush1.msra.mxu0 %v6187
    %6189 = vmatprep.subr.mxu0 0.0
    %v6190 = vand.u32 %v5503, 4294901760
    %6191 = vmatpush1.msra.mxu0 %v6190
    %6192 = vmatprep.subr.mxu0 0.0
    %v6193 = vand.u32 %v5502, 4294901760
    %6194 = vmatpush1.msra.mxu0 %v6193
    %6195 = vmatprep.subr.mxu0 0.0
    %v6196 = vand.u32 %v5501, 4294901760
    %6197 = vmatpush1.msra.mxu0 %v6196
    %6198 = vmatprep.subr.mxu0 0.0
    %v6199 = vand.u32 %v5500, 4294901760
    %6200 = vmatpush1.msra.mxu0 %v6199
    %6201 = vmatprep.subr.mxu0 0.0
    %v6202 = vand.u32 %v5499, 4294901760
    %6203 = vmatpush1.msra.mxu0 %v6202
    %6204 = vmatprep.subr.mxu0 0.0
    %v6205 = vand.u32 %v5498, 4294901760
    %6206 = vmatpush1.msra.mxu0 %v6205
    %6207 = vmatprep.subr.mxu0 0.0
    %v6208 = vand.u32 %v5497, 4294901760
    %6209 = vmatpush1.msra.mxu0 %v6208
    %6210 = vmatprep.subr.mxu0 0.0
    %v6211 = vand.u32 %v5496, 4294901760
    %6212 = vmatpush1.msra.mxu0 %v6211
    %6213 = vmatprep.subr.mxu0 0.0
    %v6214 = vand.u32 %v5495, 4294901760
    %6215 = vmatpush1.msra.mxu0 %v6214
    %6216 = vmatprep.subr.mxu0 0.0
    %v6217 = vand.u32 %v5494, 4294901760
    %6218 = vmatpush1.msra.mxu0 %v6217
    %6219 = vmatprep.subr.mxu0 0.0
    %v6220 = vand.u32 %v5493, 4294901760
    %6221 = vmatpush1.msra.mxu0 %v6220
    %6222 = vmatprep.subr.mxu0 0.0
    %6223 = vmatpush2.msra.mxu0 0.0
    %6224 = vmatprep.subr.mxu0 0.0
    %6225 = vmatpush2.msra.mxu0 0.0
    %6226 = vmatprep.subr.mxu0 0.0
    %6227 = vmatpush2.msra.mxu0 0.0
    %6228 = vmatprep.subr.mxu0 0.0
    %6229 = vmatpush2.msra.mxu0 0.0
    %6230 = vmatprep.subr.mxu0 0.0
    %6231 = vmatpush2.msra.mxu0 0.0
    %6232 = vmatprep.subr.mxu0 0.0
    %6233 = vmatpush2.msra.mxu0 0.0
    %6234 = vmatprep.subr.mxu0 0.0
    %6235 = vmatpush2.msra.mxu0 0.0
    %6236 = vmatprep.subr.mxu0 0.0
    %6237 = vmatpush2.msra.mxu0 0.0
    %6238 = vmatprep.subr.mxu0 0.0
    %6239 = vmatpush2.msra.mxu0 0.0
    %6240 = vmatprep.subr.mxu0 0.0
    %6241 = vmatpush2.msra.mxu0 0.0
    %6242 = vmatprep.subr.mxu0 0.0
    %6243 = vmatpush2.msra.mxu0 0.0
    %6244 = vmatprep.subr.mxu0 0.0
    %6245 = vmatpush2.msra.mxu0 0.0
    %6246 = vmatprep.subr.mxu0 0.0
    %6247 = vmatpush2.msra.mxu0 0.0
    %6248 = vmatprep.subr.mxu0 0.0
    %6249 = vmatpush2.msra.mxu0 0.0
    %6250 = vmatprep.subr.mxu0 0.0
    %6251 = vmatpush2.msra.mxu0 0.0
    %6252 = vmatprep.subr.mxu0 0.0
    %6253 = vmatpush2.msra.mxu0 0.0
    %6254 = vmatprep.mubr.f32.mxu0 0.0
    %v6255 = vand.u32 %v3915, 4294901760
    %6256 = vmatmul.mubr.f32.gmra.mxu0 %v6255
    %v6257 = vpop.f32.mrf.mxu0
    %v6258 = vadd.f32 %v6153, %v6257
    %v6259 = vpop.f32.mrf.mxu0
    %6260 = vmatprep.mubr.f32.mxu0 0.0
    %v6261 = vand.u32 %v3916, 4294901760
    %6262 = vmatmul.mubr.f32.gmra.mxu0 %v6261
    %v6263 = vpop.f32.mrf.mxu0
    %v6264 = vadd.f32 %v6159, %v6263
    %v6265 = vpop.f32.mrf.mxu0
    %6266 = vmatprep.mubr.f32.mxu0 0.0
    %v6267 = vand.u32 %v3917, 4294901760
    %6268 = vmatmul.mubr.f32.gmra.mxu0 %v6267
    %v6269 = vpop.f32.mrf.mxu0
    %v6270 = vadd.f32 %v6165, %v6269
    %v6271 = vpop.f32.mrf.mxu0
    %6272 = vmatprep.mubr.f32.mxu0 0.0
    %v6273 = vand.u32 %v3918, 4294901760
    %6274 = vmatmul.mubr.f32.gmra.mxu0 %v6273
    %v6275 = vpop.f32.mrf.mxu0
    %v6276 = vadd.f32 %v6171, %v6275
    %v6277 = vpop.f32.mrf.mxu0
    %6278 = vdwg.mxu0
    %v6279 = vadd.f32 %v5471, %v6258
    %v6280 = vadd.f32 %v5477, %v6264
    %v6281 = vadd.f32 %v5483, %v6270
    %v6282 = vadd.f32 %v5489, %v6276
    %v6283 = vld [vmem:[%s5] sm:$0x1]
    %v6284 = vld [vmem:[%s6] sm:$0x1]
    %v6285 = vadd.f32 %v6279, %v6280
    %v6286 = vadd.f32 %v6285, %v6281
    %v6287 = vadd.f32 %v6286, %v6282
    %v6288 = vrot.slane %v6287, 4
    %v6289 = vadd.f32 %v6287, %v6288
    %v6290 = vrot.slane %v6289, 2
    %v6291 = vadd.f32 %v6289, %v6290
    %v6292 = vrot.slane %v6291, 1
    %v6293 = vadd.f32 %v6291, %v6292
    %v6294 = vmul.f32 %v6279, %v6279
    %v6295 = vmul.f32 %v6280, %v6280
    %v6296 = vmul.f32 %v6281, %v6281
    %v6297 = vmul.f32 %v6282, %v6282
    %v6298 = vadd.f32 %v6294, %v6295
    %v6299 = vadd.f32 %v6298, %v6296
    %v6300 = vadd.f32 %v6299, %v6297
    %v6301 = vrot.slane %v6300, 4
    %v6302 = vadd.f32 %v6300, %v6301
    %v6303 = vrot.slane %v6302, 2
    %v6304 = vadd.f32 %v6302, %v6303
    %v6305 = vrot.slane %v6304, 1
    %v6306 = vadd.f32 %v6304, %v6305
    %6307 = vmatprep.subr.mxu0 0.0
    %v6308 = vand.u32 %v104, 4294901760
    %6309 = vmatpush1.msra.mxu0 %v6308
    %6310 = vmatprep.subr.mxu0 0.0
    %v6311 = vand.u32 %v103, 4294901760
    %6312 = vmatpush1.msra.mxu0 %v6311
    %6313 = vmatprep.subr.mxu0 0.0
    %v6314 = vand.u32 %v102, 4294901760
    %6315 = vmatpush1.msra.mxu0 %v6314
    %6316 = vmatprep.subr.mxu0 0.0
    %v6317 = vand.u32 %v101, 4294901760
    %6318 = vmatpush1.msra.mxu0 %v6317
    %6319 = vmatprep.subr.mxu0 0.0
    %v6320 = vand.u32 %v100, 4294901760
    %6321 = vmatpush1.msra.mxu0 %v6320
    %6322 = vmatprep.subr.mxu0 0.0
    %v6323 = vand.u32 %v99, 4294901760
    %6324 = vmatpush1.msra.mxu0 %v6323
    %6325 = vmatprep.subr.mxu0 0.0
    %v6326 = vand.u32 %v98, 4294901760
    %6327 = vmatpush1.msra.mxu0 %v6326
    %6328 = vmatprep.subr.mxu0 0.0
    %v6329 = vand.u32 %v97, 4294901760
    %6330 = vmatpush1.msra.mxu0 %v6329
    %6331 = vmatprep.subr.mxu0 0.0
    %v6332 = vand.u32 %v96, 4294901760
    %6333 = vmatpush1.msra.mxu0 %v6332
    %6334 = vmatprep.subr.mxu0 0.0
    %v6335 = vand.u32 %v95, 4294901760
    %6336 = vmatpush1.msra.mxu0 %v6335
    %6337 = vmatprep.subr.mxu0 0.0
    %v6338 = vand.u32 %v94, 4294901760
    %6339 = vmatpush1.msra.mxu0 %v6338
    %6340 = vmatprep.subr.mxu0 0.0
    %v6341 = vand.u32 %v93, 4294901760
    %6342 = vmatpush1.msra.mxu0 %v6341
    %6343 = vmatprep.subr.mxu0 0.0
    %v6344 = vand.u32 %v92, 4294901760
    %6345 = vmatpush1.msra.mxu0 %v6344
    %6346 = vmatprep.subr.mxu0 0.0
    %v6347 = vand.u32 %v91, 4294901760
    %6348 = vmatpush1.msra.mxu0 %v6347
    %6349 = vmatprep.subr.mxu0 0.0
    %v6350 = vand.u32 %v90, 4294901760
    %6351 = vmatpush1.msra.mxu0 %v6350
    %6352 = vmatprep.subr.mxu0 0.0
    %v6353 = vand.u32 %v89, 4294901760
    %6354 = vmatpush1.msra.mxu0 %v6353
    %6355 = vmatprep.subr.mxu0 0.0
    %6356 = vmatpush2.msra.mxu0 0.0
    %6357 = vmatprep.subr.mxu0 0.0
    %6358 = vmatpush2.msra.mxu0 0.0
    %6359 = vmatprep.subr.mxu0 0.0
    %6360 = vmatpush2.msra.mxu0 0.0
    %6361 = vmatprep.subr.mxu0 0.0
    %6362 = vmatpush2.msra.mxu0 0.0
    %6363 = vmatprep.subr.mxu0 0.0
    %6364 = vmatpush2.msra.mxu0 0.0
    %6365 = vmatprep.subr.mxu0 0.0
    %6366 = vmatpush2.msra.mxu0 0.0
    %6367 = vmatprep.subr.mxu0 0.0
    %6368 = vmatpush2.msra.mxu0 0.0
    %6369 = vmatprep.subr.mxu0 0.0
    %6370 = vmatpush2.msra.mxu0 0.0
    %6371 = vmatprep.subr.mxu0 0.0
    %6372 = vmatpush2.msra.mxu0 0.0
    %6373 = vmatprep.subr.mxu0 0.0
    %6374 = vmatpush2.msra.mxu0 0.0
    %6375 = vmatprep.subr.mxu0 0.0
    %6376 = vmatpush2.msra.mxu0 0.0
    %6377 = vmatprep.subr.mxu0 0.0
    %6378 = vmatpush2.msra.mxu0 0.0
    %6379 = vmatprep.subr.mxu0 0.0
    %6380 = vmatpush2.msra.mxu0 0.0
    %6381 = vmatprep.subr.mxu0 0.0
    %6382 = vmatpush2.msra.mxu0 0.0
    %6383 = vmatprep.subr.mxu0 0.0
    %6384 = vmatpush2.msra.mxu0 0.0
    %6385 = vmatprep.subr.mxu0 0.0
    %6386 = vmatpush2.msra.mxu0 0.0
    %6387 = vmatprep.mubr.f32.mxu0 0.0
    %v6388 = vand.u32 %v6293, 4294901760
    %v6389 = vsub.f32 %v6293, %v6388
    %v6390 = vand.u32 %v6389, 4294901760
    %v6391 = vsub.f32 %v6389, %v6390
    %v6392 = vand.u32 %v6391, 4294901760
    %6393 = vmatmul.mubr.f32.gmra.mxu0 %v6392
    %v6394 = vpop.f32.mrf.mxu0
    %v6395 = vadd.f32 0.0, %v6394
    %v6396 = vpop.f32.mrf.mxu0
    %6397 = vdwg.mxu0
    %6398 = vmatprep.subr.mxu0 0.0
    %v6399 = vand.u32 %v104, 4294901760
    %v6400 = vsub.f32 %v104, %v6399
    %v6401 = vand.u32 %v6400, 4294901760
    %v6402 = vsub.f32 %v6400, %v6401
    %v6403 = vand.u32 %v6402, 4294901760
    %6404 = vmatpush1.msra.mxu0 %v6403
    %6405 = vmatprep.subr.mxu0 0.0
    %v6406 = vand.u32 %v103, 4294901760
    %v6407 = vsub.f32 %v103, %v6406
    %v6408 = vand.u32 %v6407, 4294901760
    %v6409 = vsub.f32 %v6407, %v6408
    %v6410 = vand.u32 %v6409, 4294901760
    %6411 = vmatpush1.msra.mxu0 %v6410
    %6412 = vmatprep.subr.mxu0 0.0
    %v6413 = vand.u32 %v102, 4294901760
    %v6414 = vsub.f32 %v102, %v6413
    %v6415 = vand.u32 %v6414, 4294901760
    %v6416 = vsub.f32 %v6414, %v6415
    %v6417 = vand.u32 %v6416, 4294901760
    %6418 = vmatpush1.msra.mxu0 %v6417
    %6419 = vmatprep.subr.mxu0 0.0
    %v6420 = vand.u32 %v101, 4294901760
    %v6421 = vsub.f32 %v101, %v6420
    %v6422 = vand.u32 %v6421, 4294901760
    %v6423 = vsub.f32 %v6421, %v6422
    %v6424 = vand.u32 %v6423, 4294901760
    %6425 = vmatpush1.msra.mxu0 %v6424
    %6426 = vmatprep.subr.mxu0 0.0
    %v6427 = vand.u32 %v100, 4294901760
    %v6428 = vsub.f32 %v100, %v6427
    %v6429 = vand.u32 %v6428, 4294901760
    %v6430 = vsub.f32 %v6428, %v6429
    %v6431 = vand.u32 %v6430, 4294901760
    %6432 = vmatpush1.msra.mxu0 %v6431
    %6433 = vmatprep.subr.mxu0 0.0
    %v6434 = vand.u32 %v99, 4294901760
    %v6435 = vsub.f32 %v99, %v6434
    %v6436 = vand.u32 %v6435, 4294901760
    %v6437 = vsub.f32 %v6435, %v6436
    %v6438 = vand.u32 %v6437, 4294901760
    %6439 = vmatpush1.msra.mxu0 %v6438
    %6440 = vmatprep.subr.mxu0 0.0
    %v6441 = vand.u32 %v98, 4294901760
    %v6442 = vsub.f32 %v98, %v6441
    %v6443 = vand.u32 %v6442, 4294901760
    %v6444 = vsub.f32 %v6442, %v6443
    %v6445 = vand.u32 %v6444, 4294901760
    %6446 = vmatpush1.msra.mxu0 %v6445
    %6447 = vmatprep.subr.mxu0 0.0
    %v6448 = vand.u32 %v97, 4294901760
    %v6449 = vsub.f32 %v97, %v6448
    %v6450 = vand.u32 %v6449, 4294901760
    %v6451 = vsub.f32 %v6449, %v6450
    %v6452 = vand.u32 %v6451, 4294901760
    %6453 = vmatpush1.msra.mxu0 %v6452
    %6454 = vmatprep.subr.mxu0 0.0
    %v6455 = vand.u32 %v96, 4294901760
    %v6456 = vsub.f32 %v96, %v6455
    %v6457 = vand.u32 %v6456, 4294901760
    %v6458 = vsub.f32 %v6456, %v6457
    %v6459 = vand.u32 %v6458, 4294901760
    %6460 = vmatpush1.msra.mxu0 %v6459
    %6461 = vmatprep.subr.mxu0 0.0
    %v6462 = vand.u32 %v95, 4294901760
    %v6463 = vsub.f32 %v95, %v6462
    %v6464 = vand.u32 %v6463, 4294901760
    %v6465 = vsub.f32 %v6463, %v6464
    %v6466 = vand.u32 %v6465, 4294901760
    %6467 = vmatpush1.msra.mxu0 %v6466
    %6468 = vmatprep.subr.mxu0 0.0
    %v6469 = vand.u32 %v94, 4294901760
    %v6470 = vsub.f32 %v94, %v6469
    %v6471 = vand.u32 %v6470, 4294901760
    %v6472 = vsub.f32 %v6470, %v6471
    %v6473 = vand.u32 %v6472, 4294901760
    %6474 = vmatpush1.msra.mxu0 %v6473
    %6475 = vmatprep.subr.mxu0 0.0
    %v6476 = vand.u32 %v93, 4294901760
    %v6477 = vsub.f32 %v93, %v6476
    %v6478 = vand.u32 %v6477, 4294901760
    %v6479 = vsub.f32 %v6477, %v6478
    %v6480 = vand.u32 %v6479, 4294901760
    %6481 = vmatpush1.msra.mxu0 %v6480
    %6482 = vmatprep.subr.mxu0 0.0
    %v6483 = vand.u32 %v92, 4294901760
    %v6484 = vsub.f32 %v92, %v6483
    %v6485 = vand.u32 %v6484, 4294901760
    %v6486 = vsub.f32 %v6484, %v6485
    %v6487 = vand.u32 %v6486, 4294901760
    %6488 = vmatpush1.msra.mxu0 %v6487
    %6489 = vmatprep.subr.mxu0 0.0
    %v6490 = vand.u32 %v91, 4294901760
    %v6491 = vsub.f32 %v91, %v6490
    %v6492 = vand.u32 %v6491, 4294901760
    %v6493 = vsub.f32 %v6491, %v6492
    %v6494 = vand.u32 %v6493, 4294901760
    %6495 = vmatpush1.msra.mxu0 %v6494
    %6496 = vmatprep.subr.mxu0 0.0
    %v6497 = vand.u32 %v90, 4294901760
    %v6498 = vsub.f32 %v90, %v6497
    %v6499 = vand.u32 %v6498, 4294901760
    %v6500 = vsub.f32 %v6498, %v6499
    %v6501 = vand.u32 %v6500, 4294901760
    %6502 = vmatpush1.msra.mxu0 %v6501
    %6503 = vmatprep.subr.mxu0 0.0
    %v6504 = vand.u32 %v89, 4294901760
    %v6505 = vsub.f32 %v89, %v6504
    %v6506 = vand.u32 %v6505, 4294901760
    %v6507 = vsub.f32 %v6505, %v6506
    %v6508 = vand.u32 %v6507, 4294901760
    %6509 = vmatpush1.msra.mxu0 %v6508
    %6510 = vmatprep.subr.mxu0 0.0
    %6511 = vmatpush2.msra.mxu0 0.0
    %6512 = vmatprep.subr.mxu0 0.0
    %6513 = vmatpush2.msra.mxu0 0.0
    %6514 = vmatprep.subr.mxu0 0.0
    %6515 = vmatpush2.msra.mxu0 0.0
    %6516 = vmatprep.subr.mxu0 0.0
    %6517 = vmatpush2.msra.mxu0 0.0
    %6518 = vmatprep.subr.mxu0 0.0
    %6519 = vmatpush2.msra.mxu0 0.0
    %6520 = vmatprep.subr.mxu0 0.0
    %6521 = vmatpush2.msra.mxu0 0.0
    %6522 = vmatprep.subr.mxu0 0.0
    %6523 = vmatpush2.msra.mxu0 0.0
    %6524 = vmatprep.subr.mxu0 0.0
    %6525 = vmatpush2.msra.mxu0 0.0
    %6526 = vmatprep.subr.mxu0 0.0
    %6527 = vmatpush2.msra.mxu0 0.0
    %6528 = vmatprep.subr.mxu0 0.0
    %6529 = vmatpush2.msra.mxu0 0.0
    %6530 = vmatprep.subr.mxu0 0.0
    %6531 = vmatpush2.msra.mxu0 0.0
    %6532 = vmatprep.subr.mxu0 0.0
    %6533 = vmatpush2.msra.mxu0 0.0
    %6534 = vmatprep.subr.mxu0 0.0
    %6535 = vmatpush2.msra.mxu0 0.0
    %6536 = vmatprep.subr.mxu0 0.0
    %6537 = vmatpush2.msra.mxu0 0.0
    %6538 = vmatprep.subr.mxu0 0.0
    %6539 = vmatpush2.msra.mxu0 0.0
    %6540 = vmatprep.subr.mxu0 0.0
    %6541 = vmatpush2.msra.mxu0 0.0
    %6542 = vmatprep.mubr.f32.mxu0 0.0
    %v6543 = vand.u32 %v6293, 4294901760
    %6544 = vmatmul.mubr.f32.gmra.mxu0 %v6543
    %v6545 = vpop.f32.mrf.mxu0
    %v6546 = vadd.f32 %v6395, %v6545
    %v6547 = vpop.f32.mrf.mxu0
    %6548 = vdwg.mxu0
    %6549 = vmatprep.subr.mxu0 0.0
    %v6550 = vand.u32 %v104, 4294901760
    %v6551 = vsub.f32 %v104, %v6550
    %6552 = vmatpush1.msra.mxu0 %v6551
    %6553 = vmatprep.subr.mxu0 0.0
    %v6554 = vand.u32 %v103, 4294901760
    %v6555 = vsub.f32 %v103, %v6554
    %6556 = vmatpush1.msra.mxu0 %v6555
    %6557 = vmatprep.subr.mxu0 0.0
    %v6558 = vand.u32 %v102, 4294901760
    %v6559 = vsub.f32 %v102, %v6558
    %6560 = vmatpush1.msra.mxu0 %v6559
    %6561 = vmatprep.subr.mxu0 0.0
    %v6562 = vand.u32 %v101, 4294901760
    %v6563 = vsub.f32 %v101, %v6562
    %6564 = vmatpush1.msra.mxu0 %v6563
    %6565 = vmatprep.subr.mxu0 0.0
    %v6566 = vand.u32 %v100, 4294901760
    %v6567 = vsub.f32 %v100, %v6566
    %6568 = vmatpush1.msra.mxu0 %v6567
    %6569 = vmatprep.subr.mxu0 0.0
    %v6570 = vand.u32 %v99, 4294901760
    %v6571 = vsub.f32 %v99, %v6570
    %6572 = vmatpush1.msra.mxu0 %v6571
    %6573 = vmatprep.subr.mxu0 0.0
    %v6574 = vand.u32 %v98, 4294901760
    %v6575 = vsub.f32 %v98, %v6574
    %6576 = vmatpush1.msra.mxu0 %v6575
    %6577 = vmatprep.subr.mxu0 0.0
    %v6578 = vand.u32 %v97, 4294901760
    %v6579 = vsub.f32 %v97, %v6578
    %6580 = vmatpush1.msra.mxu0 %v6579
    %6581 = vmatprep.subr.mxu0 0.0
    %v6582 = vand.u32 %v96, 4294901760
    %v6583 = vsub.f32 %v96, %v6582
    %6584 = vmatpush1.msra.mxu0 %v6583
    %6585 = vmatprep.subr.mxu0 0.0
    %v6586 = vand.u32 %v95, 4294901760
    %v6587 = vsub.f32 %v95, %v6586
    %6588 = vmatpush1.msra.mxu0 %v6587
    %6589 = vmatprep.subr.mxu0 0.0
    %v6590 = vand.u32 %v94, 4294901760
    %v6591 = vsub.f32 %v94, %v6590
    %6592 = vmatpush1.msra.mxu0 %v6591
    %6593 = vmatprep.subr.mxu0 0.0
    %v6594 = vand.u32 %v93, 4294901760
    %v6595 = vsub.f32 %v93, %v6594
    %6596 = vmatpush1.msra.mxu0 %v6595
    %6597 = vmatprep.subr.mxu0 0.0
    %v6598 = vand.u32 %v92, 4294901760
    %v6599 = vsub.f32 %v92, %v6598
    %6600 = vmatpush1.msra.mxu0 %v6599
    %6601 = vmatprep.subr.mxu0 0.0
    %v6602 = vand.u32 %v91, 4294901760
    %v6603 = vsub.f32 %v91, %v6602
    %6604 = vmatpush1.msra.mxu0 %v6603
    %6605 = vmatprep.subr.mxu0 0.0
    %v6606 = vand.u32 %v90, 4294901760
    %v6607 = vsub.f32 %v90, %v6606
    %6608 = vmatpush1.msra.mxu0 %v6607
    %6609 = vmatprep.subr.mxu0 0.0
    %v6610 = vand.u32 %v89, 4294901760
    %v6611 = vsub.f32 %v89, %v6610
    %6612 = vmatpush1.msra.mxu0 %v6611
    %6613 = vmatprep.subr.mxu0 0.0
    %6614 = vmatpush2.msra.mxu0 0.0
    %6615 = vmatprep.subr.mxu0 0.0
    %6616 = vmatpush2.msra.mxu0 0.0
    %6617 = vmatprep.subr.mxu0 0.0
    %6618 = vmatpush2.msra.mxu0 0.0
    %6619 = vmatprep.subr.mxu0 0.0
    %6620 = vmatpush2.msra.mxu0 0.0
    %6621 = vmatprep.subr.mxu0 0.0
    %6622 = vmatpush2.msra.mxu0 0.0
    %6623 = vmatprep.subr.mxu0 0.0
    %6624 = vmatpush2.msra.mxu0 0.0
    %6625 = vmatprep.subr.mxu0 0.0
    %6626 = vmatpush2.msra.mxu0 0.0
    %6627 = vmatprep.subr.mxu0 0.0
    %6628 = vmatpush2.msra.mxu0 0.0
    %6629 = vmatprep.subr.mxu0 0.0
    %6630 = vmatpush2.msra.mxu0 0.0
    %6631 = vmatprep.subr.mxu0 0.0
    %6632 = vmatpush2.msra.mxu0 0.0
    %6633 = vmatprep.subr.mxu0 0.0
    %6634 = vmatpush2.msra.mxu0 0.0
    %6635 = vmatprep.subr.mxu0 0.0
    %6636 = vmatpush2.msra.mxu0 0.0
    %6637 = vmatprep.subr.mxu0 0.0
    %6638 = vmatpush2.msra.mxu0 0.0
    %6639 = vmatprep.subr.mxu0 0.0
    %6640 = vmatpush2.msra.mxu0 0.0
    %6641 = vmatprep.subr.mxu0 0.0
    %6642 = vmatpush2.msra.mxu0 0.0
    %6643 = vmatprep.subr.mxu0 0.0
    %6644 = vmatpush2.msra.mxu0 0.0
    %6645 = vmatprep.mubr.f32.mxu0 0.0
    %v6646 = vand.u32 %v6293, 4294901760
    %v6647 = vsub.f32 %v6293, %v6646
    %6648 = vmatmul.mubr.f32.gmra.mxu0 %v6647
    %v6649 = vpop.f32.mrf.mxu0
    %v6650 = vadd.f32 %v6546, %v6649
    %v6651 = vpop.f32.mrf.mxu0
    %6652 = vdwg.mxu0
    %6653 = vmatprep.subr.mxu0 0.0
    %v6654 = vand.u32 %v104, 4294901760
    %6655 = vmatpush1.msra.mxu0 %v6654
    %6656 = vmatprep.subr.mxu0 0.0
    %v6657 = vand.u32 %v103, 4294901760
    %6658 = vmatpush1.msra.mxu0 %v6657
    %6659 = vmatprep.subr.mxu0 0.0
    %v6660 = vand.u32 %v102, 4294901760
    %6661 = vmatpush1.msra.mxu0 %v6660
    %6662 = vmatprep.subr.mxu0 0.0
    %v6663 = vand.u32 %v101, 4294901760
    %6664 = vmatpush1.msra.mxu0 %v6663
    %6665 = vmatprep.subr.mxu0 0.0
    %v6666 = vand.u32 %v100, 4294901760
    %6667 = vmatpush1.msra.mxu0 %v6666
    %6668 = vmatprep.subr.mxu0 0.0
    %v6669 = vand.u32 %v99, 4294901760
    %6670 = vmatpush1.msra.mxu0 %v6669
    %6671 = vmatprep.subr.mxu0 0.0
    %v6672 = vand.u32 %v98, 4294901760
    %6673 = vmatpush1.msra.mxu0 %v6672
    %6674 = vmatprep.subr.mxu0 0.0
    %v6675 = vand.u32 %v97, 4294901760
    %6676 = vmatpush1.msra.mxu0 %v6675
    %6677 = vmatprep.subr.mxu0 0.0
    %v6678 = vand.u32 %v96, 4294901760
    %6679 = vmatpush1.msra.mxu0 %v6678
    %6680 = vmatprep.subr.mxu0 0.0
    %v6681 = vand.u32 %v95, 4294901760
    %6682 = vmatpush1.msra.mxu0 %v6681
    %6683 = vmatprep.subr.mxu0 0.0
    %v6684 = vand.u32 %v94, 4294901760
    %6685 = vmatpush1.msra.mxu0 %v6684
    %6686 = vmatprep.subr.mxu0 0.0
    %v6687 = vand.u32 %v93, 4294901760
    %6688 = vmatpush1.msra.mxu0 %v6687
    %6689 = vmatprep.subr.mxu0 0.0
    %v6690 = vand.u32 %v92, 4294901760
    %6691 = vmatpush1.msra.mxu0 %v6690
    %6692 = vmatprep.subr.mxu0 0.0
    %v6693 = vand.u32 %v91, 4294901760
    %6694 = vmatpush1.msra.mxu0 %v6693
    %6695 = vmatprep.subr.mxu0 0.0
    %v6696 = vand.u32 %v90, 4294901760
    %6697 = vmatpush1.msra.mxu0 %v6696
    %6698 = vmatprep.subr.mxu0 0.0
    %v6699 = vand.u32 %v89, 4294901760
    %6700 = vmatpush1.msra.mxu0 %v6699
    %6701 = vmatprep.subr.mxu0 0.0
    %6702 = vmatpush2.msra.mxu0 0.0
    %6703 = vmatprep.subr.mxu0 0.0
    %6704 = vmatpush2.msra.mxu0 0.0
    %6705 = vmatprep.subr.mxu0 0.0
    %6706 = vmatpush2.msra.mxu0 0.0
    %6707 = vmatprep.subr.mxu0 0.0
    %6708 = vmatpush2.msra.mxu0 0.0
    %6709 = vmatprep.subr.mxu0 0.0
    %6710 = vmatpush2.msra.mxu0 0.0
    %6711 = vmatprep.subr.mxu0 0.0
    %6712 = vmatpush2.msra.mxu0 0.0
    %6713 = vmatprep.subr.mxu0 0.0
    %6714 = vmatpush2.msra.mxu0 0.0
    %6715 = vmatprep.subr.mxu0 0.0
    %6716 = vmatpush2.msra.mxu0 0.0
    %6717 = vmatprep.subr.mxu0 0.0
    %6718 = vmatpush2.msra.mxu0 0.0
    %6719 = vmatprep.subr.mxu0 0.0
    %6720 = vmatpush2.msra.mxu0 0.0
    %6721 = vmatprep.subr.mxu0 0.0
    %6722 = vmatpush2.msra.mxu0 0.0
    %6723 = vmatprep.subr.mxu0 0.0
    %6724 = vmatpush2.msra.mxu0 0.0
    %6725 = vmatprep.subr.mxu0 0.0
    %6726 = vmatpush2.msra.mxu0 0.0
    %6727 = vmatprep.subr.mxu0 0.0
    %6728 = vmatpush2.msra.mxu0 0.0
    %6729 = vmatprep.subr.mxu0 0.0
    %6730 = vmatpush2.msra.mxu0 0.0
    %6731 = vmatprep.subr.mxu0 0.0
    %6732 = vmatpush2.msra.mxu0 0.0
    %6733 = vmatprep.mubr.f32.mxu0 0.0
    %v6734 = vand.u32 %v6293, 4294901760
    %v6735 = vsub.f32 %v6293, %v6734
    %v6736 = vand.u32 %v6735, 4294901760
    %6737 = vmatmul.mubr.f32.gmra.mxu0 %v6736
    %v6738 = vpop.f32.mrf.mxu0
    %v6739 = vadd.f32 %v6650, %v6738
    %v6740 = vpop.f32.mrf.mxu0
    %6741 = vdwg.mxu0
    %6742 = vmatprep.subr.mxu0 0.0
    %v6743 = vand.u32 %v104, 4294901760
    %v6744 = vsub.f32 %v104, %v6743
    %v6745 = vand.u32 %v6744, 4294901760
    %6746 = vmatpush1.msra.mxu0 %v6745
    %6747 = vmatprep.subr.mxu0 0.0
    %v6748 = vand.u32 %v103, 4294901760
    %v6749 = vsub.f32 %v103, %v6748
    %v6750 = vand.u32 %v6749, 4294901760
    %6751 = vmatpush1.msra.mxu0 %v6750
    %6752 = vmatprep.subr.mxu0 0.0
    %v6753 = vand.u32 %v102, 4294901760
    %v6754 = vsub.f32 %v102, %v6753
    %v6755 = vand.u32 %v6754, 4294901760
    %6756 = vmatpush1.msra.mxu0 %v6755
    %6757 = vmatprep.subr.mxu0 0.0
    %v6758 = vand.u32 %v101, 4294901760
    %v6759 = vsub.f32 %v101, %v6758
    %v6760 = vand.u32 %v6759, 4294901760
    %6761 = vmatpush1.msra.mxu0 %v6760
    %6762 = vmatprep.subr.mxu0 0.0
    %v6763 = vand.u32 %v100, 4294901760
    %v6764 = vsub.f32 %v100, %v6763
    %v6765 = vand.u32 %v6764, 4294901760
    %6766 = vmatpush1.msra.mxu0 %v6765
    %6767 = vmatprep.subr.mxu0 0.0
    %v6768 = vand.u32 %v99, 4294901760
    %v6769 = vsub.f32 %v99, %v6768
    %v6770 = vand.u32 %v6769, 4294901760
    %6771 = vmatpush1.msra.mxu0 %v6770
    %6772 = vmatprep.subr.mxu0 0.0
    %v6773 = vand.u32 %v98, 4294901760
    %v6774 = vsub.f32 %v98, %v6773
    %v6775 = vand.u32 %v6774, 4294901760
    %6776 = vmatpush1.msra.mxu0 %v6775
    %6777 = vmatprep.subr.mxu0 0.0
    %v6778 = vand.u32 %v97, 4294901760
    %v6779 = vsub.f32 %v97, %v6778
    %v6780 = vand.u32 %v6779, 4294901760
    %6781 = vmatpush1.msra.mxu0 %v6780
    %6782 = vmatprep.subr.mxu0 0.0
    %v6783 = vand.u32 %v96, 4294901760
    %v6784 = vsub.f32 %v96, %v6783
    %v6785 = vand.u32 %v6784, 4294901760
    %6786 = vmatpush1.msra.mxu0 %v6785
    %6787 = vmatprep.subr.mxu0 0.0
    %v6788 = vand.u32 %v95, 4294901760
    %v6789 = vsub.f32 %v95, %v6788
    %v6790 = vand.u32 %v6789, 4294901760
    %6791 = vmatpush1.msra.mxu0 %v6790
    %6792 = vmatprep.subr.mxu0 0.0
    %v6793 = vand.u32 %v94, 4294901760
    %v6794 = vsub.f32 %v94, %v6793
    %v6795 = vand.u32 %v6794, 4294901760
    %6796 = vmatpush1.msra.mxu0 %v6795
    %6797 = vmatprep.subr.mxu0 0.0
    %v6798 = vand.u32 %v93, 4294901760
    %v6799 = vsub.f32 %v93, %v6798
    %v6800 = vand.u32 %v6799, 4294901760
    %6801 = vmatpush1.msra.mxu0 %v6800
    %6802 = vmatprep.subr.mxu0 0.0
    %v6803 = vand.u32 %v92, 4294901760
    %v6804 = vsub.f32 %v92, %v6803
    %v6805 = vand.u32 %v6804, 4294901760
    %6806 = vmatpush1.msra.mxu0 %v6805
    %6807 = vmatprep.subr.mxu0 0.0
    %v6808 = vand.u32 %v91, 4294901760
    %v6809 = vsub.f32 %v91, %v6808
    %v6810 = vand.u32 %v6809, 4294901760
    %6811 = vmatpush1.msra.mxu0 %v6810
    %6812 = vmatprep.subr.mxu0 0.0
    %v6813 = vand.u32 %v90, 4294901760
    %v6814 = vsub.f32 %v90, %v6813
    %v6815 = vand.u32 %v6814, 4294901760
    %6816 = vmatpush1.msra.mxu0 %v6815
    %6817 = vmatprep.subr.mxu0 0.0
    %v6818 = vand.u32 %v89, 4294901760
    %v6819 = vsub.f32 %v89, %v6818
    %v6820 = vand.u32 %v6819, 4294901760
    %6821 = vmatpush1.msra.mxu0 %v6820
    %6822 = vmatprep.subr.mxu0 0.0
    %6823 = vmatpush2.msra.mxu0 0.0
    %6824 = vmatprep.subr.mxu0 0.0
    %6825 = vmatpush2.msra.mxu0 0.0
    %6826 = vmatprep.subr.mxu0 0.0
    %6827 = vmatpush2.msra.mxu0 0.0
    %6828 = vmatprep.subr.mxu0 0.0
    %6829 = vmatpush2.msra.mxu0 0.0
    %6830 = vmatprep.subr.mxu0 0.0
    %6831 = vmatpush2.msra.mxu0 0.0
    %6832 = vmatprep.subr.mxu0 0.0
    %6833 = vmatpush2.msra.mxu0 0.0
    %6834 = vmatprep.subr.mxu0 0.0
    %6835 = vmatpush2.msra.mxu0 0.0
    %6836 = vmatprep.subr.mxu0 0.0
    %6837 = vmatpush2.msra.mxu0 0.0
    %6838 = vmatprep.subr.mxu0 0.0
    %6839 = vmatpush2.msra.mxu0 0.0
    %6840 = vmatprep.subr.mxu0 0.0
    %6841 = vmatpush2.msra.mxu0 0.0
    %6842 = vmatprep.subr.mxu0 0.0
    %6843 = vmatpush2.msra.mxu0 0.0
    %6844 = vmatprep.subr.mxu0 0.0
    %6845 = vmatpush2.msra.mxu0 0.0
    %6846 = vmatprep.subr.mxu0 0.0
    %6847 = vmatpush2.msra.mxu0 0.0
    %6848 = vmatprep.subr.mxu0 0.0
    %6849 = vmatpush2.msra.mxu0 0.0
    %6850 = vmatprep.subr.mxu0 0.0
    %6851 = vmatpush2.msra.mxu0 0.0
    %6852 = vmatprep.subr.mxu0 0.0
    %6853 = vmatpush2.msra.mxu0 0.0
    %6854 = vmatprep.mubr.f32.mxu0 0.0
    %v6855 = vand.u32 %v6293, 4294901760
    %6856 = vmatmul.mubr.f32.gmra.mxu0 %v6855
    %v6857 = vpop.f32.mrf.mxu0
    %v6858 = vadd.f32 %v6739, %v6857
    %v6859 = vpop.f32.mrf.mxu0
    %6860 = vdwg.mxu0
    %6861 = vmatprep.subr.mxu0 0.0
    %v6862 = vand.u32 %v104, 4294901760
    %6863 = vmatpush1.msra.mxu0 %v6862
    %6864 = vmatprep.subr.mxu0 0.0
    %v6865 = vand.u32 %v103, 4294901760
    %6866 = vmatpush1.msra.mxu0 %v6865
    %6867 = vmatprep.subr.mxu0 0.0
    %v6868 = vand.u32 %v102, 4294901760
    %6869 = vmatpush1.msra.mxu0 %v6868
    %6870 = vmatprep.subr.mxu0 0.0
    %v6871 = vand.u32 %v101, 4294901760
    %6872 = vmatpush1.msra.mxu0 %v6871
    %6873 = vmatprep.subr.mxu0 0.0
    %v6874 = vand.u32 %v100, 4294901760
    %6875 = vmatpush1.msra.mxu0 %v6874
    %6876 = vmatprep.subr.mxu0 0.0
    %v6877 = vand.u32 %v99, 4294901760
    %6878 = vmatpush1.msra.mxu0 %v6877
    %6879 = vmatprep.subr.mxu0 0.0
    %v6880 = vand.u32 %v98, 4294901760
    %6881 = vmatpush1.msra.mxu0 %v6880
    %6882 = vmatprep.subr.mxu0 0.0
    %v6883 = vand.u32 %v97, 4294901760
    %6884 = vmatpush1.msra.mxu0 %v6883
    %6885 = vmatprep.subr.mxu0 0.0
    %v6886 = vand.u32 %v96, 4294901760
    %6887 = vmatpush1.msra.mxu0 %v6886
    %6888 = vmatprep.subr.mxu0 0.0
    %v6889 = vand.u32 %v95, 4294901760
    %6890 = vmatpush1.msra.mxu0 %v6889
    %6891 = vmatprep.subr.mxu0 0.0
    %v6892 = vand.u32 %v94, 4294901760
    %6893 = vmatpush1.msra.mxu0 %v6892
    %6894 = vmatprep.subr.mxu0 0.0
    %v6895 = vand.u32 %v93, 4294901760
    %6896 = vmatpush1.msra.mxu0 %v6895
    %6897 = vmatprep.subr.mxu0 0.0
    %v6898 = vand.u32 %v92, 4294901760
    %6899 = vmatpush1.msra.mxu0 %v6898
    %6900 = vmatprep.subr.mxu0 0.0
    %v6901 = vand.u32 %v91, 4294901760
    %6902 = vmatpush1.msra.mxu0 %v6901
    %6903 = vmatprep.subr.mxu0 0.0
    %v6904 = vand.u32 %v90, 4294901760
    %6905 = vmatpush1.msra.mxu0 %v6904
    %6906 = vmatprep.subr.mxu0 0.0
    %v6907 = vand.u32 %v89, 4294901760
    %6908 = vmatpush1.msra.mxu0 %v6907
    %6909 = vmatprep.subr.mxu0 0.0
    %6910 = vmatpush2.msra.mxu0 0.0
    %6911 = vmatprep.subr.mxu0 0.0
    %6912 = vmatpush2.msra.mxu0 0.0
    %6913 = vmatprep.subr.mxu0 0.0
    %6914 = vmatpush2.msra.mxu0 0.0
    %6915 = vmatprep.subr.mxu0 0.0
    %6916 = vmatpush2.msra.mxu0 0.0
    %6917 = vmatprep.subr.mxu0 0.0
    %6918 = vmatpush2.msra.mxu0 0.0
    %6919 = vmatprep.subr.mxu0 0.0
    %6920 = vmatpush2.msra.mxu0 0.0
    %6921 = vmatprep.subr.mxu0 0.0
    %6922 = vmatpush2.msra.mxu0 0.0
    %6923 = vmatprep.subr.mxu0 0.0
    %6924 = vmatpush2.msra.mxu0 0.0
    %6925 = vmatprep.subr.mxu0 0.0
    %6926 = vmatpush2.msra.mxu0 0.0
    %6927 = vmatprep.subr.mxu0 0.0
    %6928 = vmatpush2.msra.mxu0 0.0
    %6929 = vmatprep.subr.mxu0 0.0
    %6930 = vmatpush2.msra.mxu0 0.0
    %6931 = vmatprep.subr.mxu0 0.0
    %6932 = vmatpush2.msra.mxu0 0.0
    %6933 = vmatprep.subr.mxu0 0.0
    %6934 = vmatpush2.msra.mxu0 0.0
    %6935 = vmatprep.subr.mxu0 0.0
    %6936 = vmatpush2.msra.mxu0 0.0
    %6937 = vmatprep.subr.mxu0 0.0
    %6938 = vmatpush2.msra.mxu0 0.0
    %6939 = vmatprep.subr.mxu0 0.0
    %6940 = vmatpush2.msra.mxu0 0.0
    %6941 = vmatprep.mubr.f32.mxu0 0.0
    %v6942 = vand.u32 %v6293, 4294901760
    %6943 = vmatmul.mubr.f32.gmra.mxu0 %v6942
    %v6944 = vpop.f32.mrf.mxu0
    %v6945 = vadd.f32 %v6858, %v6944
    %v6946 = vpop.f32.mrf.mxu0
    %6947 = vdwg.mxu0
    %6948 = vmatprep.subr.mxu0 0.0
    %v6949 = vand.u32 %v104, 4294901760
    %6950 = vmatpush1.msra.mxu0 %v6949
    %6951 = vmatprep.subr.mxu0 0.0
    %v6952 = vand.u32 %v103, 4294901760
    %6953 = vmatpush1.msra.mxu0 %v6952
    %6954 = vmatprep.subr.mxu0 0.0
    %v6955 = vand.u32 %v102, 4294901760
    %6956 = vmatpush1.msra.mxu0 %v6955
    %6957 = vmatprep.subr.mxu0 0.0
    %v6958 = vand.u32 %v101, 4294901760
    %6959 = vmatpush1.msra.mxu0 %v6958
    %6960 = vmatprep.subr.mxu0 0.0
    %v6961 = vand.u32 %v100, 4294901760
    %6962 = vmatpush1.msra.mxu0 %v6961
    %6963 = vmatprep.subr.mxu0 0.0
    %v6964 = vand.u32 %v99, 4294901760
    %6965 = vmatpush1.msra.mxu0 %v6964
    %6966 = vmatprep.subr.mxu0 0.0
    %v6967 = vand.u32 %v98, 4294901760
    %6968 = vmatpush1.msra.mxu0 %v6967
    %6969 = vmatprep.subr.mxu0 0.0
    %v6970 = vand.u32 %v97, 4294901760
    %6971 = vmatpush1.msra.mxu0 %v6970
    %6972 = vmatprep.subr.mxu0 0.0
    %v6973 = vand.u32 %v96, 4294901760
    %6974 = vmatpush1.msra.mxu0 %v6973
    %6975 = vmatprep.subr.mxu0 0.0
    %v6976 = vand.u32 %v95, 4294901760
    %6977 = vmatpush1.msra.mxu0 %v6976
    %6978 = vmatprep.subr.mxu0 0.0
    %v6979 = vand.u32 %v94, 4294901760
    %6980 = vmatpush1.msra.mxu0 %v6979
    %6981 = vmatprep.subr.mxu0 0.0
    %v6982 = vand.u32 %v93, 4294901760
    %6983 = vmatpush1.msra.mxu0 %v6982
    %6984 = vmatprep.subr.mxu0 0.0
    %v6985 = vand.u32 %v92, 4294901760
    %6986 = vmatpush1.msra.mxu0 %v6985
    %6987 = vmatprep.subr.mxu0 0.0
    %v6988 = vand.u32 %v91, 4294901760
    %6989 = vmatpush1.msra.mxu0 %v6988
    %6990 = vmatprep.subr.mxu0 0.0
    %v6991 = vand.u32 %v90, 4294901760
    %6992 = vmatpush1.msra.mxu0 %v6991
    %6993 = vmatprep.subr.mxu0 0.0
    %v6994 = vand.u32 %v89, 4294901760
    %6995 = vmatpush1.msra.mxu0 %v6994
    %6996 = vmatprep.subr.mxu0 0.0
    %6997 = vmatpush2.msra.mxu0 0.0
    %6998 = vmatprep.subr.mxu0 0.0
    %6999 = vmatpush2.msra.mxu0 0.0
    %7000 = vmatprep.subr.mxu0 0.0
    %7001 = vmatpush2.msra.mxu0 0.0
    %7002 = vmatprep.subr.mxu0 0.0
    %7003 = vmatpush2.msra.mxu0 0.0
    %7004 = vmatprep.subr.mxu0 0.0
    %7005 = vmatpush2.msra.mxu0 0.0
    %7006 = vmatprep.subr.mxu0 0.0
    %7007 = vmatpush2.msra.mxu0 0.0
    %7008 = vmatprep.subr.mxu0 0.0
    %7009 = vmatpush2.msra.mxu0 0.0
    %7010 = vmatprep.subr.mxu0 0.0
    %7011 = vmatpush2.msra.mxu0 0.0
    %7012 = vmatprep.subr.mxu0 0.0
    %7013 = vmatpush2.msra.mxu0 0.0
    %7014 = vmatprep.subr.mxu0 0.0
    %7015 = vmatpush2.msra.mxu0 0.0
    %7016 = vmatprep.subr.mxu0 0.0
    %7017 = vmatpush2.msra.mxu0 0.0
    %7018 = vmatprep.subr.mxu0 0.0
    %7019 = vmatpush2.msra.mxu0 0.0
    %7020 = vmatprep.subr.mxu0 0.0
    %7021 = vmatpush2.msra.mxu0 0.0
    %7022 = vmatprep.subr.mxu0 0.0
    %7023 = vmatpush2.msra.mxu0 0.0
    %7024 = vmatprep.subr.mxu0 0.0
    %7025 = vmatpush2.msra.mxu0 0.0
    %7026 = vmatprep.subr.mxu0 0.0
    %7027 = vmatpush2.msra.mxu0 0.0
    %7028 = vmatprep.mubr.f32.mxu0 0.0
    %v7029 = vand.u32 %v6306, 4294901760
    %v7030 = vsub.f32 %v6306, %v7029
    %v7031 = vand.u32 %v7030, 4294901760
    %v7032 = vsub.f32 %v7030, %v7031
    %v7033 = vand.u32 %v7032, 4294901760
    %7034 = vmatmul.mubr.f32.gmra.mxu0 %v7033
    %v7035 = vpop.f32.mrf.mxu0
    %v7036 = vadd.f32 0.0, %v7035
    %v7037 = vpop.f32.mrf.mxu0
    %7038 = vdwg.mxu0
    %7039 = vmatprep.subr.mxu0 0.0
    %v7040 = vand.u32 %v104, 4294901760
    %v7041 = vsub.f32 %v104, %v7040
    %v7042 = vand.u32 %v7041, 4294901760
    %v7043 = vsub.f32 %v7041, %v7042
    %v7044 = vand.u32 %v7043, 4294901760
    %7045 = vmatpush1.msra.mxu0 %v7044
    %7046 = vmatprep.subr.mxu0 0.0
    %v7047 = vand.u32 %v103, 4294901760
    %v7048 = vsub.f32 %v103, %v7047
    %v7049 = vand.u32 %v7048, 4294901760
    %v7050 = vsub.f32 %v7048, %v7049
    %v7051 = vand.u32 %v7050, 4294901760
    %7052 = vmatpush1.msra.mxu0 %v7051
    %7053 = vmatprep.subr.mxu0 0.0
    %v7054 = vand.u32 %v102, 4294901760
    %v7055 = vsub.f32 %v102, %v7054
    %v7056 = vand.u32 %v7055, 4294901760
    %v7057 = vsub.f32 %v7055, %v7056
    %v7058 = vand.u32 %v7057, 4294901760
    %7059 = vmatpush1.msra.mxu0 %v7058
    %7060 = vmatprep.subr.mxu0 0.0
    %v7061 = vand.u32 %v101, 4294901760
    %v7062 = vsub.f32 %v101, %v7061
    %v7063 = vand.u32 %v7062, 4294901760
    %v7064 = vsub.f32 %v7062, %v7063
    %v7065 = vand.u32 %v7064, 4294901760
    %7066 = vmatpush1.msra.mxu0 %v7065
    %7067 = vmatprep.subr.mxu0 0.0
    %v7068 = vand.u32 %v100, 4294901760
    %v7069 = vsub.f32 %v100, %v7068
    %v7070 = vand.u32 %v7069, 4294901760
    %v7071 = vsub.f32 %v7069, %v7070
    %v7072 = vand.u32 %v7071, 4294901760
    %7073 = vmatpush1.msra.mxu0 %v7072
    %7074 = vmatprep.subr.mxu0 0.0
    %v7075 = vand.u32 %v99, 4294901760
    %v7076 = vsub.f32 %v99, %v7075
    %v7077 = vand.u32 %v7076, 4294901760
    %v7078 = vsub.f32 %v7076, %v7077
    %v7079 = vand.u32 %v7078, 4294901760
    %7080 = vmatpush1.msra.mxu0 %v7079
    %7081 = vmatprep.subr.mxu0 0.0
    %v7082 = vand.u32 %v98, 4294901760
    %v7083 = vsub.f32 %v98, %v7082
    %v7084 = vand.u32 %v7083, 4294901760
    %v7085 = vsub.f32 %v7083, %v7084
    %v7086 = vand.u32 %v7085, 4294901760
    %7087 = vmatpush1.msra.mxu0 %v7086
    %7088 = vmatprep.subr.mxu0 0.0
    %v7089 = vand.u32 %v97, 4294901760
    %v7090 = vsub.f32 %v97, %v7089
    %v7091 = vand.u32 %v7090, 4294901760
    %v7092 = vsub.f32 %v7090, %v7091
    %v7093 = vand.u32 %v7092, 4294901760
    %7094 = vmatpush1.msra.mxu0 %v7093
    %7095 = vmatprep.subr.mxu0 0.0
    %v7096 = vand.u32 %v96, 4294901760
    %v7097 = vsub.f32 %v96, %v7096
    %v7098 = vand.u32 %v7097, 4294901760
    %v7099 = vsub.f32 %v7097, %v7098
    %v7100 = vand.u32 %v7099, 4294901760
    %7101 = vmatpush1.msra.mxu0 %v7100
    %7102 = vmatprep.subr.mxu0 0.0
    %v7103 = vand.u32 %v95, 4294901760
    %v7104 = vsub.f32 %v95, %v7103
    %v7105 = vand.u32 %v7104, 4294901760
    %v7106 = vsub.f32 %v7104, %v7105
    %v7107 = vand.u32 %v7106, 4294901760
    %7108 = vmatpush1.msra.mxu0 %v7107
    %7109 = vmatprep.subr.mxu0 0.0
    %v7110 = vand.u32 %v94, 4294901760
    %v7111 = vsub.f32 %v94, %v7110
    %v7112 = vand.u32 %v7111, 4294901760
    %v7113 = vsub.f32 %v7111, %v7112
    %v7114 = vand.u32 %v7113, 4294901760
    %7115 = vmatpush1.msra.mxu0 %v7114
    %7116 = vmatprep.subr.mxu0 0.0
    %v7117 = vand.u32 %v93, 4294901760
    %v7118 = vsub.f32 %v93, %v7117
    %v7119 = vand.u32 %v7118, 4294901760
    %v7120 = vsub.f32 %v7118, %v7119
    %v7121 = vand.u32 %v7120, 4294901760
    %7122 = vmatpush1.msra.mxu0 %v7121
    %7123 = vmatprep.subr.mxu0 0.0
    %v7124 = vand.u32 %v92, 4294901760
    %v7125 = vsub.f32 %v92, %v7124
    %v7126 = vand.u32 %v7125, 4294901760
    %v7127 = vsub.f32 %v7125, %v7126
    %v7128 = vand.u32 %v7127, 4294901760
    %7129 = vmatpush1.msra.mxu0 %v7128
    %7130 = vmatprep.subr.mxu0 0.0
    %v7131 = vand.u32 %v91, 4294901760
    %v7132 = vsub.f32 %v91, %v7131
    %v7133 = vand.u32 %v7132, 4294901760
    %v7134 = vsub.f32 %v7132, %v7133
    %v7135 = vand.u32 %v7134, 4294901760
    %7136 = vmatpush1.msra.mxu0 %v7135
    %7137 = vmatprep.subr.mxu0 0.0
    %v7138 = vand.u32 %v90, 4294901760
    %v7139 = vsub.f32 %v90, %v7138
    %v7140 = vand.u32 %v7139, 4294901760
    %v7141 = vsub.f32 %v7139, %v7140
    %v7142 = vand.u32 %v7141, 4294901760
    %7143 = vmatpush1.msra.mxu0 %v7142
    %7144 = vmatprep.subr.mxu0 0.0
    %v7145 = vand.u32 %v89, 4294901760
    %v7146 = vsub.f32 %v89, %v7145
    %v7147 = vand.u32 %v7146, 4294901760
    %v7148 = vsub.f32 %v7146, %v7147
    %v7149 = vand.u32 %v7148, 4294901760
    %7150 = vmatpush1.msra.mxu0 %v7149
    %7151 = vmatprep.subr.mxu0 0.0
    %7152 = vmatpush2.msra.mxu0 0.0
    %7153 = vmatprep.subr.mxu0 0.0
    %7154 = vmatpush2.msra.mxu0 0.0
    %7155 = vmatprep.subr.mxu0 0.0
    %7156 = vmatpush2.msra.mxu0 0.0
    %7157 = vmatprep.subr.mxu0 0.0
    %7158 = vmatpush2.msra.mxu0 0.0
    %7159 = vmatprep.subr.mxu0 0.0
    %7160 = vmatpush2.msra.mxu0 0.0
    %7161 = vmatprep.subr.mxu0 0.0
    %7162 = vmatpush2.msra.mxu0 0.0
    %7163 = vmatprep.subr.mxu0 0.0
    %7164 = vmatpush2.msra.mxu0 0.0
    %7165 = vmatprep.subr.mxu0 0.0
    %7166 = vmatpush2.msra.mxu0 0.0
    %7167 = vmatprep.subr.mxu0 0.0
    %7168 = vmatpush2.msra.mxu0 0.0
    %7169 = vmatprep.subr.mxu0 0.0
    %7170 = vmatpush2.msra.mxu0 0.0
    %7171 = vmatprep.subr.mxu0 0.0
    %7172 = vmatpush2.msra.mxu0 0.0
    %7173 = vmatprep.subr.mxu0 0.0
    %7174 = vmatpush2.msra.mxu0 0.0
    %7175 = vmatprep.subr.mxu0 0.0
    %7176 = vmatpush2.msra.mxu0 0.0
    %7177 = vmatprep.subr.mxu0 0.0
    %7178 = vmatpush2.msra.mxu0 0.0
    %7179 = vmatprep.subr.mxu0 0.0
    %7180 = vmatpush2.msra.mxu0 0.0
    %7181 = vmatprep.subr.mxu0 0.0
    %7182 = vmatpush2.msra.mxu0 0.0
    %7183 = vmatprep.mubr.f32.mxu0 0.0
    %v7184 = vand.u32 %v6306, 4294901760
    %7185 = vmatmul.mubr.f32.gmra.mxu0 %v7184
    %v7186 = vpop.f32.mrf.mxu0
    %v7187 = vadd.f32 %v7036, %v7186
    %v7188 = vpop.f32.mrf.mxu0
    %7189 = vdwg.mxu0
    %7190 = vmatprep.subr.mxu0 0.0
    %v7191 = vand.u32 %v104, 4294901760
    %v7192 = vsub.f32 %v104, %v7191
    %7193 = vmatpush1.msra.mxu0 %v7192
    %7194 = vmatprep.subr.mxu0 0.0
    %v7195 = vand.u32 %v103, 4294901760
    %v7196 = vsub.f32 %v103, %v7195
    %7197 = vmatpush1.msra.mxu0 %v7196
    %7198 = vmatprep.subr.mxu0 0.0
    %v7199 = vand.u32 %v102, 4294901760
    %v7200 = vsub.f32 %v102, %v7199
    %7201 = vmatpush1.msra.mxu0 %v7200
    %7202 = vmatprep.subr.mxu0 0.0
    %v7203 = vand.u32 %v101, 4294901760
    %v7204 = vsub.f32 %v101, %v7203
    %7205 = vmatpush1.msra.mxu0 %v7204
    %7206 = vmatprep.subr.mxu0 0.0
    %v7207 = vand.u32 %v100, 4294901760
    %v7208 = vsub.f32 %v100, %v7207
    %7209 = vmatpush1.msra.mxu0 %v7208
    %7210 = vmatprep.subr.mxu0 0.0
    %v7211 = vand.u32 %v99, 4294901760
    %v7212 = vsub.f32 %v99, %v7211
    %7213 = vmatpush1.msra.mxu0 %v7212
    %7214 = vmatprep.subr.mxu0 0.0
    %v7215 = vand.u32 %v98, 4294901760
    %v7216 = vsub.f32 %v98, %v7215
    %7217 = vmatpush1.msra.mxu0 %v7216
    %7218 = vmatprep.subr.mxu0 0.0
    %v7219 = vand.u32 %v97, 4294901760
    %v7220 = vsub.f32 %v97, %v7219
    %7221 = vmatpush1.msra.mxu0 %v7220
    %7222 = vmatprep.subr.mxu0 0.0
    %v7223 = vand.u32 %v96, 4294901760
    %v7224 = vsub.f32 %v96, %v7223
    %7225 = vmatpush1.msra.mxu0 %v7224
    %7226 = vmatprep.subr.mxu0 0.0
    %v7227 = vand.u32 %v95, 4294901760
    %v7228 = vsub.f32 %v95, %v7227
    %7229 = vmatpush1.msra.mxu0 %v7228
    %7230 = vmatprep.subr.mxu0 0.0
    %v7231 = vand.u32 %v94, 4294901760
    %v7232 = vsub.f32 %v94, %v7231
    %7233 = vmatpush1.msra.mxu0 %v7232
    %7234 = vmatprep.subr.mxu0 0.0
    %v7235 = vand.u32 %v93, 4294901760
    %v7236 = vsub.f32 %v93, %v7235
    %7237 = vmatpush1.msra.mxu0 %v7236
    %7238 = vmatprep.subr.mxu0 0.0
    %v7239 = vand.u32 %v92, 4294901760
    %v7240 = vsub.f32 %v92, %v7239
    %7241 = vmatpush1.msra.mxu0 %v7240
    %7242 = vmatprep.subr.mxu0 0.0
    %v7243 = vand.u32 %v91, 4294901760
    %v7244 = vsub.f32 %v91, %v7243
    %7245 = vmatpush1.msra.mxu0 %v7244
    %7246 = vmatprep.subr.mxu0 0.0
    %v7247 = vand.u32 %v90, 4294901760
    %v7248 = vsub.f32 %v90, %v7247
    %7249 = vmatpush1.msra.mxu0 %v7248
    %7250 = vmatprep.subr.mxu0 0.0
    %v7251 = vand.u32 %v89, 4294901760
    %v7252 = vsub.f32 %v89, %v7251
    %7253 = vmatpush1.msra.mxu0 %v7252
    %7254 = vmatprep.subr.mxu0 0.0
    %7255 = vmatpush2.msra.mxu0 0.0
    %7256 = vmatprep.subr.mxu0 0.0
    %7257 = vmatpush2.msra.mxu0 0.0
    %7258 = vmatprep.subr.mxu0 0.0
    %7259 = vmatpush2.msra.mxu0 0.0
    %7260 = vmatprep.subr.mxu0 0.0
    %7261 = vmatpush2.msra.mxu0 0.0
    %7262 = vmatprep.subr.mxu0 0.0
    %7263 = vmatpush2.msra.mxu0 0.0
    %7264 = vmatprep.subr.mxu0 0.0
    %7265 = vmatpush2.msra.mxu0 0.0
    %7266 = vmatprep.subr.mxu0 0.0
    %7267 = vmatpush2.msra.mxu0 0.0
    %7268 = vmatprep.subr.mxu0 0.0
    %7269 = vmatpush2.msra.mxu0 0.0
    %7270 = vmatprep.subr.mxu0 0.0
    %7271 = vmatpush2.msra.mxu0 0.0
    %7272 = vmatprep.subr.mxu0 0.0
    %7273 = vmatpush2.msra.mxu0 0.0
    %7274 = vmatprep.subr.mxu0 0.0
    %7275 = vmatpush2.msra.mxu0 0.0
    %7276 = vmatprep.subr.mxu0 0.0
    %7277 = vmatpush2.msra.mxu0 0.0
    %7278 = vmatprep.subr.mxu0 0.0
    %7279 = vmatpush2.msra.mxu0 0.0
    %7280 = vmatprep.subr.mxu0 0.0
    %7281 = vmatpush2.msra.mxu0 0.0
    %7282 = vmatprep.subr.mxu0 0.0
    %7283 = vmatpush2.msra.mxu0 0.0
    %7284 = vmatprep.subr.mxu0 0.0
    %7285 = vmatpush2.msra.mxu0 0.0
    %7286 = vmatprep.mubr.f32.mxu0 0.0
    %v7287 = vand.u32 %v6306, 4294901760
    %v7288 = vsub.f32 %v6306, %v7287
    %7289 = vmatmul.mubr.f32.gmra.mxu0 %v7288
    %v7290 = vpop.f32.mrf.mxu0
    %v7291 = vadd.f32 %v7187, %v7290
    %v7292 = vpop.f32.mrf.mxu0
    %7293 = vdwg.mxu0
    %7294 = vmatprep.subr.mxu0 0.0
    %v7295 = vand.u32 %v104, 4294901760
    %7296 = vmatpush1.msra.mxu0 %v7295
    %7297 = vmatprep.subr.mxu0 0.0
    %v7298 = vand.u32 %v103, 4294901760
    %7299 = vmatpush1.msra.mxu0 %v7298
    %7300 = vmatprep.subr.mxu0 0.0
    %v7301 = vand.u32 %v102, 4294901760
    %7302 = vmatpush1.msra.mxu0 %v7301
    %7303 = vmatprep.subr.mxu0 0.0
    %v7304 = vand.u32 %v101, 4294901760
    %7305 = vmatpush1.msra.mxu0 %v7304
    %7306 = vmatprep.subr.mxu0 0.0
    %v7307 = vand.u32 %v100, 4294901760
    %7308 = vmatpush1.msra.mxu0 %v7307
    %7309 = vmatprep.subr.mxu0 0.0
    %v7310 = vand.u32 %v99, 4294901760
    %7311 = vmatpush1.msra.mxu0 %v7310
    %7312 = vmatprep.subr.mxu0 0.0
    %v7313 = vand.u32 %v98, 4294901760
    %7314 = vmatpush1.msra.mxu0 %v7313
    %7315 = vmatprep.subr.mxu0 0.0
    %v7316 = vand.u32 %v97, 4294901760
    %7317 = vmatpush1.msra.mxu0 %v7316
    %7318 = vmatprep.subr.mxu0 0.0
    %v7319 = vand.u32 %v96, 4294901760
    %7320 = vmatpush1.msra.mxu0 %v7319
    %7321 = vmatprep.subr.mxu0 0.0
    %v7322 = vand.u32 %v95, 4294901760
    %7323 = vmatpush1.msra.mxu0 %v7322
    %7324 = vmatprep.subr.mxu0 0.0
    %v7325 = vand.u32 %v94, 4294901760
    %7326 = vmatpush1.msra.mxu0 %v7325
    %7327 = vmatprep.subr.mxu0 0.0
    %v7328 = vand.u32 %v93, 4294901760
    %7329 = vmatpush1.msra.mxu0 %v7328
    %7330 = vmatprep.subr.mxu0 0.0
    %v7331 = vand.u32 %v92, 4294901760
    %7332 = vmatpush1.msra.mxu0 %v7331
    %7333 = vmatprep.subr.mxu0 0.0
    %v7334 = vand.u32 %v91, 4294901760
    %7335 = vmatpush1.msra.mxu0 %v7334
    %7336 = vmatprep.subr.mxu0 0.0
    %v7337 = vand.u32 %v90, 4294901760
    %7338 = vmatpush1.msra.mxu0 %v7337
    %7339 = vmatprep.subr.mxu0 0.0
    %v7340 = vand.u32 %v89, 4294901760
    %7341 = vmatpush1.msra.mxu0 %v7340
    %7342 = vmatprep.subr.mxu0 0.0
    %7343 = vmatpush2.msra.mxu0 0.0
    %7344 = vmatprep.subr.mxu0 0.0
    %7345 = vmatpush2.msra.mxu0 0.0
    %7346 = vmatprep.subr.mxu0 0.0
    %7347 = vmatpush2.msra.mxu0 0.0
    %7348 = vmatprep.subr.mxu0 0.0
    %7349 = vmatpush2.msra.mxu0 0.0
    %7350 = vmatprep.subr.mxu0 0.0
    %7351 = vmatpush2.msra.mxu0 0.0
    %7352 = vmatprep.subr.mxu0 0.0
    %7353 = vmatpush2.msra.mxu0 0.0
    %7354 = vmatprep.subr.mxu0 0.0
    %7355 = vmatpush2.msra.mxu0 0.0
    %7356 = vmatprep.subr.mxu0 0.0
    %7357 = vmatpush2.msra.mxu0 0.0
    %7358 = vmatprep.subr.mxu0 0.0
    %7359 = vmatpush2.msra.mxu0 0.0
    %7360 = vmatprep.subr.mxu0 0.0
    %7361 = vmatpush2.msra.mxu0 0.0
    %7362 = vmatprep.subr.mxu0 0.0
    %7363 = vmatpush2.msra.mxu0 0.0
    %7364 = vmatprep.subr.mxu0 0.0
    %7365 = vmatpush2.msra.mxu0 0.0
    %7366 = vmatprep.subr.mxu0 0.0
    %7367 = vmatpush2.msra.mxu0 0.0
    %7368 = vmatprep.subr.mxu0 0.0
    %7369 = vmatpush2.msra.mxu0 0.0
    %7370 = vmatprep.subr.mxu0 0.0
    %7371 = vmatpush2.msra.mxu0 0.0
    %7372 = vmatprep.subr.mxu0 0.0
    %7373 = vmatpush2.msra.mxu0 0.0
    %7374 = vmatprep.mubr.f32.mxu0 0.0
    %v7375 = vand.u32 %v6306, 4294901760
    %v7376 = vsub.f32 %v6306, %v7375
    %v7377 = vand.u32 %v7376, 4294901760
    %7378 = vmatmul.mubr.f32.gmra.mxu0 %v7377
    %v7379 = vpop.f32.mrf.mxu0
    %v7380 = vadd.f32 %v7291, %v7379
    %v7381 = vpop.f32.mrf.mxu0
    %7382 = vdwg.mxu0
    %7383 = vmatprep.subr.mxu0 0.0
    %v7384 = vand.u32 %v104, 4294901760
    %v7385 = vsub.f32 %v104, %v7384
    %v7386 = vand.u32 %v7385, 4294901760
    %7387 = vmatpush1.msra.mxu0 %v7386
    %7388 = vmatprep.subr.mxu0 0.0
    %v7389 = vand.u32 %v103, 4294901760
    %v7390 = vsub.f32 %v103, %v7389
    %v7391 = vand.u32 %v7390, 4294901760
    %7392 = vmatpush1.msra.mxu0 %v7391
    %7393 = vmatprep.subr.mxu0 0.0
    %v7394 = vand.u32 %v102, 4294901760
    %v7395 = vsub.f32 %v102, %v7394
    %v7396 = vand.u32 %v7395, 4294901760
    %7397 = vmatpush1.msra.mxu0 %v7396
    %7398 = vmatprep.subr.mxu0 0.0
    %v7399 = vand.u32 %v101, 4294901760
    %v7400 = vsub.f32 %v101, %v7399
    %v7401 = vand.u32 %v7400, 4294901760
    %7402 = vmatpush1.msra.mxu0 %v7401
    %7403 = vmatprep.subr.mxu0 0.0
    %v7404 = vand.u32 %v100, 4294901760
    %v7405 = vsub.f32 %v100, %v7404
    %v7406 = vand.u32 %v7405, 4294901760
    %7407 = vmatpush1.msra.mxu0 %v7406
    %7408 = vmatprep.subr.mxu0 0.0
    %v7409 = vand.u32 %v99, 4294901760
    %v7410 = vsub.f32 %v99, %v7409
    %v7411 = vand.u32 %v7410, 4294901760
    %7412 = vmatpush1.msra.mxu0 %v7411
    %7413 = vmatprep.subr.mxu0 0.0
    %v7414 = vand.u32 %v98, 4294901760
    %v7415 = vsub.f32 %v98, %v7414
    %v7416 = vand.u32 %v7415, 4294901760
    %7417 = vmatpush1.msra.mxu0 %v7416
    %7418 = vmatprep.subr.mxu0 0.0
    %v7419 = vand.u32 %v97, 4294901760
    %v7420 = vsub.f32 %v97, %v7419
    %v7421 = vand.u32 %v7420, 4294901760
    %7422 = vmatpush1.msra.mxu0 %v7421
    %7423 = vmatprep.subr.mxu0 0.0
    %v7424 = vand.u32 %v96, 4294901760
    %v7425 = vsub.f32 %v96, %v7424
    %v7426 = vand.u32 %v7425, 4294901760
    %7427 = vmatpush1.msra.mxu0 %v7426
    %7428 = vmatprep.subr.mxu0 0.0
    %v7429 = vand.u32 %v95, 4294901760
    %v7430 = vsub.f32 %v95, %v7429
    %v7431 = vand.u32 %v7430, 4294901760
    %7432 = vmatpush1.msra.mxu0 %v7431
    %7433 = vmatprep.subr.mxu0 0.0
    %v7434 = vand.u32 %v94, 4294901760
    %v7435 = vsub.f32 %v94, %v7434
    %v7436 = vand.u32 %v7435, 4294901760
    %7437 = vmatpush1.msra.mxu0 %v7436
    %7438 = vmatprep.subr.mxu0 0.0
    %v7439 = vand.u32 %v93, 4294901760
    %v7440 = vsub.f32 %v93, %v7439
    %v7441 = vand.u32 %v7440, 4294901760
    %7442 = vmatpush1.msra.mxu0 %v7441
    %7443 = vmatprep.subr.mxu0 0.0
    %v7444 = vand.u32 %v92, 4294901760
    %v7445 = vsub.f32 %v92, %v7444
    %v7446 = vand.u32 %v7445, 4294901760
    %7447 = vmatpush1.msra.mxu0 %v7446
    %7448 = vmatprep.subr.mxu0 0.0
    %v7449 = vand.u32 %v91, 4294901760
    %v7450 = vsub.f32 %v91, %v7449
    %v7451 = vand.u32 %v7450, 4294901760
    %7452 = vmatpush1.msra.mxu0 %v7451
    %7453 = vmatprep.subr.mxu0 0.0
    %v7454 = vand.u32 %v90, 4294901760
    %v7455 = vsub.f32 %v90, %v7454
    %v7456 = vand.u32 %v7455, 4294901760
    %7457 = vmatpush1.msra.mxu0 %v7456
    %7458 = vmatprep.subr.mxu0 0.0
    %v7459 = vand.u32 %v89, 4294901760
    %v7460 = vsub.f32 %v89, %v7459
    %v7461 = vand.u32 %v7460, 4294901760
    %7462 = vmatpush1.msra.mxu0 %v7461
    %7463 = vmatprep.subr.mxu0 0.0
    %7464 = vmatpush2.msra.mxu0 0.0
    %7465 = vmatprep.subr.mxu0 0.0
    %7466 = vmatpush2.msra.mxu0 0.0
    %7467 = vmatprep.subr.mxu0 0.0
    %7468 = vmatpush2.msra.mxu0 0.0
    %7469 = vmatprep.subr.mxu0 0.0
    %7470 = vmatpush2.msra.mxu0 0.0
    %7471 = vmatprep.subr.mxu0 0.0
    %7472 = vmatpush2.msra.mxu0 0.0
    %7473 = vmatprep.subr.mxu0 0.0
    %7474 = vmatpush2.msra.mxu0 0.0
    %7475 = vmatprep.subr.mxu0 0.0
    %7476 = vmatpush2.msra.mxu0 0.0
    %7477 = vmatprep.subr.mxu0 0.0
    %7478 = vmatpush2.msra.mxu0 0.0
    %7479 = vmatprep.subr.mxu0 0.0
    %7480 = vmatpush2.msra.mxu0 0.0
    %7481 = vmatprep.subr.mxu0 0.0
    %7482 = vmatpush2.msra.mxu0 0.0
    %7483 = vmatprep.subr.mxu0 0.0
    %7484 = vmatpush2.msra.mxu0 0.0
    %7485 = vmatprep.subr.mxu0 0.0
    %7486 = vmatpush2.msra.mxu0 0.0
    %7487 = vmatprep.subr.mxu0 0.0
    %7488 = vmatpush2.msra.mxu0 0.0
    %7489 = vmatprep.subr.mxu0 0.0
    %7490 = vmatpush2.msra.mxu0 0.0
    %7491 = vmatprep.subr.mxu0 0.0
    %7492 = vmatpush2.msra.mxu0 0.0
    %7493 = vmatprep.subr.mxu0 0.0
    %7494 = vmatpush2.msra.mxu0 0.0
    %7495 = vmatprep.mubr.f32.mxu0 0.0
    %v7496 = vand.u32 %v6306, 4294901760
    %7497 = vmatmul.mubr.f32.gmra.mxu0 %v7496
    %v7498 = vpop.f32.mrf.mxu0
    %v7499 = vadd.f32 %v7380, %v7498
    %v7500 = vpop.f32.mrf.mxu0
    %7501 = vdwg.mxu0
    %7502 = vmatprep.subr.mxu0 0.0
    %v7503 = vand.u32 %v104, 4294901760
    %7504 = vmatpush1.msra.mxu0 %v7503
    %7505 = vmatprep.subr.mxu0 0.0
    %v7506 = vand.u32 %v103, 4294901760
    %7507 = vmatpush1.msra.mxu0 %v7506
    %7508 = vmatprep.subr.mxu0 0.0
    %v7509 = vand.u32 %v102, 4294901760
    %7510 = vmatpush1.msra.mxu0 %v7509
    %7511 = vmatprep.subr.mxu0 0.0
    %v7512 = vand.u32 %v101, 4294901760
    %7513 = vmatpush1.msra.mxu0 %v7512
    %7514 = vmatprep.subr.mxu0 0.0
    %v7515 = vand.u32 %v100, 4294901760
    %7516 = vmatpush1.msra.mxu0 %v7515
    %7517 = vmatprep.subr.mxu0 0.0
    %v7518 = vand.u32 %v99, 4294901760
    %7519 = vmatpush1.msra.mxu0 %v7518
    %7520 = vmatprep.subr.mxu0 0.0
    %v7521 = vand.u32 %v98, 4294901760
    %7522 = vmatpush1.msra.mxu0 %v7521
    %7523 = vmatprep.subr.mxu0 0.0
    %v7524 = vand.u32 %v97, 4294901760
    %7525 = vmatpush1.msra.mxu0 %v7524
    %7526 = vmatprep.subr.mxu0 0.0
    %v7527 = vand.u32 %v96, 4294901760
    %7528 = vmatpush1.msra.mxu0 %v7527
    %7529 = vmatprep.subr.mxu0 0.0
    %v7530 = vand.u32 %v95, 4294901760
    %7531 = vmatpush1.msra.mxu0 %v7530
    %7532 = vmatprep.subr.mxu0 0.0
    %v7533 = vand.u32 %v94, 4294901760
    %7534 = vmatpush1.msra.mxu0 %v7533
    %7535 = vmatprep.subr.mxu0 0.0
    %v7536 = vand.u32 %v93, 4294901760
    %7537 = vmatpush1.msra.mxu0 %v7536
    %7538 = vmatprep.subr.mxu0 0.0
    %v7539 = vand.u32 %v92, 4294901760
    %7540 = vmatpush1.msra.mxu0 %v7539
    %7541 = vmatprep.subr.mxu0 0.0
    %v7542 = vand.u32 %v91, 4294901760
    %7543 = vmatpush1.msra.mxu0 %v7542
    %7544 = vmatprep.subr.mxu0 0.0
    %v7545 = vand.u32 %v90, 4294901760
    %7546 = vmatpush1.msra.mxu0 %v7545
    %7547 = vmatprep.subr.mxu0 0.0
    %v7548 = vand.u32 %v89, 4294901760
    %7549 = vmatpush1.msra.mxu0 %v7548
    %7550 = vmatprep.subr.mxu0 0.0
    %7551 = vmatpush2.msra.mxu0 0.0
    %7552 = vmatprep.subr.mxu0 0.0
    %7553 = vmatpush2.msra.mxu0 0.0
    %7554 = vmatprep.subr.mxu0 0.0
    %7555 = vmatpush2.msra.mxu0 0.0
    %7556 = vmatprep.subr.mxu0 0.0
    %7557 = vmatpush2.msra.mxu0 0.0
    %7558 = vmatprep.subr.mxu0 0.0
    %7559 = vmatpush2.msra.mxu0 0.0
    %7560 = vmatprep.subr.mxu0 0.0
    %7561 = vmatpush2.msra.mxu0 0.0
    %7562 = vmatprep.subr.mxu0 0.0
    %7563 = vmatpush2.msra.mxu0 0.0
    %7564 = vmatprep.subr.mxu0 0.0
    %7565 = vmatpush2.msra.mxu0 0.0
    %7566 = vmatprep.subr.mxu0 0.0
    %7567 = vmatpush2.msra.mxu0 0.0
    %7568 = vmatprep.subr.mxu0 0.0
    %7569 = vmatpush2.msra.mxu0 0.0
    %7570 = vmatprep.subr.mxu0 0.0
    %7571 = vmatpush2.msra.mxu0 0.0
    %7572 = vmatprep.subr.mxu0 0.0
    %7573 = vmatpush2.msra.mxu0 0.0
    %7574 = vmatprep.subr.mxu0 0.0
    %7575 = vmatpush2.msra.mxu0 0.0
    %7576 = vmatprep.subr.mxu0 0.0
    %7577 = vmatpush2.msra.mxu0 0.0
    %7578 = vmatprep.subr.mxu0 0.0
    %7579 = vmatpush2.msra.mxu0 0.0
    %7580 = vmatprep.subr.mxu0 0.0
    %7581 = vmatpush2.msra.mxu0 0.0
    %7582 = vmatprep.mubr.f32.mxu0 0.0
    %v7583 = vand.u32 %v6306, 4294901760
    %7584 = vmatmul.mubr.f32.gmra.mxu0 %v7583
    %v7585 = vpop.f32.mrf.mxu0
    %v7586 = vadd.f32 %v7499, %v7585
    %v7587 = vpop.f32.mrf.mxu0
    %7588 = vdwg.mxu0
    %v7589 = vmul.f32 %v6945, 0.001953125
    %v7590 = vmul.f32 %v7586, 0.001953125
    %v7591 = vmul.f32 %v7589, %v7589
    %v7592 = vsub.f32 %v7590, %v7591
    %v7593 = vadd.f32 %v7592, 1e-05
    %v7594 = vrsqrt.pop %v7593
    %v7595 = vmul.f32 %v6283, %v7594
    %v7596 = vmul.f32 %v7589, %v7595
    %v7597 = vsub.f32 %v6284, %v7596
    %v7599 = vlaneseq
    %v7600 = vshrl.u32 %v7599, 7
    %v7601 = vsub.s32 0, %v7600
    %v7602 = vrot.slane %v7595, %v7601
    %v7604 = vmul.f32 %v6279, %v7602
    %v7605 = vmul.f32 %v6280, %v7602
    %v7606 = vmul.f32 %v6281, %v7602
    %v7607 = vmul.f32 %v6282, %v7602
    %v7609 = vlaneseq
    %v7610 = vshrl.u32 %v7609, 7
    %v7611 = vsub.s32 0, %v7610
    %v7612 = vrot.slane %v7597, %v7611
    %v7614 = vadd.f32 %v7604, %v7612
    %v7615 = vadd.f32 %v7605, %v7612
    %v7616 = vadd.f32 %v7606, %v7612
    %v7617 = vadd.f32 %v7607, %v7612
    %v7618 = vadd.f32 %v7614, %v85
    %v7619 = vadd.f32 %v7615, %v86
    %v7620 = vadd.f32 %v7616, %v87
    %v7621 = vadd.f32 %v7617, %v88
    %v7622 = vmax.f32 %v7618, 0.0
    %v7623 = vmax.f32 %v7619, 0.0
    %v7624 = vmax.f32 %v7620, 0.0
    %v7625 = vmax.f32 %v7621, 0.0
    %7626 = vst [vmem:[#allocation10] sm:$0xff] %v7622
    %7627 = vst [vmem:[#allocation10 + $0x8] sm:$0xff] %v7623
    %7628 = vst [vmem:[#allocation10 + $0x10] sm:$0xff] %v7624
    %7629 = vst [vmem:[#allocation10 + $0x18] sm:$0xff] %v7625
    // Predicated region
    $region50: #{tpu_custom_call.1} parent=1 // pred_check
      _
    $region51: #{tpu_custom_call.1} parent=1 // pred_check_branch
      %7631 = sbr.rel (0) target = $region53
    $region52: #{tpu_custom_call.1} parent=1 // pred_region
      %s7633 = ssub.s32 512, 512
      %7634 = vsyncadd [#allocation4], %s7633
      %s7635 = sshll.u32 [#allocation10], 4
      %s7636 = int_to_ptr.vmem [resolvable:$true] %s7635
      %7641 = dma.vmem_to_hbm [thread:$0]  %s7636, 512, %s8, [#allocation4], 128, 128, 8
    $region53: #{tpu_custom_call.1} parent=1 // pred_fallthru
      _
    // Predicated region
    $region54: #{tpu_custom_call.1} parent=1 // pred_check
      _
    $region55: #{tpu_custom_call.1} parent=1 // pred_check_branch
      %7643 = sbr.rel (0) target = $region57
    $region56: #{tpu_custom_call.1} parent=1 // pred_region
      %7644 = dma.done [#allocation4], 512
    $region57: #{tpu_custom_call.1} parent=1 // pred_fallthru
      _
    %7645 = vsyncpa [#allocation3], 1
    %7646 = vsyncpa [#allocation6], 1
    %7647 = vsyncpa [#allocation9], 1
    %7648 = vsyncpa [#allocation4], 1

</llo_original>
